<compile_context>
chip_gen: v7x
topology: tpu7x:2x2x1
jax: 0.10.0
libtpu: 0.0.40
codegen_flags: <defaults>
</compile_context>

<pallas_src>
import math
from functools import partial

import jax
import jax.numpy as jnp
from jax import lax
from jax.experimental import pallas as pl
from jax.experimental.pallas import tpu as pltpu

EPS = 1e-6           # LayerNorm(eps=1e-6); added to std (torch.std semantics)
NEG_INF = -1e9
VMEM_LIMIT = 48 * 1024 * 1024   # > 16/32 MiB scoped defaults, < v7x 64 MiB phys

_BUF1 = False        # resolved by _probe_buffered1() in __main__ (before jit)


# --------------------------- feature probe (safe) ----------------------------

def _probe_buffered1():
    """True iff this Pallas build supports pipeline_mode=pl.Buffered(1) on a
    grid-constant input (single-buffered weights).  Probed with a tiny real
    kernel + value check so an unsupported API can never break the kernels."""
    if not hasattr(pl, "Buffered"):
        return False
    try:
        def k(x_ref, w_ref, o_ref):
            o_ref[...] = x_ref[...] + w_ref[...]

        x = jnp.arange(16 * 128, dtype=jnp.float32).reshape(16, 128)
        w = jnp.ones((8, 128), jnp.float32)
        f = pl.pallas_call(
            k,
            out_shape=jax.ShapeDtypeStruct((16, 128), jnp.float32),
            grid=(2,),
            in_specs=[pl.BlockSpec((8, 128), lambda i: (i, 0)),
                      pl.BlockSpec((8, 128), lambda i: (0, 0),
                                   pipeline_mode=pl.Buffered(1))],
            out_specs=pl.BlockSpec((8, 128), lambda i: (i, 0)),
        )
        out = jax.block_until_ready(f(x, w))
        return bool(jnp.all(out == x + 1.0))
    except Exception:
        return False


def _const(shape):
    """BlockSpec for a grid-constant operand (weights / biases / LN params):
    all-zeros index map; single-buffered when supported (saves a whole extra
    weight buffer of VMEM per operand)."""
    imap = lambda *_: (0,) * len(shape)
    if _BUF1:
        return pl.BlockSpec(shape, imap, pipeline_mode=pl.Buffered(1))
    return pl.BlockSpec(shape, imap)


# ----------------------------- in-kernel helpers -----------------------------

def _layer_norm(x, a, b):
    """model.py LayerNorm: a*(x-mean)/(std_unbiased + eps) + b, in f32."""
    d = x.shape[-1]
    mean = jnp.mean(x, axis=-1, keepdims=True)
    xc = x - mean
    var = jnp.sum(xc * xc, axis=-1, keepdims=True) * (1.0 / (d - 1))
    std = jnp.sqrt(var)
    return a * xc * pl.reciprocal(std + EPS, approx=False) + b


def _split_heads(x2d, h, dk):
    # [S, h*dk] -> [h, S, dk]: static lane slices stacked on a new leading
    # (major) axis -- the minimal relayout needed for the head-batched dots.
    return jnp.stack([x2d[:, i * dk:(i + 1) * dk] for i in range(h)], axis=0)


def _attn_tail(q, k, v, bias2d, wo, bo, h):
    """All-head scaled-dot-product attention + output projection.

    q:      [TQ, D] f32  (Q rows for this query tile, bias added)
    k, v:   [Sk, D] f32  (K / V projections of the full key sequence)
    bias2d: [1|TQ, Sk] f32 additive mask bias (0 / -1e9), broadcast over heads
    wo:     [D, D] bf16,  bo: [1, D] f32
    """
    d = q.shape[-1]
    dk = d // h
    scale = jnp.float32(1.0 / math.sqrt(dk))            # compile-time constant

    qh = _split_heads(q.astype(jnp.bfloat16), h, dk)    # [h, TQ, dk] (1 cast)
    kh = _split_heads(k.astype(jnp.bfloat16), h, dk)    # [h, Sk, dk]
    vh = _split_heads(v.astype(jnp.bfloat16), h, dk)    # [h, Sk, dk]

    # One batched MXU contraction for all heads (no per-head drain/refill).
    s = jnp.einsum("hqd,hkd->hqk", qh, kh,
                   preferred_element_type=jnp.float32) * scale
    s = s + bias2d[None]                                 # one add, no selects
    s = s - jnp.max(s, axis=-1, keepdims=True)           # stable softmax
    p = jnp.exp(s)
    p = p * pl.reciprocal(jnp.sum(p, axis=-1, keepdims=True), approx=False)

    ctx = jnp.einsum("hqk,hkd->hqd", p.astype(jnp.bfloat16), vh,
                     preferred_element_type=jnp.float32)            # [h,TQ,dk]
    ctx = jnp.concatenate([ctx[i] for i in range(h)], axis=-1)      # [TQ, D]
    return jnp.dot(ctx.astype(jnp.bfloat16), wo,
                   preferred_element_type=jnp.float32) + bo


# ------------------------------- Pallas kernels -------------------------------

def _self_attn_kernel(*refs, h, tq, causal):
    """x + self_attn(norm(x)) for one (batch, query-tile) block.  The fused
    [D,3D] QKV GEMM over the full sequence runs once per batch element and is
    cached in a VMEM scratch across query tiles."""
    if causal:
        x_ref, lna, lnb, wqkv, bqkv, wo, bo, o_ref, qkv = refs
        bias_ref = None
    else:
        bias_ref, x_ref, lna, lnb, wqkv, bqkv, wo, bo, o_ref, qkv = refs
    s, d = x_ref.shape[1], x_ref.shape[2]
    qi = pl.program_id(1)

    @pl.when(qi == 0)                        # LN + fused QKV GEMM, once per b
    def _():
        y = _layer_norm(x_ref[0], lna[...], lnb[...])
        qkv[...] = jnp.dot(y.astype(jnp.bfloat16), wqkv[...],
                           preferred_element_type=jnp.float32) + bqkv[...]

    q0 = pl.multiple_of(qi * tq, tq)
    q = qkv[pl.ds(q0, tq), :][:, :d]         # [tq, D]
    k = qkv[:, d:2 * d]                      # [s, D]
    v = qkv[:, 2 * d:3 * d]                  # [s, D]

    if causal:                               # mask generated in-kernel: 0B DMA
        row = q0 + lax.broadcasted_iota(jnp.int32, (tq, s), 0)
        col = lax.broadcasted_iota(jnp.int32, (tq, s), 1)
        bias = jnp.where(col <= row, jnp.float32(0.0), jnp.float32(NEG_INF))
    else:
        bias = bias_ref[0]                   # [1|tq, s] additive bias

    out = _attn_tail(q, k, v, bias, wo[...], bo[...], h)
    o_ref[0] = x_ref[0, pl.ds(q0, tq), :] + out          # fused residual add


def _cross_attn_kernel(bias_ref, x_ref, mem_ref, lna, lnb, wq, bq, wkv, bkv,
                       wo, bo, o_ref, kv, *, h):
    """x + src_attn(norm(x), memory, memory) for one (batch, query-tile)
    block.  The fused [D,2D] KV GEMM over memory runs once per batch element."""
    @pl.when(pl.program_id(1) == 0)
    def _():
        kv[...] = jnp.dot(mem_ref[0].astype(jnp.bfloat16), wkv[...],
                          preferred_element_type=jnp.float32) + bkv[...]

    x = x_ref[0]                                          # [tq, D]
    d = x.shape[-1]
    y = _layer_norm(x, lna[...], lnb[...])
    q = jnp.dot(y.astype(jnp.bfloat16), wq[...],
                preferred_element_type=jnp.float32) + bq[...]
    out = _attn_tail(q, kv[:, :d], kv[:, d:2 * d], bias_ref[0],
                     wo[...], bo[...], h)
    o_ref[0] = x + out


def _ffn_kernel(x_ref, lna, lnb, w1, b1, w2, b2, *rest, apply_final_ln):
    """x + W2(relu(W1(norm(x)))) on a row tile; optionally followed by the
    decoder's final LayerNorm (folded into the last layer's FFN)."""
    if apply_final_ln:
        fa, fb, o_ref = rest
    else:
        (o_ref,) = rest
    x = x_ref[...]
    y = _layer_norm(x, lna[...], lnb[...])
    hmid = jnp.dot(y.astype(jnp.bfloat16), w1[...],
                   preferred_element_type=jnp.float32) + b1[...]
    hmid = jnp.maximum(hmid, 0.0)
    out = x + jnp.dot(hmid.astype(jnp.bfloat16), w2[...],
                      preferred_element_type=jnp.float32) + b2[...]
    if apply_final_ln:
        out = _layer_norm(out, fa[...], fb[...])
    o_ref[...] = out


# ------------------------------ Pallas wrappers -------------------------------

def _pick_q_tile(s):
    # Largest multiple-of-8 query tile (<=128) dividing S with >=2 tiles;
    # bounds the score tile to [h, TQ, Sk] and gives the pipeline work to
    # overlap.  Falls back to the full (tiny) sequence otherwise.
    for t in (128, 64, 32, 16, 8):
        if s % t == 0 and s // t >= 2:
            return t
    return s


def _pick_row_tile(m):
    # Largest multiple-of-8 row tile with >=4 grid steps (pipelining on each
    # of v7x's 2 TensorCores); else one full block.
    for t in (512, 256, 128, 64, 32, 16, 8):
        if m % t == 0 and m // t >= 4:
            return t
    return m


def _bias_spec(mq, sq, sk, tq):
    # Compact additive-mask-bias block: [B,1,Sk] padding masks stay [1,Sk];
    # [B,Sq,Sk] masks are row-tiled along the query-tile grid axis.
    if mq == 1:
        return pl.BlockSpec((1, 1, sk), lambda bi, qi: (bi, 0, 0))
    assert mq == sq, "mask second dim must be 1 or Sq"
    return pl.BlockSpec((1, tq, sk), lambda bi, qi: (bi, qi, 0))


def self_attn_sublayer(x, tgt_bias, p, h, *, causal):
    b, s, d = x.shape
    assert d % h == 0
    tq = _pick_q_tile(s)
    in_specs, args = [], []
    if not causal:
        in_specs.append(_bias_spec(tgt_bias.shape[1], s, s, tq))
        args.append(tgt_bias)
    in_specs += [
        pl.BlockSpec((1, s, d), lambda bi, qi: (bi, 0, 0)),  # full x (KV + rows)
        _const((1, d)), _const((1, d)),                      # LN a / b
        _const((d, 3 * d)), _const((1, 3 * d)),              # Wqkv (bf16) / bqkv
        _const((d, d)), _const((1, d)),                      # Wo (bf16) / bo
    ]
    args += [x, p["ln_a"], p["ln_b"], p["wqkv"], p["bqkv"], p["wo"], p["bo"]]
    return pl.pallas_call(
        partial(_self_attn_kernel, h=h, tq=tq, causal=causal),
        out_shape=jax.ShapeDtypeStruct((b, s, d), jnp.float32),
        grid=(b, s // tq),
        in_specs=in_specs,
        out_specs=pl.BlockSpec((1, tq, d), lambda bi, qi: (bi, qi, 0)),
        scratch_shapes=[pltpu.VMEM((s, 3 * d), jnp.float32)],  # QKV, once per b
        compiler_params=pltpu.CompilerParams(
            dimension_semantics=("parallel", "arbitrary"),
            vmem_limit_bytes=VMEM_LIMIT),
    )(*args)


def cross_attn_sublayer(x, memory, src_bias, p, h):
    b, sq, d = x.shape
    sk = memory.shape[1]
    assert d % h == 0
    tq = _pick_q_tile(sq)
    return pl.pallas_call(
        partial(_cross_attn_kernel, h=h),
        out_shape=jax.ShapeDtypeStruct((b, sq, d), jnp.float32),
        grid=(b, sq // tq),
        in_specs=[
            _bias_spec(src_bias.shape[1], sq, sk, tq),            # additive bias
            pl.BlockSpec((1, tq, d), lambda bi, qi: (bi, qi, 0)),  # x query tile
            pl.BlockSpec((1, sk, d), lambda bi, qi: (bi, 0, 0)),   # memory
            _const((1, d)), _const((1, d)),                        # LN a / b
            _const((d, d)), _const((1, d)),                        # Wq / bq
            _const((d, 2 * d)), _const((1, 2 * d)),                # Wkv / bkv
            _const((d, d)), _const((1, d)),                        # Wo / bo
        ],
        out_specs=pl.BlockSpec((1, tq, d), lambda bi, qi: (bi, qi, 0)),
        scratch_shapes=[pltpu.VMEM((sk, 2 * d), jnp.float32)],   # KV, once per b
        compiler_params=pltpu.CompilerParams(
            dimension_semantics=("parallel", "arbitrary"),
            vmem_limit_bytes=VMEM_LIMIT),
    )(src_bias, x, memory, p["ln_a"], p["ln_b"], p["wq"], p["bq"],
      p["wkv"], p["bkv"], p["wo"], p["bo"])


def ffn_sublayer(x, p, final_ln=None):
    b, s, d = x.shape
    dff = p["w1"].shape[1]
    x2 = x.reshape(b * s, d)
    m = b * s
    tm = _pick_row_tile(m)
    in_specs = [
        pl.BlockSpec((tm, d), lambda i: (i, 0)),
        _const((1, d)), _const((1, d)),
        _const((d, dff)), _const((1, dff)),
        _const((dff, d)), _const((1, d)),
    ]
    args = [x2, p["ln_a"], p["ln_b"], p["w1"], p["b1"], p["w2"], p["b2"]]
    if final_ln is not None:
        in_specs += [_const((1, d)), _const((1, d))]
        args += list(final_ln)
    out = pl.pallas_call(
        partial(_ffn_kernel, apply_final_ln=final_ln is not None),
        out_shape=jax.ShapeDtypeStruct((m, d), jnp.float32),
        grid=(m // tm,),
        in_specs=in_specs,
        out_specs=pl.BlockSpec((tm, d), lambda i: (i, 0)),
        compiler_params=pltpu.CompilerParams(
            dimension_semantics=("parallel",),
            vmem_limit_bytes=VMEM_LIMIT),
    )(*args)
    return out.reshape(b, s, d)


# -------------------------------- model glue ----------------------------------

def decoder_forward(params, x, memory, src_mask, tgt_mask, h,
                    tgt_is_causal=False):
    """Decoder.forward: N x DecoderLayer then LayerNorm (final norm is folded
    into the last layer's FFN kernel).  Masks become compact additive 0/-1e9
    biases once per forward; a causal tgt mask can instead be generated
    in-kernel (tgt_is_causal=True).  Dropout is identity (eval mode)."""
    layers = params["layers"]
    assert len(layers) >= 1
    src_bias = jnp.where(src_mask != 0, jnp.float32(0.0), jnp.float32(NEG_INF))
    tgt_bias = None if tgt_is_causal else jnp.where(
        tgt_mask != 0, jnp.float32(0.0), jnp.float32(NEG_INF))
    final_ln = (params["norm_a"], params["norm_b"])
    # TODO(synk): fusing all three sublayers of a layer into one pallas_call
    # would remove the remaining residual-stream HBM round-trips on v5e/v6e.
    for li, lp in enumerate(layers):
        x = self_attn_sublayer(x, tgt_bias, lp["self_attn"], h,
                               causal=tgt_is_causal)
        x = cross_attn_sublayer(x, memory, src_bias, lp["src_attn"], h)
        x = ffn_sublayer(x, lp["ff"],
                         final_ln=final_ln if li == len(layers) - 1 else None)
    return x


# ------------------------------ parameter init --------------------------------

def init_params(key, n_layers, d_model, d_ff):
    """Kernel-ready params: QKV / KV weights pre-fused and pre-cast to bf16
    (halves weight DMA, native MXU input); biases / LN params stay f32.
    NOTE: model.py's LayerNorm initializes BOTH a_2 and b_2 to ones -- kept
    exactly as in the provided spec."""

    def dense(k, din, dout):
        scale = 1.0 / math.sqrt(din)
        kw, kb = jax.random.split(k)
        w = jax.random.uniform(kw, (din, dout), jnp.float32, -scale, scale)
        b = jax.random.uniform(kb, (dout,), jnp.float32, -scale, scale)
        return w, b

    def ln_pair():
        return (jnp.ones((1, d_model), jnp.float32),
                jnp.ones((1, d_model), jnp.float32))

    def self_attn_params(k):
        ks = jax.random.split(k, 4)
        wq, bq = dense(ks[0], d_model, d_model)
        wk, bk = dense(ks[1], d_model, d_model)
        wv, bv = dense(ks[2], d_model, d_model)
        wo, bo = dense(ks[3], d_model, d_model)
        a, b = ln_pair()
        return dict(
            wqkv=jnp.concatenate([wq, wk, wv], axis=1).astype(jnp.bfloat16),
            bqkv=jnp.concatenate([bq, bk, bv]).reshape(1, 3 * d_model),
            wo=wo.astype(jnp.bfloat16), bo=bo.reshape(1, d_model),
            ln_a=a, ln_b=b)

    def cross_attn_params(k):
        ks = jax.random.split(k, 4)
        wq, bq = dense(ks[0], d_model, d_model)
        wk, bk = dense(ks[1], d_model, d_model)
        wv, bv = dense(ks[2], d_model, d_model)
        wo, bo = dense(ks[3], d_model, d_model)
        a, b = ln_pair()
        return dict(
            wq=wq.astype(jnp.bfloat16), bq=bq.reshape(1, d_model),
            wkv=jnp.concatenate([wk, wv], axis=1).astype(jnp.bfloat16),
            bkv=jnp.concatenate([bk, bv]).reshape(1, 2 * d_model),
            wo=wo.astype(jnp.bfloat16), bo=bo.reshape(1, d_model),
            ln_a=a, ln_b=b)

    def ff_params(k):
        k1, k2 = jax.random.split(k)
        w1, b1 = dense(k1, d_model, d_ff)
        w2, b2 = dense(k2, d_ff, d_model)
        a, b = ln_pair()
        return dict(w1=w1.astype(jnp.bfloat16), b1=b1.reshape(1, d_ff),
                    w2=w2.astype(jnp.bfloat16), b2=b2.reshape(1, d_model),
                    ln_a=a, ln_b=b)

    layers = []
    for lk in jax.random.split(key, n_layers):
        ks = jax.random.split(lk, 3)
        layers.append(dict(self_attn=self_attn_params(ks[0]),
                           src_attn=cross_attn_params(ks[1]),
                           ff=ff_params(ks[2])))
    return dict(layers=layers,
                norm_a=jnp.ones((1, d_model), jnp.float32),
                norm_b=jnp.ones((1, d_model), jnp.float32))


# ----------------------------------- main --------------------------------------

if __name__ == "__main__":
    _BUF1 = _probe_buffered1()     # enable single-buffered weights if supported

    # Small but lane-aligned demo shapes (D, d_ff multiples of 128 lanes).
    B, S_TGT, S_SRC = 2, 16, 16
    D_MODEL, D_FF, HEADS, N_LAYERS = 128, 256, 4, 2

    root = jax.random.PRNGKey(0)
    k_par, k_x, k_mem = jax.random.split(root, 3)

    params = init_params(k_par, N_LAYERS, D_MODEL, D_FF)
    x = jax.random.normal(k_x, (B, S_TGT, D_MODEL), jnp.float32)
    memory = jax.random.normal(k_mem, (B, S_SRC, D_MODEL), jnp.float32)

    # src_mask: all-ones [B,1,S_src]; tgt_mask: causal (subsequent) mask.
    src_mask = jnp.ones((B, 1, S_SRC), jnp.float32)
    tgt_mask = jnp.broadcast_to(
        jnp.tril(jnp.ones((S_TGT, S_TGT), jnp.float32))[None],
        (B, S_TGT, S_TGT))

    # Optimized path: causal mask generated in-kernel (no mask DMA at all).
    fwd_causal = jax.jit(partial(decoder_forward, h=HEADS, tgt_is_causal=True))
    # General path: arbitrary mask passed as a compact additive bias.
    fwd_masked = jax.jit(partial(decoder_forward, h=HEADS, tgt_is_causal=False))

    out = jax.block_until_ready(fwd_causal(params, x, memory, src_mask, tgt_mask))
    out_ref = jax.block_until_ready(fwd_masked(params, x, memory, src_mask, tgt_mask))

    assert out.shape == (B, S_TGT, D_MODEL)
    assert bool(jnp.all(jnp.isfinite(out)))
    # The in-kernel causal mask must match the explicit causal-mask path.
    assert bool(jnp.allclose(out, out_ref, atol=1e-4, rtol=1e-4))
    print("KERNEL_OK")
</pallas_src>

<mosaic_0001>
module attributes {stable_mosaic.version = 11 : i64} {
  func.func @k(%arg0: i32, %arg1: memref<8x128xf32, #tpu.memory_space<vmem>>, %arg2: memref<8x128xf32, #tpu.memory_space<vmem>>, %arg3: memref<8x128xf32, #tpu.memory_space<vmem>>) attributes {dimension_semantics = [#tpu.dimension_semantics<arbitrary>], iteration_bounds = array<i64: 2>, scalar_prefetch = 0 : i64, scratch_operands = 0 : i64, tpu.core_type = #tpu.core_type<tc>, window_params = [{transform_indices = @transform_0, window_bounds = array<i64: 8, 128>}, {pipeline_mode = #tpu.pipeline_mode<synchronous>, transform_indices = @transform_1, window_bounds = array<i64: 8, 128>}, {transform_indices = @transform_2, window_bounds = array<i64: 8, 128>}]} {
    %c0 = arith.constant 0 : index
    %c0_0 = arith.constant 0 : index
    %0 = vector.load %arg1[%c0, %c0_0] : memref<8x128xf32, #tpu.memory_space<vmem>>, vector<8x128xf32>
    %c0_1 = arith.constant 0 : index
    %c0_2 = arith.constant 0 : index
    %1 = vector.load %arg2[%c0_1, %c0_2] : memref<8x128xf32, #tpu.memory_space<vmem>>, vector<8x128xf32>
    %2 = arith.addf %0, %1 : vector<8x128xf32>
    %c0_3 = arith.constant 0 : index
    %c0_4 = arith.constant 0 : index
    %3 = vector.load %arg3[%c0_3, %c0_4] : memref<8x128xf32, #tpu.memory_space<vmem>>, vector<8x128xf32>
    tpu.vector_store %arg3[%c0_3, %c0_4], %2 {strides = array<i32>} : memref<8x128xf32, #tpu.memory_space<vmem>>, vector<8x128xf32>,
    return
  }
  func.func @transform_0(%arg0: i32) -> (i32, i32) {
    %c0_i32 = arith.constant 0 : i32
    %c0_i32_0 = arith.constant 0 : i32
    return %arg0, %c0_i32 : i32, i32
  }
  func.func @transform_1(%arg0: i32) -> (i32, i32) {
    %c0_i32 = arith.constant 0 : i32
    %c0_i32_0 = arith.constant 0 : i32
    %c0_i32_1 = arith.constant 0 : i32
    return %c0_i32, %c0_i32_0 : i32, i32
  }
  func.func @transform_2(%arg0: i32) -> (i32, i32) {
    %c0_i32 = arith.constant 0 : i32
    %c0_i32_0 = arith.constant 0 : i32
    return %arg0, %c0_i32 : i32, i32
  }
}

module attributes {stable_mosaic.version = 11 : i64} {
  func.func @_ffn_kernel(%arg0: i32, %arg1: memref<8x128xf32, #tpu.memory_space<vmem>>, %arg2: memref<1x128xf32, #tpu.memory_space<vmem>>, %arg3: memref<1x128xf32, #tpu.memory_space<vmem>>, %arg4: memref<128x256xbf16, #tpu.memory_space<vmem>>, %arg5: memref<1x256xf32, #tpu.memory_space<vmem>>, %arg6: memref<256x128xbf16, #tpu.memory_space<vmem>>, %arg7: memref<1x128xf32, #tpu.memory_space<vmem>>, %arg8: memref<8x128xf32, #tpu.memory_space<vmem>>) attributes {dimension_semantics = [#tpu.dimension_semantics<parallel>], iteration_bounds = array<i64: 4>, scalar_prefetch = 0 : i64, scratch_operands = 0 : i64, tpu.core_type = #tpu.core_type<tc>, window_params = [{transform_indices = @transform_0, window_bounds = array<i64: 8, 128>}, {pipeline_mode = #tpu.pipeline_mode<synchronous>, transform_indices = @transform_1, window_bounds = array<i64: 1, 128>}, {pipeline_mode = #tpu.pipeline_mode<synchronous>, transform_indices = @transform_2, window_bounds = array<i64: 1, 128>}, {pipeline_mode = #tpu.pipeline_mode<synchronous>, transform_indices = @transform_3, window_bounds = array<i64: 128, 256>}, {pipeline_mode = #tpu.pipeline_mode<synchronous>, transform_indices = @transform_4, window_bounds = array<i64: 1, 256>}, {pipeline_mode = #tpu.pipeline_mode<synchronous>, transform_indices = @transform_5, window_bounds = array<i64: 256, 128>}, {pipeline_mode = #tpu.pipeline_mode<synchronous>, transform_indices = @transform_6, window_bounds = array<i64: 1, 128>}, {transform_indices = @transform_7, window_bounds = array<i64: 8, 128>}]} {
    %c0 = arith.constant 0 : index
    %c0_0 = arith.constant 0 : index
    %0 = vector.load %arg1[%c0, %c0_0] : memref<8x128xf32, #tpu.memory_space<vmem>>, vector<8x128xf32>
    %c0_1 = arith.constant 0 : index
    %c0_2 = arith.constant 0 : index
    %1 = vector.load %arg2[%c0_1, %c0_2] : memref<1x128xf32, #tpu.memory_space<vmem>>, vector<1x128xf32>
    %c0_3 = arith.constant 0 : index
    %c0_4 = arith.constant 0 : index
    %2 = vector.load %arg3[%c0_3, %c0_4] : memref<1x128xf32, #tpu.memory_space<vmem>>, vector<1x128xf32>
    %cst = arith.constant dense<0.000000e+00> : vector<8xf32>
    %3 = vector.multi_reduction <add>, %0, %cst [1] : vector<8x128xf32> to vector<8xf32>
    %4 = vector.shape_cast %3 : vector<8xf32> to vector<8x1xf32>
    %cst_5 = arith.constant 1.280000e+02 : f32
    %5 = vector.broadcast %cst_5 : f32 to vector<8x1xf32>
    %6 = arith.divf %4, %5 : vector<8x1xf32>
    %7 = vector.broadcast %6 : vector<8x1xf32> to vector<8x128xf32>
    %8 = arith.subf %0, %7 : vector<8x128xf32>
    %9 = arith.mulf %8, %8 : vector<8x128xf32>
    %cst_6 = arith.constant dense<0.000000e+00> : vector<8xf32>
    %10 = vector.multi_reduction <add>, %9, %cst_6 [1] : vector<8x128xf32> to vector<8xf32>
    %11 = vector.shape_cast %10 : vector<8xf32> to vector<8x1xf32>
    %cst_7 = arith.constant 0.00787401571 : f32
    %12 = vector.broadcast %cst_7 : f32 to vector<8x1xf32>
    %13 = arith.mulf %11, %12 : vector<8x1xf32>
    %14 = math.sqrt %13 : vector<8x1xf32>
    %15 = vector.broadcast %1 : vector<1x128xf32> to vector<8x128xf32>
    %16 = arith.mulf %15, %8 : vector<8x128xf32>
    %cst_8 = arith.constant 9.99999997E-7 : f32
    %17 = vector.broadcast %cst_8 : f32 to vector<8x1xf32>
    %18 = arith.addf %14, %17 : vector<8x1xf32>
    %19 = tpu.reciprocal %18 : vector<8x1xf32> -> vector<8x1xf32>
    %20 = vector.broadcast %19 : vector<8x1xf32> to vector<8x128xf32>
    %21 = arith.mulf %16, %20 : vector<8x128xf32>
    %22 = vector.broadcast %2 : vector<1x128xf32> to vector<8x128xf32>
    %23 = arith.addf %21, %22 : vector<8x128xf32>
    %24 = arith.truncf %23 : vector<8x128xf32> to vector<8x128xbf16>
    %c0_9 = arith.constant 0 : index
    %c0_10 = arith.constant 0 : index
    %25 = vector.load %arg4[%c0_9, %c0_10] : memref<128x256xbf16, #tpu.memory_space<vmem>>, vector<128x256xbf16>
    %cst_11 = arith.constant dense<0.000000e+00> : vector<8x256xf32>
    %26 = tpu.matmul %24, %25, %cst_11 {dimension_numbers = #tpu.dot_dimension_numbers<[1], [0], [0], [1], [0, 0, 1, 1], [], []>} : vector<8x128xbf16>, vector<128x256xbf16>, vector<8x256xf32> -> vector<8x256xf32>
    %c0_12 = arith.constant 0 : index
    %c0_13 = arith.constant 0 : index
    %27 = vector.load %arg5[%c0_12, %c0_13] : memref<1x256xf32, #tpu.memory_space<vmem>>, vector<1x256xf32>
    %28 = vector.broadcast %27 : vector<1x256xf32> to vector<8x256xf32>
    %29 = arith.addf %26, %28 : vector<8x256xf32>
    %cst_14 = arith.constant 0.000000e+00 : f32
    %30 = vector.broadcast %cst_14 : f32 to vector<8x256xf32>
    %31 = arith.maximumf %29, %30 : vector<8x256xf32>
    %32 = arith.truncf %31 : vector<8x256xf32> to vector<8x256xbf16>
    %c0_15 = arith.constant 0 : index
    %c0_16 = arith.constant 0 : index
    %33 = vector.load %arg6[%c0_15, %c0_16] : memref<256x128xbf16, #tpu.memory_space<vmem>>, vector<256x128xbf16>
    %cst_17 = arith.constant dense<0.000000e+00> : vector<8x128xf32>
    %34 = tpu.matmul %32, %33, %cst_17 {dimension_numbers = #tpu.dot_dimension_numbers<[1], [0], [0], [1], [0, 0, 1, 1], [], []>} : vector<8x256xbf16>, vector<256x128xbf16>, vector<8x128xf32> -> vector<8x128xf32>
    %35 = arith.addf %0, %34 : vector<8x128xf32>
    %c0_18 = arith.constant 0 : index
    %c0_19 = arith.constant 0 : index
    %36 = vector.load %arg7[%c0_18, %c0_19] : memref<1x128xf32, #tpu.memory_space<vmem>>, vector<1x128xf32>
    %37 = vector.broadcast %36 : vector<1x128xf32> to vector<8x128xf32>
    %38 = arith.addf %35, %37 : vector<8x128xf32>
    %c0_20 = arith.constant 0 : index
    %c0_21 = arith.constant 0 : index
    %39 = vector.load %arg8[%c0_20, %c0_21] : memref<8x128xf32, #tpu.memory_space<vmem>>, vector<8x128xf32>
    tpu.vector_store %arg8[%c0_20, %c0_21], %38 {strides = array<i32>} : memref<8x128xf32, #tpu.memory_space<vmem>>, vector<8x128xf32>,
    return
  }
  func.func @transform_0(%arg0: i32) -> (i32, i32) {
    %c0_i32 = arith.constant 0 : i32
    %c0_i32_0 = arith.constant 0 : i32
    return %arg0, %c0_i32 : i32, i32
  }
  func.func @transform_1(%arg0: i32) -> (i32, i32) {
    %c0_i32 = arith.constant 0 : i32
    %c0_i32_0 = arith.constant 0 : i32
    %c0_i32_1 = arith.constant 0 : i32
    return %c0_i32, %c0_i32_0 : i32, i32
  }
  func.func @transform_2(%arg0: i32) -> (i32, i32) {
    %c0_i32 = arith.constant 0 : i32
    %c0_i32_0 = arith.constant 0 : i32
    %c0_i32_1 = arith.constant 0 : i32
    return %c0_i32, %c0_i32_0 : i32, i32
  }
  func.func @transform_3(%arg0: i32) -> (i32, i32) {
    %c0_i32 = arith.constant 0 : i32
    %c0_i32_0 = arith.constant 0 : i32
    %c0_i32_1 = arith.constant 0 : i32
    return %c0_i32, %c0_i32_0 : i32, i32
  }
  func.func @transform_4(%arg0: i32) -> (i32, i32) {
    %c0_i32 = arith.constant 0 : i32
    %c0_i32_0 = arith.constant 0 : i32
    %c0_i32_1 = arith.constant 0 : i32
    return %c0_i32, %c0_i32_0 : i32, i32
  }
  func.func @transform_5(%arg0: i32) -> (i32, i32) {
    %c0_i32 = arith.constant 0 : i32
    %c0_i32_0 = arith.constant 0 : i32
    %c0_i32_1 = arith.constant 0 : i32
    return %c0_i32, %c0_i32_0 : i32, i32
  }
  func.func @transform_6(%arg0: i32) -> (i32, i32) {
    %c0_i32 = arith.constant 0 : i32
    %c0_i32_0 = arith.constant 0 : i32
    %c0_i32_1 = arith.constant 0 : i32
    return %c0_i32, %c0_i32_0 : i32, i32
  }
  func.func @transform_7(%arg0: i32) -> (i32, i32) {
    %c0_i32 = arith.constant 0 : i32
    %c0_i32_0 = arith.constant 0 : i32
    return %arg0, %c0_i32 : i32, i32
  }
}

module attributes {stable_mosaic.version = 11 : i64} {
  func.func @_self_attn_kernel(%arg0: i32, %arg1: i32, %arg2: memref<1x16x128xf32, #tpu.memory_space<vmem>>, %arg3: memref<1x128xf32, #tpu.memory_space<vmem>>, %arg4: memref<1x128xf32, #tpu.memory_space<vmem>>, %arg5: memref<128x384xbf16, #tpu.memory_space<vmem>>, %arg6: memref<1x384xf32, #tpu.memory_space<vmem>>, %arg7: memref<128x128xbf16, #tpu.memory_space<vmem>>, %arg8: memref<1x128xf32, #tpu.memory_space<vmem>>, %arg9: memref<1x8x128xf32, #tpu.memory_space<vmem>>, %arg10: memref<16x384xf32, #tpu.memory_space<vmem>>) attributes {dimension_semantics = [#tpu.dimension_semantics<parallel>, #tpu.dimension_semantics<arbitrary>], iteration_bounds = array<i64: 2, 2>, scalar_prefetch = 0 : i64, scratch_operands = 1 : i64, tpu.core_type = #tpu.core_type<tc>, window_params = [{transform_indices = @transform_0, window_bounds = array<i64: 1, 16, 128>}, {pipeline_mode = #tpu.pipeline_mode<synchronous>, transform_indices = @transform_1, window_bounds = array<i64: 1, 128>}, {pipeline_mode = #tpu.pipeline_mode<synchronous>, transform_indices = @transform_2, window_bounds = array<i64: 1, 128>}, {pipeline_mode = #tpu.pipeline_mode<synchronous>, transform_indices = @transform_3, window_bounds = array<i64: 128, 384>}, {pipeline_mode = #tpu.pipeline_mode<synchronous>, transform_indices = @transform_4, window_bounds = array<i64: 1, 384>}, {pipeline_mode = #tpu.pipeline_mode<synchronous>, transform_indices = @transform_5, window_bounds = array<i64: 128, 128>}, {pipeline_mode = #tpu.pipeline_mode<synchronous>, transform_indices = @transform_6, window_bounds = array<i64: 1, 128>}, {transform_indices = @transform_7, window_bounds = array<i64: 1, 8, 128>}]} {
    %c0_i32 = arith.constant 0 : i32
    %0 = arith.cmpi eq, %arg1, %c0_i32 : i32
    %1 = arith.extui %0 : i1 to i32
    %c0_i32_0 = arith.constant 0 : i32
    %2 = arith.cmpi ne, %1, %c0_i32_0 : i32
    scf.if %2 {
      %c0_19 = arith.constant 0 : index
      %c0_20 = arith.constant 0 : index
      %c0_21 = arith.constant 0 : index
      %88 = vector.load %arg2[%c0_19, %c0_20, %c0_21] : memref<1x16x128xf32, #tpu.memory_space<vmem>>, vector<1x16x128xf32>
      %89 = vector.shape_cast %88 : vector<1x16x128xf32> to vector<16x128xf32>
      %c0_22 = arith.constant 0 : index
      %c0_23 = arith.constant 0 : index
      %90 = vector.load %arg3[%c0_22, %c0_23] : memref<1x128xf32, #tpu.memory_space<vmem>>, vector<1x128xf32>
      %c0_24 = arith.constant 0 : index
      %c0_25 = arith.constant 0 : index
      %91 = vector.load %arg4[%c0_24, %c0_25] : memref<1x128xf32, #tpu.memory_space<vmem>>, vector<1x128xf32>
      %cst_26 = arith.constant dense<0.000000e+00> : vector<16xf32>
      %92 = vector.multi_reduction <add>, %89, %cst_26 [1] : vector<16x128xf32> to vector<16xf32>
      %93 = vector.shape_cast %92 : vector<16xf32> to vector<16x1xf32>
      %cst_27 = arith.constant 1.280000e+02 : f32
      %94 = vector.broadcast %cst_27 : f32 to vector<16x1xf32>
      %95 = arith.divf %93, %94 : vector<16x1xf32>
      %96 = vector.broadcast %95 : vector<16x1xf32> to vector<16x128xf32>
      %97 = arith.subf %89, %96 : vector<16x128xf32>
      %98 = arith.mulf %97, %97 : vector<16x128xf32>
      %cst_28 = arith.constant dense<0.000000e+00> : vector<16xf32>
      %99 = vector.multi_reduction <add>, %98, %cst_28 [1] : vector<16x128xf32> to vector<16xf32>
      %100 = vector.shape_cast %99 : vector<16xf32> to vector<16x1xf32>
      %cst_29 = arith.constant 0.00787401571 : f32
      %101 = vector.broadcast %cst_29 : f32 to vector<16x1xf32>
      %102 = arith.mulf %100, %101 : vector<16x1xf32>
      %103 = math.sqrt %102 : vector<16x1xf32>
      %104 = vector.broadcast %90 : vector<1x128xf32> to vector<16x128xf32>
      %105 = arith.mulf %104, %97 : vector<16x128xf32>
      %cst_30 = arith.constant 9.99999997E-7 : f32
      %106 = vector.broadcast %cst_30 : f32 to vector<16x1xf32>
      %107 = arith.addf %103, %106 : vector<16x1xf32>
      %108 = tpu.reciprocal %107 : vector<16x1xf32> -> vector<16x1xf32>
      %109 = vector.broadcast %108 : vector<16x1xf32> to vector<16x128xf32>
      %110 = arith.mulf %105, %109 : vector<16x128xf32>
      %111 = vector.broadcast %91 : vector<1x128xf32> to vector<16x128xf32>
      %112 = arith.addf %110, %111 : vector<16x128xf32>
      %113 = arith.truncf %112 : vector<16x128xf32> to vector<16x128xbf16>
      %c0_31 = arith.constant 0 : index
      %c0_32 = arith.constant 0 : index
      %114 = vector.load %arg5[%c0_31, %c0_32] : memref<128x384xbf16, #tpu.memory_space<vmem>>, vector<128x384xbf16>
      %cst_33 = arith.constant dense<0.000000e+00> : vector<16x384xf32>
      %115 = tpu.matmul %113, %114, %cst_33 {dimension_numbers = #tpu.dot_dimension_numbers<[1], [0], [0], [1], [0, 0, 1, 1], [], []>} : vector<16x128xbf16>, vector<128x384xbf16>, vector<16x384xf32> -> vector<16x384xf32>
      %c0_34 = arith.constant 0 : index
      %c0_35 = arith.constant 0 : index
      %116 = vector.load %arg6[%c0_34, %c0_35] : memref<1x384xf32, #tpu.memory_space<vmem>>, vector<1x384xf32>
      %117 = vector.broadcast %116 : vector<1x384xf32> to vector<16x384xf32>
      %118 = arith.addf %115, %117 : vector<16x384xf32>
      %c0_36 = arith.constant 0 : index
      %c0_37 = arith.constant 0 : index
      %119 = vector.load %arg10[%c0_36, %c0_37] : memref<16x384xf32, #tpu.memory_space<vmem>>, vector<16x384xf32>
      tpu.vector_store %arg10[%c0_36, %c0_37], %118 {strides = array<i32>} : memref<16x384xf32, #tpu.memory_space<vmem>>, vector<16x384xf32>,
    } else {
    }
    %c8_i32 = arith.constant 8 : i32
    %3 = arith.muli %arg1, %c8_i32 : i32
    %4 = tpu.assume_multiple %3, 8 : i32
    %5 = arith.index_cast %4 : i32 to index
    %c0 = arith.constant 0 : index
    %6 = vector.load %arg10[%5, %c0] : memref<16x384xf32, #tpu.memory_space<vmem>>, vector<8x384xf32>
    %7 = vector.extract_strided_slice %6 {offsets = [0, 0], sizes = [8, 128], strides = [1, 1]} : vector<8x384xf32> to vector<8x128xf32>
    %c0_1 = arith.constant 0 : index
    %c128 = arith.constant 128 : index
    %8 = vector.load %arg10[%c0_1, %c128] : memref<16x384xf32, #tpu.memory_space<vmem>>, vector<16x128xf32>
    %c0_2 = arith.constant 0 : index
    %c256 = arith.constant 256 : index
    %9 = vector.load %arg10[%c0_2, %c256] : memref<16x384xf32, #tpu.memory_space<vmem>>, vector<16x128xf32>
    %10 = tpu.iota {dimensions = array<i32: 0>} : vector<8x16xi32>
    %11 = vector.broadcast %4 : i32 to vector<8x16xi32>
    %12 = arith.addi %11, %10 : vector<8x16xi32>
    %13 = tpu.iota {dimensions = array<i32: 1>} : vector<8x16xi32>
    %14 = arith.cmpi sle, %13, %12 : vector<8x16xi32>
    %cst = arith.constant 0.000000e+00 : f32
    %cst_3 = arith.constant -1.000000e+09 : f32
    %15 = vector.broadcast %cst : f32 to vector<8x16xf32>
    %16 = vector.broadcast %cst_3 : f32 to vector<8x16xf32>
    %17 = arith.select %14, %15, %16 : vector<8x16xi1>, vector<8x16xf32>
    %c0_4 = arith.constant 0 : index
    %c0_5 = arith.constant 0 : index
    %18 = vector.load %arg7[%c0_4, %c0_5] : memref<128x128xbf16, #tpu.memory_space<vmem>>, vector<128x128xbf16>
    %c0_6 = arith.constant 0 : index
    %c0_7 = arith.constant 0 : index
    %19 = vector.load %arg8[%c0_6, %c0_7] : memref<1x128xf32, #tpu.memory_space<vmem>>, vector<1x128xf32>
    %20 = arith.truncf %7 : vector<8x128xf32> to vector<8x128xbf16>
    %21 = vector.extract_strided_slice %20 {offsets = [0, 0], sizes = [8, 32], strides = [1, 1]} : vector<8x128xbf16> to vector<8x32xbf16>
    %22 = vector.extract_strided_slice %20 {offsets = [0, 32], sizes = [8, 32], strides = [1, 1]} : vector<8x128xbf16> to vector<8x32xbf16>
    %23 = vector.extract_strided_slice %20 {offsets = [0, 64], sizes = [8, 32], strides = [1, 1]} : vector<8x128xbf16> to vector<8x32xbf16>
    %24 = vector.extract_strided_slice %20 {offsets = [0, 96], sizes = [8, 32], strides = [1, 1]} : vector<8x128xbf16> to vector<8x32xbf16>
    %25 = vector.shape_cast %21 : vector<8x32xbf16> to vector<1x8x32xbf16>
    %26 = vector.shape_cast %22 : vector<8x32xbf16> to vector<1x8x32xbf16>
    %27 = vector.shape_cast %23 : vector<8x32xbf16> to vector<1x8x32xbf16>
    %28 = vector.shape_cast %24 : vector<8x32xbf16> to vector<1x8x32xbf16>
    %29 = tpu.concatenate %25, %26, %27, %28 in 0 : vector<1x8x32xbf16>, vector<1x8x32xbf16>, vector<1x8x32xbf16>, vector<1x8x32xbf16> -> vector<4x8x32xbf16>
    %30 = arith.truncf %8 : vector<16x128xf32> to vector<16x128xbf16>
    %31 = vector.extract_strided_slice %30 {offsets = [0, 0], sizes = [16, 32], strides = [1, 1]} : vector<16x128xbf16> to vector<16x32xbf16>
    %32 = vector.extract_strided_slice %30 {offsets = [0, 32], sizes = [16, 32], strides = [1, 1]} : vector<16x128xbf16> to vector<16x32xbf16>
    %33 = vector.extract_strided_slice %30 {offsets = [0, 64], sizes = [16, 32], strides = [1, 1]} : vector<16x128xbf16> to vector<16x32xbf16>
    %34 = vector.extract_strided_slice %30 {offsets = [0, 96], sizes = [16, 32], strides = [1, 1]} : vector<16x128xbf16> to vector<16x32xbf16>
    %35 = vector.shape_cast %31 : vector<16x32xbf16> to vector<1x16x32xbf16>
    %36 = vector.shape_cast %32 : vector<16x32xbf16> to vector<1x16x32xbf16>
    %37 = vector.shape_cast %33 : vector<16x32xbf16> to vector<1x16x32xbf16>
    %38 = vector.shape_cast %34 : vector<16x32xbf16> to vector<1x16x32xbf16>
    %39 = tpu.concatenate %35, %36, %37, %38 in 0 : vector<1x16x32xbf16>, vector<1x16x32xbf16>, vector<1x16x32xbf16>, vector<1x16x32xbf16> -> vector<4x16x32xbf16>
    %40 = arith.truncf %9 : vector<16x128xf32> to vector<16x128xbf16>
    %41 = vector.extract_strided_slice %40 {offsets = [0, 0], sizes = [16, 32], strides = [1, 1]} : vector<16x128xbf16> to vector<16x32xbf16>
    %42 = vector.extract_strided_slice %40 {offsets = [0, 32], sizes = [16, 32], strides = [1, 1]} : vector<16x128xbf16> to vector<16x32xbf16>
    %43 = vector.extract_strided_slice %40 {offsets = [0, 64], sizes = [16, 32], strides = [1, 1]} : vector<16x128xbf16> to vector<16x32xbf16>
    %44 = vector.extract_strided_slice %40 {offsets = [0, 96], sizes = [16, 32], strides = [1, 1]} : vector<16x128xbf16> to vector<16x32xbf16>
    %45 = vector.shape_cast %41 : vector<16x32xbf16> to vector<1x16x32xbf16>
    %46 = vector.shape_cast %42 : vector<16x32xbf16> to vector<1x16x32xbf16>
    %47 = vector.shape_cast %43 : vector<16x32xbf16> to vector<1x16x32xbf16>
    %48 = vector.shape_cast %44 : vector<16x32xbf16> to vector<1x16x32xbf16>
    %49 = tpu.concatenate %45, %46, %47, %48 in 0 : vector<1x16x32xbf16>, vector<1x16x32xbf16>, vector<1x16x32xbf16>, vector<1x16x32xbf16> -> vector<4x16x32xbf16>
    "tpu.trace_start"() <{level = 10 : i32, message = "hqd,hkd->hqk"}> : () -> ()
    %cst_8 = arith.constant dense<0.000000e+00> : vector<4x8x16xf32>
    %50 = tpu.matmul %29, %39, %cst_8 {dimension_numbers = #tpu.dot_dimension_numbers<[2], [2], [1], [1], [0, 0, 0, 1, 1, 1], [0], [0]>} : vector<4x8x32xbf16>, vector<4x16x32xbf16>, vector<4x8x16xf32> -> vector<4x8x16xf32>
    "tpu.trace_stop"() : () -> ()
    %cst_9 = arith.constant 0.176776692 : f32
    %51 = vector.broadcast %cst_9 : f32 to vector<4x8x16xf32>
    %52 = arith.mulf %50, %51 : vector<4x8x16xf32>
    %53 = vector.shape_cast %17 : vector<8x16xf32> to vector<1x8x16xf32>
    %54 = vector.broadcast %53 : vector<1x8x16xf32> to vector<4x8x16xf32>
    %55 = arith.addf %52, %54 : vector<4x8x16xf32>
    %cst_10 = arith.constant dense<0xFF800000> : vector<4x8xf32>
    %56 = vector.multi_reduction <maximumf>, %55, %cst_10 [2] : vector<4x8x16xf32> to vector<4x8xf32>
    %57 = vector.shape_cast %56 : vector<4x8xf32> to vector<4x8x1xf32>
    %58 = vector.broadcast %57 : vector<4x8x1xf32> to vector<4x8x16xf32>
    %59 = arith.subf %55, %58 : vector<4x8x16xf32>
    %60 = math.exp %59 : vector<4x8x16xf32>
    %cst_11 = arith.constant dense<0.000000e+00> : vector<4x8xf32>
    %61 = vector.multi_reduction <add>, %60, %cst_11 [2] : vector<4x8x16xf32> to vector<4x8xf32>
    %62 = vector.shape_cast %61 : vector<4x8xf32> to vector<4x8x1xf32>
    %63 = tpu.reciprocal %62 : vector<4x8x1xf32> -> vector<4x8x1xf32>
    %64 = vector.broadcast %63 : vector<4x8x1xf32> to vector<4x8x16xf32>
    %65 = arith.mulf %60, %64 : vector<4x8x16xf32>
    %66 = arith.truncf %65 : vector<4x8x16xf32> to vector<4x8x16xbf16>
    "tpu.trace_start"() <{level = 10 : i32, message = "hqk,hkd->hqd"}> : () -> ()
    %cst_12 = arith.constant dense<0.000000e+00> : vector<4x8x32xf32>
    %67 = tpu.matmul %66, %49, %cst_12 {dimension_numbers = #tpu.dot_dimension_numbers<[2], [1], [1], [2], [0, 0, 0, 1, 1, 2], [0], [0]>} : vector<4x8x16xbf16>, vector<4x16x32xbf16>, vector<4x8x32xf32> -> vector<4x8x32xf32>
    "tpu.trace_stop"() : () -> ()
    %68 = vector.extract_strided_slice %67 {offsets = [0, 0, 0], sizes = [1, 8, 32], strides = [1, 1, 1]} : vector<4x8x32xf32> to vector<1x8x32xf32>
    %69 = vector.shape_cast %68 : vector<1x8x32xf32> to vector<8x32xf32>
    %70 = vector.extract_strided_slice %67 {offsets = [1, 0, 0], sizes = [1, 8, 32], strides = [1, 1, 1]} : vector<4x8x32xf32> to vector<1x8x32xf32>
    %71 = vector.shape_cast %70 : vector<1x8x32xf32> to vector<8x32xf32>
    %72 = vector.extract_strided_slice %67 {offsets = [2, 0, 0], sizes = [1, 8, 32], strides = [1, 1, 1]} : vector<4x8x32xf32> to vector<1x8x32xf32>
    %73 = vector.shape_cast %72 : vector<1x8x32xf32> to vector<8x32xf32>
    %74 = vector.extract_strided_slice %67 {offsets = [3, 0, 0], sizes = [1, 8, 32], strides = [1, 1, 1]} : vector<4x8x32xf32> to vector<1x8x32xf32>
    %75 = vector.shape_cast %74 : vector<1x8x32xf32> to vector<8x32xf32>
    %76 = tpu.concatenate %69, %71, %73, %75 in 1 : vector<8x32xf32>, vector<8x32xf32>, vector<8x32xf32>, vector<8x32xf32> -> vector<8x128xf32>
    %77 = arith.truncf %76 : vector<8x128xf32> to vector<8x128xbf16>
    %cst_13 = arith.constant dense<0.000000e+00> : vector<8x128xf32>
    %78 = tpu.matmul %77, %18, %cst_13 {dimension_numbers = #tpu.dot_dimension_numbers<[1], [0], [0], [1], [0, 0, 1, 1], [], []>} : vector<8x128xbf16>, vector<128x128xbf16>, vector<8x128xf32> -> vector<8x128xf32>
    %79 = vector.broadcast %19 : vector<1x128xf32> to vector<8x128xf32>
    %80 = arith.addf %78, %79 : vector<8x128xf32>
    %c0_14 = arith.constant 0 : index
    %81 = arith.index_cast %4 : i32 to index
    %c0_15 = arith.constant 0 : index
    %82 = vector.load %arg2[%c0_14, %81, %c0_15] : memref<1x16x128xf32, #tpu.memory_space<vmem>>, vector<1x8x128xf32>
    %83 = vector.shape_cast %82 : vector<1x8x128xf32> to vector<8x128xf32>
    %84 = arith.addf %83, %80 : vector<8x128xf32>
    %c0_16 = arith.constant 0 : index
    %c0_17 = arith.constant 0 : index
    %c0_18 = arith.constant 0 : index
    %85 = vector.load %arg9[%c0_16, %c0_17, %c0_18] : memref<1x8x128xf32, #tpu.memory_space<vmem>>, vector<1x8x128xf32>
    %86 = vector.shape_cast %85 : vector<1x8x128xf32> to vector<8x128xf32>
    %87 = vector.shape_cast %84 : vector<8x128xf32> to vector<1x8x128xf32>
    tpu.vector_store %arg9[%c0_16, %c0_17, %c0_18], %87 {strides = array<i32>} : memref<1x8x128xf32, #tpu.memory_space<vmem>>, vector<1x8x128xf32>,
    return
  }
  func.func @transform_0(%arg0: i32, %arg1: i32) -> (i32, i32, i32) {
    %c0_i32 = arith.constant 0 : i32
    %c0_i32_0 = arith.constant 0 : i32
    %c0_i32_1 = arith.constant 0 : i32
    return %arg0, %c0_i32, %c0_i32_0 : i32, i32, i32
  }
  func.func @transform_1(%arg0: i32, %arg1: i32) -> (i32, i32) {
    %c0_i32 = arith.constant 0 : i32
    %c0_i32_0 = arith.constant 0 : i32
    %c0_i32_1 = arith.constant 0 : i32
    return %c0_i32, %c0_i32_0 : i32, i32
  }
  func.func @transform_2(%arg0: i32, %arg1: i32) -> (i32, i32) {
    %c0_i32 = arith.constant 0 : i32
    %c0_i32_0 = arith.constant 0 : i32
    %c0_i32_1 = arith.constant 0 : i32
    return %c0_i32, %c0_i32_0 : i32, i32
  }
  func.func @transform_3(%arg0: i32, %arg1: i32) -> (i32, i32) {
    %c0_i32 = arith.constant 0 : i32
    %c0_i32_0 = arith.constant 0 : i32
    %c0_i32_1 = arith.constant 0 : i32
    return %c0_i32, %c0_i32_0 : i32, i32
  }
  func.func @transform_4(%arg0: i32, %arg1: i32) -> (i32, i32) {
    %c0_i32 = arith.constant 0 : i32
    %c0_i32_0 = arith.constant 0 : i32
    %c0_i32_1 = arith.constant 0 : i32
    return %c0_i32, %c0_i32_0 : i32, i32
  }
  func.func @transform_5(%arg0: i32, %arg1: i32) -> (i32, i32) {
    %c0_i32 = arith.constant 0 : i32
    %c0_i32_0 = arith.constant 0 : i32
    %c0_i32_1 = arith.constant 0 : i32
    return %c0_i32, %c0_i32_0 : i32, i32
  }
  func.func @transform_6(%arg0: i32, %arg1: i32) -> (i32, i32) {
    %c0_i32 = arith.constant 0 : i32
    %c0_i32_0 = arith.constant 0 : i32
    %c0_i32_1 = arith.constant 0 : i32
    return %c0_i32, %c0_i32_0 : i32, i32
  }
  func.func @transform_7(%arg0: i32, %arg1: i32) -> (i32, i32, i32) {
    %c0_i32 = arith.constant 0 : i32
    %c0_i32_0 = arith.constant 0 : i32
    return %arg0, %arg1, %c0_i32 : i32, i32, i32
  }
}

module attributes {stable_mosaic.version = 11 : i64} {
  func.func @_cross_attn_kernel(%arg0: i32, %arg1: i32, %arg2: memref<1x1x16xf32, #tpu.memory_space<vmem>>, %arg3: memref<1x8x128xf32, #tpu.memory_space<vmem>>, %arg4: memref<1x16x128xf32, #tpu.memory_space<vmem>>, %arg5: memref<1x128xf32, #tpu.memory_space<vmem>>, %arg6: memref<1x128xf32, #tpu.memory_space<vmem>>, %arg7: memref<128x128xbf16, #tpu.memory_space<vmem>>, %arg8: memref<1x128xf32, #tpu.memory_space<vmem>>, %arg9: memref<128x256xbf16, #tpu.memory_space<vmem>>, %arg10: memref<1x256xf32, #tpu.memory_space<vmem>>, %arg11: memref<128x128xbf16, #tpu.memory_space<vmem>>, %arg12: memref<1x128xf32, #tpu.memory_space<vmem>>, %arg13: memref<1x8x128xf32, #tpu.memory_space<vmem>>, %arg14: memref<16x256xf32, #tpu.memory_space<vmem>>) attributes {dimension_semantics = [#tpu.dimension_semantics<parallel>, #tpu.dimension_semantics<arbitrary>], iteration_bounds = array<i64: 2, 2>, scalar_prefetch = 0 : i64, scratch_operands = 1 : i64, tpu.core_type = #tpu.core_type<tc>, window_params = [{transform_indices = @transform_0, window_bounds = array<i64: 1, 1, 16>}, {transform_indices = @transform_1, window_bounds = array<i64: 1, 8, 128>}, {transform_indices = @transform_2, window_bounds = array<i64: 1, 16, 128>}, {pipeline_mode = #tpu.pipeline_mode<synchronous>, transform_indices = @transform_3, window_bounds = array<i64: 1, 128>}, {pipeline_mode = #tpu.pipeline_mode<synchronous>, transform_indices = @transform_4, window_bounds = array<i64: 1, 128>}, {pipeline_mode = #tpu.pipeline_mode<synchronous>, transform_indices = @transform_5, window_bounds = array<i64: 128, 128>}, {pipeline_mode = #tpu.pipeline_mode<synchronous>, transform_indices = @transform_6, window_bounds = array<i64: 1, 128>}, {pipeline_mode = #tpu.pipeline_mode<synchronous>, transform_indices = @transform_7, window_bounds = array<i64: 128, 256>}, {pipeline_mode = #tpu.pipeline_mode<synchronous>, transform_indices = @transform_8, window_bounds = array<i64: 1, 256>}, {pipeline_mode = #tpu.pipeline_mode<synchronous>, transform_indices = @transform_9, window_bounds = array<i64: 128, 128>}, {pipeline_mode = #tpu.pipeline_mode<synchronous>, transform_indices = @transform_10, window_bounds = array<i64: 1, 128>}, {transform_indices = @transform_11, window_bounds = array<i64: 1, 8, 128>}]} {
    %c0_i32 = arith.constant 0 : i32
    %0 = arith.cmpi eq, %arg1, %c0_i32 : i32
    %1 = arith.extui %0 : i1 to i32
    %c0_i32_0 = arith.constant 0 : i32
    %2 = arith.cmpi ne, %1, %c0_i32_0 : i32
    scf.if %2 {
      %c0_35 = arith.constant 0 : index
      %c0_36 = arith.constant 0 : index
      %c0_37 = arith.constant 0 : index
      %105 = vector.load %arg4[%c0_35, %c0_36, %c0_37] : memref<1x16x128xf32, #tpu.memory_space<vmem>>, vector<1x16x128xf32>
      %106 = vector.shape_cast %105 : vector<1x16x128xf32> to vector<16x128xf32>
      %107 = arith.truncf %106 : vector<16x128xf32> to vector<16x128xbf16>
      %c0_38 = arith.constant 0 : index
      %c0_39 = arith.constant 0 : index
      %108 = vector.load %arg9[%c0_38, %c0_39] : memref<128x256xbf16, #tpu.memory_space<vmem>>, vector<128x256xbf16>
      %cst_40 = arith.constant dense<0.000000e+00> : vector<16x256xf32>
      %109 = tpu.matmul %107, %108, %cst_40 {dimension_numbers = #tpu.dot_dimension_numbers<[1], [0], [0], [1], [0, 0, 1, 1], [], []>} : vector<16x128xbf16>, vector<128x256xbf16>, vector<16x256xf32> -> vector<16x256xf32>
      %c0_41 = arith.constant 0 : index
      %c0_42 = arith.constant 0 : index
      %110 = vector.load %arg10[%c0_41, %c0_42] : memref<1x256xf32, #tpu.memory_space<vmem>>, vector<1x256xf32>
      %111 = vector.broadcast %110 : vector<1x256xf32> to vector<16x256xf32>
      %112 = arith.addf %109, %111 : vector<16x256xf32>
      %c0_43 = arith.constant 0 : index
      %c0_44 = arith.constant 0 : index
      %113 = vector.load %arg14[%c0_43, %c0_44] : memref<16x256xf32, #tpu.memory_space<vmem>>, vector<16x256xf32>
      tpu.vector_store %arg14[%c0_43, %c0_44], %112 {strides = array<i32>} : memref<16x256xf32, #tpu.memory_space<vmem>>, vector<16x256xf32>,
    } else {
    }
    %c0 = arith.constant 0 : index
    %c0_1 = arith.constant 0 : index
    %c0_2 = arith.constant 0 : index
    %3 = vector.load %arg3[%c0, %c0_1, %c0_2] : memref<1x8x128xf32, #tpu.memory_space<vmem>>, vector<1x8x128xf32>
    %4 = vector.shape_cast %3 : vector<1x8x128xf32> to vector<8x128xf32>
    %c0_3 = arith.constant 0 : index
    %c0_4 = arith.constant 0 : index
    %5 = vector.load %arg5[%c0_3, %c0_4] : memref<1x128xf32, #tpu.memory_space<vmem>>, vector<1x128xf32>
    %c0_5 = arith.constant 0 : index
    %c0_6 = arith.constant 0 : index
    %6 = vector.load %arg6[%c0_5, %c0_6] : memref<1x128xf32, #tpu.memory_space<vmem>>, vector<1x128xf32>
    %cst = arith.constant dense<0.000000e+00> : vector<8xf32>
    %7 = vector.multi_reduction <add>, %4, %cst [1] : vector<8x128xf32> to vector<8xf32>
    %8 = vector.shape_cast %7 : vector<8xf32> to vector<8x1xf32>
    %cst_7 = arith.constant 1.280000e+02 : f32
    %9 = vector.broadcast %cst_7 : f32 to vector<8x1xf32>
    %10 = arith.divf %8, %9 : vector<8x1xf32>
    %11 = vector.broadcast %10 : vector<8x1xf32> to vector<8x128xf32>
    %12 = arith.subf %4, %11 : vector<8x128xf32>
    %13 = arith.mulf %12, %12 : vector<8x128xf32>
    %cst_8 = arith.constant dense<0.000000e+00> : vector<8xf32>
    %14 = vector.multi_reduction <add>, %13, %cst_8 [1] : vector<8x128xf32> to vector<8xf32>
    %15 = vector.shape_cast %14 : vector<8xf32> to vector<8x1xf32>
    %cst_9 = arith.constant 0.00787401571 : f32
    %16 = vector.broadcast %cst_9 : f32 to vector<8x1xf32>
    %17 = arith.mulf %15, %16 : vector<8x1xf32>
    %18 = math.sqrt %17 : vector<8x1xf32>
    %19 = vector.broadcast %5 : vector<1x128xf32> to vector<8x128xf32>
    %20 = arith.mulf %19, %12 : vector<8x128xf32>
    %cst_10 = arith.constant 9.99999997E-7 : f32
    %21 = vector.broadcast %cst_10 : f32 to vector<8x1xf32>
    %22 = arith.addf %18, %21 : vector<8x1xf32>
    %23 = tpu.reciprocal %22 : vector<8x1xf32> -> vector<8x1xf32>
    %24 = vector.broadcast %23 : vector<8x1xf32> to vector<8x128xf32>
    %25 = arith.mulf %20, %24 : vector<8x128xf32>
    %26 = vector.broadcast %6 : vector<1x128xf32> to vector<8x128xf32>
    %27 = arith.addf %25, %26 : vector<8x128xf32>
    %28 = arith.truncf %27 : vector<8x128xf32> to vector<8x128xbf16>
    %c0_11 = arith.constant 0 : index
    %c0_12 = arith.constant 0 : index
    %29 = vector.load %arg7[%c0_11, %c0_12] : memref<128x128xbf16, #tpu.memory_space<vmem>>, vector<128x128xbf16>
    %cst_13 = arith.constant dense<0.000000e+00> : vector<8x128xf32>
    %30 = tpu.matmul %28, %29, %cst_13 {dimension_numbers = #tpu.dot_dimension_numbers<[1], [0], [0], [1], [0, 0, 1, 1], [], []>} : vector<8x128xbf16>, vector<128x128xbf16>, vector<8x128xf32> -> vector<8x128xf32>
    %c0_14 = arith.constant 0 : index
    %c0_15 = arith.constant 0 : index
    %31 = vector.load %arg8[%c0_14, %c0_15] : memref<1x128xf32, #tpu.memory_space<vmem>>, vector<1x128xf32>
    %32 = vector.broadcast %31 : vector<1x128xf32> to vector<8x128xf32>
    %33 = arith.addf %30, %32 : vector<8x128xf32>
    %c0_16 = arith.constant 0 : index
    %c0_17 = arith.constant 0 : index
    %34 = vector.load %arg14[%c0_16, %c0_17] : memref<16x256xf32, #tpu.memory_space<vmem>>, vector<16x128xf32>
    %c0_18 = arith.constant 0 : index
    %c128 = arith.constant 128 : index
    %35 = vector.load %arg14[%c0_18, %c128] : memref<16x256xf32, #tpu.memory_space<vmem>>, vector<16x128xf32>
    %c0_19 = arith.constant 0 : index
    %c0_20 = arith.constant 0 : index
    %c0_21 = arith.constant 0 : index
    %36 = vector.load %arg2[%c0_19, %c0_20, %c0_21] : memref<1x1x16xf32, #tpu.memory_space<vmem>>, vector<1x1x16xf32>
    %37 = vector.shape_cast %36 : vector<1x1x16xf32> to vector<1x16xf32>
    %c0_22 = arith.constant 0 : index
    %c0_23 = arith.constant 0 : index
    %38 = vector.load %arg11[%c0_22, %c0_23] : memref<128x128xbf16, #tpu.memory_space<vmem>>, vector<128x128xbf16>
    %c0_24 = arith.constant 0 : index
    %c0_25 = arith.constant 0 : index
    %39 = vector.load %arg12[%c0_24, %c0_25] : memref<1x128xf32, #tpu.memory_space<vmem>>, vector<1x128xf32>
    %40 = arith.truncf %33 : vector<8x128xf32> to vector<8x128xbf16>
    %41 = vector.extract_strided_slice %40 {offsets = [0, 0], sizes = [8, 32], strides = [1, 1]} : vector<8x128xbf16> to vector<8x32xbf16>
    %42 = vector.extract_strided_slice %40 {offsets = [0, 32], sizes = [8, 32], strides = [1, 1]} : vector<8x128xbf16> to vector<8x32xbf16>
    %43 = vector.extract_strided_slice %40 {offsets = [0, 64], sizes = [8, 32], strides = [1, 1]} : vector<8x128xbf16> to vector<8x32xbf16>
    %44 = vector.extract_strided_slice %40 {offsets = [0, 96], sizes = [8, 32], strides = [1, 1]} : vector<8x128xbf16> to vector<8x32xbf16>
    %45 = vector.shape_cast %41 : vector<8x32xbf16> to vector<1x8x32xbf16>
    %46 = vector.shape_cast %42 : vector<8x32xbf16> to vector<1x8x32xbf16>
    %47 = vector.shape_cast %43 : vector<8x32xbf16> to vector<1x8x32xbf16>
    %48 = vector.shape_cast %44 : vector<8x32xbf16> to vector<1x8x32xbf16>
    %49 = tpu.concatenate %45, %46, %47, %48 in 0 : vector<1x8x32xbf16>, vector<1x8x32xbf16>, vector<1x8x32xbf16>, vector<1x8x32xbf16> -> vector<4x8x32xbf16>
    %50 = arith.truncf %34 : vector<16x128xf32> to vector<16x128xbf16>
    %51 = vector.extract_strided_slice %50 {offsets = [0, 0], sizes = [16, 32], strides = [1, 1]} : vector<16x128xbf16> to vector<16x32xbf16>
    %52 = vector.extract_strided_slice %50 {offsets = [0, 32], sizes = [16, 32], strides = [1, 1]} : vector<16x128xbf16> to vector<16x32xbf16>
    %53 = vector.extract_strided_slice %50 {offsets = [0, 64], sizes = [16, 32], strides = [1, 1]} : vector<16x128xbf16> to vector<16x32xbf16>
    %54 = vector.extract_strided_slice %50 {offsets = [0, 96], sizes = [16, 32], strides = [1, 1]} : vector<16x128xbf16> to vector<16x32xbf16>
    %55 = vector.shape_cast %51 : vector<16x32xbf16> to vector<1x16x32xbf16>
    %56 = vector.shape_cast %52 : vector<16x32xbf16> to vector<1x16x32xbf16>
    %57 = vector.shape_cast %53 : vector<16x32xbf16> to vector<1x16x32xbf16>
    %58 = vector.shape_cast %54 : vector<16x32xbf16> to vector<1x16x32xbf16>
    %59 = tpu.concatenate %55, %56, %57, %58 in 0 : vector<1x16x32xbf16>, vector<1x16x32xbf16>, vector<1x16x32xbf16>, vector<1x16x32xbf16> -> vector<4x16x32xbf16>
    %60 = arith.truncf %35 : vector<16x128xf32> to vector<16x128xbf16>
    %61 = vector.extract_strided_slice %60 {offsets = [0, 0], sizes = [16, 32], strides = [1, 1]} : vector<16x128xbf16> to vector<16x32xbf16>
    %62 = vector.extract_strided_slice %60 {offsets = [0, 32], sizes = [16, 32], strides = [1, 1]} : vector<16x128xbf16> to vector<16x32xbf16>
    %63 = vector.extract_strided_slice %60 {offsets = [0, 64], sizes = [16, 32], strides = [1, 1]} : vector<16x128xbf16> to vector<16x32xbf16>
    %64 = vector.extract_strided_slice %60 {offsets = [0, 96], sizes = [16, 32], strides = [1, 1]} : vector<16x128xbf16> to vector<16x32xbf16>
    %65 = vector.shape_cast %61 : vector<16x32xbf16> to vector<1x16x32xbf16>
    %66 = vector.shape_cast %62 : vector<16x32xbf16> to vector<1x16x32xbf16>
    %67 = vector.shape_cast %63 : vector<16x32xbf16> to vector<1x16x32xbf16>
    %68 = vector.shape_cast %64 : vector<16x32xbf16> to vector<1x16x32xbf16>
    %69 = tpu.concatenate %65, %66, %67, %68 in 0 : vector<1x16x32xbf16>, vector<1x16x32xbf16>, vector<1x16x32xbf16>, vector<1x16x32xbf16> -> vector<4x16x32xbf16>
    "tpu.trace_start"() <{level = 10 : i32, message = "hqd,hkd->hqk"}> : () -> ()
    %cst_26 = arith.constant dense<0.000000e+00> : vector<4x8x16xf32>
    %70 = tpu.matmul %49, %59, %cst_26 {dimension_numbers = #tpu.dot_dimension_numbers<[2], [2], [1], [1], [0, 0, 0, 1, 1, 1], [0], [0]>} : vector<4x8x32xbf16>, vector<4x16x32xbf16>, vector<4x8x16xf32> -> vector<4x8x16xf32>
    "tpu.trace_stop"() : () -> ()
    %cst_27 = arith.constant 0.176776692 : f32
    %71 = vector.broadcast %cst_27 : f32 to vector<4x8x16xf32>
    %72 = arith.mulf %70, %71 : vector<4x8x16xf32>
    %73 = vector.shape_cast %37 : vector<1x16xf32> to vector<1x1x16xf32>
    %74 = vector.broadcast %73 : vector<1x1x16xf32> to vector<4x8x16xf32>
    %75 = arith.addf %72, %74 : vector<4x8x16xf32>
    %cst_28 = arith.constant dense<0xFF800000> : vector<4x8xf32>
    %76 = vector.multi_reduction <maximumf>, %75, %cst_28 [2] : vector<4x8x16xf32> to vector<4x8xf32>
    %77 = vector.shape_cast %76 : vector<4x8xf32> to vector<4x8x1xf32>
    %78 = vector.broadcast %77 : vector<4x8x1xf32> to vector<4x8x16xf32>
    %79 = arith.subf %75, %78 : vector<4x8x16xf32>
    %80 = math.exp %79 : vector<4x8x16xf32>
    %cst_29 = arith.constant dense<0.000000e+00> : vector<4x8xf32>
    %81 = vector.multi_reduction <add>, %80, %cst_29 [2] : vector<4x8x16xf32> to vector<4x8xf32>
    %82 = vector.shape_cast %81 : vector<4x8xf32> to vector<4x8x1xf32>
    %83 = tpu.reciprocal %82 : vector<4x8x1xf32> -> vector<4x8x1xf32>
    %84 = vector.broadcast %83 : vector<4x8x1xf32> to vector<4x8x16xf32>
    %85 = arith.mulf %80, %84 : vector<4x8x16xf32>
    %86 = arith.truncf %85 : vector<4x8x16xf32> to vector<4x8x16xbf16>
    "tpu.trace_start"() <{level = 10 : i32, message = "hqk,hkd->hqd"}> : () -> ()
    %cst_30 = arith.constant dense<0.000000e+00> : vector<4x8x32xf32>
    %87 = tpu.matmul %86, %69, %cst_30 {dimension_numbers = #tpu.dot_dimension_numbers<[2], [1], [1], [2], [0, 0, 0, 1, 1, 2], [0], [0]>} : vector<4x8x16xbf16>, vector<4x16x32xbf16>, vector<4x8x32xf32> -> vector<4x8x32xf32>
    "tpu.trace_stop"() : () -> ()
    %88 = vector.extract_strided_slice %87 {offsets = [0, 0, 0], sizes = [1, 8, 32], strides = [1, 1, 1]} : vector<4x8x32xf32> to vector<1x8x32xf32>
    %89 = vector.shape_cast %88 : vector<1x8x32xf32> to vector<8x32xf32>
    %90 = vector.extract_strided_slice %87 {offsets = [1, 0, 0], sizes = [1, 8, 32], strides = [1, 1, 1]} : vector<4x8x32xf32> to vector<1x8x32xf32>
    %91 = vector.shape_cast %90 : vector<1x8x32xf32> to vector<8x32xf32>
    %92 = vector.extract_strided_slice %87 {offsets = [2, 0, 0], sizes = [1, 8, 32], strides = [1, 1, 1]} : vector<4x8x32xf32> to vector<1x8x32xf32>
    %93 = vector.shape_cast %92 : vector<1x8x32xf32> to vector<8x32xf32>
    %94 = vector.extract_strided_slice %87 {offsets = [3, 0, 0], sizes = [1, 8, 32], strides = [1, 1, 1]} : vector<4x8x32xf32> to vector<1x8x32xf32>
    %95 = vector.shape_cast %94 : vector<1x8x32xf32> to vector<8x32xf32>
    %96 = tpu.concatenate %89, %91, %93, %95 in 1 : vector<8x32xf32>, vector<8x32xf32>, vector<8x32xf32>, vector<8x32xf32> -> vector<8x128xf32>
    %97 = arith.truncf %96 : vector<8x128xf32> to vector<8x128xbf16>
    %cst_31 = arith.constant dense<0.000000e+00> : vector<8x128xf32>
    %98 = tpu.matmul %97, %38, %cst_31 {dimension_numbers = #tpu.dot_dimension_numbers<[1], [0], [0], [1], [0, 0, 1, 1], [], []>} : vector<8x128xbf16>, vector<128x128xbf16>, vector<8x128xf32> -> vector<8x128xf32>
    %99 = vector.broadcast %39 : vector<1x128xf32> to vector<8x128xf32>
    %100 = arith.addf %98, %99 : vector<8x128xf32>
    %101 = arith.addf %4, %100 : vector<8x128xf32>
    %c0_32 = arith.constant 0 : index
    %c0_33 = arith.constant 0 : index
    %c0_34 = arith.constant 0 : index
    %102 = vector.load %arg13[%c0_32, %c0_33, %c0_34] : memref<1x8x128xf32, #tpu.memory_space<vmem>>, vector<1x8x128xf32>
    %103 = vector.shape_cast %102 : vector<1x8x128xf32> to vector<8x128xf32>
    %104 = vector.shape_cast %101 : vector<8x128xf32> to vector<1x8x128xf32>
    tpu.vector_store %arg13[%c0_32, %c0_33, %c0_34], %104 {strides = array<i32>} : memref<1x8x128xf32, #tpu.memory_space<vmem>>, vector<1x8x128xf32>,
    return
  }
  func.func @transform_0(%arg0: i32, %arg1: i32) -> (i32, i32, i32) {
    %c0_i32 = arith.constant 0 : i32
    %c0_i32_0 = arith.constant 0 : i32
    %c0_i32_1 = arith.constant 0 : i32
    return %arg0, %c0_i32, %c0_i32_0 : i32, i32, i32
  }
  func.func @transform_1(%arg0: i32, %arg1: i32) -> (i32, i32, i32) {
    %c0_i32 = arith.constant 0 : i32
    %c0_i32_0 = arith.constant 0 : i32
    return %arg0, %arg1, %c0_i32 : i32, i32, i32
  }
  func.func @transform_2(%arg0: i32, %arg1: i32) -> (i32, i32, i32) {
    %c0_i32 = arith.constant 0 : i32
    %c0_i32_0 = arith.constant 0 : i32
    %c0_i32_1 = arith.constant 0 : i32
    return %arg0, %c0_i32, %c0_i32_0 : i32, i32, i32
  }
  func.func @transform_3(%arg0: i32, %arg1: i32) -> (i32, i32) {
    %c0_i32 = arith.constant 0 : i32
    %c0_i32_0 = arith.constant 0 : i32
    %c0_i32_1 = arith.constant 0 : i32
    return %c0_i32, %c0_i32_0 : i32, i32
  }
  func.func @transform_4(%arg0: i32, %arg1: i32) -> (i32, i32) {
    %c0_i32 = arith.constant 0 : i32
    %c0_i32_0 = arith.constant 0 : i32
    %c0_i32_1 = arith.constant 0 : i32
    return %c0_i32, %c0_i32_0 : i32, i32
  }
  func.func @transform_5(%arg0: i32, %arg1: i32) -> (i32, i32) {
    %c0_i32 = arith.constant 0 : i32
    %c0_i32_0 = arith.constant 0 : i32
    %c0_i32_1 = arith.constant 0 : i32
    return %c0_i32, %c0_i32_0 : i32, i32
  }
  func.func @transform_6(%arg0: i32, %arg1: i32) -> (i32, i32) {
    %c0_i32 = arith.constant 0 : i32
    %c0_i32_0 = arith.constant 0 : i32
    %c0_i32_1 = arith.constant 0 : i32
    return %c0_i32, %c0_i32_0 : i32, i32
  }
  func.func @transform_7(%arg0: i32, %arg1: i32) -> (i32, i32) {
    %c0_i32 = arith.constant 0 : i32
    %c0_i32_0 = arith.constant 0 : i32
    %c0_i32_1 = arith.constant 0 : i32
    return %c0_i32, %c0_i32_0 : i32, i32
  }
  func.func @transform_8(%arg0: i32, %arg1: i32) -> (i32, i32) {
    %c0_i32 = arith.constant 0 : i32
    %c0_i32_0 = arith.constant 0 : i32
    %c0_i32_1 = arith.constant 0 : i32
    return %c0_i32, %c0_i32_0 : i32, i32
  }
  func.func @transform_9(%arg0: i32, %arg1: i32) -> (i32, i32) {
    %c0_i32 = arith.constant 0 : i32
    %c0_i32_0 = arith.constant 0 : i32
    %c0_i32_1 = arith.constant 0 : i32
    return %c0_i32, %c0_i32_0 : i32, i32
  }
  func.func @transform_10(%arg0: i32, %arg1: i32) -> (i32, i32) {
    %c0_i32 = arith.constant 0 : i32
    %c0_i32_0 = arith.constant 0 : i32
    %c0_i32_1 = arith.constant 0 : i32
    return %c0_i32, %c0_i32_0 : i32, i32
  }
  func.func @transform_11(%arg0: i32, %arg1: i32) -> (i32, i32, i32) {
    %c0_i32 = arith.constant 0 : i32
    %c0_i32_0 = arith.constant 0 : i32
    return %arg0, %arg1, %c0_i32 : i32, i32, i32
  }
}

module attributes {stable_mosaic.version = 11 : i64} {
  func.func @_self_attn_kernel(%arg0: i32, %arg1: i32, %arg2: memref<1x16x128xf32, #tpu.memory_space<vmem>>, %arg3: memref<1x128xf32, #tpu.memory_space<vmem>>, %arg4: memref<1x128xf32, #tpu.memory_space<vmem>>, %arg5: memref<128x384xbf16, #tpu.memory_space<vmem>>, %arg6: memref<1x384xf32, #tpu.memory_space<vmem>>, %arg7: memref<128x128xbf16, #tpu.memory_space<vmem>>, %arg8: memref<1x128xf32, #tpu.memory_space<vmem>>, %arg9: memref<1x8x128xf32, #tpu.memory_space<vmem>>, %arg10: memref<16x384xf32, #tpu.memory_space<vmem>>) attributes {dimension_semantics = [#tpu.dimension_semantics<parallel>, #tpu.dimension_semantics<arbitrary>], iteration_bounds = array<i64: 2, 2>, scalar_prefetch = 0 : i64, scratch_operands = 1 : i64, tpu.core_type = #tpu.core_type<tc>, window_params = [{transform_indices = @transform_0, window_bounds = array<i64: 1, 16, 128>}, {pipeline_mode = #tpu.pipeline_mode<synchronous>, transform_indices = @transform_1, window_bounds = array<i64: 1, 128>}, {pipeline_mode = #tpu.pipeline_mode<synchronous>, transform_indices = @transform_2, window_bounds = array<i64: 1, 128>}, {pipeline_mode = #tpu.pipeline_mode<synchronous>, transform_indices = @transform_3, window_bounds = array<i64: 128, 384>}, {pipeline_mode = #tpu.pipeline_mode<synchronous>, transform_indices = @transform_4, window_bounds = array<i64: 1, 384>}, {pipeline_mode = #tpu.pipeline_mode<synchronous>, transform_indices = @transform_5, window_bounds = array<i64: 128, 128>}, {pipeline_mode = #tpu.pipeline_mode<synchronous>, transform_indices = @transform_6, window_bounds = array<i64: 1, 128>}, {transform_indices = @transform_7, window_bounds = array<i64: 1, 8, 128>}]} {
    %c0_i32 = arith.constant 0 : i32
    %0 = arith.cmpi eq, %arg1, %c0_i32 : i32
    %1 = arith.extui %0 : i1 to i32
    %c0_i32_0 = arith.constant 0 : i32
    %2 = arith.cmpi ne, %1, %c0_i32_0 : i32
    scf.if %2 {
      %c0_19 = arith.constant 0 : index
      %c0_20 = arith.constant 0 : index
      %c0_21 = arith.constant 0 : index
      %88 = vector.load %arg2[%c0_19, %c0_20, %c0_21] : memref<1x16x128xf32, #tpu.memory_space<vmem>>, vector<1x16x128xf32>
      %89 = vector.shape_cast %88 : vector<1x16x128xf32> to vector<16x128xf32>
      %c0_22 = arith.constant 0 : index
      %c0_23 = arith.constant 0 : index
      %90 = vector.load %arg3[%c0_22, %c0_23] : memref<1x128xf32, #tpu.memory_space<vmem>>, vector<1x128xf32>
      %c0_24 = arith.constant 0 : index
      %c0_25 = arith.constant 0 : index
      %91 = vector.load %arg4[%c0_24, %c0_25] : memref<1x128xf32, #tpu.memory_space<vmem>>, vector<1x128xf32>
      %cst_26 = arith.constant dense<0.000000e+00> : vector<16xf32>
      %92 = vector.multi_reduction <add>, %89, %cst_26 [1] : vector<16x128xf32> to vector<16xf32>
      %93 = vector.shape_cast %92 : vector<16xf32> to vector<16x1xf32>
      %cst_27 = arith.constant 1.280000e+02 : f32
      %94 = vector.broadcast %cst_27 : f32 to vector<16x1xf32>
      %95 = arith.divf %93, %94 : vector<16x1xf32>
      %96 = vector.broadcast %95 : vector<16x1xf32> to vector<16x128xf32>
      %97 = arith.subf %89, %96 : vector<16x128xf32>
      %98 = arith.mulf %97, %97 : vector<16x128xf32>
      %cst_28 = arith.constant dense<0.000000e+00> : vector<16xf32>
      %99 = vector.multi_reduction <add>, %98, %cst_28 [1] : vector<16x128xf32> to vector<16xf32>
      %100 = vector.shape_cast %99 : vector<16xf32> to vector<16x1xf32>
      %cst_29 = arith.constant 0.00787401571 : f32
      %101 = vector.broadcast %cst_29 : f32 to vector<16x1xf32>
      %102 = arith.mulf %100, %101 : vector<16x1xf32>
      %103 = math.sqrt %102 : vector<16x1xf32>
      %104 = vector.broadcast %90 : vector<1x128xf32> to vector<16x128xf32>
      %105 = arith.mulf %104, %97 : vector<16x128xf32>
      %cst_30 = arith.constant 9.99999997E-7 : f32
      %106 = vector.broadcast %cst_30 : f32 to vector<16x1xf32>
      %107 = arith.addf %103, %106 : vector<16x1xf32>
      %108 = tpu.reciprocal %107 : vector<16x1xf32> -> vector<16x1xf32>
      %109 = vector.broadcast %108 : vector<16x1xf32> to vector<16x128xf32>
      %110 = arith.mulf %105, %109 : vector<16x128xf32>
      %111 = vector.broadcast %91 : vector<1x128xf32> to vector<16x128xf32>
      %112 = arith.addf %110, %111 : vector<16x128xf32>
      %113 = arith.truncf %112 : vector<16x128xf32> to vector<16x128xbf16>
      %c0_31 = arith.constant 0 : index
      %c0_32 = arith.constant 0 : index
      %114 = vector.load %arg5[%c0_31, %c0_32] : memref<128x384xbf16, #tpu.memory_space<vmem>>, vector<128x384xbf16>
      %cst_33 = arith.constant dense<0.000000e+00> : vector<16x384xf32>
      %115 = tpu.matmul %113, %114, %cst_33 {dimension_numbers = #tpu.dot_dimension_numbers<[1], [0], [0], [1], [0, 0, 1, 1], [], []>} : vector<16x128xbf16>, vector<128x384xbf16>, vector<16x384xf32> -> vector<16x384xf32>
      %c0_34 = arith.constant 0 : index
      %c0_35 = arith.constant 0 : index
      %116 = vector.load %arg6[%c0_34, %c0_35] : memref<1x384xf32, #tpu.memory_space<vmem>>, vector<1x384xf32>
      %117 = vector.broadcast %116 : vector<1x384xf32> to vector<16x384xf32>
      %118 = arith.addf %115, %117 : vector<16x384xf32>
      %c0_36 = arith.constant 0 : index
      %c0_37 = arith.constant 0 : index
      %119 = vector.load %arg10[%c0_36, %c0_37] : memref<16x384xf32, #tpu.memory_space<vmem>>, vector<16x384xf32>
      tpu.vector_store %arg10[%c0_36, %c0_37], %118 {strides = array<i32>} : memref<16x384xf32, #tpu.memory_space<vmem>>, vector<16x384xf32>,
    } else {
    }
    %c8_i32 = arith.constant 8 : i32
    %3 = arith.muli %arg1, %c8_i32 : i32
    %4 = tpu.assume_multiple %3, 8 : i32
    %5 = arith.index_cast %4 : i32 to index
    %c0 = arith.constant 0 : index
    %6 = vector.load %arg10[%5, %c0] : memref<16x384xf32, #tpu.memory_space<vmem>>, vector<8x384xf32>
    %7 = vector.extract_strided_slice %6 {offsets = [0, 0], sizes = [8, 128], strides = [1, 1]} : vector<8x384xf32> to vector<8x128xf32>
    %c0_1 = arith.constant 0 : index
    %c128 = arith.constant 128 : index
    %8 = vector.load %arg10[%c0_1, %c128] : memref<16x384xf32, #tpu.memory_space<vmem>>, vector<16x128xf32>
    %c0_2 = arith.constant 0 : index
    %c256 = arith.constant 256 : index
    %9 = vector.load %arg10[%c0_2, %c256] : memref<16x384xf32, #tpu.memory_space<vmem>>, vector<16x128xf32>
    %10 = tpu.iota {dimensions = array<i32: 0>} : vector<8x16xi32>
    %11 = vector.broadcast %4 : i32 to vector<8x16xi32>
    %12 = arith.addi %11, %10 : vector<8x16xi32>
    %13 = tpu.iota {dimensions = array<i32: 1>} : vector<8x16xi32>
    %14 = arith.cmpi sle, %13, %12 : vector<8x16xi32>
    %cst = arith.constant 0.000000e+00 : f32
    %cst_3 = arith.constant -1.000000e+09 : f32
    %15 = vector.broadcast %cst : f32 to vector<8x16xf32>
    %16 = vector.broadcast %cst_3 : f32 to vector<8x16xf32>
    %17 = arith.select %14, %15, %16 : vector<8x16xi1>, vector<8x16xf32>
    %c0_4 = arith.constant 0 : index
    %c0_5 = arith.constant 0 : index
    %18 = vector.load %arg7[%c0_4, %c0_5] : memref<128x128xbf16, #tpu.memory_space<vmem>>, vector<128x128xbf16>
    %c0_6 = arith.constant 0 : index
    %c0_7 = arith.constant 0 : index
    %19 = vector.load %arg8[%c0_6, %c0_7] : memref<1x128xf32, #tpu.memory_space<vmem>>, vector<1x128xf32>
    %20 = arith.truncf %7 : vector<8x128xf32> to vector<8x128xbf16>
    %21 = vector.extract_strided_slice %20 {offsets = [0, 0], sizes = [8, 32], strides = [1, 1]} : vector<8x128xbf16> to vector<8x32xbf16>
    %22 = vector.extract_strided_slice %20 {offsets = [0, 32], sizes = [8, 32], strides = [1, 1]} : vector<8x128xbf16> to vector<8x32xbf16>
    %23 = vector.extract_strided_slice %20 {offsets = [0, 64], sizes = [8, 32], strides = [1, 1]} : vector<8x128xbf16> to vector<8x32xbf16>
    %24 = vector.extract_strided_slice %20 {offsets = [0, 96], sizes = [8, 32], strides = [1, 1]} : vector<8x128xbf16> to vector<8x32xbf16>
    %25 = vector.shape_cast %21 : vector<8x32xbf16> to vector<1x8x32xbf16>
    %26 = vector.shape_cast %22 : vector<8x32xbf16> to vector<1x8x32xbf16>
    %27 = vector.shape_cast %23 : vector<8x32xbf16> to vector<1x8x32xbf16>
    %28 = vector.shape_cast %24 : vector<8x32xbf16> to vector<1x8x32xbf16>
    %29 = tpu.concatenate %25, %26, %27, %28 in 0 : vector<1x8x32xbf16>, vector<1x8x32xbf16>, vector<1x8x32xbf16>, vector<1x8x32xbf16> -> vector<4x8x32xbf16>
    %30 = arith.truncf %8 : vector<16x128xf32> to vector<16x128xbf16>
    %31 = vector.extract_strided_slice %30 {offsets = [0, 0], sizes = [16, 32], strides = [1, 1]} : vector<16x128xbf16> to vector<16x32xbf16>
    %32 = vector.extract_strided_slice %30 {offsets = [0, 32], sizes = [16, 32], strides = [1, 1]} : vector<16x128xbf16> to vector<16x32xbf16>
    %33 = vector.extract_strided_slice %30 {offsets = [0, 64], sizes = [16, 32], strides = [1, 1]} : vector<16x128xbf16> to vector<16x32xbf16>
    %34 = vector.extract_strided_slice %30 {offsets = [0, 96], sizes = [16, 32], strides = [1, 1]} : vector<16x128xbf16> to vector<16x32xbf16>
    %35 = vector.shape_cast %31 : vector<16x32xbf16> to vector<1x16x32xbf16>
    %36 = vector.shape_cast %32 : vector<16x32xbf16> to vector<1x16x32xbf16>
    %37 = vector.shape_cast %33 : vector<16x32xbf16> to vector<1x16x32xbf16>
    %38 = vector.shape_cast %34 : vector<16x32xbf16> to vector<1x16x32xbf16>
    %39 = tpu.concatenate %35, %36, %37, %38 in 0 : vector<1x16x32xbf16>, vector<1x16x32xbf16>, vector<1x16x32xbf16>, vector<1x16x32xbf16> -> vector<4x16x32xbf16>
    %40 = arith.truncf %9 : vector<16x128xf32> to vector<16x128xbf16>
    %41 = vector.extract_strided_slice %40 {offsets = [0, 0], sizes = [16, 32], strides = [1, 1]} : vector<16x128xbf16> to vector<16x32xbf16>
    %42 = vector.extract_strided_slice %40 {offsets = [0, 32], sizes = [16, 32], strides = [1, 1]} : vector<16x128xbf16> to vector<16x32xbf16>
    %43 = vector.extract_strided_slice %40 {offsets = [0, 64], sizes = [16, 32], strides = [1, 1]} : vector<16x128xbf16> to vector<16x32xbf16>
    %44 = vector.extract_strided_slice %40 {offsets = [0, 96], sizes = [16, 32], strides = [1, 1]} : vector<16x128xbf16> to vector<16x32xbf16>
    %45 = vector.shape_cast %41 : vector<16x32xbf16> to vector<1x16x32xbf16>
    %46 = vector.shape_cast %42 : vector<16x32xbf16> to vector<1x16x32xbf16>
    %47 = vector.shape_cast %43 : vector<16x32xbf16> to vector<1x16x32xbf16>
    %48 = vector.shape_cast %44 : vector<16x32xbf16> to vector<1x16x32xbf16>
    %49 = tpu.concatenate %45, %46, %47, %48 in 0 : vector<1x16x32xbf16>, vector<1x16x32xbf16>, vector<1x16x32xbf16>, vector<1x16x32xbf16> -> vector<4x16x32xbf16>
    "tpu.trace_start"() <{level = 10 : i32, message = "hqd,hkd->hqk"}> : () -> ()
    %cst_8 = arith.constant dense<0.000000e+00> : vector<4x8x16xf32>
    %50 = tpu.matmul %29, %39, %cst_8 {dimension_numbers = #tpu.dot_dimension_numbers<[2], [2], [1], [1], [0, 0, 0, 1, 1, 1], [0], [0]>} : vector<4x8x32xbf16>, vector<4x16x32xbf16>, vector<4x8x16xf32> -> vector<4x8x16xf32>
    "tpu.trace_stop"() : () -> ()
    %cst_9 = arith.constant 0.176776692 : f32
    %51 = vector.broadcast %cst_9 : f32 to vector<4x8x16xf32>
    %52 = arith.mulf %50, %51 : vector<4x8x16xf32>
    %53 = vector.shape_cast %17 : vector<8x16xf32> to vector<1x8x16xf32>
    %54 = vector.broadcast %53 : vector<1x8x16xf32> to vector<4x8x16xf32>
    %55 = arith.addf %52, %54 : vector<4x8x16xf32>
    %cst_10 = arith.constant dense<0xFF800000> : vector<4x8xf32>
    %56 = vector.multi_reduction <maximumf>, %55, %cst_10 [2] : vector<4x8x16xf32> to vector<4x8xf32>
    %57 = vector.shape_cast %56 : vector<4x8xf32> to vector<4x8x1xf32>
    %58 = vector.broadcast %57 : vector<4x8x1xf32> to vector<4x8x16xf32>
    %59 = arith.subf %55, %58 : vector<4x8x16xf32>
    %60 = math.exp %59 : vector<4x8x16xf32>
    %cst_11 = arith.constant dense<0.000000e+00> : vector<4x8xf32>
    %61 = vector.multi_reduction <add>, %60, %cst_11 [2] : vector<4x8x16xf32> to vector<4x8xf32>
    %62 = vector.shape_cast %61 : vector<4x8xf32> to vector<4x8x1xf32>
    %63 = tpu.reciprocal %62 : vector<4x8x1xf32> -> vector<4x8x1xf32>
    %64 = vector.broadcast %63 : vector<4x8x1xf32> to vector<4x8x16xf32>
    %65 = arith.mulf %60, %64 : vector<4x8x16xf32>
    %66 = arith.truncf %65 : vector<4x8x16xf32> to vector<4x8x16xbf16>
    "tpu.trace_start"() <{level = 10 : i32, message = "hqk,hkd->hqd"}> : () -> ()
    %cst_12 = arith.constant dense<0.000000e+00> : vector<4x8x32xf32>
    %67 = tpu.matmul %66, %49, %cst_12 {dimension_numbers = #tpu.dot_dimension_numbers<[2], [1], [1], [2], [0, 0, 0, 1, 1, 2], [0], [0]>} : vector<4x8x16xbf16>, vector<4x16x32xbf16>, vector<4x8x32xf32> -> vector<4x8x32xf32>
    "tpu.trace_stop"() : () -> ()
    %68 = vector.extract_strided_slice %67 {offsets = [0, 0, 0], sizes = [1, 8, 32], strides = [1, 1, 1]} : vector<4x8x32xf32> to vector<1x8x32xf32>
    %69 = vector.shape_cast %68 : vector<1x8x32xf32> to vector<8x32xf32>
    %70 = vector.extract_strided_slice %67 {offsets = [1, 0, 0], sizes = [1, 8, 32], strides = [1, 1, 1]} : vector<4x8x32xf32> to vector<1x8x32xf32>
    %71 = vector.shape_cast %70 : vector<1x8x32xf32> to vector<8x32xf32>
    %72 = vector.extract_strided_slice %67 {offsets = [2, 0, 0], sizes = [1, 8, 32], strides = [1, 1, 1]} : vector<4x8x32xf32> to vector<1x8x32xf32>
    %73 = vector.shape_cast %72 : vector<1x8x32xf32> to vector<8x32xf32>
    %74 = vector.extract_strided_slice %67 {offsets = [3, 0, 0], sizes = [1, 8, 32], strides = [1, 1, 1]} : vector<4x8x32xf32> to vector<1x8x32xf32>
    %75 = vector.shape_cast %74 : vector<1x8x32xf32> to vector<8x32xf32>
    %76 = tpu.concatenate %69, %71, %73, %75 in 1 : vector<8x32xf32>, vector<8x32xf32>, vector<8x32xf32>, vector<8x32xf32> -> vector<8x128xf32>
    %77 = arith.truncf %76 : vector<8x128xf32> to vector<8x128xbf16>
    %cst_13 = arith.constant dense<0.000000e+00> : vector<8x128xf32>
    %78 = tpu.matmul %77, %18, %cst_13 {dimension_numbers = #tpu.dot_dimension_numbers<[1], [0], [0], [1], [0, 0, 1, 1], [], []>} : vector<8x128xbf16>, vector<128x128xbf16>, vector<8x128xf32> -> vector<8x128xf32>
    %79 = vector.broadcast %19 : vector<1x128xf32> to vector<8x128xf32>
    %80 = arith.addf %78, %79 : vector<8x128xf32>
    %c0_14 = arith.constant 0 : index
    %81 = arith.index_cast %4 : i32 to index
    %c0_15 = arith.constant 0 : index
    %82 = vector.load %arg2[%c0_14, %81, %c0_15] : memref<1x16x128xf32, #tpu.memory_space<vmem>>, vector<1x8x128xf32>
    %83 = vector.shape_cast %82 : vector<1x8x128xf32> to vector<8x128xf32>
    %84 = arith.addf %83, %80 : vector<8x128xf32>
    %c0_16 = arith.constant 0 : index
    %c0_17 = arith.constant 0 : index
    %c0_18 = arith.constant 0 : index
    %85 = vector.load %arg9[%c0_16, %c0_17, %c0_18] : memref<1x8x128xf32, #tpu.memory_space<vmem>>, vector<1x8x128xf32>
    %86 = vector.shape_cast %85 : vector<1x8x128xf32> to vector<8x128xf32>
    %87 = vector.shape_cast %84 : vector<8x128xf32> to vector<1x8x128xf32>
    tpu.vector_store %arg9[%c0_16, %c0_17, %c0_18], %87 {strides = array<i32>} : memref<1x8x128xf32, #tpu.memory_space<vmem>>, vector<1x8x128xf32>,
    return
  }
  func.func @transform_0(%arg0: i32, %arg1: i32) -> (i32, i32, i32) {
    %c0_i32 = arith.constant 0 : i32
    %c0_i32_0 = arith.constant 0 : i32
    %c0_i32_1 = arith.constant 0 : i32
    return %arg0, %c0_i32, %c0_i32_0 : i32, i32, i32
  }
  func.func @transform_1(%arg0: i32, %arg1: i32) -> (i32, i32) {
    %c0_i32 = arith.constant 0 : i32
    %c0_i32_0 = arith.constant 0 : i32
    %c0_i32_1 = arith.constant 0 : i32
    return %c0_i32, %c0_i32_0 : i32, i32
  }
  func.func @transform_2(%arg0: i32, %arg1: i32) -> (i32, i32) {
    %c0_i32 = arith.constant 0 : i32
    %c0_i32_0 = arith.constant 0 : i32
    %c0_i32_1 = arith.constant 0 : i32
    return %c0_i32, %c0_i32_0 : i32, i32
  }
  func.func @transform_3(%arg0: i32, %arg1: i32) -> (i32, i32) {
    %c0_i32 = arith.constant 0 : i32
    %c0_i32_0 = arith.constant 0 : i32
    %c0_i32_1 = arith.constant 0 : i32
    return %c0_i32, %c0_i32_0 : i32, i32
  }
  func.func @transform_4(%arg0: i32, %arg1: i32) -> (i32, i32) {
    %c0_i32 = arith.constant 0 : i32
    %c0_i32_0 = arith.constant 0 : i32
    %c0_i32_1 = arith.constant 0 : i32
    return %c0_i32, %c0_i32_0 : i32, i32
  }
  func.func @transform_5(%arg0: i32, %arg1: i32) -> (i32, i32) {
    %c0_i32 = arith.constant 0 : i32
    %c0_i32_0 = arith.constant 0 : i32
    %c0_i32_1 = arith.constant 0 : i32
    return %c0_i32, %c0_i32_0 : i32, i32
  }
  func.func @transform_6(%arg0: i32, %arg1: i32) -> (i32, i32) {
    %c0_i32 = arith.constant 0 : i32
    %c0_i32_0 = arith.constant 0 : i32
    %c0_i32_1 = arith.constant 0 : i32
    return %c0_i32, %c0_i32_0 : i32, i32
  }
  func.func @transform_7(%arg0: i32, %arg1: i32) -> (i32, i32, i32) {
    %c0_i32 = arith.constant 0 : i32
    %c0_i32_0 = arith.constant 0 : i32
    return %arg0, %arg1, %c0_i32 : i32, i32, i32
  }
}

module attributes {stable_mosaic.version = 11 : i64} {
  func.func @_ffn_kernel(%arg0: i32, %arg1: memref<8x128xf32, #tpu.memory_space<vmem>>, %arg2: memref<1x128xf32, #tpu.memory_space<vmem>>, %arg3: memref<1x128xf32, #tpu.memory_space<vmem>>, %arg4: memref<128x256xbf16, #tpu.memory_space<vmem>>, %arg5: memref<1x256xf32, #tpu.memory_space<vmem>>, %arg6: memref<256x128xbf16, #tpu.memory_space<vmem>>, %arg7: memref<1x128xf32, #tpu.memory_space<vmem>>, %arg8: memref<1x128xf32, #tpu.memory_space<vmem>>, %arg9: memref<1x128xf32, #tpu.memory_space<vmem>>, %arg10: memref<8x128xf32, #tpu.memory_space<vmem>>) attributes {dimension_semantics = [#tpu.dimension_semantics<parallel>], iteration_bounds = array<i64: 4>, scalar_prefetch = 0 : i64, scratch_operands = 0 : i64, tpu.core_type = #tpu.core_type<tc>, window_params = [{transform_indices = @transform_0, window_bounds = array<i64: 8, 128>}, {pipeline_mode = #tpu.pipeline_mode<synchronous>, transform_indices = @transform_1, window_bounds = array<i64: 1, 128>}, {pipeline_mode = #tpu.pipeline_mode<synchronous>, transform_indices = @transform_2, window_bounds = array<i64: 1, 128>}, {pipeline_mode = #tpu.pipeline_mode<synchronous>, transform_indices = @transform_3, window_bounds = array<i64: 128, 256>}, {pipeline_mode = #tpu.pipeline_mode<synchronous>, transform_indices = @transform_4, window_bounds = array<i64: 1, 256>}, {pipeline_mode = #tpu.pipeline_mode<synchronous>, transform_indices = @transform_5, window_bounds = array<i64: 256, 128>}, {pipeline_mode = #tpu.pipeline_mode<synchronous>, transform_indices = @transform_6, window_bounds = array<i64: 1, 128>}, {pipeline_mode = #tpu.pipeline_mode<synchronous>, transform_indices = @transform_7, window_bounds = array<i64: 1, 128>}, {pipeline_mode = #tpu.pipeline_mode<synchronous>, transform_indices = @transform_8, window_bounds = array<i64: 1, 128>}, {transform_indices = @transform_9, window_bounds = array<i64: 8, 128>}]} {
    %c0 = arith.constant 0 : index
    %c0_0 = arith.constant 0 : index
    %0 = vector.load %arg1[%c0, %c0_0] : memref<8x128xf32, #tpu.memory_space<vmem>>, vector<8x128xf32>
    %c0_1 = arith.constant 0 : index
    %c0_2 = arith.constant 0 : index
    %1 = vector.load %arg2[%c0_1, %c0_2] : memref<1x128xf32, #tpu.memory_space<vmem>>, vector<1x128xf32>
    %c0_3 = arith.constant 0 : index
    %c0_4 = arith.constant 0 : index
    %2 = vector.load %arg3[%c0_3, %c0_4] : memref<1x128xf32, #tpu.memory_space<vmem>>, vector<1x128xf32>
    %cst = arith.constant dense<0.000000e+00> : vector<8xf32>
    %3 = vector.multi_reduction <add>, %0, %cst [1] : vector<8x128xf32> to vector<8xf32>
    %4 = vector.shape_cast %3 : vector<8xf32> to vector<8x1xf32>
    %cst_5 = arith.constant 1.280000e+02 : f32
    %5 = vector.broadcast %cst_5 : f32 to vector<8x1xf32>
    %6 = arith.divf %4, %5 : vector<8x1xf32>
    %7 = vector.broadcast %6 : vector<8x1xf32> to vector<8x128xf32>
    %8 = arith.subf %0, %7 : vector<8x128xf32>
    %9 = arith.mulf %8, %8 : vector<8x128xf32>
    %cst_6 = arith.constant dense<0.000000e+00> : vector<8xf32>
    %10 = vector.multi_reduction <add>, %9, %cst_6 [1] : vector<8x128xf32> to vector<8xf32>
    %11 = vector.shape_cast %10 : vector<8xf32> to vector<8x1xf32>
    %cst_7 = arith.constant 0.00787401571 : f32
    %12 = vector.broadcast %cst_7 : f32 to vector<8x1xf32>
    %13 = arith.mulf %11, %12 : vector<8x1xf32>
    %14 = math.sqrt %13 : vector<8x1xf32>
    %15 = vector.broadcast %1 : vector<1x128xf32> to vector<8x128xf32>
    %16 = arith.mulf %15, %8 : vector<8x128xf32>
    %cst_8 = arith.constant 9.99999997E-7 : f32
    %17 = vector.broadcast %cst_8 : f32 to vector<8x1xf32>
    %18 = arith.addf %14, %17 : vector<8x1xf32>
    %19 = tpu.reciprocal %18 : vector<8x1xf32> -> vector<8x1xf32>
    %20 = vector.broadcast %19 : vector<8x1xf32> to vector<8x128xf32>
    %21 = arith.mulf %16, %20 : vector<8x128xf32>
    %22 = vector.broadcast %2 : vector<1x128xf32> to vector<8x128xf32>
    %23 = arith.addf %21, %22 : vector<8x128xf32>
    %24 = arith.truncf %23 : vector<8x128xf32> to vector<8x128xbf16>
    %c0_9 = arith.constant 0 : index
    %c0_10 = arith.constant 0 : index
    %25 = vector.load %arg4[%c0_9, %c0_10] : memref<128x256xbf16, #tpu.memory_space<vmem>>, vector<128x256xbf16>
    %cst_11 = arith.constant dense<0.000000e+00> : vector<8x256xf32>
    %26 = tpu.matmul %24, %25, %cst_11 {dimension_numbers = #tpu.dot_dimension_numbers<[1], [0], [0], [1], [0, 0, 1, 1], [], []>} : vector<8x128xbf16>, vector<128x256xbf16>, vector<8x256xf32> -> vector<8x256xf32>
    %c0_12 = arith.constant 0 : index
    %c0_13 = arith.constant 0 : index
    %27 = vector.load %arg5[%c0_12, %c0_13] : memref<1x256xf32, #tpu.memory_space<vmem>>, vector<1x256xf32>
    %28 = vector.broadcast %27 : vector<1x256xf32> to vector<8x256xf32>
    %29 = arith.addf %26, %28 : vector<8x256xf32>
    %cst_14 = arith.constant 0.000000e+00 : f32
    %30 = vector.broadcast %cst_14 : f32 to vector<8x256xf32>
    %31 = arith.maximumf %29, %30 : vector<8x256xf32>
    %32 = arith.truncf %31 : vector<8x256xf32> to vector<8x256xbf16>
    %c0_15 = arith.constant 0 : index
    %c0_16 = arith.constant 0 : index
    %33 = vector.load %arg6[%c0_15, %c0_16] : memref<256x128xbf16, #tpu.memory_space<vmem>>, vector<256x128xbf16>
    %cst_17 = arith.constant dense<0.000000e+00> : vector<8x128xf32>
    %34 = tpu.matmul %32, %33, %cst_17 {dimension_numbers = #tpu.dot_dimension_numbers<[1], [0], [0], [1], [0, 0, 1, 1], [], []>} : vector<8x256xbf16>, vector<256x128xbf16>, vector<8x128xf32> -> vector<8x128xf32>
    %35 = arith.addf %0, %34 : vector<8x128xf32>
    %c0_18 = arith.constant 0 : index
    %c0_19 = arith.constant 0 : index
    %36 = vector.load %arg7[%c0_18, %c0_19] : memref<1x128xf32, #tpu.memory_space<vmem>>, vector<1x128xf32>
    %37 = vector.broadcast %36 : vector<1x128xf32> to vector<8x128xf32>
    %38 = arith.addf %35, %37 : vector<8x128xf32>
    %c0_20 = arith.constant 0 : index
    %c0_21 = arith.constant 0 : index
    %39 = vector.load %arg8[%c0_20, %c0_21] : memref<1x128xf32, #tpu.memory_space<vmem>>, vector<1x128xf32>
    %c0_22 = arith.constant 0 : index
    %c0_23 = arith.constant 0 : index
    %40 = vector.load %arg9[%c0_22, %c0_23] : memref<1x128xf32, #tpu.memory_space<vmem>>, vector<1x128xf32>
    %cst_24 = arith.constant dense<0.000000e+00> : vector<8xf32>
    %41 = vector.multi_reduction <add>, %38, %cst_24 [1] : vector<8x128xf32> to vector<8xf32>
    %42 = vector.shape_cast %41 : vector<8xf32> to vector<8x1xf32>
    %cst_25 = arith.constant 1.280000e+02 : f32
    %43 = vector.broadcast %cst_25 : f32 to vector<8x1xf32>
    %44 = arith.divf %42, %43 : vector<8x1xf32>
    %45 = vector.broadcast %44 : vector<8x1xf32> to vector<8x128xf32>
    %46 = arith.subf %38, %45 : vector<8x128xf32>
    %47 = arith.mulf %46, %46 : vector<8x128xf32>
    %cst_26 = arith.constant dense<0.000000e+00> : vector<8xf32>
    %48 = vector.multi_reduction <add>, %47, %cst_26 [1] : vector<8x128xf32> to vector<8xf32>
    %49 = vector.shape_cast %48 : vector<8xf32> to vector<8x1xf32>
    %cst_27 = arith.constant 0.00787401571 : f32
    %50 = vector.broadcast %cst_27 : f32 to vector<8x1xf32>
    %51 = arith.mulf %49, %50 : vector<8x1xf32>
    %52 = math.sqrt %51 : vector<8x1xf32>
    %53 = vector.broadcast %39 : vector<1x128xf32> to vector<8x128xf32>
    %54 = arith.mulf %53, %46 : vector<8x128xf32>
    %cst_28 = arith.constant 9.99999997E-7 : f32
    %55 = vector.broadcast %cst_28 : f32 to vector<8x1xf32>
    %56 = arith.addf %52, %55 : vector<8x1xf32>
    %57 = tpu.reciprocal %56 : vector<8x1xf32> -> vector<8x1xf32>
    %58 = vector.broadcast %57 : vector<8x1xf32> to vector<8x128xf32>
    %59 = arith.mulf %54, %58 : vector<8x128xf32>
    %60 = vector.broadcast %40 : vector<1x128xf32> to vector<8x128xf32>
    %61 = arith.addf %59, %60 : vector<8x128xf32>
    %c0_29 = arith.constant 0 : index
    %c0_30 = arith.constant 0 : index
    %62 = vector.load %arg10[%c0_29, %c0_30] : memref<8x128xf32, #tpu.memory_space<vmem>>, vector<8x128xf32>
    tpu.vector_store %arg10[%c0_29, %c0_30], %61 {strides = array<i32>} : memref<8x128xf32, #tpu.memory_space<vmem>>, vector<8x128xf32>,
    return
  }
  func.func @transform_0(%arg0: i32) -> (i32, i32) {
    %c0_i32 = arith.constant 0 : i32
    %c0_i32_0 = arith.constant 0 : i32
    return %arg0, %c0_i32 : i32, i32
  }
  func.func @transform_1(%arg0: i32) -> (i32, i32) {
    %c0_i32 = arith.constant 0 : i32
    %c0_i32_0 = arith.constant 0 : i32
    %c0_i32_1 = arith.constant 0 : i32
    return %c0_i32, %c0_i32_0 : i32, i32
  }
  func.func @transform_2(%arg0: i32) -> (i32, i32) {
    %c0_i32 = arith.constant 0 : i32
    %c0_i32_0 = arith.constant 0 : i32
    %c0_i32_1 = arith.constant 0 : i32
    return %c0_i32, %c0_i32_0 : i32, i32
  }
  func.func @transform_3(%arg0: i32) -> (i32, i32) {
    %c0_i32 = arith.constant 0 : i32
    %c0_i32_0 = arith.constant 0 : i32
    %c0_i32_1 = arith.constant 0 : i32
    return %c0_i32, %c0_i32_0 : i32, i32
  }
  func.func @transform_4(%arg0: i32) -> (i32, i32) {
    %c0_i32 = arith.constant 0 : i32
    %c0_i32_0 = arith.constant 0 : i32
    %c0_i32_1 = arith.constant 0 : i32
    return %c0_i32, %c0_i32_0 : i32, i32
  }
  func.func @transform_5(%arg0: i32) -> (i32, i32) {
    %c0_i32 = arith.constant 0 : i32
    %c0_i32_0 = arith.constant 0 : i32
    %c0_i32_1 = arith.constant 0 : i32
    return %c0_i32, %c0_i32_0 : i32, i32
  }
  func.func @transform_6(%arg0: i32) -> (i32, i32) {
    %c0_i32 = arith.constant 0 : i32
    %c0_i32_0 = arith.constant 0 : i32
    %c0_i32_1 = arith.constant 0 : i32
    return %c0_i32, %c0_i32_0 : i32, i32
  }
  func.func @transform_7(%arg0: i32) -> (i32, i32) {
    %c0_i32 = arith.constant 0 : i32
    %c0_i32_0 = arith.constant 0 : i32
    %c0_i32_1 = arith.constant 0 : i32
    return %c0_i32, %c0_i32_0 : i32, i32
  }
  func.func @transform_8(%arg0: i32) -> (i32, i32) {
    %c0_i32 = arith.constant 0 : i32
    %c0_i32_0 = arith.constant 0 : i32
    %c0_i32_1 = arith.constant 0 : i32
    return %c0_i32, %c0_i32_0 : i32, i32
  }
  func.func @transform_9(%arg0: i32) -> (i32, i32) {
    %c0_i32 = arith.constant 0 : i32
    %c0_i32_0 = arith.constant 0 : i32
    return %arg0, %c0_i32 : i32, i32
  }
}

</mosaic_0001>

<llo_original>
// kernel: tpu_custom_call.1
$region0: #{tpu_custom_call.1}
  #allocation0 [shape = 'u32[]', space=smem, size = 0x4, offset = 0x4, fixed_abs, tag = 'smem constant byte address 0x4 - core index']
  #allocation1 [shape = 'u32[144,128]{1,0:T(1,128)}', space=vmem, size = 0x12000, scoped, tag = 'internal scratch']
  %s0 = inlined_call_operand.hbm [shape: f32[16,128], index: 0, kind: input, shape index: {}]
  %s1 = inlined_call_operand.hbm [shape: f32[8,128], index: 1, kind: input, shape index: {}]
  %s2 = inlined_call_operand.hbm [shape: f32[16,128], index: 2, kind: output, shape index: {}]
  %s3 = sld [smem:[#allocation0]]
  $region49: #{tpu_custom_call.1} parent=0
    _
  %s5 = ssub.s32 1, %s3
  %s6 = scalar_select 0, %s5, %s3
  $region1: #{tpu_custom_call.1} parent=0
    #allocation2 [shape = 'u8[8192]{0}', space=vmem, size = 0x2000, scoped, tag = 'input window, operand 0']
    #allocation3 [shape = 's32[2]{0}', space=sflag, size = 0x8, scoped, tag = 'scoped memory for tpu_custom_call.1']
    #allocation4 [shape = 's32[2]{0}', space=sflag, size = 0x8, scoped, tag = 'scoped memory for tpu_custom_call.1']
    #allocation5 [shape = 'u8[4096]{0}', space=vmem, size = 0x1000, scoped, tag = 'input window, operand 1, single buffered']
    #allocation6 [shape = 's32[1]{0}', space=sflag, size = 0x4, scoped, tag = 'scoped memory for tpu_custom_call.1']
    #allocation7 [shape = 'u8[8192]{0}', space=vmem, size = 0x2000, scoped, tag = 'output window, operand 0']
    %7 = vsyncpa [#allocation3], 0
    %s8 = scalar_lea.sflag [#allocation3], 1
    %9 = vsyncpa %s8, 0
    %10 = vsyncpa [#allocation6], 0
    %11 = vsyncpa [#allocation4], 0
    %s12 = scalar_lea.sflag [#allocation4], 1
    %13 = vsyncpa %s12, 0
    loop: start=0, step=1, limit=4
    $region2: #{tpu_custom_call.1} parent=1 // loop_pre_header
      _
    $region3: #{tpu_custom_call.1} parent=1 // loop_header
      %s15 = sphi 0, %s19
      %p16 = scmp.ge.s32.totalorder %s15, 4
      %s25 = sphi 0, %s27
      %s28 = sphi 0, %s25
      %s29 = sphi 0, %s28
      %s45 = sphi 0, %s29
      %s49 = sphi 0, %s49
      %s51 = sphi 0, %s49
      %s52 = sphi 0, %s51
      %s66 = sphi 0, %s52
      %s72 = sphi 0, %s74
      %s75 = sphi 0, %s72
      %s76 = sphi 0, %s75
      %s92 = sphi 0, %s76
    $region4: #{tpu_custom_call.1} parent=1 // loop_header_branch
      %18 = sbr.rel (%p16) target = $region8
    $region5: #{tpu_custom_call.1} parent=1 // loop_body
      %s20 = ssub.s32 %s15, 1
      %s21 = ssub.s32 %s15, 2
      %s22 = sadd.s32 %s15, 1
      %s23 = ssub.s32 %s15, %s22
      %p24 = scmp.eq.s32.totalorder %s23, 0
      %s26 = sadd.s32 %s25, 1
      %s27 = scalar_select %p24, %s25, %s26
      %p30 = pneg %p24
      %p31 = scmp.eq.s32.totalorder %s15, 1
      %p32 = por %p30, %p31
      %p33 = scmp.ne.s32.totalorder %s25, %s28
      %p34 = scmp.eq.s32.totalorder %s15, 0
      %p35 = por %p33, %p34
      %p36 = scmp.ne.s32.totalorder %s25, %s28
      %p37 = scmp.eq.s32.totalorder %s20, 1
      %p38 = por %p36, %p37
      %p39 = scmp.ne.s32.totalorder %s28, %s29
      %p40 = scmp.eq.s32.totalorder %s20, 0
      %p41 = por %p39, %p40
      %p42 = scmp.ne.s32.totalorder %s28, %s29
      %p43 = scmp.eq.s32.totalorder %s21, 1
      %p44 = por %p42, %p43
      %p46 = scmp.ne.s32.totalorder %s29, %s45
      %p47 = scmp.eq.s32.totalorder %s21, 0
      %p48 = por %p46, %p47
      %s50 = sadd.s32 %s49, 1
      %p53 = scmp.eq.s32.totalorder %s15, 1
      %p54 = scmp.ne.s32.totalorder %s49, %s51
      %p55 = scmp.eq.s32.totalorder %s15, 0
      %p56 = por %p54, %p55
      %p57 = scmp.ne.s32.totalorder %s49, %s51
      %p58 = scmp.eq.s32.totalorder %s20, 1
      %p59 = por %p57, %p58
      %p60 = scmp.ne.s32.totalorder %s51, %s52
      %p61 = scmp.eq.s32.totalorder %s20, 0
      %p62 = por %p60, %p61
      %p63 = scmp.ne.s32.totalorder %s51, %s52
      %p64 = scmp.eq.s32.totalorder %s21, 1
      %p65 = por %p63, %p64
      %p67 = scmp.ne.s32.totalorder %s52, %s66
      %p68 = scmp.eq.s32.totalorder %s21, 0
      %p69 = por %p67, %p68
      %s70 = ssub.s32 %s15, %s22
      %p71 = scmp.eq.s32.totalorder %s70, 0
      %s73 = sadd.s32 %s72, 1
      %s74 = scalar_select %p71, %s72, %s73
      %p77 = pneg %p71
      %p78 = scmp.eq.s32.totalorder %s15, 1
      %p79 = por %p77, %p78
      %p80 = scmp.ne.s32.totalorder %s72, %s75
      %p81 = scmp.eq.s32.totalorder %s15, 0
      %p82 = por %p80, %p81
      %p83 = scmp.ne.s32.totalorder %s72, %s75
      %p84 = scmp.eq.s32.totalorder %s20, 1
      %p85 = por %p83, %p84
      %p86 = scmp.ne.s32.totalorder %s75, %s76
      %p87 = scmp.eq.s32.totalorder %s20, 0
      %p88 = por %p86, %p87
      %p89 = scmp.ne.s32.totalorder %s75, %s76
      %p90 = scmp.eq.s32.totalorder %s21, 1
      %p91 = por %p89, %p90
      %p93 = scmp.ne.s32.totalorder %s76, %s92
      %p94 = scmp.eq.s32.totalorder %s21, 0
      %p95 = por %p93, %p94
      %p96 = scmp.le.s32.totalorder 1, %s15
      %p97 = scmp.lt.s32.totalorder %s15, 3
      %p98 = pnand %p96, %p97
      %p99 = pneg %p98
      // Predicated region
      $region9: #{tpu_custom_call.1} parent=5 // pred_check
        _
      $region10: #{tpu_custom_call.1} parent=5 // pred_check_branch
        %101 = sbr.rel (%p98) target = $region12
      $region11: #{tpu_custom_call.1} parent=5 // pred_region
        %s102 = ssub.s32 %s15, 1
        // Predicated region
        $region13: #{tpu_custom_call.1} parent=11 // pred_check
          %p103 = pneg %p62
        $region14: #{tpu_custom_call.1} parent=11 // pred_check_branch
          %105 = sbr.rel (%p103) target = $region16
        $region15: #{tpu_custom_call.1} parent=11 // pred_region
          %s107 = ssub.s32 128, 128
          %108 = vsyncadd [#allocation6], %s107
          %s110 = sshll.u32 [#allocation5], 4
          %s111 = int_to_ptr.vmem [resolvable:$true] %s110
          %113 = dma.hbm_to_vmem [thread:$0]  %s1, 128, %s111, [#allocation6]
        $region16: #{tpu_custom_call.1} parent=11 // pred_fallthru
          _
      $region12: #{tpu_custom_call.1} parent=5 // pred_fallthru
        _
      %p114 = scmp.lt.s32.totalorder %s15, 2
      // Predicated region
      $region17: #{tpu_custom_call.1} parent=5 // pred_check
        %p115 = pneg %p114
      $region18: #{tpu_custom_call.1} parent=5 // pred_check_branch
        %117 = sbr.rel (%p115) target = $region20
      $region19: #{tpu_custom_call.1} parent=5 // pred_region
        // Predicated region
        $region21: #{tpu_custom_call.1} parent=19 // pred_check
          %p118 = pneg %p35
        $region22: #{tpu_custom_call.1} parent=19 // pred_check_branch
          %120 = sbr.rel (%p118) target = $region24
        $region23: #{tpu_custom_call.1} parent=19 // pred_region
          %s121 = sand.u32 %s25, 1
          %s122 = scalar_lea.sflag [#allocation3], %s121
          %s123 = sand.u32 %s25, 1
          %s124 = smul.addr %s123, 8
          %s125 = scalar_lea.vmem [#allocation2], %s124
          %s127 = ssub.s32 128, 128
          %128 = vsyncadd %s122, %s127
          %s129 = smul.addr %s15, 128
          %s130 = scalar_lea.hbm %s0, %s129
          %s132 = sshll.u32 %s125, 4
          %s133 = int_to_ptr.vmem [resolvable:$true] %s132
          %135 = dma.hbm_to_vmem [thread:$0]  %s130, 128, %s133, %s122
        $region24: #{tpu_custom_call.1} parent=19 // pred_fallthru
          _
      $region20: #{tpu_custom_call.1} parent=5 // pred_fallthru
        _
      %p136 = scmp.le.s32.totalorder 1, %s15
      %p137 = scmp.lt.s32.totalorder %s15, 3
      %p138 = pnand %p136, %p137
      %p139 = pneg %p138
      // Predicated region
      $region25: #{tpu_custom_call.1} parent=5 // pred_check
        _
      $region26: #{tpu_custom_call.1} parent=5 // pred_check_branch
        %141 = sbr.rel (%p138) target = $region28
      $region27: #{tpu_custom_call.1} parent=5 // pred_region
        %s142 = ssub.s32 %s15, 1
        %s143 = sand.u32 %s28, 1
        %s144 = scalar_lea.sflag [#allocation3], %s143
        %s145 = sand.u32 %s28, 1
        %s146 = smul.addr %s145, 8
        %s147 = scalar_lea.vmem [#allocation2], %s146
        // Predicated region
        $region29: #{tpu_custom_call.1} parent=27 // pred_check
          %p148 = pneg %p41
        $region30: #{tpu_custom_call.1} parent=27 // pred_check_branch
          %150 = sbr.rel (%p148) target = $region32
        $region31: #{tpu_custom_call.1} parent=27 // pred_region
          %151 = dma.done %s144, 128
        $region32: #{tpu_custom_call.1} parent=27 // pred_fallthru
          _
        // Predicated region
        $region33: #{tpu_custom_call.1} parent=27 // pred_check
          %p152 = pneg %p62
        $region34: #{tpu_custom_call.1} parent=27 // pred_check_branch
          %154 = sbr.rel (%p152) target = $region36
        $region35: #{tpu_custom_call.1} parent=27 // pred_region
          %155 = dma.done [#allocation6], 128
        $region36: #{tpu_custom_call.1} parent=27 // pred_fallthru
          _
        %s156 = sand.u32 %s28, 1
        %s157 = scalar_lea.sflag [#allocation3], %s156
        %s158 = sand.u32 %s28, 1
        %s159 = smul.addr %s158, 8
        %s160 = scalar_lea.vmem [#allocation2], %s159
        %p161 = pneg %p41
        %p162 = pneg %p38
        %p163 = pneg %p62
        %p164 = pneg %p59
        %p165 = pneg %p88
        %p166 = pneg %p85
        %s167 = sand.u32 %s75, 1
        %s168 = scalar_lea.sflag [#allocation4], %s167
        %s169 = sand.u32 %s75, 1
        %s170 = smul.addr %s169, 8
        %s171 = scalar_lea.vmem [#allocation7], %s170
        %v172 = vld [vmem:[%s147] sm:$0xff]
        %v173 = vld [vmem:[#allocation5] sm:$0xff]
        %v174 = vadd.f32 %v172, %v173
        %175 = vst [vmem:[%s171] sm:$0xff] %v174
        %s176 = sand.u32 %s75, 1
        %s177 = scalar_lea.sflag [#allocation4], %s176
        %s178 = sand.u32 %s75, 1
        %s179 = smul.addr %s178, 8
        %s180 = scalar_lea.vmem [#allocation7], %s179
        // Predicated region
        $region37: #{tpu_custom_call.1} parent=27 // pred_check
          %p181 = pneg %p85
        $region38: #{tpu_custom_call.1} parent=27 // pred_check_branch
          %183 = sbr.rel (%p181) target = $region40
        $region39: #{tpu_custom_call.1} parent=27 // pred_region
          %s185 = ssub.s32 128, 128
          %186 = vsyncadd %s177, %s185
          %s187 = smul.addr %s20, 128
          %s188 = scalar_lea.hbm %s2, %s187
          %s190 = sshll.u32 %s180, 4
          %s191 = int_to_ptr.vmem [resolvable:$true] %s190
          %193 = dma.vmem_to_hbm [thread:$0]  %s191, 128, %s188, %s177
        $region40: #{tpu_custom_call.1} parent=27 // pred_fallthru
          _
      $region28: #{tpu_custom_call.1} parent=5 // pred_fallthru
        _
      %p194 = scmp.le.s32.totalorder 2, %s15
      // Predicated region
      $region41: #{tpu_custom_call.1} parent=5 // pred_check
        %p195 = pneg %p194
      $region42: #{tpu_custom_call.1} parent=5 // pred_check_branch
        %197 = sbr.rel (%p195) target = $region44
      $region43: #{tpu_custom_call.1} parent=5 // pred_region
        %s198 = ssub.s32 %s15, 2
        // Predicated region
        $region45: #{tpu_custom_call.1} parent=43 // pred_check
          %p199 = pneg %p91
        $region46: #{tpu_custom_call.1} parent=43 // pred_check_branch
          %201 = sbr.rel (%p199) target = $region48
        $region47: #{tpu_custom_call.1} parent=43 // pred_region
          %s202 = sand.u32 %s76, 1
          %s203 = scalar_lea.sflag [#allocation4], %s202
          %s204 = sand.u32 %s76, 1
          %s205 = smul.addr %s204, 8
          %s206 = scalar_lea.vmem [#allocation7], %s205
          %207 = dma.done %s203, 128
        $region48: #{tpu_custom_call.1} parent=43 // pred_fallthru
          _
      $region44: #{tpu_custom_call.1} parent=5 // pred_fallthru
        _
    $region6: #{tpu_custom_call.1} parent=1 // loop_footer
      %s19 = sadd.s32 1, %s15
    $region7: #{tpu_custom_call.1} parent=1 // loop_footer_branch
      %14 = sbr.rel target = $region3
    $region8: #{tpu_custom_call.1} parent=1 // loop_exit
      _
    %208 = vsyncpa [#allocation3], 1
    %s209 = scalar_lea.sflag [#allocation3], 1
    %210 = vsyncpa %s209, 1
    %211 = vsyncpa [#allocation6], 1
    %212 = vsyncpa [#allocation4], 1
    %s213 = scalar_lea.sflag [#allocation4], 1
    %214 = vsyncpa %s213, 1

// kernel: decoder_forward.8
$region0: #{decoder_forward.8}
  #allocation0 [shape = 'u32[]', space=smem, size = 0x4, offset = 0x4, fixed_abs, tag = 'smem constant byte address 0x4 - core index']
  #allocation1 [shape = 'u32[144,128]{1,0:T(1,128)}', space=vmem, size = 0x12000, scoped, tag = 'internal scratch']
  %s0 = inlined_call_operand.vmem [shape: f32[32,128], index: 0, kind: input, shape index: {}]
  %s1 = inlined_call_operand.vmem [shape: f32[1,128], index: 1, kind: input, shape index: {}]
  %s2 = inlined_call_operand.vmem [shape: f32[1,128], index: 2, kind: input, shape index: {}]
  %s3 = inlined_call_operand.vmem [shape: bf16[128,256], index: 3, kind: input, shape index: {}]
  %s4 = inlined_call_operand.vmem [shape: f32[1,256], index: 4, kind: input, shape index: {}]
  %s5 = inlined_call_operand.vmem [shape: bf16[256,128], index: 5, kind: input, shape index: {}]
  %s6 = inlined_call_operand.vmem [shape: f32[1,128], index: 6, kind: input, shape index: {}]
  %s7 = inlined_call_operand.vmem [shape: f32[32,128], index: 7, kind: output, shape index: {}]
  %s8 = sld [smem:[#allocation0]]
  $region61: #{decoder_forward.8} parent=0
    _
  %s10 = ssub.s32 1, %s8
  %s11 = scalar_select 0, %s10, %s8
  loop: start=0, step=1, limit=6
  $region2: #{decoder_forward.8} parent=0 // loop_pre_header
    _
  $region3: #{decoder_forward.8} parent=0 // loop_header
    %s13 = sphi 0, %s17
    %p14 = scmp.ge.s32.totalorder %s13, 6
    %s23 = sphi 0, %s25
    %s26 = sphi 0, %s23
    %s27 = sphi 0, %s26
    %s43 = sphi 0, %s27
    %s47 = sphi 0, %s47
    %s49 = sphi 0, %s47
    %s50 = sphi 0, %s49
    %s64 = sphi 0, %s50
    %s68 = sphi 0, %s68
    %s70 = sphi 0, %s68
    %s71 = sphi 0, %s70
    %s85 = sphi 0, %s71
    %s89 = sphi 0, %s89
    %s91 = sphi 0, %s89
    %s92 = sphi 0, %s91
    %s106 = sphi 0, %s92
    %s110 = sphi 0, %s110
    %s112 = sphi 0, %s110
    %s113 = sphi 0, %s112
    %s127 = sphi 0, %s113
    %s131 = sphi 0, %s131
    %s133 = sphi 0, %s131
    %s134 = sphi 0, %s133
    %s148 = sphi 0, %s134
    %s152 = sphi 0, %s152
    %s154 = sphi 0, %s152
    %s155 = sphi 0, %s154
    %s169 = sphi 0, %s155
    %s175 = sphi 0, %s177
    %s178 = sphi 0, %s175
    %s179 = sphi 0, %s178
    %s195 = sphi 0, %s179
  $region4: #{decoder_forward.8} parent=0 // loop_header_branch
    %16 = sbr.rel (%p14) target = $region8
  $region5: #{decoder_forward.8} parent=0 // loop_body
    %s18 = ssub.s32 %s13, 1
    %s19 = ssub.s32 %s13, 2
    %s20 = sadd.s32 %s13, 1
    %s21 = ssub.s32 %s13, %s20
    %p22 = scmp.eq.s32.totalorder %s21, 0
    %s24 = sadd.s32 %s23, 1
    %s25 = scalar_select %p22, %s23, %s24
    %p28 = pneg %p22
    %p29 = scmp.eq.s32.totalorder %s13, 3
    %p30 = por %p28, %p29
    %p31 = scmp.ne.s32.totalorder %s23, %s26
    %p32 = scmp.eq.s32.totalorder %s13, 0
    %p33 = por %p31, %p32
    %p34 = scmp.ne.s32.totalorder %s23, %s26
    %p35 = scmp.eq.s32.totalorder %s18, 3
    %p36 = por %p34, %p35
    %p37 = scmp.ne.s32.totalorder %s26, %s27
    %p38 = scmp.eq.s32.totalorder %s18, 0
    %p39 = por %p37, %p38
    %p40 = scmp.ne.s32.totalorder %s26, %s27
    %p41 = scmp.eq.s32.totalorder %s19, 3
    %p42 = por %p40, %p41
    %p44 = scmp.ne.s32.totalorder %s27, %s43
    %p45 = scmp.eq.s32.totalorder %s19, 0
    %p46 = por %p44, %p45
    %s48 = sadd.s32 %s47, 1
    %p51 = scmp.eq.s32.totalorder %s13, 3
    %p52 = scmp.ne.s32.totalorder %s47, %s49
    %p53 = scmp.eq.s32.totalorder %s13, 0
    %p54 = por %p52, %p53
    %p55 = scmp.ne.s32.totalorder %s47, %s49
    %p56 = scmp.eq.s32.totalorder %s18, 3
    %p57 = por %p55, %p56
    %p58 = scmp.ne.s32.totalorder %s49, %s50
    %p59 = scmp.eq.s32.totalorder %s18, 0
    %p60 = por %p58, %p59
    %p61 = scmp.ne.s32.totalorder %s49, %s50
    %p62 = scmp.eq.s32.totalorder %s19, 3
    %p63 = por %p61, %p62
    %p65 = scmp.ne.s32.totalorder %s50, %s64
    %p66 = scmp.eq.s32.totalorder %s19, 0
    %p67 = por %p65, %p66
    %s69 = sadd.s32 %s68, 1
    %p72 = scmp.eq.s32.totalorder %s13, 3
    %p73 = scmp.ne.s32.totalorder %s68, %s70
    %p74 = scmp.eq.s32.totalorder %s13, 0
    %p75 = por %p73, %p74
    %p76 = scmp.ne.s32.totalorder %s68, %s70
    %p77 = scmp.eq.s32.totalorder %s18, 3
    %p78 = por %p76, %p77
    %p79 = scmp.ne.s32.totalorder %s70, %s71
    %p80 = scmp.eq.s32.totalorder %s18, 0
    %p81 = por %p79, %p80
    %p82 = scmp.ne.s32.totalorder %s70, %s71
    %p83 = scmp.eq.s32.totalorder %s19, 3
    %p84 = por %p82, %p83
    %p86 = scmp.ne.s32.totalorder %s71, %s85
    %p87 = scmp.eq.s32.totalorder %s19, 0
    %p88 = por %p86, %p87
    %s90 = sadd.s32 %s89, 1
    %p93 = scmp.eq.s32.totalorder %s13, 3
    %p94 = scmp.ne.s32.totalorder %s89, %s91
    %p95 = scmp.eq.s32.totalorder %s13, 0
    %p96 = por %p94, %p95
    %p97 = scmp.ne.s32.totalorder %s89, %s91
    %p98 = scmp.eq.s32.totalorder %s18, 3
    %p99 = por %p97, %p98
    %p100 = scmp.ne.s32.totalorder %s91, %s92
    %p101 = scmp.eq.s32.totalorder %s18, 0
    %p102 = por %p100, %p101
    %p103 = scmp.ne.s32.totalorder %s91, %s92
    %p104 = scmp.eq.s32.totalorder %s19, 3
    %p105 = por %p103, %p104
    %p107 = scmp.ne.s32.totalorder %s92, %s106
    %p108 = scmp.eq.s32.totalorder %s19, 0
    %p109 = por %p107, %p108
    %s111 = sadd.s32 %s110, 1
    %p114 = scmp.eq.s32.totalorder %s13, 3
    %p115 = scmp.ne.s32.totalorder %s110, %s112
    %p116 = scmp.eq.s32.totalorder %s13, 0
    %p117 = por %p115, %p116
    %p118 = scmp.ne.s32.totalorder %s110, %s112
    %p119 = scmp.eq.s32.totalorder %s18, 3
    %p120 = por %p118, %p119
    %p121 = scmp.ne.s32.totalorder %s112, %s113
    %p122 = scmp.eq.s32.totalorder %s18, 0
    %p123 = por %p121, %p122
    %p124 = scmp.ne.s32.totalorder %s112, %s113
    %p125 = scmp.eq.s32.totalorder %s19, 3
    %p126 = por %p124, %p125
    %p128 = scmp.ne.s32.totalorder %s113, %s127
    %p129 = scmp.eq.s32.totalorder %s19, 0
    %p130 = por %p128, %p129
    %s132 = sadd.s32 %s131, 1
    %p135 = scmp.eq.s32.totalorder %s13, 3
    %p136 = scmp.ne.s32.totalorder %s131, %s133
    %p137 = scmp.eq.s32.totalorder %s13, 0
    %p138 = por %p136, %p137
    %p139 = scmp.ne.s32.totalorder %s131, %s133
    %p140 = scmp.eq.s32.totalorder %s18, 3
    %p141 = por %p139, %p140
    %p142 = scmp.ne.s32.totalorder %s133, %s134
    %p143 = scmp.eq.s32.totalorder %s18, 0
    %p144 = por %p142, %p143
    %p145 = scmp.ne.s32.totalorder %s133, %s134
    %p146 = scmp.eq.s32.totalorder %s19, 3
    %p147 = por %p145, %p146
    %p149 = scmp.ne.s32.totalorder %s134, %s148
    %p150 = scmp.eq.s32.totalorder %s19, 0
    %p151 = por %p149, %p150
    %s153 = sadd.s32 %s152, 1
    %p156 = scmp.eq.s32.totalorder %s13, 3
    %p157 = scmp.ne.s32.totalorder %s152, %s154
    %p158 = scmp.eq.s32.totalorder %s13, 0
    %p159 = por %p157, %p158
    %p160 = scmp.ne.s32.totalorder %s152, %s154
    %p161 = scmp.eq.s32.totalorder %s18, 3
    %p162 = por %p160, %p161
    %p163 = scmp.ne.s32.totalorder %s154, %s155
    %p164 = scmp.eq.s32.totalorder %s18, 0
    %p165 = por %p163, %p164
    %p166 = scmp.ne.s32.totalorder %s154, %s155
    %p167 = scmp.eq.s32.totalorder %s19, 3
    %p168 = por %p166, %p167
    %p170 = scmp.ne.s32.totalorder %s155, %s169
    %p171 = scmp.eq.s32.totalorder %s19, 0
    %p172 = por %p170, %p171
    %s173 = ssub.s32 %s13, %s20
    %p174 = scmp.eq.s32.totalorder %s173, 0
    %s176 = sadd.s32 %s175, 1
    %s177 = scalar_select %p174, %s175, %s176
    %p180 = pneg %p174
    %p181 = scmp.eq.s32.totalorder %s13, 3
    %p182 = por %p180, %p181
    %p183 = scmp.ne.s32.totalorder %s175, %s178
    %p184 = scmp.eq.s32.totalorder %s13, 0
    %p185 = por %p183, %p184
    %p186 = scmp.ne.s32.totalorder %s175, %s178
    %p187 = scmp.eq.s32.totalorder %s18, 3
    %p188 = por %p186, %p187
    %p189 = scmp.ne.s32.totalorder %s178, %s179
    %p190 = scmp.eq.s32.totalorder %s18, 0
    %p191 = por %p189, %p190
    %p192 = scmp.ne.s32.totalorder %s178, %s179
    %p193 = scmp.eq.s32.totalorder %s19, 3
    %p194 = por %p192, %p193
    %p196 = scmp.ne.s32.totalorder %s179, %s195
    %p197 = scmp.eq.s32.totalorder %s19, 0
    %p198 = por %p196, %p197
    %p199 = scmp.le.s32.totalorder 1, %s13
    %p200 = scmp.lt.s32.totalorder %s13, 5
    %p201 = pnand %p199, %p200
    %p202 = pneg %p201
    // Predicated region
    $region9: #{decoder_forward.8} parent=5 // pred_check
      _
    $region10: #{decoder_forward.8} parent=5 // pred_check_branch
      %204 = sbr.rel (%p201) target = $region12
    $region11: #{decoder_forward.8} parent=5 // pred_region
      %s205 = ssub.s32 %s13, 1
      // Predicated region
      $region13: #{decoder_forward.8} parent=11 // pred_check
        %p206 = pneg %p60
      $region14: #{decoder_forward.8} parent=11 // pred_check_branch
        %208 = sbr.rel (%p206) target = $region16
      $region15: #{decoder_forward.8} parent=11 // pred_region
        _
      $region16: #{decoder_forward.8} parent=11 // pred_fallthru
        _
      // Predicated region
      $region17: #{decoder_forward.8} parent=11 // pred_check
        %p209 = pneg %p81
      $region18: #{decoder_forward.8} parent=11 // pred_check_branch
        %211 = sbr.rel (%p209) target = $region20
      $region19: #{decoder_forward.8} parent=11 // pred_region
        _
      $region20: #{decoder_forward.8} parent=11 // pred_fallthru
        _
      // Predicated region
      $region21: #{decoder_forward.8} parent=11 // pred_check
        %p212 = pneg %p102
      $region22: #{decoder_forward.8} parent=11 // pred_check_branch
        %214 = sbr.rel (%p212) target = $region24
      $region23: #{decoder_forward.8} parent=11 // pred_region
        _
      $region24: #{decoder_forward.8} parent=11 // pred_fallthru
        _
      // Predicated region
      $region25: #{decoder_forward.8} parent=11 // pred_check
        %p215 = pneg %p123
      $region26: #{decoder_forward.8} parent=11 // pred_check_branch
        %217 = sbr.rel (%p215) target = $region28
      $region27: #{decoder_forward.8} parent=11 // pred_region
        _
      $region28: #{decoder_forward.8} parent=11 // pred_fallthru
        _
      // Predicated region
      $region29: #{decoder_forward.8} parent=11 // pred_check
        %p218 = pneg %p144
      $region30: #{decoder_forward.8} parent=11 // pred_check_branch
        %220 = sbr.rel (%p218) target = $region32
      $region31: #{decoder_forward.8} parent=11 // pred_region
        _
      $region32: #{decoder_forward.8} parent=11 // pred_fallthru
        _
      // Predicated region
      $region33: #{decoder_forward.8} parent=11 // pred_check
        %p221 = pneg %p165
      $region34: #{decoder_forward.8} parent=11 // pred_check_branch
        %223 = sbr.rel (%p221) target = $region36
      $region35: #{decoder_forward.8} parent=11 // pred_region
        _
      $region36: #{decoder_forward.8} parent=11 // pred_fallthru
        _
    $region12: #{decoder_forward.8} parent=5 // pred_fallthru
      _
    %p224 = scmp.lt.s32.totalorder %s13, 4
    // Predicated region
    $region37: #{decoder_forward.8} parent=5 // pred_check
      %p225 = pneg %p224
    $region38: #{decoder_forward.8} parent=5 // pred_check_branch
      %227 = sbr.rel (%p225) target = $region40
    $region39: #{decoder_forward.8} parent=5 // pred_region
      // Predicated region
      $region41: #{decoder_forward.8} parent=39 // pred_check
        %p228 = pneg %p33
      $region42: #{decoder_forward.8} parent=39 // pred_check_branch
        %230 = sbr.rel (%p228) target = $region44
      $region43: #{decoder_forward.8} parent=39 // pred_region
        %p231 = scmp.lt.s32.totalorder %s13, 3
        %s232 = scalar_select %p231, %s13, 3
        %s233 = smul.addr %s232, 8
        %s234 = scalar_lea.vmem %s0, %s233
      $region44: #{decoder_forward.8} parent=39 // pred_fallthru
        _
    $region40: #{decoder_forward.8} parent=5 // pred_fallthru
      _
    %p235 = scmp.le.s32.totalorder 1, %s13
    %p236 = scmp.lt.s32.totalorder %s13, 5
    %p237 = pnand %p235, %p236
    %p238 = pneg %p237
    // Predicated region
    $region45: #{decoder_forward.8} parent=5 // pred_check
      _
    $region46: #{decoder_forward.8} parent=5 // pred_check_branch
      %240 = sbr.rel (%p237) target = $region48
    $region47: #{decoder_forward.8} parent=5 // pred_region
      %s241 = ssub.s32 %s13, 1
      %p242 = scmp.lt.s32.totalorder %s18, 3
      %s243 = scalar_select %p242, %s18, 3
      %s244 = smul.addr %s243, 8
      %s245 = scalar_lea.vmem %s0, %s244
      %p246 = pneg %p39
      %p247 = pneg %p36
      %p248 = pneg %p60
      %p249 = pneg %p57
      %p250 = pneg %p81
      %p251 = pneg %p78
      %p252 = pneg %p102
      %p253 = pneg %p99
      %p254 = pneg %p123
      %p255 = pneg %p120
      %p256 = pneg %p144
      %p257 = pneg %p141
      %p258 = pneg %p165
      %p259 = pneg %p162
      %p260 = pneg %p191
      %p261 = pneg %p188
      %p262 = scmp.lt.s32.totalorder %s18, 3
      %s263 = scalar_select %p262, %s18, 3
      %s264 = smul.addr %s263, 8
      %s265 = scalar_lea.vmem %s7, %s264
      %p266 = scmp.lt.s32.totalorder %s18, 3
      %s267 = scalar_select %p266, %s18, 3
      %s268 = smul.addr %s267, 8
      %s269 = scalar_lea.vmem %s0, %s268
      %p270 = scmp.lt.s32.totalorder %s18, 3
      %s271 = scalar_select %p270, %s18, 3
      %s272 = smul.addr %s271, 8
      %s273 = scalar_lea.vmem %s7, %s272
      %v275 = vld [vmem:[%s269] sm:$0xff]
      %v276 = vld [vmem:[%s1] sm:$0x1]
      %v277 = vld [vmem:[%s2] sm:$0x1]
      %278 = vadd.xlane.f32.xlu0 %v275
      %v279 = vpop.xlane.xlu0 %278
      %v280 = vrcp.pop 128.0
      %v281 = vmul.f32 %v279, %v280
      %v282 = vsub.f32 %v275, %v281
      %v283 = vmul.f32 %v282, %v282
      %284 = vadd.xlane.f32.xlu0 %v283
      %v285 = vpop.xlane.xlu0 %284
      %v286 = vmul.f32 %v285, 0.007874016
      %v287 = vrsqrt.pop %v286
      %v288 = vmul.f32 %v286, %v287
      %vm289 = vcmp.eq.f32.partialorder %v286, inf
      %v290 = vsel %vm289, %v286, %v288
      %vm291 = vcmp.eq.f32.partialorder %v286, 0.0
      %v292 = vand.u32 %v286, 2147483648
      %v293 = vsel %vm291, %v292, %v290
      %v295 = vlaneseq
      %v296 = vshrl.u32 %v295, 7
      %v297 = vsub.s32 0, %v296
      %v298 = vrot.slane %v276, %v297
      %v300 = vmul.f32 %v298, %v282
      %v301 = vadd.f32 %v293, 1e-06
      %v302 = vrcp.pop %v301
      %v303 = vmul.f32 %v300, %v302
      %v305 = vlaneseq
      %v306 = vshrl.u32 %v305, 7
      %v307 = vsub.s32 0, %v306
      %v308 = vrot.slane %v277, %v307
      %v310 = vadd.f32 %v303, %v308
      %v311 = vpack.c.bf16 %v310, %v310
      %v312 = vld [vmem:[%s3] sm:$0xff]
      %v313 = vld [vmem:[%s3 + $0x8] sm:$0xff]
      %v314 = vld [vmem:[%s3 + $0x10] sm:$0xff]
      %v315 = vld [vmem:[%s3 + $0x18] sm:$0xff]
      %v316 = vld [vmem:[%s3 + $0x20] sm:$0xff]
      %v317 = vld [vmem:[%s3 + $0x28] sm:$0xff]
      %v318 = vld [vmem:[%s3 + $0x30] sm:$0xff]
      %v319 = vld [vmem:[%s3 + $0x38] sm:$0xff]
      %v320 = vld [vmem:[%s3 + $0x40] sm:$0xff]
      %v321 = vld [vmem:[%s3 + $0x48] sm:$0xff]
      %v322 = vld [vmem:[%s3 + $0x50] sm:$0xff]
      %v323 = vld [vmem:[%s3 + $0x58] sm:$0xff]
      %v324 = vld [vmem:[%s3 + $0x60] sm:$0xff]
      %v325 = vld [vmem:[%s3 + $0x68] sm:$0xff]
      %v326 = vld [vmem:[%s3 + $0x70] sm:$0xff]
      %v327 = vld [vmem:[%s3 + $0x78] sm:$0xff]
      %v328 = vld [vmem:[%s4] sm:$0x3]
      %v330 = vlaneseq
      %v331 = vshrl.u32 %v330, 7
      %v332 = vsub.s32 0, %v331
      %v333 = vrot.slane %v328, %v332
      %v334 = vlaneseq
      %v335 = vshrl.u32 %v334, 7
      %v336 = vsub.s32 1, %v335
      %v337 = vrot.slane %v328, %v336
      %v356 = vunpack.c.l.b16 %v312
      %v357 = vunpack.c.h.b16 %v312
      %v358 = vunpack.c.l.b16 %v313
      %v359 = vunpack.c.h.b16 %v313
      %v360 = vunpack.c.l.b16 %v314
      %v361 = vunpack.c.h.b16 %v314
      %v362 = vunpack.c.l.b16 %v315
      %v363 = vunpack.c.h.b16 %v315
      %v364 = vunpack.c.l.b16 %v316
      %v365 = vunpack.c.h.b16 %v316
      %v366 = vunpack.c.l.b16 %v317
      %v367 = vunpack.c.h.b16 %v317
      %v368 = vunpack.c.l.b16 %v318
      %v369 = vunpack.c.h.b16 %v318
      %v370 = vunpack.c.l.b16 %v319
      %v371 = vunpack.c.h.b16 %v319
      %v372 = vunpack.c.l.b16 %v320
      %v373 = vunpack.c.h.b16 %v320
      %v374 = vunpack.c.l.b16 %v321
      %v375 = vunpack.c.h.b16 %v321
      %v376 = vunpack.c.l.b16 %v322
      %v377 = vunpack.c.h.b16 %v322
      %v378 = vunpack.c.l.b16 %v323
      %v379 = vunpack.c.h.b16 %v323
      %v380 = vunpack.c.l.b16 %v324
      %v381 = vunpack.c.h.b16 %v324
      %v382 = vunpack.c.l.b16 %v325
      %v383 = vunpack.c.h.b16 %v325
      %v384 = vunpack.c.l.b16 %v326
      %v385 = vunpack.c.h.b16 %v326
      %v386 = vunpack.c.l.b16 %v327
      %v387 = vunpack.c.h.b16 %v327
      %v388 = vpack.c.b16 %v358, %v356
      %v389 = vpack.c.b16 %v359, %v357
      %v390 = vpack.c.b16 %v362, %v360
      %v391 = vpack.c.b16 %v363, %v361
      %v392 = vpack.c.b16 %v366, %v364
      %v393 = vpack.c.b16 %v367, %v365
      %v394 = vpack.c.b16 %v370, %v368
      %v395 = vpack.c.b16 %v371, %v369
      %v396 = vpack.c.b16 %v374, %v372
      %v397 = vpack.c.b16 %v375, %v373
      %v398 = vpack.c.b16 %v378, %v376
      %v399 = vpack.c.b16 %v379, %v377
      %v400 = vpack.c.b16 %v382, %v380
      %v401 = vpack.c.b16 %v383, %v381
      %v402 = vpack.c.b16 %v386, %v384
      %v403 = vpack.c.b16 %v387, %v385
      %420 = vmatprep.subr.bf16.mxu0 %v389
      %421 = vmatpush1.bf16.msra.mxu0 %v388
      %422 = vmatprep.subr.bf16.mxu0 %v391
      %423 = vmatpush1.bf16.msra.mxu0 %v390
      %424 = vmatprep.subr.bf16.mxu0 %v393
      %425 = vmatpush1.bf16.msra.mxu0 %v392
      %426 = vmatprep.subr.bf16.mxu0 %v395
      %427 = vmatpush1.bf16.msra.mxu0 %v394
      %428 = vmatprep.subr.bf16.mxu0 %v397
      %429 = vmatpush1.bf16.msra.mxu0 %v396
      %430 = vmatprep.subr.bf16.mxu0 %v399
      %431 = vmatpush1.bf16.msra.mxu0 %v398
      %432 = vmatprep.subr.bf16.mxu0 %v401
      %433 = vmatpush1.bf16.msra.mxu0 %v400
      %434 = vmatprep.subr.bf16.mxu0 %v403
      %435 = vmatpush1.bf16.msra.mxu0 %v402
      %436 = vmatprep.subr.bf16.mxu0 0
      %437 = vmatpush1.bf16.msra.mxu0 0
      %438 = vmatprep.subr.bf16.mxu0 0
      %439 = vmatpush1.bf16.msra.mxu0 0
      %440 = vmatprep.subr.bf16.mxu0 0
      %441 = vmatpush1.bf16.msra.mxu0 0
      %442 = vmatprep.subr.bf16.mxu0 0
      %443 = vmatpush1.bf16.msra.mxu0 0
      %444 = vmatprep.subr.bf16.mxu0 0
      %445 = vmatpush1.bf16.msra.mxu0 0
      %446 = vmatprep.subr.bf16.mxu0 0
      %447 = vmatpush1.bf16.msra.mxu0 0
      %448 = vmatprep.subr.bf16.mxu0 0
      %449 = vmatpush1.bf16.msra.mxu0 0
      %450 = vmatprep.subr.bf16.mxu0 0
      %451 = vmatpush1.bf16.msra.mxu0 0
      %452 = vmatprep.mubr.bf16.mxu0 0
      %453 = vmatmul.mubr.bf16.gmra.mrb[0].mxu0 %v311
      %v454 = vpop.f32.mrb[0].mxu0
      %v455 = vadd.f32 %v333, %v454
      %v456 = vpop.f32.mrb[0].mxu0
      %v457 = vadd.f32 %v337, %v456
      %v458 = vpop.f32.mrb[0].mxu0
      %v459 = vpop.f32.mrb[0].mxu0
      %460 = vdwg.mxu0
      %v461 = vmax.f32 %v455, 0.0
      %v462 = vmax.f32 %v457, 0.0
      %v463 = vpack.c.bf16 %v461, %v461
      %v464 = vpack.c.bf16 %v462, %v462
      %v465 = vld [vmem:[%s5] sm:$0xf]
      %v466 = vld [vmem:[%s5 + $0x4] sm:$0xf]
      %v467 = vld [vmem:[%s5 + $0x8] sm:$0xf]
      %v468 = vld [vmem:[%s5 + $0xc] sm:$0xf]
      %v469 = vld [vmem:[%s5 + $0x10] sm:$0xf]
      %v470 = vld [vmem:[%s5 + $0x14] sm:$0xf]
      %v471 = vld [vmem:[%s5 + $0x18] sm:$0xf]
      %v472 = vld [vmem:[%s5 + $0x1c] sm:$0xf]
      %v473 = vld [vmem:[%s5 + $0x20] sm:$0xf]
      %v474 = vld [vmem:[%s5 + $0x24] sm:$0xf]
      %v475 = vld [vmem:[%s5 + $0x28] sm:$0xf]
      %v476 = vld [vmem:[%s5 + $0x2c] sm:$0xf]
      %v477 = vld [vmem:[%s5 + $0x30] sm:$0xf]
      %v478 = vld [vmem:[%s5 + $0x34] sm:$0xf]
      %v479 = vld [vmem:[%s5 + $0x38] sm:$0xf]
      %v480 = vld [vmem:[%s5 + $0x3c] sm:$0xf]
      %v481 = vld [vmem:[%s5 + $0x40] sm:$0xf]
      %v482 = vld [vmem:[%s5 + $0x44] sm:$0xf]
      %v483 = vld [vmem:[%s5 + $0x48] sm:$0xf]
      %v484 = vld [vmem:[%s5 + $0x4c] sm:$0xf]
      %v485 = vld [vmem:[%s5 + $0x50] sm:$0xf]
      %v486 = vld [vmem:[%s5 + $0x54] sm:$0xf]
      %v487 = vld [vmem:[%s5 + $0x58] sm:$0xf]
      %v488 = vld [vmem:[%s5 + $0x5c] sm:$0xf]
      %v489 = vld [vmem:[%s5 + $0x60] sm:$0xf]
      %v490 = vld [vmem:[%s5 + $0x64] sm:$0xf]
      %v491 = vld [vmem:[%s5 + $0x68] sm:$0xf]
      %v492 = vld [vmem:[%s5 + $0x6c] sm:$0xf]
      %v493 = vld [vmem:[%s5 + $0x70] sm:$0xf]
      %v494 = vld [vmem:[%s5 + $0x74] sm:$0xf]
      %v495 = vld [vmem:[%s5 + $0x78] sm:$0xf]
      %v496 = vld [vmem:[%s5 + $0x7c] sm:$0xf]
      %v529 = vunpack.c.l.b16 %v465
      %v530 = vunpack.c.l.b16 %v466
      %v531 = vunpack.c.l.b16 %v467
      %v532 = vunpack.c.l.b16 %v468
      %v533 = vunpack.c.l.b16 %v469
      %v534 = vunpack.c.l.b16 %v470
      %v535 = vunpack.c.l.b16 %v471
      %v536 = vunpack.c.l.b16 %v472
      %v537 = vunpack.c.l.b16 %v473
      %v538 = vunpack.c.l.b16 %v474
      %v539 = vunpack.c.l.b16 %v475
      %v540 = vunpack.c.l.b16 %v476
      %v541 = vunpack.c.l.b16 %v477
      %v542 = vunpack.c.l.b16 %v478
      %v543 = vunpack.c.l.b16 %v479
      %v544 = vunpack.c.l.b16 %v480
      %v545 = vunpack.c.l.b16 %v481
      %v546 = vunpack.c.l.b16 %v482
      %v547 = vunpack.c.l.b16 %v483
      %v548 = vunpack.c.l.b16 %v484
      %v549 = vunpack.c.l.b16 %v485
      %v550 = vunpack.c.l.b16 %v486
      %v551 = vunpack.c.l.b16 %v487
      %v552 = vunpack.c.l.b16 %v488
      %v553 = vunpack.c.l.b16 %v489
      %v554 = vunpack.c.l.b16 %v490
      %v555 = vunpack.c.l.b16 %v491
      %v556 = vunpack.c.l.b16 %v492
      %v557 = vunpack.c.l.b16 %v493
      %v558 = vunpack.c.l.b16 %v494
      %v559 = vunpack.c.l.b16 %v495
      %v560 = vunpack.c.l.b16 %v496
      %v561 = vpack.c.b16 %v530, %v529
      %v562 = vpack.c.b16 %v532, %v531
      %v563 = vpack.c.b16 %v534, %v533
      %v564 = vpack.c.b16 %v536, %v535
      %v565 = vpack.c.b16 %v538, %v537
      %v566 = vpack.c.b16 %v540, %v539
      %v567 = vpack.c.b16 %v542, %v541
      %v568 = vpack.c.b16 %v544, %v543
      %v569 = vpack.c.b16 %v546, %v545
      %v570 = vpack.c.b16 %v548, %v547
      %v571 = vpack.c.b16 %v550, %v549
      %v572 = vpack.c.b16 %v552, %v551
      %v573 = vpack.c.b16 %v554, %v553
      %v574 = vpack.c.b16 %v556, %v555
      %v575 = vpack.c.b16 %v558, %v557
      %v576 = vpack.c.b16 %v560, %v559
      %593 = vmatprep.subr.bf16.mxu0 0
      %594 = vmatpush1.bf16.msra.mxu0 %v561
      %595 = vmatprep.subr.bf16.mxu0 0
      %596 = vmatpush1.bf16.msra.mxu0 %v562
      %597 = vmatprep.subr.bf16.mxu0 0
      %598 = vmatpush1.bf16.msra.mxu0 %v563
      %599 = vmatprep.subr.bf16.mxu0 0
      %600 = vmatpush1.bf16.msra.mxu0 %v564
      %601 = vmatprep.subr.bf16.mxu0 0
      %602 = vmatpush1.bf16.msra.mxu0 %v565
      %603 = vmatprep.subr.bf16.mxu0 0
      %604 = vmatpush1.bf16.msra.mxu0 %v566
      %605 = vmatprep.subr.bf16.mxu0 0
      %606 = vmatpush1.bf16.msra.mxu0 %v567
      %607 = vmatprep.subr.bf16.mxu0 0
      %608 = vmatpush1.bf16.msra.mxu0 %v568
      %609 = vmatprep.subr.bf16.mxu0 0
      %610 = vmatpush1.bf16.msra.mxu0 %v569
      %611 = vmatprep.subr.bf16.mxu0 0
      %612 = vmatpush1.bf16.msra.mxu0 %v570
      %613 = vmatprep.subr.bf16.mxu0 0
      %614 = vmatpush1.bf16.msra.mxu0 %v571
      %615 = vmatprep.subr.bf16.mxu0 0
      %616 = vmatpush1.bf16.msra.mxu0 %v572
      %617 = vmatprep.subr.bf16.mxu0 0
      %618 = vmatpush1.bf16.msra.mxu0 %v573
      %619 = vmatprep.subr.bf16.mxu0 0
      %620 = vmatpush1.bf16.msra.mxu0 %v574
      %621 = vmatprep.subr.bf16.mxu0 0
      %622 = vmatpush1.bf16.msra.mxu0 %v575
      %623 = vmatprep.subr.bf16.mxu0 0
      %624 = vmatpush1.bf16.msra.mxu0 %v576
      %625 = vmatprep.mubr.bf16.mxu0 %v464
      %626 = vmatmul.mubr.bf16.gmra.mrb[0].mxu0 %v463
      %v627 = vpop.f32.mrb[0].mxu0
      %v628 = vadd.f32 0.0, %v627
      %v629 = vpop.f32.mrb[0].mxu0
      %v630 = vpop.f32.mrb[0].mxu0
      %v631 = vpop.f32.mrb[0].mxu0
      %632 = vdwg.mxu0
      %v633 = vadd.f32 %v275, %v628
      %v634 = vld [vmem:[%s6] sm:$0x1]
      %v636 = vlaneseq
      %v637 = vshrl.u32 %v636, 7
      %v638 = vsub.s32 0, %v637
      %v639 = vrot.slane %v634, %v638
      %v641 = vadd.f32 %v633, %v639
      %642 = vst [vmem:[%s273] sm:$0xff] %v641
      %p643 = scmp.lt.s32.totalorder %s18, 3
      %s644 = scalar_select %p643, %s18, 3
      %s645 = smul.addr %s644, 8
      %s646 = scalar_lea.vmem %s7, %s645
      // Predicated region
      $region49: #{decoder_forward.8} parent=47 // pred_check
        %p647 = pneg %p188
      $region50: #{decoder_forward.8} parent=47 // pred_check_branch
        %649 = sbr.rel (%p647) target = $region52
      $region51: #{decoder_forward.8} parent=47 // pred_region
        _
      $region52: #{decoder_forward.8} parent=47 // pred_fallthru
        _
    $region48: #{decoder_forward.8} parent=5 // pred_fallthru
      _
    %p650 = scmp.le.s32.totalorder 2, %s13
    // Predicated region
    $region53: #{decoder_forward.8} parent=5 // pred_check
      %p651 = pneg %p650
    $region54: #{decoder_forward.8} parent=5 // pred_check_branch
      %653 = sbr.rel (%p651) target = $region56
    $region55: #{decoder_forward.8} parent=5 // pred_region
      %s654 = ssub.s32 %s13, 2
      // Predicated region
      $region57: #{decoder_forward.8} parent=55 // pred_check
        %p655 = pneg %p194
      $region58: #{decoder_forward.8} parent=55 // pred_check_branch
        %657 = sbr.rel (%p655) target = $region60
      $region59: #{decoder_forward.8} parent=55 // pred_region
        %p658 = scmp.lt.s32.totalorder %s19, 3
        %s659 = scalar_select %p658, %s19, 3
        %s660 = smul.addr %s659, 8
        %s661 = scalar_lea.vmem %s7, %s660
      $region60: #{decoder_forward.8} parent=55 // pred_fallthru
        _
    $region56: #{decoder_forward.8} parent=5 // pred_fallthru
      _
  $region6: #{decoder_forward.8} parent=0 // loop_footer
    %s17 = sadd.s32 1, %s13
  $region7: #{decoder_forward.8} parent=0 // loop_footer_branch
    %12 = sbr.rel target = $region3
  $region8: #{decoder_forward.8} parent=0 // loop_exit
    _

// kernel: decoder_forward.6
$region0: #{decoder_forward.6}
  #allocation0 [shape = 'u32[]', space=smem, size = 0x4, offset = 0x4, fixed_abs, tag = 'smem constant byte address 0x4 - core index']
  #allocation1 [shape = 'u32[144,128]{1,0:T(1,128)}', space=vmem, size = 0x12000, scoped, tag = 'internal scratch']
  #allocation2 [shape = 'f32[16,384]{1,0:T(8,128)}', space=vmem, size = 0x6000, scoped, tag = 'scratch operand']
  %s0 = inlined_call_operand.vmem [shape: f32[2,16,128], index: 0, kind: input, shape index: {}]
  %s1 = inlined_call_operand.vmem [shape: f32[1,128], index: 1, kind: input, shape index: {}]
  %s2 = inlined_call_operand.vmem [shape: f32[1,128], index: 2, kind: input, shape index: {}]
  %s3 = inlined_call_operand.hbm [shape: bf16[128,384], index: 3, kind: input, shape index: {}]
  %s4 = inlined_call_operand.vmem [shape: f32[1,384], index: 4, kind: input, shape index: {}]
  %s5 = inlined_call_operand.hbm [shape: bf16[128,128], index: 5, kind: input, shape index: {}]
  %s6 = inlined_call_operand.vmem [shape: f32[1,128], index: 6, kind: input, shape index: {}]
  %s7 = inlined_call_operand.vmem [shape: f32[2,16,128], index: 7, kind: output, shape index: {}]
  %s8 = sld [smem:[#allocation0]]
  $region73: #{decoder_forward.6} parent=0
    _
  %s10 = ssub.s32 1, %s8
  %s11 = scalar_select 0, %s10, %s8
  $region1: #{decoder_forward.6} parent=0
    #allocation3 [shape = 'u8[98304]{0}', space=vmem, size = 0x18000, scoped, tag = 'input window, operand 3, single buffered']
    #allocation4 [shape = 's32[2]{0}', space=sflag, size = 0x8, scoped, tag = 'scoped memory for decoder_forward.6']
    #allocation5 [shape = 'u8[32768]{0}', space=vmem, size = 0x8000, scoped, tag = 'input window, operand 5, single buffered']
    #allocation6 [shape = 's32[1]{0}', space=sflag, size = 0x4, scoped, tag = 'scoped memory for decoder_forward.6']
    %12 = vsyncpa [#allocation4], 0
    %13 = vsyncpa [#allocation6], 0
    loop: start=0, step=1, limit=6
    $region2: #{decoder_forward.6} parent=1 // loop_pre_header
      _
    $region3: #{decoder_forward.6} parent=1 // loop_header
      %s15 = sphi 0, %s19
      %p16 = scmp.ge.s32.totalorder %s15, 6
      %s22 = sphi 0, %s34
      %s23 = sphi 0, %s30
      %s24 = sphi 0, %s22
      %s25 = sphi 0, %s23
      %s26 = sphi 0, %s24
      %s27 = sphi 0, %s25
      %s37 = sphi 0, %s39
      %s40 = sphi 0, %s37
      %s41 = sphi 0, %s40
      %s57 = sphi 0, %s41
      %s61 = sphi 0, %s61
      %s63 = sphi 0, %s61
      %s64 = sphi 0, %s63
      %s78 = sphi 0, %s64
      %s82 = sphi 0, %s82
      %s84 = sphi 0, %s82
      %s85 = sphi 0, %s84
      %s99 = sphi 0, %s85
      %s103 = sphi 0, %s103
      %s105 = sphi 0, %s103
      %s106 = sphi 0, %s105
      %s120 = sphi 0, %s106
      %s124 = sphi 0, %s124
      %s126 = sphi 0, %s124
      %s127 = sphi 0, %s126
      %s141 = sphi 0, %s127
      %s145 = sphi 0, %s145
      %s147 = sphi 0, %s145
      %s148 = sphi 0, %s147
      %s162 = sphi 0, %s148
      %s166 = sphi 0, %s166
      %s168 = sphi 0, %s166
      %s169 = sphi 0, %s168
      %s183 = sphi 0, %s169
      %s191 = sphi 0, %s193
      %s194 = sphi 0, %s191
      %s195 = sphi 0, %s194
      %s211 = sphi 0, %s195
    $region4: #{decoder_forward.6} parent=1 // loop_header_branch
      %18 = sbr.rel (%p16) target = $region8
    $region5: #{decoder_forward.6} parent=1 // loop_body
      %s20 = ssub.s32 %s15, 1
      %s21 = ssub.s32 %s15, 2
      %s28 = sadd.s32 1, %s23
      %p29 = scmp.ge.s32.totalorder %s28, 2
      %s30 = scalar_select %p29, 0, %s28
      %s31 = sadd.s32 1, %s22
      %s32 = scalar_select %p29, %s31, %s22
      %p33 = scmp.ge.s32.totalorder %s32, 2
      %s34 = scalar_select %p33, 0, %s32
      %s35 = ssub.s32 %s22, %s34
      %p36 = scmp.eq.s32.totalorder %s35, 0
      %s38 = sadd.s32 %s37, 1
      %s39 = scalar_select %p36, %s37, %s38
      %p42 = pneg %p36
      %p43 = scmp.eq.s32.totalorder %s15, 3
      %p44 = por %p42, %p43
      %p45 = scmp.ne.s32.totalorder %s37, %s40
      %p46 = scmp.eq.s32.totalorder %s15, 0
      %p47 = por %p45, %p46
      %p48 = scmp.ne.s32.totalorder %s37, %s40
      %p49 = scmp.eq.s32.totalorder %s20, 3
      %p50 = por %p48, %p49
      %p51 = scmp.ne.s32.totalorder %s40, %s41
      %p52 = scmp.eq.s32.totalorder %s20, 0
      %p53 = por %p51, %p52
      %p54 = scmp.ne.s32.totalorder %s40, %s41
      %p55 = scmp.eq.s32.totalorder %s21, 3
      %p56 = por %p54, %p55
      %p58 = scmp.ne.s32.totalorder %s41, %s57
      %p59 = scmp.eq.s32.totalorder %s21, 0
      %p60 = por %p58, %p59
      %s62 = sadd.s32 %s61, 1
      %p65 = scmp.eq.s32.totalorder %s15, 3
      %p66 = scmp.ne.s32.totalorder %s61, %s63
      %p67 = scmp.eq.s32.totalorder %s15, 0
      %p68 = por %p66, %p67
      %p69 = scmp.ne.s32.totalorder %s61, %s63
      %p70 = scmp.eq.s32.totalorder %s20, 3
      %p71 = por %p69, %p70
      %p72 = scmp.ne.s32.totalorder %s63, %s64
      %p73 = scmp.eq.s32.totalorder %s20, 0
      %p74 = por %p72, %p73
      %p75 = scmp.ne.s32.totalorder %s63, %s64
      %p76 = scmp.eq.s32.totalorder %s21, 3
      %p77 = por %p75, %p76
      %p79 = scmp.ne.s32.totalorder %s64, %s78
      %p80 = scmp.eq.s32.totalorder %s21, 0
      %p81 = por %p79, %p80
      %s83 = sadd.s32 %s82, 1
      %p86 = scmp.eq.s32.totalorder %s15, 3
      %p87 = scmp.ne.s32.totalorder %s82, %s84
      %p88 = scmp.eq.s32.totalorder %s15, 0
      %p89 = por %p87, %p88
      %p90 = scmp.ne.s32.totalorder %s82, %s84
      %p91 = scmp.eq.s32.totalorder %s20, 3
      %p92 = por %p90, %p91
      %p93 = scmp.ne.s32.totalorder %s84, %s85
      %p94 = scmp.eq.s32.totalorder %s20, 0
      %p95 = por %p93, %p94
      %p96 = scmp.ne.s32.totalorder %s84, %s85
      %p97 = scmp.eq.s32.totalorder %s21, 3
      %p98 = por %p96, %p97
      %p100 = scmp.ne.s32.totalorder %s85, %s99
      %p101 = scmp.eq.s32.totalorder %s21, 0
      %p102 = por %p100, %p101
      %s104 = sadd.s32 %s103, 1
      %p107 = scmp.eq.s32.totalorder %s15, 3
      %p108 = scmp.ne.s32.totalorder %s103, %s105
      %p109 = scmp.eq.s32.totalorder %s15, 0
      %p110 = por %p108, %p109
      %p111 = scmp.ne.s32.totalorder %s103, %s105
      %p112 = scmp.eq.s32.totalorder %s20, 3
      %p113 = por %p111, %p112
      %p114 = scmp.ne.s32.totalorder %s105, %s106
      %p115 = scmp.eq.s32.totalorder %s20, 0
      %p116 = por %p114, %p115
      %p117 = scmp.ne.s32.totalorder %s105, %s106
      %p118 = scmp.eq.s32.totalorder %s21, 3
      %p119 = por %p117, %p118
      %p121 = scmp.ne.s32.totalorder %s106, %s120
      %p122 = scmp.eq.s32.totalorder %s21, 0
      %p123 = por %p121, %p122
      %s125 = sadd.s32 %s124, 1
      %p128 = scmp.eq.s32.totalorder %s15, 3
      %p129 = scmp.ne.s32.totalorder %s124, %s126
      %p130 = scmp.eq.s32.totalorder %s15, 0
      %p131 = por %p129, %p130
      %p132 = scmp.ne.s32.totalorder %s124, %s126
      %p133 = scmp.eq.s32.totalorder %s20, 3
      %p134 = por %p132, %p133
      %p135 = scmp.ne.s32.totalorder %s126, %s127
      %p136 = scmp.eq.s32.totalorder %s20, 0
      %p137 = por %p135, %p136
      %p138 = scmp.ne.s32.totalorder %s126, %s127
      %p139 = scmp.eq.s32.totalorder %s21, 3
      %p140 = por %p138, %p139
      %p142 = scmp.ne.s32.totalorder %s127, %s141
      %p143 = scmp.eq.s32.totalorder %s21, 0
      %p144 = por %p142, %p143
      %s146 = sadd.s32 %s145, 1
      %p149 = scmp.eq.s32.totalorder %s15, 3
      %p150 = scmp.ne.s32.totalorder %s145, %s147
      %p151 = scmp.eq.s32.totalorder %s15, 0
      %p152 = por %p150, %p151
      %p153 = scmp.ne.s32.totalorder %s145, %s147
      %p154 = scmp.eq.s32.totalorder %s20, 3
      %p155 = por %p153, %p154
      %p156 = scmp.ne.s32.totalorder %s147, %s148
      %p157 = scmp.eq.s32.totalorder %s20, 0
      %p158 = por %p156, %p157
      %p159 = scmp.ne.s32.totalorder %s147, %s148
      %p160 = scmp.eq.s32.totalorder %s21, 3
      %p161 = por %p159, %p160
      %p163 = scmp.ne.s32.totalorder %s148, %s162
      %p164 = scmp.eq.s32.totalorder %s21, 0
      %p165 = por %p163, %p164
      %s167 = sadd.s32 %s166, 1
      %p170 = scmp.eq.s32.totalorder %s15, 3
      %p171 = scmp.ne.s32.totalorder %s166, %s168
      %p172 = scmp.eq.s32.totalorder %s15, 0
      %p173 = por %p171, %p172
      %p174 = scmp.ne.s32.totalorder %s166, %s168
      %p175 = scmp.eq.s32.totalorder %s20, 3
      %p176 = por %p174, %p175
      %p177 = scmp.ne.s32.totalorder %s168, %s169
      %p178 = scmp.eq.s32.totalorder %s20, 0
      %p179 = por %p177, %p178
      %p180 = scmp.ne.s32.totalorder %s168, %s169
      %p181 = scmp.eq.s32.totalorder %s21, 3
      %p182 = por %p180, %p181
      %p184 = scmp.ne.s32.totalorder %s169, %s183
      %p185 = scmp.eq.s32.totalorder %s21, 0
      %p186 = por %p184, %p185
      %s187 = ssub.s32 %s22, %s34
      %s188 = ssub.s32 %s23, %s30
      %s189 = sor.u32 %s187, %s188
      %p190 = scmp.eq.s32.totalorder %s189, 0
      %s192 = sadd.s32 %s191, 1
      %s193 = scalar_select %p190, %s191, %s192
      %p196 = pneg %p190
      %p197 = scmp.eq.s32.totalorder %s15, 3
      %p198 = por %p196, %p197
      %p199 = scmp.ne.s32.totalorder %s191, %s194
      %p200 = scmp.eq.s32.totalorder %s15, 0
      %p201 = por %p199, %p200
      %p202 = scmp.ne.s32.totalorder %s191, %s194
      %p203 = scmp.eq.s32.totalorder %s20, 3
      %p204 = por %p202, %p203
      %p205 = scmp.ne.s32.totalorder %s194, %s195
      %p206 = scmp.eq.s32.totalorder %s20, 0
      %p207 = por %p205, %p206
      %p208 = scmp.ne.s32.totalorder %s194, %s195
      %p209 = scmp.eq.s32.totalorder %s21, 3
      %p210 = por %p208, %p209
      %p212 = scmp.ne.s32.totalorder %s195, %s211
      %p213 = scmp.eq.s32.totalorder %s21, 0
      %p214 = por %p212, %p213
      %p215 = scmp.le.s32.totalorder 1, %s15
      %p216 = scmp.lt.s32.totalorder %s15, 5
      %p217 = pnand %p215, %p216
      %p218 = pneg %p217
      // Predicated region
      $region9: #{decoder_forward.6} parent=5 // pred_check
        _
      $region10: #{decoder_forward.6} parent=5 // pred_check_branch
        %220 = sbr.rel (%p217) target = $region12
      $region11: #{decoder_forward.6} parent=5 // pred_region
        %s221 = ssub.s32 %s15, 1
        // Predicated region
        $region13: #{decoder_forward.6} parent=11 // pred_check
          %p222 = pneg %p74
        $region14: #{decoder_forward.6} parent=11 // pred_check_branch
          %224 = sbr.rel (%p222) target = $region16
        $region15: #{decoder_forward.6} parent=11 // pred_region
          _
        $region16: #{decoder_forward.6} parent=11 // pred_fallthru
          _
        // Predicated region
        $region17: #{decoder_forward.6} parent=11 // pred_check
          %p225 = pneg %p95
        $region18: #{decoder_forward.6} parent=11 // pred_check_branch
          %227 = sbr.rel (%p225) target = $region20
        $region19: #{decoder_forward.6} parent=11 // pred_region
          _
        $region20: #{decoder_forward.6} parent=11 // pred_fallthru
          _
        // Predicated region
        $region21: #{decoder_forward.6} parent=11 // pred_check
          %p228 = pneg %p116
        $region22: #{decoder_forward.6} parent=11 // pred_check_branch
          %230 = sbr.rel (%p228) target = $region24
        $region23: #{decoder_forward.6} parent=11 // pred_region
          %s232 = ssub.s32 3072, 3072
          %233 = vsyncadd [#allocation4], %s232
          %s234 = sshll.u32 [#allocation3], 4
          %s235 = int_to_ptr.vmem [resolvable:$true] %s234
          %240 = dma.hbm_to_vmem [thread:$0]  %s3, 3072, %s235, [#allocation4], 192, 192, 12
        $region24: #{decoder_forward.6} parent=11 // pred_fallthru
          _
        // Predicated region
        $region25: #{decoder_forward.6} parent=11 // pred_check
          %p241 = pneg %p137
        $region26: #{decoder_forward.6} parent=11 // pred_check_branch
          %243 = sbr.rel (%p241) target = $region28
        $region27: #{decoder_forward.6} parent=11 // pred_region
          _
        $region28: #{decoder_forward.6} parent=11 // pred_fallthru
          _
        // Predicated region
        $region29: #{decoder_forward.6} parent=11 // pred_check
          %p244 = pneg %p158
        $region30: #{decoder_forward.6} parent=11 // pred_check_branch
          %246 = sbr.rel (%p244) target = $region32
        $region31: #{decoder_forward.6} parent=11 // pred_region
          %s248 = ssub.s32 1024, 1024
          %249 = vsyncadd [#allocation6], %s248
          %s250 = sshll.u32 [#allocation5], 4
          %s251 = int_to_ptr.vmem [resolvable:$true] %s250
          %256 = dma.hbm_to_vmem [thread:$0]  %s5, 1024, %s251, [#allocation6], 64, 64, 4
        $region32: #{decoder_forward.6} parent=11 // pred_fallthru
          _
        // Predicated region
        $region33: #{decoder_forward.6} parent=11 // pred_check
          %p257 = pneg %p179
        $region34: #{decoder_forward.6} parent=11 // pred_check_branch
          %259 = sbr.rel (%p257) target = $region36
        $region35: #{decoder_forward.6} parent=11 // pred_region
          _
        $region36: #{decoder_forward.6} parent=11 // pred_fallthru
          _
      $region12: #{decoder_forward.6} parent=5 // pred_fallthru
        _
      %p260 = scmp.lt.s32.totalorder %s15, 4
      // Predicated region
      $region37: #{decoder_forward.6} parent=5 // pred_check
        %p261 = pneg %p260
      $region38: #{decoder_forward.6} parent=5 // pred_check_branch
        %263 = sbr.rel (%p261) target = $region40
      $region39: #{decoder_forward.6} parent=5 // pred_region
        // Predicated region
        $region41: #{decoder_forward.6} parent=39 // pred_check
          %p264 = pneg %p47
        $region42: #{decoder_forward.6} parent=39 // pred_check_branch
          %266 = sbr.rel (%p264) target = $region44
        $region43: #{decoder_forward.6} parent=39 // pred_region
          %p267 = scmp.lt.s32.totalorder %s22, 1
          %s268 = scalar_select %p267, %s22, 1
          %s269 = smul.addr %s268, 2
          %s270 = smul.addr %s269, 8
          %s271 = scalar_lea.vmem %s0, %s270
        $region44: #{decoder_forward.6} parent=39 // pred_fallthru
          _
      $region40: #{decoder_forward.6} parent=5 // pred_fallthru
        _
      %p272 = scmp.le.s32.totalorder 1, %s15
      %p273 = scmp.lt.s32.totalorder %s15, 5
      %p274 = pnand %p272, %p273
      %p275 = pneg %p274
      // Predicated region
      $region45: #{decoder_forward.6} parent=5 // pred_check
        _
      $region46: #{decoder_forward.6} parent=5 // pred_check_branch
        %277 = sbr.rel (%p274) target = $region48
      $region47: #{decoder_forward.6} parent=5 // pred_region
        %s278 = ssub.s32 %s15, 1
        // Predicated region
        $region49: #{decoder_forward.6} parent=47 // pred_check
          %p279 = pneg %p116
        $region50: #{decoder_forward.6} parent=47 // pred_check_branch
          %281 = sbr.rel (%p279) target = $region52
        $region51: #{decoder_forward.6} parent=47 // pred_region
          %282 = dma.done [#allocation4], 3072
        $region52: #{decoder_forward.6} parent=47 // pred_fallthru
          _
        // Predicated region
        $region53: #{decoder_forward.6} parent=47 // pred_check
          %p283 = pneg %p158
        $region54: #{decoder_forward.6} parent=47 // pred_check_branch
          %285 = sbr.rel (%p283) target = $region56
        $region55: #{decoder_forward.6} parent=47 // pred_region
          %286 = dma.done [#allocation6], 1024
        $region56: #{decoder_forward.6} parent=47 // pred_fallthru
          _
        %p287 = scmp.lt.s32.totalorder %s24, 1
        %s288 = scalar_select %p287, %s24, 1
        %s289 = smul.addr %s288, 2
        %s290 = smul.addr %s289, 8
        %s291 = scalar_lea.vmem %s0, %s290
        %p292 = pneg %p53
        %p293 = pneg %p50
        %p294 = pneg %p74
        %p295 = pneg %p71
        %p296 = pneg %p95
        %p297 = pneg %p92
        %p298 = pneg %p116
        %p299 = pneg %p113
        %p300 = pneg %p137
        %p301 = pneg %p134
        %p302 = pneg %p158
        %p303 = pneg %p155
        %p304 = pneg %p179
        %p305 = pneg %p176
        %p306 = pneg %p207
        %p307 = pneg %p204
        %p308 = scmp.lt.s32.totalorder %s24, 1
        %s309 = scalar_select %p308, %s24, 1
        %p310 = scmp.lt.s32.totalorder %s25, 1
        %s311 = scalar_select %p310, %s25, 1
        %s312 = smul.addr %s309, 2
        %s313 = sadd.s32 %s311, %s312
        %s314 = smul.addr %s313, 8
        %s315 = scalar_lea.vmem %s7, %s314
        %p316 = scmp.lt.s32.totalorder %s24, 1
        %s317 = scalar_select %p316, %s24, 1
        %s318 = smul.addr %s317, 2
        %s319 = smul.addr %s318, 8
        %s320 = scalar_lea.vmem %s0, %s319
        %p321 = scmp.lt.s32.totalorder %s24, 1
        %s322 = scalar_select %p321, %s24, 1
        %p323 = scmp.lt.s32.totalorder %s25, 1
        %s324 = scalar_select %p323, %s25, 1
        %s325 = smul.addr %s322, 2
        %s326 = sadd.s32 %s324, %s325
        %s327 = smul.addr %s326, 8
        %s328 = scalar_lea.vmem %s7, %s327
        %p330 = scmp.eq.s32.totalorder %s25, 0
        // Predicated region
        $region57: #{decoder_forward.6} parent=47 // pred_check
          %p331 = pneg %p330
        $region58: #{decoder_forward.6} parent=47 // pred_check_branch
          %333 = sbr.rel (%p331) target = $region60
        $region59: #{decoder_forward.6} parent=47 // pred_region
          %v334 = vld [vmem:[%s320] sm:$0xff]
          %v335 = vld [vmem:[%s320 + $0x8] sm:$0xff]
          %v336 = vld [vmem:[%s1] sm:$0x1]
          %v337 = vld [vmem:[%s2] sm:$0x1]
          %338 = vadd.xlane.f32.xlu0 %v334
          %v339 = vpop.xlane.xlu0 %338
          %340 = vadd.xlane.f32.xlu0 %v335
          %v341 = vpop.xlane.xlu0 %340
          %v342 = vrcp.pop 128.0
          %v343 = vmul.f32 %v339, %v342
          %v344 = vmul.f32 %v341, %v342
          %v345 = vsub.f32 %v334, %v343
          %v346 = vsub.f32 %v335, %v344
          %v347 = vmul.f32 %v345, %v345
          %v348 = vmul.f32 %v346, %v346
          %349 = vadd.xlane.f32.xlu0 %v347
          %v350 = vpop.xlane.xlu0 %349
          %351 = vadd.xlane.f32.xlu0 %v348
          %v352 = vpop.xlane.xlu0 %351
          %v353 = vmul.f32 %v350, 0.007874016
          %v354 = vmul.f32 %v352, 0.007874016
          %v355 = vrsqrt.pop %v353
          %v356 = vmul.f32 %v353, %v355
          %vm357 = vcmp.eq.f32.partialorder %v353, inf
          %v358 = vsel %vm357, %v353, %v356
          %vm359 = vcmp.eq.f32.partialorder %v353, 0.0
          %v360 = vand.u32 %v353, 2147483648
          %v361 = vsel %vm359, %v360, %v358
          %v362 = vrsqrt.pop %v354
          %v363 = vmul.f32 %v354, %v362
          %vm364 = vcmp.eq.f32.partialorder %v354, inf
          %v365 = vsel %vm364, %v354, %v363
          %vm366 = vcmp.eq.f32.partialorder %v354, 0.0
          %v367 = vand.u32 %v354, 2147483648
          %v368 = vsel %vm366, %v367, %v365
          %v370 = vlaneseq
          %v371 = vshrl.u32 %v370, 7
          %v372 = vsub.s32 0, %v371
          %v373 = vrot.slane %v336, %v372
          %v375 = vmul.f32 %v373, %v345
          %v376 = vmul.f32 %v373, %v346
          %v377 = vadd.f32 %v361, 1e-06
          %v378 = vadd.f32 %v368, 1e-06
          %v379 = vrcp.pop %v377
          %v380 = vrcp.pop %v378
          %v381 = vmul.f32 %v375, %v379
          %v382 = vmul.f32 %v376, %v380
          %v384 = vlaneseq
          %v385 = vshrl.u32 %v384, 7
          %v386 = vsub.s32 0, %v385
          %v387 = vrot.slane %v337, %v386
          %v389 = vadd.f32 %v381, %v387
          %v390 = vadd.f32 %v382, %v387
          %v391 = vpack.c.bf16 %v390, %v389
          %v392 = vld [vmem:[#allocation3] sm:$0xff]
          %v393 = vld [vmem:[#allocation3 + $0x8] sm:$0xf]
          %v394 = vld [vmem:[#allocation3 + $0xc] sm:$0xff]
          %v395 = vld [vmem:[#allocation3 + $0x14] sm:$0xf]
          %v396 = vld [vmem:[#allocation3 + $0x18] sm:$0xff]
          %v397 = vld [vmem:[#allocation3 + $0x20] sm:$0xf]
          %v398 = vld [vmem:[#allocation3 + $0x24] sm:$0xff]
          %v399 = vld [vmem:[#allocation3 + $0x2c] sm:$0xf]
          %v400 = vld [vmem:[#allocation3 + $0x30] sm:$0xff]
          %v401 = vld [vmem:[#allocation3 + $0x38] sm:$0xf]
          %v402 = vld [vmem:[#allocation3 + $0x3c] sm:$0xff]
          %v403 = vld [vmem:[#allocation3 + $0x44] sm:$0xf]
          %v404 = vld [vmem:[#allocation3 + $0x48] sm:$0xff]
          %v405 = vld [vmem:[#allocation3 + $0x50] sm:$0xf]
          %v406 = vld [vmem:[#allocation3 + $0x54] sm:$0xff]
          %v407 = vld [vmem:[#allocation3 + $0x5c] sm:$0xf]
          %v408 = vld [vmem:[#allocation3 + $0x60] sm:$0xff]
          %v409 = vld [vmem:[#allocation3 + $0x68] sm:$0xf]
          %v410 = vld [vmem:[#allocation3 + $0x6c] sm:$0xff]
          %v411 = vld [vmem:[#allocation3 + $0x74] sm:$0xf]
          %v412 = vld [vmem:[#allocation3 + $0x78] sm:$0xff]
          %v413 = vld [vmem:[#allocation3 + $0x80] sm:$0xf]
          %v414 = vld [vmem:[#allocation3 + $0x84] sm:$0xff]
          %v415 = vld [vmem:[#allocation3 + $0x8c] sm:$0xf]
          %v416 = vld [vmem:[#allocation3 + $0x90] sm:$0xff]
          %v417 = vld [vmem:[#allocation3 + $0x98] sm:$0xf]
          %v418 = vld [vmem:[#allocation3 + $0x9c] sm:$0xff]
          %v419 = vld [vmem:[#allocation3 + $0xa4] sm:$0xf]
          %v420 = vld [vmem:[#allocation3 + $0xa8] sm:$0xff]
          %v421 = vld [vmem:[#allocation3 + $0xb0] sm:$0xf]
          %v422 = vld [vmem:[#allocation3 + $0xb4] sm:$0xff]
          %v423 = vld [vmem:[#allocation3 + $0xbc] sm:$0xf]
          %v424 = vld [vmem:[%s4] sm:$0x7]
          %v426 = vlaneseq
          %v427 = vshrl.u32 %v426, 7
          %v428 = vsub.s32 0, %v427
          %v429 = vrot.slane %v424, %v428
          %v430 = vlaneseq
          %v431 = vshrl.u32 %v430, 7
          %v432 = vsub.s32 1, %v431
          %v433 = vrot.slane %v424, %v432
          %v434 = vlaneseq
          %v435 = vshrl.u32 %v434, 7
          %v436 = vsub.s32 2, %v435
          %v437 = vrot.slane %v424, %v436
          %v473 = vunpack.c.l.b16 %v392
          %v474 = vunpack.c.h.b16 %v392
          %v475 = vunpack.c.l.b16 %v393
          %v476 = vunpack.c.l.b16 %v394
          %v477 = vunpack.c.h.b16 %v394
          %v478 = vunpack.c.l.b16 %v395
          %v479 = vunpack.c.l.b16 %v396
          %v480 = vunpack.c.h.b16 %v396
          %v481 = vunpack.c.l.b16 %v397
          %v482 = vunpack.c.l.b16 %v398
          %v483 = vunpack.c.h.b16 %v398
          %v484 = vunpack.c.l.b16 %v399
          %v485 = vunpack.c.l.b16 %v400
          %v486 = vunpack.c.h.b16 %v400
          %v487 = vunpack.c.l.b16 %v401
          %v488 = vunpack.c.l.b16 %v402
          %v489 = vunpack.c.h.b16 %v402
          %v490 = vunpack.c.l.b16 %v403
          %v491 = vunpack.c.l.b16 %v404
          %v492 = vunpack.c.h.b16 %v404
          %v493 = vunpack.c.l.b16 %v405
          %v494 = vunpack.c.l.b16 %v406
          %v495 = vunpack.c.h.b16 %v406
          %v496 = vunpack.c.l.b16 %v407
          %v497 = vunpack.c.l.b16 %v408
          %v498 = vunpack.c.h.b16 %v408
          %v499 = vunpack.c.l.b16 %v409
          %v500 = vunpack.c.l.b16 %v410
          %v501 = vunpack.c.h.b16 %v410
          %v502 = vunpack.c.l.b16 %v411
          %v503 = vunpack.c.l.b16 %v412
          %v504 = vunpack.c.h.b16 %v412
          %v505 = vunpack.c.l.b16 %v413
          %v506 = vunpack.c.l.b16 %v414
          %v507 = vunpack.c.h.b16 %v414
          %v508 = vunpack.c.l.b16 %v415
          %v509 = vunpack.c.l.b16 %v416
          %v510 = vunpack.c.h.b16 %v416
          %v511 = vunpack.c.l.b16 %v417
          %v512 = vunpack.c.l.b16 %v418
          %v513 = vunpack.c.h.b16 %v418
          %v514 = vunpack.c.l.b16 %v419
          %v515 = vunpack.c.l.b16 %v420
          %v516 = vunpack.c.h.b16 %v420
          %v517 = vunpack.c.l.b16 %v421
          %v518 = vunpack.c.l.b16 %v422
          %v519 = vunpack.c.h.b16 %v422
          %v520 = vunpack.c.l.b16 %v423
          %v521 = vpack.c.b16 %v476, %v473
          %v522 = vpack.c.b16 %v477, %v474
          %v523 = vpack.c.b16 %v478, %v475
          %v524 = vpack.c.b16 %v482, %v479
          %v525 = vpack.c.b16 %v483, %v480
          %v526 = vpack.c.b16 %v484, %v481
          %v527 = vpack.c.b16 %v488, %v485
          %v528 = vpack.c.b16 %v489, %v486
          %v529 = vpack.c.b16 %v490, %v487
          %v530 = vpack.c.b16 %v494, %v491
          %v531 = vpack.c.b16 %v495, %v492
          %v532 = vpack.c.b16 %v496, %v493
          %v533 = vpack.c.b16 %v500, %v497
          %v534 = vpack.c.b16 %v501, %v498
          %v535 = vpack.c.b16 %v502, %v499
          %v536 = vpack.c.b16 %v506, %v503
          %v537 = vpack.c.b16 %v507, %v504
          %v538 = vpack.c.b16 %v508, %v505
          %v539 = vpack.c.b16 %v512, %v509
          %v540 = vpack.c.b16 %v513, %v510
          %v541 = vpack.c.b16 %v514, %v511
          %v542 = vpack.c.b16 %v518, %v515
          %v543 = vpack.c.b16 %v519, %v516
          %v544 = vpack.c.b16 %v520, %v517
          %569 = vmatprep.subr.bf16.mxu0 %v522
          %570 = vmatpush1.bf16.msra.mxu0 %v521
          %571 = vmatprep.subr.bf16.mxu0 %v525
          %572 = vmatpush1.bf16.msra.mxu0 %v524
          %573 = vmatprep.subr.bf16.mxu0 %v528
          %574 = vmatpush1.bf16.msra.mxu0 %v527
          %575 = vmatprep.subr.bf16.mxu0 %v531
          %576 = vmatpush1.bf16.msra.mxu0 %v530
          %577 = vmatprep.subr.bf16.mxu0 %v534
          %578 = vmatpush1.bf16.msra.mxu0 %v533
          %579 = vmatprep.subr.bf16.mxu0 %v537
          %580 = vmatpush1.bf16.msra.mxu0 %v536
          %581 = vmatprep.subr.bf16.mxu0 %v540
          %582 = vmatpush1.bf16.msra.mxu0 %v539
          %583 = vmatprep.subr.bf16.mxu0 %v543
          %584 = vmatpush1.bf16.msra.mxu0 %v542
          %585 = vmatprep.subr.bf16.mxu0 0
          %586 = vmatpush1.bf16.msra.mxu0 0
          %587 = vmatprep.subr.bf16.mxu0 0
          %588 = vmatpush1.bf16.msra.mxu0 0
          %589 = vmatprep.subr.bf16.mxu0 0
          %590 = vmatpush1.bf16.msra.mxu0 0
          %591 = vmatprep.subr.bf16.mxu0 0
          %592 = vmatpush1.bf16.msra.mxu0 0
          %593 = vmatprep.subr.bf16.mxu0 0
          %594 = vmatpush1.bf16.msra.mxu0 0
          %595 = vmatprep.subr.bf16.mxu0 0
          %596 = vmatpush1.bf16.msra.mxu0 0
          %597 = vmatprep.subr.bf16.mxu0 0
          %598 = vmatpush1.bf16.msra.mxu0 0
          %599 = vmatprep.subr.bf16.mxu0 0
          %600 = vmatpush1.bf16.msra.mxu0 0
          %601 = vmatprep.mubr.bf16.mxu0 0
          %602 = vmatmul.mubr.bf16.gmra.mrb[0].mxu0 %v391
          %v603 = vpop.f32.mrb[0].mxu0
          %v604 = vadd.f32 %v429, %v603
          %v605 = vpop.f32.mrb[0].mxu0
          %v606 = vadd.f32 %v433, %v605
          %v607 = vpop.f32.mrb[0].mxu0
          %v608 = vadd.f32 %v429, %v607
          %v609 = vpop.f32.mrb[0].mxu0
          %v610 = vadd.f32 %v433, %v609
          %611 = vdwg.mxu0
          %612 = vmatprep.subr.bf16.mxu0 0
          %613 = vmatpush1.bf16.msra.mxu0 %v523
          %614 = vmatprep.subr.bf16.mxu0 0
          %615 = vmatpush1.bf16.msra.mxu0 %v526
          %616 = vmatprep.subr.bf16.mxu0 0
          %617 = vmatpush1.bf16.msra.mxu0 %v529
          %618 = vmatprep.subr.bf16.mxu0 0
          %619 = vmatpush1.bf16.msra.mxu0 %v532
          %620 = vmatprep.subr.bf16.mxu0 0
          %621 = vmatpush1.bf16.msra.mxu0 %v535
          %622 = vmatprep.subr.bf16.mxu0 0
          %623 = vmatpush1.bf16.msra.mxu0 %v538
          %624 = vmatprep.subr.bf16.mxu0 0
          %625 = vmatpush1.bf16.msra.mxu0 %v541
          %626 = vmatprep.subr.bf16.mxu0 0
          %627 = vmatpush1.bf16.msra.mxu0 %v544
          %628 = vmatprep.subr.bf16.mxu0 0
          %629 = vmatpush1.bf16.msra.mxu0 0
          %630 = vmatprep.subr.bf16.mxu0 0
          %631 = vmatpush1.bf16.msra.mxu0 0
          %632 = vmatprep.subr.bf16.mxu0 0
          %633 = vmatpush1.bf16.msra.mxu0 0
          %634 = vmatprep.subr.bf16.mxu0 0
          %635 = vmatpush1.bf16.msra.mxu0 0
          %636 = vmatprep.subr.bf16.mxu0 0
          %637 = vmatpush1.bf16.msra.mxu0 0
          %638 = vmatprep.subr.bf16.mxu0 0
          %639 = vmatpush1.bf16.msra.mxu0 0
          %640 = vmatprep.subr.bf16.mxu0 0
          %641 = vmatpush1.bf16.msra.mxu0 0
          %642 = vmatprep.subr.bf16.mxu0 0
          %643 = vmatpush1.bf16.msra.mxu0 0
          %644 = vmatprep.mubr.bf16.mxu0 0
          %645 = vmatmul.mubr.bf16.gmra.mrb[0].mxu0 %v391
          %v646 = vpop.f32.mrb[0].mxu0
          %v647 = vadd.f32 %v437, %v646
          %v648 = vpop.f32.mrb[0].mxu0
          %v649 = vpop.f32.mrb[0].mxu0
          %v650 = vadd.f32 %v437, %v649
          %v651 = vpop.f32.mrb[0].mxu0
          %652 = vdwg.mxu0
          %653 = vst [vmem:[#allocation2] sm:$0xff] %v604
          %654 = vst [vmem:[#allocation2 + $0x8] sm:$0xff] %v606
          %655 = vst [vmem:[#allocation2 + $0x10] sm:$0xff] %v647
          %656 = vst [vmem:[#allocation2 + $0x18] sm:$0xff] %v608
          %657 = vst [vmem:[#allocation2 + $0x20] sm:$0xff] %v610
          %658 = vst [vmem:[#allocation2 + $0x28] sm:$0xff] %v650
        $region60: #{decoder_forward.6} parent=47 // pred_fallthru
          _
        %s659 = smul.u32 %s25, 8
        %s660 = sshra.s32 %s659, 3
        %s661 = sand.u32 %s659, 7
        %s662 = smul.u32 %s660, 3
        %s663 = smul.addr %s662, 8
        %s664 = scalar_lea.vmem [#allocation2], %s663
        %v665 = vld [vmem:[%s664] sm:$0xff]
        %v666 = vld [vmem:[#allocation2 + $0x8] sm:$0xff]
        %v667 = vld [vmem:[#allocation2 + $0x20] sm:$0xff]
        %v668 = vld [vmem:[#allocation2 + $0x10] sm:$0xff]
        %v669 = vld [vmem:[#allocation2 + $0x28] sm:$0xff]
        %v670 = vlaneseq
        %v671 = vshrl.u32 %v670, 7
        %v672 = vstv %s659
        %v673 = vadd.s32 %v672, %v671
        %v674 = vlaneseq
        %v675 = vand.u32 %v674, 127
        %vm676 = vcmp.le.s32.totalorder %v675, %v673
        %v677 = vsel %vm676, 0.0, -1e+09
        %v678 = vld [vmem:[#allocation5] sm:$0xf]
        %v679 = vld [vmem:[#allocation5 + $0x4] sm:$0xf]
        %v680 = vld [vmem:[#allocation5 + $0x8] sm:$0xf]
        %v681 = vld [vmem:[#allocation5 + $0xc] sm:$0xf]
        %v682 = vld [vmem:[#allocation5 + $0x10] sm:$0xf]
        %v683 = vld [vmem:[#allocation5 + $0x14] sm:$0xf]
        %v684 = vld [vmem:[#allocation5 + $0x18] sm:$0xf]
        %v685 = vld [vmem:[#allocation5 + $0x1c] sm:$0xf]
        %v686 = vld [vmem:[#allocation5 + $0x20] sm:$0xf]
        %v687 = vld [vmem:[#allocation5 + $0x24] sm:$0xf]
        %v688 = vld [vmem:[#allocation5 + $0x28] sm:$0xf]
        %v689 = vld [vmem:[#allocation5 + $0x2c] sm:$0xf]
        %v690 = vld [vmem:[#allocation5 + $0x30] sm:$0xf]
        %v691 = vld [vmem:[#allocation5 + $0x34] sm:$0xf]
        %v692 = vld [vmem:[#allocation5 + $0x38] sm:$0xf]
        %v693 = vld [vmem:[#allocation5 + $0x3c] sm:$0xf]
        %v694 = vld [vmem:[%s6] sm:$0x1]
        %v695 = vpack.c.bf16 %v665, %v665
        %697 = vrot.lane.b32.xlu0 %v695, 96
        %v698 = vpop.permute.xlu0 %697
        %699 = vrot.lane.b32.xlu0 %v695, 64
        %v700 = vpop.permute.xlu0 %699
        %701 = vrot.lane.b32.xlu0 %v695, 32
        %v702 = vpop.permute.xlu0 %701
        %v703 = vpack.c.bf16 %v667, %v666
        %705 = vrot.lane.b32.xlu0 %v703, 96
        %v706 = vpop.permute.xlu0 %705
        %707 = vrot.lane.b32.xlu0 %v703, 64
        %v708 = vpop.permute.xlu0 %707
        %709 = vrot.lane.b32.xlu0 %v703, 32
        %v710 = vpop.permute.xlu0 %709
        %v711 = vpack.c.bf16 %v669, %v668
        %713 = vrot.lane.b32.xlu0 %v711, 96
        %v714 = vpop.permute.xlu0 %713
        %716 = vrot.lane.b32.xlu0 %v711, 64
        %v717 = vpop.permute.xlu0 %716
        %719 = vrot.lane.b32.xlu0 %v711, 32
        %v720 = vpop.permute.xlu0 %719
        %vm722 = vcmask 261120
        %v724 = vsel %vm722, %v695, 0
        %v727 = vsel %vm722, %v703, 0
        %729 = vmatprep.subr.bf16.mxu0 0
        %730 = vmatpush1.bf16.xpose.msra.mxu0 %v727
        %731 = vmatprep.subr.bf16.mxu0 0
        %732 = vmatpush1.bf16.xpose.msra.mxu0 0
        %733 = vmatprep.subr.bf16.mxu0 0
        %734 = vmatpush1.bf16.xpose.msra.mxu0 0
        %735 = vmatprep.subr.bf16.mxu0 0
        %736 = vmatpush1.bf16.xpose.msra.mxu0 0
        %737 = vmatprep.subr.bf16.mxu0 0
        %738 = vmatpush1.bf16.xpose.msra.mxu0 0
        %739 = vmatprep.subr.bf16.mxu0 0
        %740 = vmatpush1.bf16.xpose.msra.mxu0 0
        %741 = vmatprep.subr.bf16.mxu0 0
        %742 = vmatpush1.bf16.xpose.msra.mxu0 0
        %743 = vmatprep.subr.bf16.mxu0 0
        %744 = vmatpush1.bf16.xpose.msra.mxu0 0
        %745 = vmatprep.subr.bf16.mxu0 0
        %746 = vmatpush1.bf16.xpose.msra.mxu0 0
        %747 = vmatprep.subr.bf16.mxu0 0
        %748 = vmatpush1.bf16.xpose.msra.mxu0 0
        %749 = vmatprep.subr.bf16.mxu0 0
        %750 = vmatpush1.bf16.xpose.msra.mxu0 0
        %751 = vmatprep.subr.bf16.mxu0 0
        %752 = vmatpush1.bf16.xpose.msra.mxu0 0
        %753 = vmatprep.subr.bf16.mxu0 0
        %754 = vmatpush1.bf16.xpose.msra.mxu0 0
        %755 = vmatprep.subr.bf16.mxu0 0
        %756 = vmatpush1.bf16.xpose.msra.mxu0 0
        %757 = vmatprep.subr.bf16.mxu0 0
        %758 = vmatpush1.bf16.xpose.msra.mxu0 0
        %759 = vmatprep.subr.bf16.mxu0 0
        %760 = vmatpush1.bf16.xpose.msra.mxu0 0
        %761 = vmatprep.mubr.bf16.mxu0 0
        %762 = vmatmul.mubr.bf16.gmra.mrb[0].mxu0 %v724
        %v763 = vpop.f32.mrb[0].mxu0
        %v764 = vadd.f32 0.0, %v763
        %v765 = vpop.f32.mrb[0].mxu0
        %v766 = vpop.f32.mrb[0].mxu0
        %v767 = vpop.f32.mrb[0].mxu0
        %768 = vdwg.mxu0
        %v770 = vsel %vm722, %v698, 0
        %v773 = vsel %vm722, %v706, 0
        %775 = vmatprep.subr.bf16.mxu0 0
        %776 = vmatpush1.bf16.xpose.msra.mxu0 %v773
        %777 = vmatprep.subr.bf16.mxu0 0
        %778 = vmatpush1.bf16.xpose.msra.mxu0 0
        %779 = vmatprep.subr.bf16.mxu0 0
        %780 = vmatpush1.bf16.xpose.msra.mxu0 0
        %781 = vmatprep.subr.bf16.mxu0 0
        %782 = vmatpush1.bf16.xpose.msra.mxu0 0
        %783 = vmatprep.subr.bf16.mxu0 0
        %784 = vmatpush1.bf16.xpose.msra.mxu0 0
        %785 = vmatprep.subr.bf16.mxu0 0
        %786 = vmatpush1.bf16.xpose.msra.mxu0 0
        %787 = vmatprep.subr.bf16.mxu0 0
        %788 = vmatpush1.bf16.xpose.msra.mxu0 0
        %789 = vmatprep.subr.bf16.mxu0 0
        %790 = vmatpush1.bf16.xpose.msra.mxu0 0
        %791 = vmatprep.subr.bf16.mxu0 0
        %792 = vmatpush1.bf16.xpose.msra.mxu0 0
        %793 = vmatprep.subr.bf16.mxu0 0
        %794 = vmatpush1.bf16.xpose.msra.mxu0 0
        %795 = vmatprep.subr.bf16.mxu0 0
        %796 = vmatpush1.bf16.xpose.msra.mxu0 0
        %797 = vmatprep.subr.bf16.mxu0 0
        %798 = vmatpush1.bf16.xpose.msra.mxu0 0
        %799 = vmatprep.subr.bf16.mxu0 0
        %800 = vmatpush1.bf16.xpose.msra.mxu0 0
        %801 = vmatprep.subr.bf16.mxu0 0
        %802 = vmatpush1.bf16.xpose.msra.mxu0 0
        %803 = vmatprep.subr.bf16.mxu0 0
        %804 = vmatpush1.bf16.xpose.msra.mxu0 0
        %805 = vmatprep.subr.bf16.mxu0 0
        %806 = vmatpush1.bf16.xpose.msra.mxu0 0
        %807 = vmatprep.mubr.bf16.mxu0 0
        %808 = vmatmul.mubr.bf16.gmra.mrb[0].mxu0 %v770
        %v809 = vpop.f32.mrb[0].mxu0
        %v810 = vadd.f32 0.0, %v809
        %v811 = vpop.f32.mrb[0].mxu0
        %v812 = vpop.f32.mrb[0].mxu0
        %v813 = vpop.f32.mrb[0].mxu0
        %814 = vdwg.mxu0
        %v816 = vsel %vm722, %v700, 0
        %v819 = vsel %vm722, %v708, 0
        %821 = vmatprep.subr.bf16.mxu0 0
        %822 = vmatpush1.bf16.xpose.msra.mxu0 %v819
        %823 = vmatprep.subr.bf16.mxu0 0
        %824 = vmatpush1.bf16.xpose.msra.mxu0 0
        %825 = vmatprep.subr.bf16.mxu0 0
        %826 = vmatpush1.bf16.xpose.msra.mxu0 0
        %827 = vmatprep.subr.bf16.mxu0 0
        %828 = vmatpush1.bf16.xpose.msra.mxu0 0
        %829 = vmatprep.subr.bf16.mxu0 0
        %830 = vmatpush1.bf16.xpose.msra.mxu0 0
        %831 = vmatprep.subr.bf16.mxu0 0
        %832 = vmatpush1.bf16.xpose.msra.mxu0 0
        %833 = vmatprep.subr.bf16.mxu0 0
        %834 = vmatpush1.bf16.xpose.msra.mxu0 0
        %835 = vmatprep.subr.bf16.mxu0 0
        %836 = vmatpush1.bf16.xpose.msra.mxu0 0
        %837 = vmatprep.subr.bf16.mxu0 0
        %838 = vmatpush1.bf16.xpose.msra.mxu0 0
        %839 = vmatprep.subr.bf16.mxu0 0
        %840 = vmatpush1.bf16.xpose.msra.mxu0 0
        %841 = vmatprep.subr.bf16.mxu0 0
        %842 = vmatpush1.bf16.xpose.msra.mxu0 0
        %843 = vmatprep.subr.bf16.mxu0 0
        %844 = vmatpush1.bf16.xpose.msra.mxu0 0
        %845 = vmatprep.subr.bf16.mxu0 0
        %846 = vmatpush1.bf16.xpose.msra.mxu0 0
        %847 = vmatprep.subr.bf16.mxu0 0
        %848 = vmatpush1.bf16.xpose.msra.mxu0 0
        %849 = vmatprep.subr.bf16.mxu0 0
        %850 = vmatpush1.bf16.xpose.msra.mxu0 0
        %851 = vmatprep.subr.bf16.mxu0 0
        %852 = vmatpush1.bf16.xpose.msra.mxu0 0
        %853 = vmatprep.mubr.bf16.mxu0 0
        %854 = vmatmul.mubr.bf16.gmra.mrb[0].mxu0 %v816
        %v855 = vpop.f32.mrb[0].mxu0
        %v856 = vadd.f32 0.0, %v855
        %v857 = vpop.f32.mrb[0].mxu0
        %v858 = vpop.f32.mrb[0].mxu0
        %v859 = vpop.f32.mrb[0].mxu0
        %860 = vdwg.mxu0
        %v862 = vsel %vm722, %v702, 0
        %v865 = vsel %vm722, %v710, 0
        %867 = vmatprep.subr.bf16.mxu0 0
        %868 = vmatpush1.bf16.xpose.msra.mxu0 %v865
        %869 = vmatprep.subr.bf16.mxu0 0
        %870 = vmatpush1.bf16.xpose.msra.mxu0 0
        %871 = vmatprep.subr.bf16.mxu0 0
        %872 = vmatpush1.bf16.xpose.msra.mxu0 0
        %873 = vmatprep.subr.bf16.mxu0 0
        %874 = vmatpush1.bf16.xpose.msra.mxu0 0
        %875 = vmatprep.subr.bf16.mxu0 0
        %876 = vmatpush1.bf16.xpose.msra.mxu0 0
        %877 = vmatprep.subr.bf16.mxu0 0
        %878 = vmatpush1.bf16.xpose.msra.mxu0 0
        %879 = vmatprep.subr.bf16.mxu0 0
        %880 = vmatpush1.bf16.xpose.msra.mxu0 0
        %881 = vmatprep.subr.bf16.mxu0 0
        %882 = vmatpush1.bf16.xpose.msra.mxu0 0
        %883 = vmatprep.subr.bf16.mxu0 0
        %884 = vmatpush1.bf16.xpose.msra.mxu0 0
        %885 = vmatprep.subr.bf16.mxu0 0
        %886 = vmatpush1.bf16.xpose.msra.mxu0 0
        %887 = vmatprep.subr.bf16.mxu0 0
        %888 = vmatpush1.bf16.xpose.msra.mxu0 0
        %889 = vmatprep.subr.bf16.mxu0 0
        %890 = vmatpush1.bf16.xpose.msra.mxu0 0
        %891 = vmatprep.subr.bf16.mxu0 0
        %892 = vmatpush1.bf16.xpose.msra.mxu0 0
        %893 = vmatprep.subr.bf16.mxu0 0
        %894 = vmatpush1.bf16.xpose.msra.mxu0 0
        %895 = vmatprep.subr.bf16.mxu0 0
        %896 = vmatpush1.bf16.xpose.msra.mxu0 0
        %897 = vmatprep.subr.bf16.mxu0 0
        %898 = vmatpush1.bf16.xpose.msra.mxu0 0
        %899 = vmatprep.mubr.bf16.mxu0 0
        %900 = vmatmul.mubr.bf16.gmra.mrb[0].mxu0 %v862
        %v901 = vpop.f32.mrb[0].mxu0
        %v902 = vadd.f32 0.0, %v901
        %v903 = vpop.f32.mrb[0].mxu0
        %v904 = vpop.f32.mrb[0].mxu0
        %v905 = vpop.f32.mrb[0].mxu0
        %906 = vdwg.mxu0
        %v907 = vmul.f32 %v764, 0.17677669
        %v908 = vmul.f32 %v810, 0.17677669
        %v909 = vmul.f32 %v856, 0.17677669
        %v910 = vmul.f32 %v902, 0.17677669
        %v911 = vadd.f32 %v907, %v677
        %v912 = vadd.f32 %v908, %v677
        %v913 = vadd.f32 %v909, %v677
        %v914 = vadd.f32 %v910, %v677
        %vm915 = vcmask 130048
        %v916 = vsel %vm915, %v911, -inf
        %917 = vmax.xlane.f32.xlu0 %v916
        %v918 = vpop.xlane.xlu0 %917
        %v919 = vsel %vm915, %v912, -inf
        %920 = vmax.xlane.f32.xlu0 %v919
        %v921 = vpop.xlane.xlu0 %920
        %v922 = vsel %vm915, %v913, -inf
        %923 = vmax.xlane.f32.xlu0 %v922
        %v924 = vpop.xlane.xlu0 %923
        %v925 = vsel %vm915, %v914, -inf
        %926 = vmax.xlane.f32.xlu0 %v925
        %v927 = vpop.xlane.xlu0 %926
        %v928 = vsub.f32 %v911, %v918
        %v929 = vsub.f32 %v912, %v921
        %v930 = vsub.f32 %v913, %v924
        %v931 = vsub.f32 %v914, %v927
        %v932 = vmul.f32 %v928, 1.442695
        %v933 = vpow.pop %v932
        %v934 = vmul.f32 %v929, 1.442695
        %v935 = vpow.pop %v934
        %v936 = vmul.f32 %v930, 1.442695
        %v937 = vpow.pop %v936
        %v938 = vmul.f32 %v931, 1.442695
        %v939 = vpow.pop %v938
        %v940 = vsel %vm915, %v933, 0.0
        %941 = vadd.xlane.f32.xlu0 %v940
        %v942 = vpop.xlane.xlu0 %941
        %v943 = vsel %vm915, %v935, 0.0
        %944 = vadd.xlane.f32.xlu0 %v943
        %v945 = vpop.xlane.xlu0 %944
        %v946 = vsel %vm915, %v937, 0.0
        %947 = vadd.xlane.f32.xlu0 %v946
        %v948 = vpop.xlane.xlu0 %947
        %v949 = vsel %vm915, %v939, 0.0
        %950 = vadd.xlane.f32.xlu0 %v949
        %v951 = vpop.xlane.xlu0 %950
        %v952 = vrcp.pop %v942
        %v953 = vrcp.pop %v945
        %v954 = vrcp.pop %v948
        %v955 = vrcp.pop %v951
        %v956 = vmul.f32 %v933, %v952
        %v957 = vmul.f32 %v935, %v953
        %v958 = vmul.f32 %v937, %v954
        %v959 = vmul.f32 %v939, %v955
        %v960 = vpack.c.bf16 %v956, %v956
        %v961 = vpack.c.bf16 %v957, %v957
        %v962 = vpack.c.bf16 %v958, %v958
        %v963 = vpack.c.bf16 %v959, %v959
        %v965 = vsel %vm915, %v960, 0
        %967 = vmatprep.subr.bf16.mxu0 0
        %968 = vmatpush1.bf16.msra.mxu0 %v711
        %969 = vmatprep.subr.bf16.mxu0 0
        %970 = vmatpush1.bf16.msra.mxu0 0
        %971 = vmatprep.subr.bf16.mxu0 0
        %972 = vmatpush1.bf16.msra.mxu0 0
        %973 = vmatprep.subr.bf16.mxu0 0
        %974 = vmatpush1.bf16.msra.mxu0 0
        %975 = vmatprep.subr.bf16.mxu0 0
        %976 = vmatpush1.bf16.msra.mxu0 0
        %977 = vmatprep.subr.bf16.mxu0 0
        %978 = vmatpush1.bf16.msra.mxu0 0
        %979 = vmatprep.subr.bf16.mxu0 0
        %980 = vmatpush1.bf16.msra.mxu0 0
        %981 = vmatprep.subr.bf16.mxu0 0
        %982 = vmatpush1.bf16.msra.mxu0 0
        %983 = vmatprep.subr.bf16.mxu0 0
        %984 = vmatpush1.bf16.msra.mxu0 0
        %985 = vmatprep.subr.bf16.mxu0 0
        %986 = vmatpush1.bf16.msra.mxu0 0
        %987 = vmatprep.subr.bf16.mxu0 0
        %988 = vmatpush1.bf16.msra.mxu0 0
        %989 = vmatprep.subr.bf16.mxu0 0
        %990 = vmatpush1.bf16.msra.mxu0 0
        %991 = vmatprep.subr.bf16.mxu0 0
        %992 = vmatpush1.bf16.msra.mxu0 0
        %993 = vmatprep.subr.bf16.mxu0 0
        %994 = vmatpush1.bf16.msra.mxu0 0
        %995 = vmatprep.subr.bf16.mxu0 0
        %996 = vmatpush1.bf16.msra.mxu0 0
        %997 = vmatprep.subr.bf16.mxu0 0
        %998 = vmatpush1.bf16.msra.mxu0 0
        %999 = vmatprep.mubr.bf16.mxu0 0
        %1000 = vmatmul.mubr.bf16.gmra.mrb[0].mxu0 %v965
        %v1001 = vpop.f32.mrb[0].mxu0
        %v1002 = vadd.f32 0.0, %v1001
        %v1003 = vpop.f32.mrb[0].mxu0
        %v1004 = vpop.f32.mrb[0].mxu0
        %v1005 = vpop.f32.mrb[0].mxu0
        %1006 = vdwg.mxu0
        %v1008 = vsel %vm915, %v961, 0
        %1010 = vmatprep.subr.bf16.mxu0 0
        %1011 = vmatpush1.bf16.msra.mxu0 %v714
        %1012 = vmatprep.subr.bf16.mxu0 0
        %1013 = vmatpush1.bf16.msra.mxu0 0
        %1014 = vmatprep.subr.bf16.mxu0 0
        %1015 = vmatpush1.bf16.msra.mxu0 0
        %1016 = vmatprep.subr.bf16.mxu0 0
        %1017 = vmatpush1.bf16.msra.mxu0 0
        %1018 = vmatprep.subr.bf16.mxu0 0
        %1019 = vmatpush1.bf16.msra.mxu0 0
        %1020 = vmatprep.subr.bf16.mxu0 0
        %1021 = vmatpush1.bf16.msra.mxu0 0
        %1022 = vmatprep.subr.bf16.mxu0 0
        %1023 = vmatpush1.bf16.msra.mxu0 0
        %1024 = vmatprep.subr.bf16.mxu0 0
        %1025 = vmatpush1.bf16.msra.mxu0 0
        %1026 = vmatprep.subr.bf16.mxu0 0
        %1027 = vmatpush1.bf16.msra.mxu0 0
        %1028 = vmatprep.subr.bf16.mxu0 0
        %1029 = vmatpush1.bf16.msra.mxu0 0
        %1030 = vmatprep.subr.bf16.mxu0 0
        %1031 = vmatpush1.bf16.msra.mxu0 0
        %1032 = vmatprep.subr.bf16.mxu0 0
        %1033 = vmatpush1.bf16.msra.mxu0 0
        %1034 = vmatprep.subr.bf16.mxu0 0
        %1035 = vmatpush1.bf16.msra.mxu0 0
        %1036 = vmatprep.subr.bf16.mxu0 0
        %1037 = vmatpush1.bf16.msra.mxu0 0
        %1038 = vmatprep.subr.bf16.mxu0 0
        %1039 = vmatpush1.bf16.msra.mxu0 0
        %1040 = vmatprep.subr.bf16.mxu0 0
        %1041 = vmatpush1.bf16.msra.mxu0 0
        %1042 = vmatprep.mubr.bf16.mxu0 0
        %1043 = vmatmul.mubr.bf16.gmra.mrb[0].mxu0 %v1008
        %v1044 = vpop.f32.mrb[0].mxu0
        %v1045 = vadd.f32 0.0, %v1044
        %v1046 = vpop.f32.mrb[0].mxu0
        %v1047 = vpop.f32.mrb[0].mxu0
        %v1048 = vpop.f32.mrb[0].mxu0
        %1049 = vdwg.mxu0
        %v1051 = vsel %vm915, %v962, 0
        %1053 = vmatprep.subr.bf16.mxu0 0
        %1054 = vmatpush1.bf16.msra.mxu0 %v717
        %1055 = vmatprep.subr.bf16.mxu0 0
        %1056 = vmatpush1.bf16.msra.mxu0 0
        %1057 = vmatprep.subr.bf16.mxu0 0
        %1058 = vmatpush1.bf16.msra.mxu0 0
        %1059 = vmatprep.subr.bf16.mxu0 0
        %1060 = vmatpush1.bf16.msra.mxu0 0
        %1061 = vmatprep.subr.bf16.mxu0 0
        %1062 = vmatpush1.bf16.msra.mxu0 0
        %1063 = vmatprep.subr.bf16.mxu0 0
        %1064 = vmatpush1.bf16.msra.mxu0 0
        %1065 = vmatprep.subr.bf16.mxu0 0
        %1066 = vmatpush1.bf16.msra.mxu0 0
        %1067 = vmatprep.subr.bf16.mxu0 0
        %1068 = vmatpush1.bf16.msra.mxu0 0
        %1069 = vmatprep.subr.bf16.mxu0 0
        %1070 = vmatpush1.bf16.msra.mxu0 0
        %1071 = vmatprep.subr.bf16.mxu0 0
        %1072 = vmatpush1.bf16.msra.mxu0 0
        %1073 = vmatprep.subr.bf16.mxu0 0
        %1074 = vmatpush1.bf16.msra.mxu0 0
        %1075 = vmatprep.subr.bf16.mxu0 0
        %1076 = vmatpush1.bf16.msra.mxu0 0
        %1077 = vmatprep.subr.bf16.mxu0 0
        %1078 = vmatpush1.bf16.msra.mxu0 0
        %1079 = vmatprep.subr.bf16.mxu0 0
        %1080 = vmatpush1.bf16.msra.mxu0 0
        %1081 = vmatprep.subr.bf16.mxu0 0
        %1082 = vmatpush1.bf16.msra.mxu0 0
        %1083 = vmatprep.subr.bf16.mxu0 0
        %1084 = vmatpush1.bf16.msra.mxu0 0
        %1085 = vmatprep.mubr.bf16.mxu0 0
        %1086 = vmatmul.mubr.bf16.gmra.mrb[0].mxu0 %v1051
        %v1087 = vpop.f32.mrb[0].mxu0
        %v1088 = vadd.f32 0.0, %v1087
        %v1089 = vpop.f32.mrb[0].mxu0
        %v1090 = vpop.f32.mrb[0].mxu0
        %v1091 = vpop.f32.mrb[0].mxu0
        %1092 = vdwg.mxu0
        %v1094 = vsel %vm915, %v963, 0
        %1096 = vmatprep.subr.bf16.mxu0 0
        %1097 = vmatpush1.bf16.msra.mxu0 %v720
        %1098 = vmatprep.subr.bf16.mxu0 0
        %1099 = vmatpush1.bf16.msra.mxu0 0
        %1100 = vmatprep.subr.bf16.mxu0 0
        %1101 = vmatpush1.bf16.msra.mxu0 0
        %1102 = vmatprep.subr.bf16.mxu0 0
        %1103 = vmatpush1.bf16.msra.mxu0 0
        %1104 = vmatprep.subr.bf16.mxu0 0
        %1105 = vmatpush1.bf16.msra.mxu0 0
        %1106 = vmatprep.subr.bf16.mxu0 0
        %1107 = vmatpush1.bf16.msra.mxu0 0
        %1108 = vmatprep.subr.bf16.mxu0 0
        %1109 = vmatpush1.bf16.msra.mxu0 0
        %1110 = vmatprep.subr.bf16.mxu0 0
        %1111 = vmatpush1.bf16.msra.mxu0 0
        %1112 = vmatprep.subr.bf16.mxu0 0
        %1113 = vmatpush1.bf16.msra.mxu0 0
        %1114 = vmatprep.subr.bf16.mxu0 0
        %1115 = vmatpush1.bf16.msra.mxu0 0
        %1116 = vmatprep.subr.bf16.mxu0 0
        %1117 = vmatpush1.bf16.msra.mxu0 0
        %1118 = vmatprep.subr.bf16.mxu0 0
        %1119 = vmatpush1.bf16.msra.mxu0 0
        %1120 = vmatprep.subr.bf16.mxu0 0
        %1121 = vmatpush1.bf16.msra.mxu0 0
        %1122 = vmatprep.subr.bf16.mxu0 0
        %1123 = vmatpush1.bf16.msra.mxu0 0
        %1124 = vmatprep.subr.bf16.mxu0 0
        %1125 = vmatpush1.bf16.msra.mxu0 0
        %1126 = vmatprep.subr.bf16.mxu0 0
        %1127 = vmatpush1.bf16.msra.mxu0 0
        %1128 = vmatprep.mubr.bf16.mxu0 0
        %1129 = vmatmul.mubr.bf16.gmra.mrb[0].mxu0 %v1094
        %v1130 = vpop.f32.mrb[0].mxu0
        %v1131 = vadd.f32 0.0, %v1130
        %v1132 = vpop.f32.mrb[0].mxu0
        %v1133 = vpop.f32.mrb[0].mxu0
        %v1134 = vpop.f32.mrb[0].mxu0
        %1135 = vdwg.mxu0
        %1137 = vrot.lane.b32.xlu0 %v1045, 32
        %v1138 = vpop.permute.xlu0 %1137
        %1141 = vrot.lane.b32.xlu0 %v1088, 64
        %v1142 = vpop.permute.xlu0 %1141
        %1145 = vrot.lane.b32.xlu0 %v1131, 96
        %v1146 = vpop.permute.xlu0 %1145
        %v1148 = vsel %vm722, %v1002, %v1138
        %vm1149 = vcmask 523264
        %v1150 = vsel %vm1149, %v1148, %v1142
        %vm1151 = vcmask 785408
        %v1152 = vsel %vm1151, %v1150, %v1146
        %v1153 = vpack.c.bf16 %v1152, %v1152
        %v1155 = vlaneseq
        %v1156 = vshrl.u32 %v1155, 7
        %v1157 = vsub.s32 0, %v1156
        %v1158 = vrot.slane %v694, %v1157
        %v1176 = vunpack.c.l.b16 %v678
        %v1177 = vunpack.c.l.b16 %v679
        %v1178 = vunpack.c.l.b16 %v680
        %v1179 = vunpack.c.l.b16 %v681
        %v1180 = vunpack.c.l.b16 %v682
        %v1181 = vunpack.c.l.b16 %v683
        %v1182 = vunpack.c.l.b16 %v684
        %v1183 = vunpack.c.l.b16 %v685
        %v1184 = vunpack.c.l.b16 %v686
        %v1185 = vunpack.c.l.b16 %v687
        %v1186 = vunpack.c.l.b16 %v688
        %v1187 = vunpack.c.l.b16 %v689
        %v1188 = vunpack.c.l.b16 %v690
        %v1189 = vunpack.c.l.b16 %v691
        %v1190 = vunpack.c.l.b16 %v692
        %v1191 = vunpack.c.l.b16 %v693
        %v1192 = vpack.c.b16 %v1177, %v1176
        %v1193 = vpack.c.b16 %v1179, %v1178
        %v1194 = vpack.c.b16 %v1181, %v1180
        %v1195 = vpack.c.b16 %v1183, %v1182
        %v1196 = vpack.c.b16 %v1185, %v1184
        %v1197 = vpack.c.b16 %v1187, %v1186
        %v1198 = vpack.c.b16 %v1189, %v1188
        %v1199 = vpack.c.b16 %v1191, %v1190
        %1208 = vmatprep.subr.bf16.mxu0 0
        %1209 = vmatpush1.bf16.msra.mxu0 %v1192
        %1210 = vmatprep.subr.bf16.mxu0 0
        %1211 = vmatpush1.bf16.msra.mxu0 %v1193
        %1212 = vmatprep.subr.bf16.mxu0 0
        %1213 = vmatpush1.bf16.msra.mxu0 %v1194
        %1214 = vmatprep.subr.bf16.mxu0 0
        %1215 = vmatpush1.bf16.msra.mxu0 %v1195
        %1216 = vmatprep.subr.bf16.mxu0 0
        %1217 = vmatpush1.bf16.msra.mxu0 %v1196
        %1218 = vmatprep.subr.bf16.mxu0 0
        %1219 = vmatpush1.bf16.msra.mxu0 %v1197
        %1220 = vmatprep.subr.bf16.mxu0 0
        %1221 = vmatpush1.bf16.msra.mxu0 %v1198
        %1222 = vmatprep.subr.bf16.mxu0 0
        %1223 = vmatpush1.bf16.msra.mxu0 %v1199
        %1224 = vmatprep.subr.bf16.mxu0 0
        %1225 = vmatpush1.bf16.msra.mxu0 0
        %1226 = vmatprep.subr.bf16.mxu0 0
        %1227 = vmatpush1.bf16.msra.mxu0 0
        %1228 = vmatprep.subr.bf16.mxu0 0
        %1229 = vmatpush1.bf16.msra.mxu0 0
        %1230 = vmatprep.subr.bf16.mxu0 0
        %1231 = vmatpush1.bf16.msra.mxu0 0
        %1232 = vmatprep.subr.bf16.mxu0 0
        %1233 = vmatpush1.bf16.msra.mxu0 0
        %1234 = vmatprep.subr.bf16.mxu0 0
        %1235 = vmatpush1.bf16.msra.mxu0 0
        %1236 = vmatprep.subr.bf16.mxu0 0
        %1237 = vmatpush1.bf16.msra.mxu0 0
        %1238 = vmatprep.subr.bf16.mxu0 0
        %1239 = vmatpush1.bf16.msra.mxu0 0
        %1240 = vmatprep.mubr.bf16.mxu0 0
        %1241 = vmatmul.mubr.bf16.gmra.mrb[0].mxu0 %v1153
        %v1242 = vpop.f32.mrb[0].mxu0
        %v1243 = vadd.f32 %v1158, %v1242
        %v1244 = vpop.f32.mrb[0].mxu0
        %v1245 = vpop.f32.mrb[0].mxu0
        %v1246 = vpop.f32.mrb[0].mxu0
        %1247 = vdwg.mxu0
        %s1248 = scalar_lea.vmem %s320, %s659
        %v1249 = vld [vmem:[%s1248] sm:$0xff]
        %v1250 = vadd.f32 %v1249, %v1243
        %1251 = vst [vmem:[%s328] sm:$0xff] %v1250
        %p1252 = scmp.lt.s32.totalorder %s24, 1
        %s1253 = scalar_select %p1252, %s24, 1
        %p1254 = scmp.lt.s32.totalorder %s25, 1
        %s1255 = scalar_select %p1254, %s25, 1
        %s1256 = smul.addr %s1253, 2
        %s1257 = sadd.s32 %s1255, %s1256
        %s1258 = smul.addr %s1257, 8
        %s1259 = scalar_lea.vmem %s7, %s1258
        // Predicated region
        $region61: #{decoder_forward.6} parent=47 // pred_check
          %p1260 = pneg %p204
        $region62: #{decoder_forward.6} parent=47 // pred_check_branch
          %1262 = sbr.rel (%p1260) target = $region64
        $region63: #{decoder_forward.6} parent=47 // pred_region
          _
        $region64: #{decoder_forward.6} parent=47 // pred_fallthru
          _
      $region48: #{decoder_forward.6} parent=5 // pred_fallthru
        _
      %p1263 = scmp.le.s32.totalorder 2, %s15
      // Predicated region
      $region65: #{decoder_forward.6} parent=5 // pred_check
        %p1264 = pneg %p1263
      $region66: #{decoder_forward.6} parent=5 // pred_check_branch
        %1266 = sbr.rel (%p1264) target = $region68
      $region67: #{decoder_forward.6} parent=5 // pred_region
        %s1267 = ssub.s32 %s15, 2
        // Predicated region
        $region69: #{decoder_forward.6} parent=67 // pred_check
          %p1268 = pneg %p210
        $region70: #{decoder_forward.6} parent=67 // pred_check_branch
          %1270 = sbr.rel (%p1268) target = $region72
        $region71: #{decoder_forward.6} parent=67 // pred_region
          %p1271 = scmp.lt.s32.totalorder %s26, 1
          %s1272 = scalar_select %p1271, %s26, 1
          %p1273 = scmp.lt.s32.totalorder %s27, 1
          %s1274 = scalar_select %p1273, %s27, 1
          %s1275 = smul.addr %s1272, 2
          %s1276 = sadd.s32 %s1274, %s1275
          %s1277 = smul.addr %s1276, 8
          %s1278 = scalar_lea.vmem %s7, %s1277
        $region72: #{decoder_forward.6} parent=67 // pred_fallthru
          _
      $region68: #{decoder_forward.6} parent=5 // pred_fallthru
        _
    $region6: #{decoder_forward.6} parent=1 // loop_footer
      %s19 = sadd.s32 1, %s15
    $region7: #{decoder_forward.6} parent=1 // loop_footer_branch
      %14 = sbr.rel target = $region3
    $region8: #{decoder_forward.6} parent=1 // loop_exit
      _
    %1279 = vsyncpa [#allocation4], 1
    %s1280 = scalar_lea.sflag [#allocation4], 1
    %1281 = vsyncpa %s1280, 1
    %1282 = vsyncpa [#allocation6], 1

// kernel: decoder_forward.7
$region0: #{decoder_forward.7}
  #allocation0 [shape = 'u32[]', space=smem, size = 0x4, offset = 0x4, fixed_abs, tag = 'smem constant byte address 0x4 - core index']
  #allocation1 [shape = 'u32[144,128]{1,0:T(1,128)}', space=vmem, size = 0x12000, scoped, tag = 'internal scratch']
  #allocation2 [shape = 'f32[16,256]{1,0:T(8,128)}', space=vmem, size = 0x4000, scoped, tag = 'scratch operand']
  %s0 = inlined_call_operand.vmem [shape: f32[2,1,16], index: 0, kind: input, shape index: {}]
  %s1 = inlined_call_operand.vmem [shape: f32[2,16,128], index: 1, kind: input, shape index: {}]
  %s2 = inlined_call_operand.vmem [shape: f32[2,16,128], index: 2, kind: input, shape index: {}]
  %s3 = inlined_call_operand.vmem [shape: f32[1,128], index: 3, kind: input, shape index: {}]
  %s4 = inlined_call_operand.vmem [shape: f32[1,128], index: 4, kind: input, shape index: {}]
  %s5 = inlined_call_operand.vmem [shape: bf16[128,128], index: 5, kind: input, shape index: {}]
  %s6 = inlined_call_operand.vmem [shape: f32[1,128], index: 6, kind: input, shape index: {}]
  %s7 = inlined_call_operand.vmem [shape: bf16[128,256], index: 7, kind: input, shape index: {}]
  %s8 = inlined_call_operand.vmem [shape: f32[1,256], index: 8, kind: input, shape index: {}]
  %s9 = inlined_call_operand.vmem [shape: bf16[128,128], index: 9, kind: input, shape index: {}]
  %s10 = inlined_call_operand.vmem [shape: f32[1,128], index: 10, kind: input, shape index: {}]
  %s11 = inlined_call_operand.vmem [shape: f32[2,16,128], index: 11, kind: output, shape index: {}]
  %s12 = sld [smem:[#allocation0]]
  $region81: #{decoder_forward.7} parent=0
    _
  %s14 = ssub.s32 1, %s12
  %s15 = scalar_select 0, %s14, %s12
  loop: start=0, step=1, limit=6
  $region2: #{decoder_forward.7} parent=0 // loop_pre_header
    _
  $region3: #{decoder_forward.7} parent=0 // loop_header
    %s17 = sphi 0, %s21
    %p18 = scmp.ge.s32.totalorder %s17, 6
    %s24 = sphi 0, %s36
    %s25 = sphi 0, %s32
    %s26 = sphi 0, %s24
    %s27 = sphi 0, %s25
    %s28 = sphi 0, %s26
    %s29 = sphi 0, %s27
    %s39 = sphi 0, %s41
    %s42 = sphi 0, %s39
    %s43 = sphi 0, %s42
    %s59 = sphi 0, %s43
    %s67 = sphi 0, %s69
    %s70 = sphi 0, %s67
    %s71 = sphi 0, %s70
    %s87 = sphi 0, %s71
    %s93 = sphi 0, %s95
    %s96 = sphi 0, %s93
    %s97 = sphi 0, %s96
    %s113 = sphi 0, %s97
    %s117 = sphi 0, %s117
    %s119 = sphi 0, %s117
    %s120 = sphi 0, %s119
    %s134 = sphi 0, %s120
    %s138 = sphi 0, %s138
    %s140 = sphi 0, %s138
    %s141 = sphi 0, %s140
    %s155 = sphi 0, %s141
    %s159 = sphi 0, %s159
    %s161 = sphi 0, %s159
    %s162 = sphi 0, %s161
    %s176 = sphi 0, %s162
    %s180 = sphi 0, %s180
    %s182 = sphi 0, %s180
    %s183 = sphi 0, %s182
    %s197 = sphi 0, %s183
    %s201 = sphi 0, %s201
    %s203 = sphi 0, %s201
    %s204 = sphi 0, %s203
    %s218 = sphi 0, %s204
    %s222 = sphi 0, %s222
    %s224 = sphi 0, %s222
    %s225 = sphi 0, %s224
    %s239 = sphi 0, %s225
    %s243 = sphi 0, %s243
    %s245 = sphi 0, %s243
    %s246 = sphi 0, %s245
    %s260 = sphi 0, %s246
    %s264 = sphi 0, %s264
    %s266 = sphi 0, %s264
    %s267 = sphi 0, %s266
    %s281 = sphi 0, %s267
    %s289 = sphi 0, %s291
    %s292 = sphi 0, %s289
    %s293 = sphi 0, %s292
    %s309 = sphi 0, %s293
  $region4: #{decoder_forward.7} parent=0 // loop_header_branch
    %20 = sbr.rel (%p18) target = $region8
  $region5: #{decoder_forward.7} parent=0 // loop_body
    %s22 = ssub.s32 %s17, 1
    %s23 = ssub.s32 %s17, 2
    %s30 = sadd.s32 1, %s25
    %p31 = scmp.ge.s32.totalorder %s30, 2
    %s32 = scalar_select %p31, 0, %s30
    %s33 = sadd.s32 1, %s24
    %s34 = scalar_select %p31, %s33, %s24
    %p35 = scmp.ge.s32.totalorder %s34, 2
    %s36 = scalar_select %p35, 0, %s34
    %s37 = ssub.s32 %s24, %s36
    %p38 = scmp.eq.s32.totalorder %s37, 0
    %s40 = sadd.s32 %s39, 1
    %s41 = scalar_select %p38, %s39, %s40
    %p44 = pneg %p38
    %p45 = scmp.eq.s32.totalorder %s17, 3
    %p46 = por %p44, %p45
    %p47 = scmp.ne.s32.totalorder %s39, %s42
    %p48 = scmp.eq.s32.totalorder %s17, 0
    %p49 = por %p47, %p48
    %p50 = scmp.ne.s32.totalorder %s39, %s42
    %p51 = scmp.eq.s32.totalorder %s22, 3
    %p52 = por %p50, %p51
    %p53 = scmp.ne.s32.totalorder %s42, %s43
    %p54 = scmp.eq.s32.totalorder %s22, 0
    %p55 = por %p53, %p54
    %p56 = scmp.ne.s32.totalorder %s42, %s43
    %p57 = scmp.eq.s32.totalorder %s23, 3
    %p58 = por %p56, %p57
    %p60 = scmp.ne.s32.totalorder %s43, %s59
    %p61 = scmp.eq.s32.totalorder %s23, 0
    %p62 = por %p60, %p61
    %s63 = ssub.s32 %s24, %s36
    %s64 = ssub.s32 %s25, %s32
    %s65 = sor.u32 %s63, %s64
    %p66 = scmp.eq.s32.totalorder %s65, 0
    %s68 = sadd.s32 %s67, 1
    %s69 = scalar_select %p66, %s67, %s68
    %p72 = pneg %p66
    %p73 = scmp.eq.s32.totalorder %s17, 3
    %p74 = por %p72, %p73
    %p75 = scmp.ne.s32.totalorder %s67, %s70
    %p76 = scmp.eq.s32.totalorder %s17, 0
    %p77 = por %p75, %p76
    %p78 = scmp.ne.s32.totalorder %s67, %s70
    %p79 = scmp.eq.s32.totalorder %s22, 3
    %p80 = por %p78, %p79
    %p81 = scmp.ne.s32.totalorder %s70, %s71
    %p82 = scmp.eq.s32.totalorder %s22, 0
    %p83 = por %p81, %p82
    %p84 = scmp.ne.s32.totalorder %s70, %s71
    %p85 = scmp.eq.s32.totalorder %s23, 3
    %p86 = por %p84, %p85
    %p88 = scmp.ne.s32.totalorder %s71, %s87
    %p89 = scmp.eq.s32.totalorder %s23, 0
    %p90 = por %p88, %p89
    %s91 = ssub.s32 %s24, %s36
    %p92 = scmp.eq.s32.totalorder %s91, 0
    %s94 = sadd.s32 %s93, 1
    %s95 = scalar_select %p92, %s93, %s94
    %p98 = pneg %p92
    %p99 = scmp.eq.s32.totalorder %s17, 3
    %p100 = por %p98, %p99
    %p101 = scmp.ne.s32.totalorder %s93, %s96
    %p102 = scmp.eq.s32.totalorder %s17, 0
    %p103 = por %p101, %p102
    %p104 = scmp.ne.s32.totalorder %s93, %s96
    %p105 = scmp.eq.s32.totalorder %s22, 3
    %p106 = por %p104, %p105
    %p107 = scmp.ne.s32.totalorder %s96, %s97
    %p108 = scmp.eq.s32.totalorder %s22, 0
    %p109 = por %p107, %p108
    %p110 = scmp.ne.s32.totalorder %s96, %s97
    %p111 = scmp.eq.s32.totalorder %s23, 3
    %p112 = por %p110, %p111
    %p114 = scmp.ne.s32.totalorder %s97, %s113
    %p115 = scmp.eq.s32.totalorder %s23, 0
    %p116 = por %p114, %p115
    %s118 = sadd.s32 %s117, 1
    %p121 = scmp.eq.s32.totalorder %s17, 3
    %p122 = scmp.ne.s32.totalorder %s117, %s119
    %p123 = scmp.eq.s32.totalorder %s17, 0
    %p124 = por %p122, %p123
    %p125 = scmp.ne.s32.totalorder %s117, %s119
    %p126 = scmp.eq.s32.totalorder %s22, 3
    %p127 = por %p125, %p126
    %p128 = scmp.ne.s32.totalorder %s119, %s120
    %p129 = scmp.eq.s32.totalorder %s22, 0
    %p130 = por %p128, %p129
    %p131 = scmp.ne.s32.totalorder %s119, %s120
    %p132 = scmp.eq.s32.totalorder %s23, 3
    %p133 = por %p131, %p132
    %p135 = scmp.ne.s32.totalorder %s120, %s134
    %p136 = scmp.eq.s32.totalorder %s23, 0
    %p137 = por %p135, %p136
    %s139 = sadd.s32 %s138, 1
    %p142 = scmp.eq.s32.totalorder %s17, 3
    %p143 = scmp.ne.s32.totalorder %s138, %s140
    %p144 = scmp.eq.s32.totalorder %s17, 0
    %p145 = por %p143, %p144
    %p146 = scmp.ne.s32.totalorder %s138, %s140
    %p147 = scmp.eq.s32.totalorder %s22, 3
    %p148 = por %p146, %p147
    %p149 = scmp.ne.s32.totalorder %s140, %s141
    %p150 = scmp.eq.s32.totalorder %s22, 0
    %p151 = por %p149, %p150
    %p152 = scmp.ne.s32.totalorder %s140, %s141
    %p153 = scmp.eq.s32.totalorder %s23, 3
    %p154 = por %p152, %p153
    %p156 = scmp.ne.s32.totalorder %s141, %s155
    %p157 = scmp.eq.s32.totalorder %s23, 0
    %p158 = por %p156, %p157
    %s160 = sadd.s32 %s159, 1
    %p163 = scmp.eq.s32.totalorder %s17, 3
    %p164 = scmp.ne.s32.totalorder %s159, %s161
    %p165 = scmp.eq.s32.totalorder %s17, 0
    %p166 = por %p164, %p165
    %p167 = scmp.ne.s32.totalorder %s159, %s161
    %p168 = scmp.eq.s32.totalorder %s22, 3
    %p169 = por %p167, %p168
    %p170 = scmp.ne.s32.totalorder %s161, %s162
    %p171 = scmp.eq.s32.totalorder %s22, 0
    %p172 = por %p170, %p171
    %p173 = scmp.ne.s32.totalorder %s161, %s162
    %p174 = scmp.eq.s32.totalorder %s23, 3
    %p175 = por %p173, %p174
    %p177 = scmp.ne.s32.totalorder %s162, %s176
    %p178 = scmp.eq.s32.totalorder %s23, 0
    %p179 = por %p177, %p178
    %s181 = sadd.s32 %s180, 1
    %p184 = scmp.eq.s32.totalorder %s17, 3
    %p185 = scmp.ne.s32.totalorder %s180, %s182
    %p186 = scmp.eq.s32.totalorder %s17, 0
    %p187 = por %p185, %p186
    %p188 = scmp.ne.s32.totalorder %s180, %s182
    %p189 = scmp.eq.s32.totalorder %s22, 3
    %p190 = por %p188, %p189
    %p191 = scmp.ne.s32.totalorder %s182, %s183
    %p192 = scmp.eq.s32.totalorder %s22, 0
    %p193 = por %p191, %p192
    %p194 = scmp.ne.s32.totalorder %s182, %s183
    %p195 = scmp.eq.s32.totalorder %s23, 3
    %p196 = por %p194, %p195
    %p198 = scmp.ne.s32.totalorder %s183, %s197
    %p199 = scmp.eq.s32.totalorder %s23, 0
    %p200 = por %p198, %p199
    %s202 = sadd.s32 %s201, 1
    %p205 = scmp.eq.s32.totalorder %s17, 3
    %p206 = scmp.ne.s32.totalorder %s201, %s203
    %p207 = scmp.eq.s32.totalorder %s17, 0
    %p208 = por %p206, %p207
    %p209 = scmp.ne.s32.totalorder %s201, %s203
    %p210 = scmp.eq.s32.totalorder %s22, 3
    %p211 = por %p209, %p210
    %p212 = scmp.ne.s32.totalorder %s203, %s204
    %p213 = scmp.eq.s32.totalorder %s22, 0
    %p214 = por %p212, %p213
    %p215 = scmp.ne.s32.totalorder %s203, %s204
    %p216 = scmp.eq.s32.totalorder %s23, 3
    %p217 = por %p215, %p216
    %p219 = scmp.ne.s32.totalorder %s204, %s218
    %p220 = scmp.eq.s32.totalorder %s23, 0
    %p221 = por %p219, %p220
    %s223 = sadd.s32 %s222, 1
    %p226 = scmp.eq.s32.totalorder %s17, 3
    %p227 = scmp.ne.s32.totalorder %s222, %s224
    %p228 = scmp.eq.s32.totalorder %s17, 0
    %p229 = por %p227, %p228
    %p230 = scmp.ne.s32.totalorder %s222, %s224
    %p231 = scmp.eq.s32.totalorder %s22, 3
    %p232 = por %p230, %p231
    %p233 = scmp.ne.s32.totalorder %s224, %s225
    %p234 = scmp.eq.s32.totalorder %s22, 0
    %p235 = por %p233, %p234
    %p236 = scmp.ne.s32.totalorder %s224, %s225
    %p237 = scmp.eq.s32.totalorder %s23, 3
    %p238 = por %p236, %p237
    %p240 = scmp.ne.s32.totalorder %s225, %s239
    %p241 = scmp.eq.s32.totalorder %s23, 0
    %p242 = por %p240, %p241
    %s244 = sadd.s32 %s243, 1
    %p247 = scmp.eq.s32.totalorder %s17, 3
    %p248 = scmp.ne.s32.totalorder %s243, %s245
    %p249 = scmp.eq.s32.totalorder %s17, 0
    %p250 = por %p248, %p249
    %p251 = scmp.ne.s32.totalorder %s243, %s245
    %p252 = scmp.eq.s32.totalorder %s22, 3
    %p253 = por %p251, %p252
    %p254 = scmp.ne.s32.totalorder %s245, %s246
    %p255 = scmp.eq.s32.totalorder %s22, 0
    %p256 = por %p254, %p255
    %p257 = scmp.ne.s32.totalorder %s245, %s246
    %p258 = scmp.eq.s32.totalorder %s23, 3
    %p259 = por %p257, %p258
    %p261 = scmp.ne.s32.totalorder %s246, %s260
    %p262 = scmp.eq.s32.totalorder %s23, 0
    %p263 = por %p261, %p262
    %s265 = sadd.s32 %s264, 1
    %p268 = scmp.eq.s32.totalorder %s17, 3
    %p269 = scmp.ne.s32.totalorder %s264, %s266
    %p270 = scmp.eq.s32.totalorder %s17, 0
    %p271 = por %p269, %p270
    %p272 = scmp.ne.s32.totalorder %s264, %s266
    %p273 = scmp.eq.s32.totalorder %s22, 3
    %p274 = por %p272, %p273
    %p275 = scmp.ne.s32.totalorder %s266, %s267
    %p276 = scmp.eq.s32.totalorder %s22, 0
    %p277 = por %p275, %p276
    %p278 = scmp.ne.s32.totalorder %s266, %s267
    %p279 = scmp.eq.s32.totalorder %s23, 3
    %p280 = por %p278, %p279
    %p282 = scmp.ne.s32.totalorder %s267, %s281
    %p283 = scmp.eq.s32.totalorder %s23, 0
    %p284 = por %p282, %p283
    %s285 = ssub.s32 %s24, %s36
    %s286 = ssub.s32 %s25, %s32
    %s287 = sor.u32 %s285, %s286
    %p288 = scmp.eq.s32.totalorder %s287, 0
    %s290 = sadd.s32 %s289, 1
    %s291 = scalar_select %p288, %s289, %s290
    %p294 = pneg %p288
    %p295 = scmp.eq.s32.totalorder %s17, 3
    %p296 = por %p294, %p295
    %p297 = scmp.ne.s32.totalorder %s289, %s292
    %p298 = scmp.eq.s32.totalorder %s17, 0
    %p299 = por %p297, %p298
    %p300 = scmp.ne.s32.totalorder %s289, %s292
    %p301 = scmp.eq.s32.totalorder %s22, 3
    %p302 = por %p300, %p301
    %p303 = scmp.ne.s32.totalorder %s292, %s293
    %p304 = scmp.eq.s32.totalorder %s22, 0
    %p305 = por %p303, %p304
    %p306 = scmp.ne.s32.totalorder %s292, %s293
    %p307 = scmp.eq.s32.totalorder %s23, 3
    %p308 = por %p306, %p307
    %p310 = scmp.ne.s32.totalorder %s293, %s309
    %p311 = scmp.eq.s32.totalorder %s23, 0
    %p312 = por %p310, %p311
    %p313 = scmp.le.s32.totalorder 1, %s17
    %p314 = scmp.lt.s32.totalorder %s17, 5
    %p315 = pnand %p313, %p314
    %p316 = pneg %p315
    // Predicated region
    $region9: #{decoder_forward.7} parent=5 // pred_check
      _
    $region10: #{decoder_forward.7} parent=5 // pred_check_branch
      %318 = sbr.rel (%p315) target = $region12
    $region11: #{decoder_forward.7} parent=5 // pred_region
      %s319 = ssub.s32 %s17, 1
      // Predicated region
      $region13: #{decoder_forward.7} parent=11 // pred_check
        %p320 = pneg %p130
      $region14: #{decoder_forward.7} parent=11 // pred_check_branch
        %322 = sbr.rel (%p320) target = $region16
      $region15: #{decoder_forward.7} parent=11 // pred_region
        _
      $region16: #{decoder_forward.7} parent=11 // pred_fallthru
        _
      // Predicated region
      $region17: #{decoder_forward.7} parent=11 // pred_check
        %p323 = pneg %p151
      $region18: #{decoder_forward.7} parent=11 // pred_check_branch
        %325 = sbr.rel (%p323) target = $region20
      $region19: #{decoder_forward.7} parent=11 // pred_region
        _
      $region20: #{decoder_forward.7} parent=11 // pred_fallthru
        _
      // Predicated region
      $region21: #{decoder_forward.7} parent=11 // pred_check
        %p326 = pneg %p172
      $region22: #{decoder_forward.7} parent=11 // pred_check_branch
        %328 = sbr.rel (%p326) target = $region24
      $region23: #{decoder_forward.7} parent=11 // pred_region
        _
      $region24: #{decoder_forward.7} parent=11 // pred_fallthru
        _
      // Predicated region
      $region25: #{decoder_forward.7} parent=11 // pred_check
        %p329 = pneg %p193
      $region26: #{decoder_forward.7} parent=11 // pred_check_branch
        %331 = sbr.rel (%p329) target = $region28
      $region27: #{decoder_forward.7} parent=11 // pred_region
        _
      $region28: #{decoder_forward.7} parent=11 // pred_fallthru
        _
      // Predicated region
      $region29: #{decoder_forward.7} parent=11 // pred_check
        %p332 = pneg %p214
      $region30: #{decoder_forward.7} parent=11 // pred_check_branch
        %334 = sbr.rel (%p332) target = $region32
      $region31: #{decoder_forward.7} parent=11 // pred_region
        _
      $region32: #{decoder_forward.7} parent=11 // pred_fallthru
        _
      // Predicated region
      $region33: #{decoder_forward.7} parent=11 // pred_check
        %p335 = pneg %p235
      $region34: #{decoder_forward.7} parent=11 // pred_check_branch
        %337 = sbr.rel (%p335) target = $region36
      $region35: #{decoder_forward.7} parent=11 // pred_region
        _
      $region36: #{decoder_forward.7} parent=11 // pred_fallthru
        _
      // Predicated region
      $region37: #{decoder_forward.7} parent=11 // pred_check
        %p338 = pneg %p256
      $region38: #{decoder_forward.7} parent=11 // pred_check_branch
        %340 = sbr.rel (%p338) target = $region40
      $region39: #{decoder_forward.7} parent=11 // pred_region
        _
      $region40: #{decoder_forward.7} parent=11 // pred_fallthru
        _
      // Predicated region
      $region41: #{decoder_forward.7} parent=11 // pred_check
        %p341 = pneg %p277
      $region42: #{decoder_forward.7} parent=11 // pred_check_branch
        %343 = sbr.rel (%p341) target = $region44
      $region43: #{decoder_forward.7} parent=11 // pred_region
        _
      $region44: #{decoder_forward.7} parent=11 // pred_fallthru
        _
    $region12: #{decoder_forward.7} parent=5 // pred_fallthru
      _
    %p344 = scmp.lt.s32.totalorder %s17, 4
    // Predicated region
    $region45: #{decoder_forward.7} parent=5 // pred_check
      %p345 = pneg %p344
    $region46: #{decoder_forward.7} parent=5 // pred_check_branch
      %347 = sbr.rel (%p345) target = $region48
    $region47: #{decoder_forward.7} parent=5 // pred_region
      // Predicated region
      $region49: #{decoder_forward.7} parent=47 // pred_check
        %p348 = pneg %p49
      $region50: #{decoder_forward.7} parent=47 // pred_check_branch
        %350 = sbr.rel (%p348) target = $region52
      $region51: #{decoder_forward.7} parent=47 // pred_region
        %p351 = scmp.lt.s32.totalorder %s24, 1
        %s352 = scalar_select %p351, %s24, 1
        %s353 = scalar_lea.vmem %s0, %s352
      $region52: #{decoder_forward.7} parent=47 // pred_fallthru
        _
      // Predicated region
      $region53: #{decoder_forward.7} parent=47 // pred_check
        %p354 = pneg %p77
      $region54: #{decoder_forward.7} parent=47 // pred_check_branch
        %356 = sbr.rel (%p354) target = $region56
      $region55: #{decoder_forward.7} parent=47 // pred_region
        %p357 = scmp.lt.s32.totalorder %s24, 1
        %s358 = scalar_select %p357, %s24, 1
        %p359 = scmp.lt.s32.totalorder %s25, 1
        %s360 = scalar_select %p359, %s25, 1
        %s361 = smul.addr %s358, 2
        %s362 = sadd.s32 %s360, %s361
        %s363 = smul.addr %s362, 8
        %s364 = scalar_lea.vmem %s1, %s363
      $region56: #{decoder_forward.7} parent=47 // pred_fallthru
        _
      // Predicated region
      $region57: #{decoder_forward.7} parent=47 // pred_check
        %p365 = pneg %p103
      $region58: #{decoder_forward.7} parent=47 // pred_check_branch
        %367 = sbr.rel (%p365) target = $region60
      $region59: #{decoder_forward.7} parent=47 // pred_region
        %p368 = scmp.lt.s32.totalorder %s24, 1
        %s369 = scalar_select %p368, %s24, 1
        %s370 = smul.addr %s369, 2
        %s371 = smul.addr %s370, 8
        %s372 = scalar_lea.vmem %s2, %s371
      $region60: #{decoder_forward.7} parent=47 // pred_fallthru
        _
    $region48: #{decoder_forward.7} parent=5 // pred_fallthru
      _
    %p373 = scmp.le.s32.totalorder 1, %s17
    %p374 = scmp.lt.s32.totalorder %s17, 5
    %p375 = pnand %p373, %p374
    %p376 = pneg %p375
    // Predicated region
    $region61: #{decoder_forward.7} parent=5 // pred_check
      _
    $region62: #{decoder_forward.7} parent=5 // pred_check_branch
      %378 = sbr.rel (%p375) target = $region64
    $region63: #{decoder_forward.7} parent=5 // pred_region
      %s379 = ssub.s32 %s17, 1
      %p380 = scmp.lt.s32.totalorder %s26, 1
      %s381 = scalar_select %p380, %s26, 1
      %s382 = scalar_lea.vmem %s0, %s381
      %p383 = pneg %p55
      %p384 = pneg %p52
      %p385 = scmp.lt.s32.totalorder %s26, 1
      %s386 = scalar_select %p385, %s26, 1
      %p387 = scmp.lt.s32.totalorder %s27, 1
      %s388 = scalar_select %p387, %s27, 1
      %s389 = smul.addr %s386, 2
      %s390 = sadd.s32 %s388, %s389
      %s391 = smul.addr %s390, 8
      %s392 = scalar_lea.vmem %s1, %s391
      %p393 = pneg %p83
      %p394 = pneg %p80
      %p395 = scmp.lt.s32.totalorder %s26, 1
      %s396 = scalar_select %p395, %s26, 1
      %s397 = smul.addr %s396, 2
      %s398 = smul.addr %s397, 8
      %s399 = scalar_lea.vmem %s2, %s398
      %p400 = pneg %p109
      %p401 = pneg %p106
      %p402 = pneg %p130
      %p403 = pneg %p127
      %p404 = pneg %p151
      %p405 = pneg %p148
      %p406 = pneg %p172
      %p407 = pneg %p169
      %p408 = pneg %p193
      %p409 = pneg %p190
      %p410 = pneg %p214
      %p411 = pneg %p211
      %p412 = pneg %p235
      %p413 = pneg %p232
      %p414 = pneg %p256
      %p415 = pneg %p253
      %p416 = pneg %p277
      %p417 = pneg %p274
      %p418 = pneg %p305
      %p419 = pneg %p302
      %p420 = scmp.lt.s32.totalorder %s26, 1
      %s421 = scalar_select %p420, %s26, 1
      %p422 = scmp.lt.s32.totalorder %s27, 1
      %s423 = scalar_select %p422, %s27, 1
      %s424 = smul.addr %s421, 2
      %s425 = sadd.s32 %s423, %s424
      %s426 = smul.addr %s425, 8
      %s427 = scalar_lea.vmem %s11, %s426
      %p428 = scmp.lt.s32.totalorder %s26, 1
      %s429 = scalar_select %p428, %s26, 1
      %s430 = scalar_lea.vmem %s0, %s429
      %p431 = scmp.lt.s32.totalorder %s26, 1
      %s432 = scalar_select %p431, %s26, 1
      %p433 = scmp.lt.s32.totalorder %s27, 1
      %s434 = scalar_select %p433, %s27, 1
      %s435 = smul.addr %s432, 2
      %s436 = sadd.s32 %s434, %s435
      %s437 = smul.addr %s436, 8
      %s438 = scalar_lea.vmem %s1, %s437
      %p439 = scmp.lt.s32.totalorder %s26, 1
      %s440 = scalar_select %p439, %s26, 1
      %s441 = smul.addr %s440, 2
      %s442 = smul.addr %s441, 8
      %s443 = scalar_lea.vmem %s2, %s442
      %p444 = scmp.lt.s32.totalorder %s26, 1
      %s445 = scalar_select %p444, %s26, 1
      %p446 = scmp.lt.s32.totalorder %s27, 1
      %s447 = scalar_select %p446, %s27, 1
      %s448 = smul.addr %s445, 2
      %s449 = sadd.s32 %s447, %s448
      %s450 = smul.addr %s449, 8
      %s451 = scalar_lea.vmem %s11, %s450
      %p453 = scmp.eq.s32.totalorder %s27, 0
      // Predicated region
      $region65: #{decoder_forward.7} parent=63 // pred_check
        %p454 = pneg %p453
      $region66: #{decoder_forward.7} parent=63 // pred_check_branch
        %456 = sbr.rel (%p454) target = $region68
      $region67: #{decoder_forward.7} parent=63 // pred_region
        %v457 = vld [vmem:[%s443] sm:$0xff]
        %v458 = vld [vmem:[%s443 + $0x8] sm:$0xff]
        %v459 = vpack.c.bf16 %v458, %v457
        %v460 = vld [vmem:[%s7] sm:$0xff]
        %v461 = vld [vmem:[%s7 + $0x8] sm:$0xff]
        %v462 = vld [vmem:[%s7 + $0x10] sm:$0xff]
        %v463 = vld [vmem:[%s7 + $0x18] sm:$0xff]
        %v464 = vld [vmem:[%s7 + $0x20] sm:$0xff]
        %v465 = vld [vmem:[%s7 + $0x28] sm:$0xff]
        %v466 = vld [vmem:[%s7 + $0x30] sm:$0xff]
        %v467 = vld [vmem:[%s7 + $0x38] sm:$0xff]
        %v468 = vld [vmem:[%s7 + $0x40] sm:$0xff]
        %v469 = vld [vmem:[%s7 + $0x48] sm:$0xff]
        %v470 = vld [vmem:[%s7 + $0x50] sm:$0xff]
        %v471 = vld [vmem:[%s7 + $0x58] sm:$0xff]
        %v472 = vld [vmem:[%s7 + $0x60] sm:$0xff]
        %v473 = vld [vmem:[%s7 + $0x68] sm:$0xff]
        %v474 = vld [vmem:[%s7 + $0x70] sm:$0xff]
        %v475 = vld [vmem:[%s7 + $0x78] sm:$0xff]
        %v476 = vld [vmem:[%s8] sm:$0x3]
        %v478 = vlaneseq
        %v479 = vshrl.u32 %v478, 7
        %v480 = vsub.s32 0, %v479
        %v481 = vrot.slane %v476, %v480
        %v482 = vlaneseq
        %v483 = vshrl.u32 %v482, 7
        %v484 = vsub.s32 1, %v483
        %v485 = vrot.slane %v476, %v484
        %v504 = vunpack.c.l.b16 %v460
        %v505 = vunpack.c.h.b16 %v460
        %v506 = vunpack.c.l.b16 %v461
        %v507 = vunpack.c.h.b16 %v461
        %v508 = vunpack.c.l.b16 %v462
        %v509 = vunpack.c.h.b16 %v462
        %v510 = vunpack.c.l.b16 %v463
        %v511 = vunpack.c.h.b16 %v463
        %v512 = vunpack.c.l.b16 %v464
        %v513 = vunpack.c.h.b16 %v464
        %v514 = vunpack.c.l.b16 %v465
        %v515 = vunpack.c.h.b16 %v465
        %v516 = vunpack.c.l.b16 %v466
        %v517 = vunpack.c.h.b16 %v466
        %v518 = vunpack.c.l.b16 %v467
        %v519 = vunpack.c.h.b16 %v467
        %v520 = vunpack.c.l.b16 %v468
        %v521 = vunpack.c.h.b16 %v468
        %v522 = vunpack.c.l.b16 %v469
        %v523 = vunpack.c.h.b16 %v469
        %v524 = vunpack.c.l.b16 %v470
        %v525 = vunpack.c.h.b16 %v470
        %v526 = vunpack.c.l.b16 %v471
        %v527 = vunpack.c.h.b16 %v471
        %v528 = vunpack.c.l.b16 %v472
        %v529 = vunpack.c.h.b16 %v472
        %v530 = vunpack.c.l.b16 %v473
        %v531 = vunpack.c.h.b16 %v473
        %v532 = vunpack.c.l.b16 %v474
        %v533 = vunpack.c.h.b16 %v474
        %v534 = vunpack.c.l.b16 %v475
        %v535 = vunpack.c.h.b16 %v475
        %v536 = vpack.c.b16 %v506, %v504
        %v537 = vpack.c.b16 %v507, %v505
        %v538 = vpack.c.b16 %v510, %v508
        %v539 = vpack.c.b16 %v511, %v509
        %v540 = vpack.c.b16 %v514, %v512
        %v541 = vpack.c.b16 %v515, %v513
        %v542 = vpack.c.b16 %v518, %v516
        %v543 = vpack.c.b16 %v519, %v517
        %v544 = vpack.c.b16 %v522, %v520
        %v545 = vpack.c.b16 %v523, %v521
        %v546 = vpack.c.b16 %v526, %v524
        %v547 = vpack.c.b16 %v527, %v525
        %v548 = vpack.c.b16 %v530, %v528
        %v549 = vpack.c.b16 %v531, %v529
        %v550 = vpack.c.b16 %v534, %v532
        %v551 = vpack.c.b16 %v535, %v533
        %568 = vmatprep.subr.bf16.mxu0 %v537
        %569 = vmatpush1.bf16.msra.mxu0 %v536
        %570 = vmatprep.subr.bf16.mxu0 %v539
        %571 = vmatpush1.bf16.msra.mxu0 %v538
        %572 = vmatprep.subr.bf16.mxu0 %v541
        %573 = vmatpush1.bf16.msra.mxu0 %v540
        %574 = vmatprep.subr.bf16.mxu0 %v543
        %575 = vmatpush1.bf16.msra.mxu0 %v542
        %576 = vmatprep.subr.bf16.mxu0 %v545
        %577 = vmatpush1.bf16.msra.mxu0 %v544
        %578 = vmatprep.subr.bf16.mxu0 %v547
        %579 = vmatpush1.bf16.msra.mxu0 %v546
        %580 = vmatprep.subr.bf16.mxu0 %v549
        %581 = vmatpush1.bf16.msra.mxu0 %v548
        %582 = vmatprep.subr.bf16.mxu0 %v551
        %583 = vmatpush1.bf16.msra.mxu0 %v550
        %584 = vmatprep.subr.bf16.mxu0 0
        %585 = vmatpush1.bf16.msra.mxu0 0
        %586 = vmatprep.subr.bf16.mxu0 0
        %587 = vmatpush1.bf16.msra.mxu0 0
        %588 = vmatprep.subr.bf16.mxu0 0
        %589 = vmatpush1.bf16.msra.mxu0 0
        %590 = vmatprep.subr.bf16.mxu0 0
        %591 = vmatpush1.bf16.msra.mxu0 0
        %592 = vmatprep.subr.bf16.mxu0 0
        %593 = vmatpush1.bf16.msra.mxu0 0
        %594 = vmatprep.subr.bf16.mxu0 0
        %595 = vmatpush1.bf16.msra.mxu0 0
        %596 = vmatprep.subr.bf16.mxu0 0
        %597 = vmatpush1.bf16.msra.mxu0 0
        %598 = vmatprep.subr.bf16.mxu0 0
        %599 = vmatpush1.bf16.msra.mxu0 0
        %600 = vmatprep.mubr.bf16.mxu0 0
        %601 = vmatmul.mubr.bf16.gmra.mrb[0].mxu0 %v459
        %v602 = vpop.f32.mrb[0].mxu0
        %v603 = vadd.f32 %v481, %v602
        %v604 = vpop.f32.mrb[0].mxu0
        %v605 = vadd.f32 %v485, %v604
        %v606 = vpop.f32.mrb[0].mxu0
        %v607 = vadd.f32 %v481, %v606
        %v608 = vpop.f32.mrb[0].mxu0
        %v609 = vadd.f32 %v485, %v608
        %610 = vdwg.mxu0
        %611 = vst [vmem:[#allocation2] sm:$0xff] %v603
        %612 = vst [vmem:[#allocation2 + $0x8] sm:$0xff] %v605
        %613 = vst [vmem:[#allocation2 + $0x10] sm:$0xff] %v607
        %614 = vst [vmem:[#allocation2 + $0x18] sm:$0xff] %v609
      $region68: #{decoder_forward.7} parent=63 // pred_fallthru
        _
      %v615 = vld [vmem:[%s438] sm:$0xff]
      %v616 = vld [vmem:[%s3] sm:$0x1]
      %v617 = vld [vmem:[%s4] sm:$0x1]
      %618 = vadd.xlane.f32.xlu0 %v615
      %v619 = vpop.xlane.xlu0 %618
      %v620 = vrcp.pop 128.0
      %v621 = vmul.f32 %v619, %v620
      %v622 = vsub.f32 %v615, %v621
      %v623 = vmul.f32 %v622, %v622
      %624 = vadd.xlane.f32.xlu0 %v623
      %v625 = vpop.xlane.xlu0 %624
      %v626 = vmul.f32 %v625, 0.007874016
      %v627 = vrsqrt.pop %v626
      %v628 = vmul.f32 %v626, %v627
      %vm629 = vcmp.eq.f32.partialorder %v626, inf
      %v630 = vsel %vm629, %v626, %v628
      %vm631 = vcmp.eq.f32.partialorder %v626, 0.0
      %v632 = vand.u32 %v626, 2147483648
      %v633 = vsel %vm631, %v632, %v630
      %v635 = vlaneseq
      %v636 = vshrl.u32 %v635, 7
      %v637 = vsub.s32 0, %v636
      %v638 = vrot.slane %v616, %v637
      %v640 = vmul.f32 %v638, %v622
      %v641 = vadd.f32 %v633, 1e-06
      %v642 = vrcp.pop %v641
      %v643 = vmul.f32 %v640, %v642
      %v645 = vlaneseq
      %v646 = vshrl.u32 %v645, 7
      %v647 = vsub.s32 0, %v646
      %v648 = vrot.slane %v617, %v647
      %v650 = vadd.f32 %v643, %v648
      %v651 = vpack.c.bf16 %v650, %v650
      %v652 = vld [vmem:[%s5] sm:$0xf]
      %v653 = vld [vmem:[%s5 + $0x4] sm:$0xf]
      %v654 = vld [vmem:[%s5 + $0x8] sm:$0xf]
      %v655 = vld [vmem:[%s5 + $0xc] sm:$0xf]
      %v656 = vld [vmem:[%s5 + $0x10] sm:$0xf]
      %v657 = vld [vmem:[%s5 + $0x14] sm:$0xf]
      %v658 = vld [vmem:[%s5 + $0x18] sm:$0xf]
      %v659 = vld [vmem:[%s5 + $0x1c] sm:$0xf]
      %v660 = vld [vmem:[%s5 + $0x20] sm:$0xf]
      %v661 = vld [vmem:[%s5 + $0x24] sm:$0xf]
      %v662 = vld [vmem:[%s5 + $0x28] sm:$0xf]
      %v663 = vld [vmem:[%s5 + $0x2c] sm:$0xf]
      %v664 = vld [vmem:[%s5 + $0x30] sm:$0xf]
      %v665 = vld [vmem:[%s5 + $0x34] sm:$0xf]
      %v666 = vld [vmem:[%s5 + $0x38] sm:$0xf]
      %v667 = vld [vmem:[%s5 + $0x3c] sm:$0xf]
      %v668 = vld [vmem:[%s6] sm:$0x1]
      %v670 = vlaneseq
      %v671 = vshrl.u32 %v670, 7
      %v672 = vsub.s32 0, %v671
      %v673 = vrot.slane %v668, %v672
      %v691 = vunpack.c.l.b16 %v652
      %v692 = vunpack.c.l.b16 %v653
      %v693 = vunpack.c.l.b16 %v654
      %v694 = vunpack.c.l.b16 %v655
      %v695 = vunpack.c.l.b16 %v656
      %v696 = vunpack.c.l.b16 %v657
      %v697 = vunpack.c.l.b16 %v658
      %v698 = vunpack.c.l.b16 %v659
      %v699 = vunpack.c.l.b16 %v660
      %v700 = vunpack.c.l.b16 %v661
      %v701 = vunpack.c.l.b16 %v662
      %v702 = vunpack.c.l.b16 %v663
      %v703 = vunpack.c.l.b16 %v664
      %v704 = vunpack.c.l.b16 %v665
      %v705 = vunpack.c.l.b16 %v666
      %v706 = vunpack.c.l.b16 %v667
      %v707 = vpack.c.b16 %v692, %v691
      %v708 = vpack.c.b16 %v694, %v693
      %v709 = vpack.c.b16 %v696, %v695
      %v710 = vpack.c.b16 %v698, %v697
      %v711 = vpack.c.b16 %v700, %v699
      %v712 = vpack.c.b16 %v702, %v701
      %v713 = vpack.c.b16 %v704, %v703
      %v714 = vpack.c.b16 %v706, %v705
      %723 = vmatprep.subr.bf16.mxu0 0
      %724 = vmatpush1.bf16.msra.mxu0 %v707
      %725 = vmatprep.subr.bf16.mxu0 0
      %726 = vmatpush1.bf16.msra.mxu0 %v708
      %727 = vmatprep.subr.bf16.mxu0 0
      %728 = vmatpush1.bf16.msra.mxu0 %v709
      %729 = vmatprep.subr.bf16.mxu0 0
      %730 = vmatpush1.bf16.msra.mxu0 %v710
      %731 = vmatprep.subr.bf16.mxu0 0
      %732 = vmatpush1.bf16.msra.mxu0 %v711
      %733 = vmatprep.subr.bf16.mxu0 0
      %734 = vmatpush1.bf16.msra.mxu0 %v712
      %735 = vmatprep.subr.bf16.mxu0 0
      %736 = vmatpush1.bf16.msra.mxu0 %v713
      %737 = vmatprep.subr.bf16.mxu0 0
      %738 = vmatpush1.bf16.msra.mxu0 %v714
      %739 = vmatprep.subr.bf16.mxu0 0
      %740 = vmatpush1.bf16.msra.mxu0 0
      %741 = vmatprep.subr.bf16.mxu0 0
      %742 = vmatpush1.bf16.msra.mxu0 0
      %743 = vmatprep.subr.bf16.mxu0 0
      %744 = vmatpush1.bf16.msra.mxu0 0
      %745 = vmatprep.subr.bf16.mxu0 0
      %746 = vmatpush1.bf16.msra.mxu0 0
      %747 = vmatprep.subr.bf16.mxu0 0
      %748 = vmatpush1.bf16.msra.mxu0 0
      %749 = vmatprep.subr.bf16.mxu0 0
      %750 = vmatpush1.bf16.msra.mxu0 0
      %751 = vmatprep.subr.bf16.mxu0 0
      %752 = vmatpush1.bf16.msra.mxu0 0
      %753 = vmatprep.subr.bf16.mxu0 0
      %754 = vmatpush1.bf16.msra.mxu0 0
      %755 = vmatprep.mubr.bf16.mxu0 0
      %756 = vmatmul.mubr.bf16.gmra.mrb[0].mxu0 %v651
      %v757 = vpop.f32.mrb[0].mxu0
      %v758 = vadd.f32 %v673, %v757
      %v759 = vpop.f32.mrb[0].mxu0
      %v760 = vpop.f32.mrb[0].mxu0
      %v761 = vpop.f32.mrb[0].mxu0
      %762 = vdwg.mxu0
      %v763 = vld [vmem:[#allocation2] sm:$0xff]
      %v764 = vld [vmem:[#allocation2 + $0x10] sm:$0xff]
      %v765 = vld [vmem:[#allocation2 + $0x8] sm:$0xff]
      %v766 = vld [vmem:[#allocation2 + $0x18] sm:$0xff]
      %v767 = vld [vmem:[%s430] sm:$0x1]
      %v768 = vld [vmem:[%s9] sm:$0xf]
      %v769 = vld [vmem:[%s9 + $0x4] sm:$0xf]
      %v770 = vld [vmem:[%s9 + $0x8] sm:$0xf]
      %v771 = vld [vmem:[%s9 + $0xc] sm:$0xf]
      %v772 = vld [vmem:[%s9 + $0x10] sm:$0xf]
      %v773 = vld [vmem:[%s9 + $0x14] sm:$0xf]
      %v774 = vld [vmem:[%s9 + $0x18] sm:$0xf]
      %v775 = vld [vmem:[%s9 + $0x1c] sm:$0xf]
      %v776 = vld [vmem:[%s9 + $0x20] sm:$0xf]
      %v777 = vld [vmem:[%s9 + $0x24] sm:$0xf]
      %v778 = vld [vmem:[%s9 + $0x28] sm:$0xf]
      %v779 = vld [vmem:[%s9 + $0x2c] sm:$0xf]
      %v780 = vld [vmem:[%s9 + $0x30] sm:$0xf]
      %v781 = vld [vmem:[%s9 + $0x34] sm:$0xf]
      %v782 = vld [vmem:[%s9 + $0x38] sm:$0xf]
      %v783 = vld [vmem:[%s9 + $0x3c] sm:$0xf]
      %v784 = vld [vmem:[%s10] sm:$0x1]
      %v785 = vpack.c.bf16 %v758, %v758
      %787 = vrot.lane.b32.xlu0 %v785, 96
      %v788 = vpop.permute.xlu0 %787
      %789 = vrot.lane.b32.xlu0 %v785, 64
      %v790 = vpop.permute.xlu0 %789
      %791 = vrot.lane.b32.xlu0 %v785, 32
      %v792 = vpop.permute.xlu0 %791
      %v793 = vpack.c.bf16 %v764, %v763
      %795 = vrot.lane.b32.xlu0 %v793, 96
      %v796 = vpop.permute.xlu0 %795
      %797 = vrot.lane.b32.xlu0 %v793, 64
      %v798 = vpop.permute.xlu0 %797
      %799 = vrot.lane.b32.xlu0 %v793, 32
      %v800 = vpop.permute.xlu0 %799
      %v801 = vpack.c.bf16 %v766, %v765
      %803 = vrot.lane.b32.xlu0 %v801, 96
      %v804 = vpop.permute.xlu0 %803
      %806 = vrot.lane.b32.xlu0 %v801, 64
      %v807 = vpop.permute.xlu0 %806
      %809 = vrot.lane.b32.xlu0 %v801, 32
      %v810 = vpop.permute.xlu0 %809
      %vm812 = vcmask 261120
      %v814 = vsel %vm812, %v785, 0
      %v817 = vsel %vm812, %v793, 0
      %819 = vmatprep.subr.bf16.mxu0 0
      %820 = vmatpush1.bf16.xpose.msra.mxu0 %v817
      %821 = vmatprep.subr.bf16.mxu0 0
      %822 = vmatpush1.bf16.xpose.msra.mxu0 0
      %823 = vmatprep.subr.bf16.mxu0 0
      %824 = vmatpush1.bf16.xpose.msra.mxu0 0
      %825 = vmatprep.subr.bf16.mxu0 0
      %826 = vmatpush1.bf16.xpose.msra.mxu0 0
      %827 = vmatprep.subr.bf16.mxu0 0
      %828 = vmatpush1.bf16.xpose.msra.mxu0 0
      %829 = vmatprep.subr.bf16.mxu0 0
      %830 = vmatpush1.bf16.xpose.msra.mxu0 0
      %831 = vmatprep.subr.bf16.mxu0 0
      %832 = vmatpush1.bf16.xpose.msra.mxu0 0
      %833 = vmatprep.subr.bf16.mxu0 0
      %834 = vmatpush1.bf16.xpose.msra.mxu0 0
      %835 = vmatprep.subr.bf16.mxu0 0
      %836 = vmatpush1.bf16.xpose.msra.mxu0 0
      %837 = vmatprep.subr.bf16.mxu0 0
      %838 = vmatpush1.bf16.xpose.msra.mxu0 0
      %839 = vmatprep.subr.bf16.mxu0 0
      %840 = vmatpush1.bf16.xpose.msra.mxu0 0
      %841 = vmatprep.subr.bf16.mxu0 0
      %842 = vmatpush1.bf16.xpose.msra.mxu0 0
      %843 = vmatprep.subr.bf16.mxu0 0
      %844 = vmatpush1.bf16.xpose.msra.mxu0 0
      %845 = vmatprep.subr.bf16.mxu0 0
      %846 = vmatpush1.bf16.xpose.msra.mxu0 0
      %847 = vmatprep.subr.bf16.mxu0 0
      %848 = vmatpush1.bf16.xpose.msra.mxu0 0
      %849 = vmatprep.subr.bf16.mxu0 0
      %850 = vmatpush1.bf16.xpose.msra.mxu0 0
      %851 = vmatprep.mubr.bf16.mxu0 0
      %852 = vmatmul.mubr.bf16.gmra.mrb[0].mxu0 %v814
      %v853 = vpop.f32.mrb[0].mxu0
      %v854 = vadd.f32 0.0, %v853
      %v855 = vpop.f32.mrb[0].mxu0
      %v856 = vpop.f32.mrb[0].mxu0
      %v857 = vpop.f32.mrb[0].mxu0
      %858 = vdwg.mxu0
      %v860 = vsel %vm812, %v788, 0
      %v863 = vsel %vm812, %v796, 0
      %865 = vmatprep.subr.bf16.mxu0 0
      %866 = vmatpush1.bf16.xpose.msra.mxu0 %v863
      %867 = vmatprep.subr.bf16.mxu0 0
      %868 = vmatpush1.bf16.xpose.msra.mxu0 0
      %869 = vmatprep.subr.bf16.mxu0 0
      %870 = vmatpush1.bf16.xpose.msra.mxu0 0
      %871 = vmatprep.subr.bf16.mxu0 0
      %872 = vmatpush1.bf16.xpose.msra.mxu0 0
      %873 = vmatprep.subr.bf16.mxu0 0
      %874 = vmatpush1.bf16.xpose.msra.mxu0 0
      %875 = vmatprep.subr.bf16.mxu0 0
      %876 = vmatpush1.bf16.xpose.msra.mxu0 0
      %877 = vmatprep.subr.bf16.mxu0 0
      %878 = vmatpush1.bf16.xpose.msra.mxu0 0
      %879 = vmatprep.subr.bf16.mxu0 0
      %880 = vmatpush1.bf16.xpose.msra.mxu0 0
      %881 = vmatprep.subr.bf16.mxu0 0
      %882 = vmatpush1.bf16.xpose.msra.mxu0 0
      %883 = vmatprep.subr.bf16.mxu0 0
      %884 = vmatpush1.bf16.xpose.msra.mxu0 0
      %885 = vmatprep.subr.bf16.mxu0 0
      %886 = vmatpush1.bf16.xpose.msra.mxu0 0
      %887 = vmatprep.subr.bf16.mxu0 0
      %888 = vmatpush1.bf16.xpose.msra.mxu0 0
      %889 = vmatprep.subr.bf16.mxu0 0
      %890 = vmatpush1.bf16.xpose.msra.mxu0 0
      %891 = vmatprep.subr.bf16.mxu0 0
      %892 = vmatpush1.bf16.xpose.msra.mxu0 0
      %893 = vmatprep.subr.bf16.mxu0 0
      %894 = vmatpush1.bf16.xpose.msra.mxu0 0
      %895 = vmatprep.subr.bf16.mxu0 0
      %896 = vmatpush1.bf16.xpose.msra.mxu0 0
      %897 = vmatprep.mubr.bf16.mxu0 0
      %898 = vmatmul.mubr.bf16.gmra.mrb[0].mxu0 %v860
      %v899 = vpop.f32.mrb[0].mxu0
      %v900 = vadd.f32 0.0, %v899
      %v901 = vpop.f32.mrb[0].mxu0
      %v902 = vpop.f32.mrb[0].mxu0
      %v903 = vpop.f32.mrb[0].mxu0
      %904 = vdwg.mxu0
      %v906 = vsel %vm812, %v790, 0
      %v909 = vsel %vm812, %v798, 0
      %911 = vmatprep.subr.bf16.mxu0 0
      %912 = vmatpush1.bf16.xpose.msra.mxu0 %v909
      %913 = vmatprep.subr.bf16.mxu0 0
      %914 = vmatpush1.bf16.xpose.msra.mxu0 0
      %915 = vmatprep.subr.bf16.mxu0 0
      %916 = vmatpush1.bf16.xpose.msra.mxu0 0
      %917 = vmatprep.subr.bf16.mxu0 0
      %918 = vmatpush1.bf16.xpose.msra.mxu0 0
      %919 = vmatprep.subr.bf16.mxu0 0
      %920 = vmatpush1.bf16.xpose.msra.mxu0 0
      %921 = vmatprep.subr.bf16.mxu0 0
      %922 = vmatpush1.bf16.xpose.msra.mxu0 0
      %923 = vmatprep.subr.bf16.mxu0 0
      %924 = vmatpush1.bf16.xpose.msra.mxu0 0
      %925 = vmatprep.subr.bf16.mxu0 0
      %926 = vmatpush1.bf16.xpose.msra.mxu0 0
      %927 = vmatprep.subr.bf16.mxu0 0
      %928 = vmatpush1.bf16.xpose.msra.mxu0 0
      %929 = vmatprep.subr.bf16.mxu0 0
      %930 = vmatpush1.bf16.xpose.msra.mxu0 0
      %931 = vmatprep.subr.bf16.mxu0 0
      %932 = vmatpush1.bf16.xpose.msra.mxu0 0
      %933 = vmatprep.subr.bf16.mxu0 0
      %934 = vmatpush1.bf16.xpose.msra.mxu0 0
      %935 = vmatprep.subr.bf16.mxu0 0
      %936 = vmatpush1.bf16.xpose.msra.mxu0 0
      %937 = vmatprep.subr.bf16.mxu0 0
      %938 = vmatpush1.bf16.xpose.msra.mxu0 0
      %939 = vmatprep.subr.bf16.mxu0 0
      %940 = vmatpush1.bf16.xpose.msra.mxu0 0
      %941 = vmatprep.subr.bf16.mxu0 0
      %942 = vmatpush1.bf16.xpose.msra.mxu0 0
      %943 = vmatprep.mubr.bf16.mxu0 0
      %944 = vmatmul.mubr.bf16.gmra.mrb[0].mxu0 %v906
      %v945 = vpop.f32.mrb[0].mxu0
      %v946 = vadd.f32 0.0, %v945
      %v947 = vpop.f32.mrb[0].mxu0
      %v948 = vpop.f32.mrb[0].mxu0
      %v949 = vpop.f32.mrb[0].mxu0
      %950 = vdwg.mxu0
      %v952 = vsel %vm812, %v792, 0
      %v955 = vsel %vm812, %v800, 0
      %957 = vmatprep.subr.bf16.mxu0 0
      %958 = vmatpush1.bf16.xpose.msra.mxu0 %v955
      %959 = vmatprep.subr.bf16.mxu0 0
      %960 = vmatpush1.bf16.xpose.msra.mxu0 0
      %961 = vmatprep.subr.bf16.mxu0 0
      %962 = vmatpush1.bf16.xpose.msra.mxu0 0
      %963 = vmatprep.subr.bf16.mxu0 0
      %964 = vmatpush1.bf16.xpose.msra.mxu0 0
      %965 = vmatprep.subr.bf16.mxu0 0
      %966 = vmatpush1.bf16.xpose.msra.mxu0 0
      %967 = vmatprep.subr.bf16.mxu0 0
      %968 = vmatpush1.bf16.xpose.msra.mxu0 0
      %969 = vmatprep.subr.bf16.mxu0 0
      %970 = vmatpush1.bf16.xpose.msra.mxu0 0
      %971 = vmatprep.subr.bf16.mxu0 0
      %972 = vmatpush1.bf16.xpose.msra.mxu0 0
      %973 = vmatprep.subr.bf16.mxu0 0
      %974 = vmatpush1.bf16.xpose.msra.mxu0 0
      %975 = vmatprep.subr.bf16.mxu0 0
      %976 = vmatpush1.bf16.xpose.msra.mxu0 0
      %977 = vmatprep.subr.bf16.mxu0 0
      %978 = vmatpush1.bf16.xpose.msra.mxu0 0
      %979 = vmatprep.subr.bf16.mxu0 0
      %980 = vmatpush1.bf16.xpose.msra.mxu0 0
      %981 = vmatprep.subr.bf16.mxu0 0
      %982 = vmatpush1.bf16.xpose.msra.mxu0 0
      %983 = vmatprep.subr.bf16.mxu0 0
      %984 = vmatpush1.bf16.xpose.msra.mxu0 0
      %985 = vmatprep.subr.bf16.mxu0 0
      %986 = vmatpush1.bf16.xpose.msra.mxu0 0
      %987 = vmatprep.subr.bf16.mxu0 0
      %988 = vmatpush1.bf16.xpose.msra.mxu0 0
      %989 = vmatprep.mubr.bf16.mxu0 0
      %990 = vmatmul.mubr.bf16.gmra.mrb[0].mxu0 %v952
      %v991 = vpop.f32.mrb[0].mxu0
      %v992 = vadd.f32 0.0, %v991
      %v993 = vpop.f32.mrb[0].mxu0
      %v994 = vpop.f32.mrb[0].mxu0
      %v995 = vpop.f32.mrb[0].mxu0
      %996 = vdwg.mxu0
      %v997 = vmul.f32 %v854, 0.17677669
      %v998 = vmul.f32 %v900, 0.17677669
      %v999 = vmul.f32 %v946, 0.17677669
      %v1000 = vmul.f32 %v992, 0.17677669
      %v1002 = vlaneseq
      %v1003 = vshrl.u32 %v1002, 7
      %v1004 = vsub.s32 0, %v1003
      %v1005 = vrot.slane %v767, %v1004
      %v1007 = vadd.f32 %v997, %v1005
      %v1008 = vadd.f32 %v998, %v1005
      %v1009 = vadd.f32 %v999, %v1005
      %v1010 = vadd.f32 %v1000, %v1005
      %vm1011 = vcmask 130048
      %v1012 = vsel %vm1011, %v1007, -inf
      %1013 = vmax.xlane.f32.xlu0 %v1012
      %v1014 = vpop.xlane.xlu0 %1013
      %v1015 = vsel %vm1011, %v1008, -inf
      %1016 = vmax.xlane.f32.xlu0 %v1015
      %v1017 = vpop.xlane.xlu0 %1016
      %v1018 = vsel %vm1011, %v1009, -inf
      %1019 = vmax.xlane.f32.xlu0 %v1018
      %v1020 = vpop.xlane.xlu0 %1019
      %v1021 = vsel %vm1011, %v1010, -inf
      %1022 = vmax.xlane.f32.xlu0 %v1021
      %v1023 = vpop.xlane.xlu0 %1022
      %v1024 = vsub.f32 %v1007, %v1014
      %v1025 = vsub.f32 %v1008, %v1017
      %v1026 = vsub.f32 %v1009, %v1020
      %v1027 = vsub.f32 %v1010, %v1023
      %v1028 = vmul.f32 %v1024, 1.442695
      %v1029 = vpow.pop %v1028
      %v1030 = vmul.f32 %v1025, 1.442695
      %v1031 = vpow.pop %v1030
      %v1032 = vmul.f32 %v1026, 1.442695
      %v1033 = vpow.pop %v1032
      %v1034 = vmul.f32 %v1027, 1.442695
      %v1035 = vpow.pop %v1034
      %v1036 = vsel %vm1011, %v1029, 0.0
      %1037 = vadd.xlane.f32.xlu0 %v1036
      %v1038 = vpop.xlane.xlu0 %1037
      %v1039 = vsel %vm1011, %v1031, 0.0
      %1040 = vadd.xlane.f32.xlu0 %v1039
      %v1041 = vpop.xlane.xlu0 %1040
      %v1042 = vsel %vm1011, %v1033, 0.0
      %1043 = vadd.xlane.f32.xlu0 %v1042
      %v1044 = vpop.xlane.xlu0 %1043
      %v1045 = vsel %vm1011, %v1035, 0.0
      %1046 = vadd.xlane.f32.xlu0 %v1045
      %v1047 = vpop.xlane.xlu0 %1046
      %v1048 = vrcp.pop %v1038
      %v1049 = vrcp.pop %v1041
      %v1050 = vrcp.pop %v1044
      %v1051 = vrcp.pop %v1047
      %v1052 = vmul.f32 %v1029, %v1048
      %v1053 = vmul.f32 %v1031, %v1049
      %v1054 = vmul.f32 %v1033, %v1050
      %v1055 = vmul.f32 %v1035, %v1051
      %v1056 = vpack.c.bf16 %v1052, %v1052
      %v1057 = vpack.c.bf16 %v1053, %v1053
      %v1058 = vpack.c.bf16 %v1054, %v1054
      %v1059 = vpack.c.bf16 %v1055, %v1055
      %v1061 = vsel %vm1011, %v1056, 0
      %1063 = vmatprep.subr.bf16.mxu0 0
      %1064 = vmatpush1.bf16.msra.mxu0 %v801
      %1065 = vmatprep.subr.bf16.mxu0 0
      %1066 = vmatpush1.bf16.msra.mxu0 0
      %1067 = vmatprep.subr.bf16.mxu0 0
      %1068 = vmatpush1.bf16.msra.mxu0 0
      %1069 = vmatprep.subr.bf16.mxu0 0
      %1070 = vmatpush1.bf16.msra.mxu0 0
      %1071 = vmatprep.subr.bf16.mxu0 0
      %1072 = vmatpush1.bf16.msra.mxu0 0
      %1073 = vmatprep.subr.bf16.mxu0 0
      %1074 = vmatpush1.bf16.msra.mxu0 0
      %1075 = vmatprep.subr.bf16.mxu0 0
      %1076 = vmatpush1.bf16.msra.mxu0 0
      %1077 = vmatprep.subr.bf16.mxu0 0
      %1078 = vmatpush1.bf16.msra.mxu0 0
      %1079 = vmatprep.subr.bf16.mxu0 0
      %1080 = vmatpush1.bf16.msra.mxu0 0
      %1081 = vmatprep.subr.bf16.mxu0 0
      %1082 = vmatpush1.bf16.msra.mxu0 0
      %1083 = vmatprep.subr.bf16.mxu0 0
      %1084 = vmatpush1.bf16.msra.mxu0 0
      %1085 = vmatprep.subr.bf16.mxu0 0
      %1086 = vmatpush1.bf16.msra.mxu0 0
      %1087 = vmatprep.subr.bf16.mxu0 0
      %1088 = vmatpush1.bf16.msra.mxu0 0
      %1089 = vmatprep.subr.bf16.mxu0 0
      %1090 = vmatpush1.bf16.msra.mxu0 0
      %1091 = vmatprep.subr.bf16.mxu0 0
      %1092 = vmatpush1.bf16.msra.mxu0 0
      %1093 = vmatprep.subr.bf16.mxu0 0
      %1094 = vmatpush1.bf16.msra.mxu0 0
      %1095 = vmatprep.mubr.bf16.mxu0 0
      %1096 = vmatmul.mubr.bf16.gmra.mrb[0].mxu0 %v1061
      %v1097 = vpop.f32.mrb[0].mxu0
      %v1098 = vadd.f32 0.0, %v1097
      %v1099 = vpop.f32.mrb[0].mxu0
      %v1100 = vpop.f32.mrb[0].mxu0
      %v1101 = vpop.f32.mrb[0].mxu0
      %1102 = vdwg.mxu0
      %v1104 = vsel %vm1011, %v1057, 0
      %1106 = vmatprep.subr.bf16.mxu0 0
      %1107 = vmatpush1.bf16.msra.mxu0 %v804
      %1108 = vmatprep.subr.bf16.mxu0 0
      %1109 = vmatpush1.bf16.msra.mxu0 0
      %1110 = vmatprep.subr.bf16.mxu0 0
      %1111 = vmatpush1.bf16.msra.mxu0 0
      %1112 = vmatprep.subr.bf16.mxu0 0
      %1113 = vmatpush1.bf16.msra.mxu0 0
      %1114 = vmatprep.subr.bf16.mxu0 0
      %1115 = vmatpush1.bf16.msra.mxu0 0
      %1116 = vmatprep.subr.bf16.mxu0 0
      %1117 = vmatpush1.bf16.msra.mxu0 0
      %1118 = vmatprep.subr.bf16.mxu0 0
      %1119 = vmatpush1.bf16.msra.mxu0 0
      %1120 = vmatprep.subr.bf16.mxu0 0
      %1121 = vmatpush1.bf16.msra.mxu0 0
      %1122 = vmatprep.subr.bf16.mxu0 0
      %1123 = vmatpush1.bf16.msra.mxu0 0
      %1124 = vmatprep.subr.bf16.mxu0 0
      %1125 = vmatpush1.bf16.msra.mxu0 0
      %1126 = vmatprep.subr.bf16.mxu0 0
      %1127 = vmatpush1.bf16.msra.mxu0 0
      %1128 = vmatprep.subr.bf16.mxu0 0
      %1129 = vmatpush1.bf16.msra.mxu0 0
      %1130 = vmatprep.subr.bf16.mxu0 0
      %1131 = vmatpush1.bf16.msra.mxu0 0
      %1132 = vmatprep.subr.bf16.mxu0 0
      %1133 = vmatpush1.bf16.msra.mxu0 0
      %1134 = vmatprep.subr.bf16.mxu0 0
      %1135 = vmatpush1.bf16.msra.mxu0 0
      %1136 = vmatprep.subr.bf16.mxu0 0
      %1137 = vmatpush1.bf16.msra.mxu0 0
      %1138 = vmatprep.mubr.bf16.mxu0 0
      %1139 = vmatmul.mubr.bf16.gmra.mrb[0].mxu0 %v1104
      %v1140 = vpop.f32.mrb[0].mxu0
      %v1141 = vadd.f32 0.0, %v1140
      %v1142 = vpop.f32.mrb[0].mxu0
      %v1143 = vpop.f32.mrb[0].mxu0
      %v1144 = vpop.f32.mrb[0].mxu0
      %1145 = vdwg.mxu0
      %v1147 = vsel %vm1011, %v1058, 0
      %1149 = vmatprep.subr.bf16.mxu0 0
      %1150 = vmatpush1.bf16.msra.mxu0 %v807
      %1151 = vmatprep.subr.bf16.mxu0 0
      %1152 = vmatpush1.bf16.msra.mxu0 0
      %1153 = vmatprep.subr.bf16.mxu0 0
      %1154 = vmatpush1.bf16.msra.mxu0 0
      %1155 = vmatprep.subr.bf16.mxu0 0
      %1156 = vmatpush1.bf16.msra.mxu0 0
      %1157 = vmatprep.subr.bf16.mxu0 0
      %1158 = vmatpush1.bf16.msra.mxu0 0
      %1159 = vmatprep.subr.bf16.mxu0 0
      %1160 = vmatpush1.bf16.msra.mxu0 0
      %1161 = vmatprep.subr.bf16.mxu0 0
      %1162 = vmatpush1.bf16.msra.mxu0 0
      %1163 = vmatprep.subr.bf16.mxu0 0
      %1164 = vmatpush1.bf16.msra.mxu0 0
      %1165 = vmatprep.subr.bf16.mxu0 0
      %1166 = vmatpush1.bf16.msra.mxu0 0
      %1167 = vmatprep.subr.bf16.mxu0 0
      %1168 = vmatpush1.bf16.msra.mxu0 0
      %1169 = vmatprep.subr.bf16.mxu0 0
      %1170 = vmatpush1.bf16.msra.mxu0 0
      %1171 = vmatprep.subr.bf16.mxu0 0
      %1172 = vmatpush1.bf16.msra.mxu0 0
      %1173 = vmatprep.subr.bf16.mxu0 0
      %1174 = vmatpush1.bf16.msra.mxu0 0
      %1175 = vmatprep.subr.bf16.mxu0 0
      %1176 = vmatpush1.bf16.msra.mxu0 0
      %1177 = vmatprep.subr.bf16.mxu0 0
      %1178 = vmatpush1.bf16.msra.mxu0 0
      %1179 = vmatprep.subr.bf16.mxu0 0
      %1180 = vmatpush1.bf16.msra.mxu0 0
      %1181 = vmatprep.mubr.bf16.mxu0 0
      %1182 = vmatmul.mubr.bf16.gmra.mrb[0].mxu0 %v1147
      %v1183 = vpop.f32.mrb[0].mxu0
      %v1184 = vadd.f32 0.0, %v1183
      %v1185 = vpop.f32.mrb[0].mxu0
      %v1186 = vpop.f32.mrb[0].mxu0
      %v1187 = vpop.f32.mrb[0].mxu0
      %1188 = vdwg.mxu0
      %v1190 = vsel %vm1011, %v1059, 0
      %1192 = vmatprep.subr.bf16.mxu0 0
      %1193 = vmatpush1.bf16.msra.mxu0 %v810
      %1194 = vmatprep.subr.bf16.mxu0 0
      %1195 = vmatpush1.bf16.msra.mxu0 0
      %1196 = vmatprep.subr.bf16.mxu0 0
      %1197 = vmatpush1.bf16.msra.mxu0 0
      %1198 = vmatprep.subr.bf16.mxu0 0
      %1199 = vmatpush1.bf16.msra.mxu0 0
      %1200 = vmatprep.subr.bf16.mxu0 0
      %1201 = vmatpush1.bf16.msra.mxu0 0
      %1202 = vmatprep.subr.bf16.mxu0 0
      %1203 = vmatpush1.bf16.msra.mxu0 0
      %1204 = vmatprep.subr.bf16.mxu0 0
      %1205 = vmatpush1.bf16.msra.mxu0 0
      %1206 = vmatprep.subr.bf16.mxu0 0
      %1207 = vmatpush1.bf16.msra.mxu0 0
      %1208 = vmatprep.subr.bf16.mxu0 0
      %1209 = vmatpush1.bf16.msra.mxu0 0
      %1210 = vmatprep.subr.bf16.mxu0 0
      %1211 = vmatpush1.bf16.msra.mxu0 0
      %1212 = vmatprep.subr.bf16.mxu0 0
      %1213 = vmatpush1.bf16.msra.mxu0 0
      %1214 = vmatprep.subr.bf16.mxu0 0
      %1215 = vmatpush1.bf16.msra.mxu0 0
      %1216 = vmatprep.subr.bf16.mxu0 0
      %1217 = vmatpush1.bf16.msra.mxu0 0
      %1218 = vmatprep.subr.bf16.mxu0 0
      %1219 = vmatpush1.bf16.msra.mxu0 0
      %1220 = vmatprep.subr.bf16.mxu0 0
      %1221 = vmatpush1.bf16.msra.mxu0 0
      %1222 = vmatprep.subr.bf16.mxu0 0
      %1223 = vmatpush1.bf16.msra.mxu0 0
      %1224 = vmatprep.mubr.bf16.mxu0 0
      %1225 = vmatmul.mubr.bf16.gmra.mrb[0].mxu0 %v1190
      %v1226 = vpop.f32.mrb[0].mxu0
      %v1227 = vadd.f32 0.0, %v1226
      %v1228 = vpop.f32.mrb[0].mxu0
      %v1229 = vpop.f32.mrb[0].mxu0
      %v1230 = vpop.f32.mrb[0].mxu0
      %1231 = vdwg.mxu0
      %1233 = vrot.lane.b32.xlu0 %v1141, 32
      %v1234 = vpop.permute.xlu0 %1233
      %1237 = vrot.lane.b32.xlu0 %v1184, 64
      %v1238 = vpop.permute.xlu0 %1237
      %1241 = vrot.lane.b32.xlu0 %v1227, 96
      %v1242 = vpop.permute.xlu0 %1241
      %v1244 = vsel %vm812, %v1098, %v1234
      %vm1245 = vcmask 523264
      %v1246 = vsel %vm1245, %v1244, %v1238
      %vm1247 = vcmask 785408
      %v1248 = vsel %vm1247, %v1246, %v1242
      %v1249 = vpack.c.bf16 %v1248, %v1248
      %v1251 = vlaneseq
      %v1252 = vshrl.u32 %v1251, 7
      %v1253 = vsub.s32 0, %v1252
      %v1254 = vrot.slane %v784, %v1253
      %v1272 = vunpack.c.l.b16 %v768
      %v1273 = vunpack.c.l.b16 %v769
      %v1274 = vunpack.c.l.b16 %v770
      %v1275 = vunpack.c.l.b16 %v771
      %v1276 = vunpack.c.l.b16 %v772
      %v1277 = vunpack.c.l.b16 %v773
      %v1278 = vunpack.c.l.b16 %v774
      %v1279 = vunpack.c.l.b16 %v775
      %v1280 = vunpack.c.l.b16 %v776
      %v1281 = vunpack.c.l.b16 %v777
      %v1282 = vunpack.c.l.b16 %v778
      %v1283 = vunpack.c.l.b16 %v779
      %v1284 = vunpack.c.l.b16 %v780
      %v1285 = vunpack.c.l.b16 %v781
      %v1286 = vunpack.c.l.b16 %v782
      %v1287 = vunpack.c.l.b16 %v783
      %v1288 = vpack.c.b16 %v1273, %v1272
      %v1289 = vpack.c.b16 %v1275, %v1274
      %v1290 = vpack.c.b16 %v1277, %v1276
      %v1291 = vpack.c.b16 %v1279, %v1278
      %v1292 = vpack.c.b16 %v1281, %v1280
      %v1293 = vpack.c.b16 %v1283, %v1282
      %v1294 = vpack.c.b16 %v1285, %v1284
      %v1295 = vpack.c.b16 %v1287, %v1286
      %1304 = vmatprep.subr.bf16.mxu0 0
      %1305 = vmatpush1.bf16.msra.mxu0 %v1288
      %1306 = vmatprep.subr.bf16.mxu0 0
      %1307 = vmatpush1.bf16.msra.mxu0 %v1289
      %1308 = vmatprep.subr.bf16.mxu0 0
      %1309 = vmatpush1.bf16.msra.mxu0 %v1290
      %1310 = vmatprep.subr.bf16.mxu0 0
      %1311 = vmatpush1.bf16.msra.mxu0 %v1291
      %1312 = vmatprep.subr.bf16.mxu0 0
      %1313 = vmatpush1.bf16.msra.mxu0 %v1292
      %1314 = vmatprep.subr.bf16.mxu0 0
      %1315 = vmatpush1.bf16.msra.mxu0 %v1293
      %1316 = vmatprep.subr.bf16.mxu0 0
      %1317 = vmatpush1.bf16.msra.mxu0 %v1294
      %1318 = vmatprep.subr.bf16.mxu0 0
      %1319 = vmatpush1.bf16.msra.mxu0 %v1295
      %1320 = vmatprep.subr.bf16.mxu0 0
      %1321 = vmatpush1.bf16.msra.mxu0 0
      %1322 = vmatprep.subr.bf16.mxu0 0
      %1323 = vmatpush1.bf16.msra.mxu0 0
      %1324 = vmatprep.subr.bf16.mxu0 0
      %1325 = vmatpush1.bf16.msra.mxu0 0
      %1326 = vmatprep.subr.bf16.mxu0 0
      %1327 = vmatpush1.bf16.msra.mxu0 0
      %1328 = vmatprep.subr.bf16.mxu0 0
      %1329 = vmatpush1.bf16.msra.mxu0 0
      %1330 = vmatprep.subr.bf16.mxu0 0
      %1331 = vmatpush1.bf16.msra.mxu0 0
      %1332 = vmatprep.subr.bf16.mxu0 0
      %1333 = vmatpush1.bf16.msra.mxu0 0
      %1334 = vmatprep.subr.bf16.mxu0 0
      %1335 = vmatpush1.bf16.msra.mxu0 0
      %1336 = vmatprep.mubr.bf16.mxu0 0
      %1337 = vmatmul.mubr.bf16.gmra.mrb[0].mxu0 %v1249
      %v1338 = vpop.f32.mrb[0].mxu0
      %v1339 = vadd.f32 %v1254, %v1338
      %v1340 = vpop.f32.mrb[0].mxu0
      %v1341 = vpop.f32.mrb[0].mxu0
      %v1342 = vpop.f32.mrb[0].mxu0
      %1343 = vdwg.mxu0
      %v1344 = vadd.f32 %v615, %v1339
      %1345 = vst [vmem:[%s451] sm:$0xff] %v1344
      %p1346 = scmp.lt.s32.totalorder %s26, 1
      %s1347 = scalar_select %p1346, %s26, 1
      %p1348 = scmp.lt.s32.totalorder %s27, 1
      %s1349 = scalar_select %p1348, %s27, 1
      %s1350 = smul.addr %s1347, 2
      %s1351 = sadd.s32 %s1349, %s1350
      %s1352 = smul.addr %s1351, 8
      %s1353 = scalar_lea.vmem %s11, %s1352
      // Predicated region
      $region69: #{decoder_forward.7} parent=63 // pred_check
        %p1354 = pneg %p302
      $region70: #{decoder_forward.7} parent=63 // pred_check_branch
        %1356 = sbr.rel (%p1354) target = $region72
      $region71: #{decoder_forward.7} parent=63 // pred_region
        _
      $region72: #{decoder_forward.7} parent=63 // pred_fallthru
        _
    $region64: #{decoder_forward.7} parent=5 // pred_fallthru
      _
    %p1357 = scmp.le.s32.totalorder 2, %s17
    // Predicated region
    $region73: #{decoder_forward.7} parent=5 // pred_check
      %p1358 = pneg %p1357
    $region74: #{decoder_forward.7} parent=5 // pred_check_branch
      %1360 = sbr.rel (%p1358) target = $region76
    $region75: #{decoder_forward.7} parent=5 // pred_region
      %s1361 = ssub.s32 %s17, 2
      // Predicated region
      $region77: #{decoder_forward.7} parent=75 // pred_check
        %p1362 = pneg %p308
      $region78: #{decoder_forward.7} parent=75 // pred_check_branch
        %1364 = sbr.rel (%p1362) target = $region80
      $region79: #{decoder_forward.7} parent=75 // pred_region
        %p1365 = scmp.lt.s32.totalorder %s28, 1
        %s1366 = scalar_select %p1365, %s28, 1
        %p1367 = scmp.lt.s32.totalorder %s29, 1
        %s1368 = scalar_select %p1367, %s29, 1
        %s1369 = smul.addr %s1366, 2
        %s1370 = sadd.s32 %s1368, %s1369
        %s1371 = smul.addr %s1370, 8
        %s1372 = scalar_lea.vmem %s11, %s1371
      $region80: #{decoder_forward.7} parent=75 // pred_fallthru
        _
    $region76: #{decoder_forward.7} parent=5 // pred_fallthru
      _
  $region6: #{decoder_forward.7} parent=0 // loop_footer
    %s21 = sadd.s32 1, %s17
  $region7: #{decoder_forward.7} parent=0 // loop_footer_branch
    %16 = sbr.rel target = $region3
  $region8: #{decoder_forward.7} parent=0 // loop_exit
    _

// kernel: decoder_forward.9
$region0: #{decoder_forward.9}
  #allocation0 [shape = 'u32[]', space=smem, size = 0x4, offset = 0x4, fixed_abs, tag = 'smem constant byte address 0x4 - core index']
  #allocation1 [shape = 'u32[144,128]{1,0:T(1,128)}', space=vmem, size = 0x12000, scoped, tag = 'internal scratch']
  #allocation2 [shape = 'f32[16,384]{1,0:T(8,128)}', space=vmem, size = 0x6000, scoped, tag = 'scratch operand']
  %s0 = inlined_call_operand.vmem [shape: f32[2,16,128], index: 0, kind: input, shape index: {}]
  %s1 = inlined_call_operand.vmem [shape: f32[1,128], index: 1, kind: input, shape index: {}]
  %s2 = inlined_call_operand.vmem [shape: f32[1,128], index: 2, kind: input, shape index: {}]
  %s3 = inlined_call_operand.vmem [shape: bf16[128,384], index: 3, kind: input, shape index: {}]
  %s4 = inlined_call_operand.vmem [shape: f32[1,384], index: 4, kind: input, shape index: {}]
  %s5 = inlined_call_operand.vmem [shape: bf16[128,128], index: 5, kind: input, shape index: {}]
  %s6 = inlined_call_operand.vmem [shape: f32[1,128], index: 6, kind: input, shape index: {}]
  %s7 = inlined_call_operand.vmem [shape: f32[2,16,128], index: 7, kind: output, shape index: {}]
  %s8 = sld [smem:[#allocation0]]
  $region65: #{decoder_forward.9} parent=0
    _
  %s10 = ssub.s32 1, %s8
  %s11 = scalar_select 0, %s10, %s8
  loop: start=0, step=1, limit=6
  $region2: #{decoder_forward.9} parent=0 // loop_pre_header
    _
  $region3: #{decoder_forward.9} parent=0 // loop_header
    %s13 = sphi 0, %s17
    %p14 = scmp.ge.s32.totalorder %s13, 6
    %s20 = sphi 0, %s32
    %s21 = sphi 0, %s28
    %s22 = sphi 0, %s20
    %s23 = sphi 0, %s21
    %s24 = sphi 0, %s22
    %s25 = sphi 0, %s23
    %s35 = sphi 0, %s37
    %s38 = sphi 0, %s35
    %s39 = sphi 0, %s38
    %s55 = sphi 0, %s39
    %s59 = sphi 0, %s59
    %s61 = sphi 0, %s59
    %s62 = sphi 0, %s61
    %s76 = sphi 0, %s62
    %s80 = sphi 0, %s80
    %s82 = sphi 0, %s80
    %s83 = sphi 0, %s82
    %s97 = sphi 0, %s83
    %s101 = sphi 0, %s101
    %s103 = sphi 0, %s101
    %s104 = sphi 0, %s103
    %s118 = sphi 0, %s104
    %s122 = sphi 0, %s122
    %s124 = sphi 0, %s122
    %s125 = sphi 0, %s124
    %s139 = sphi 0, %s125
    %s143 = sphi 0, %s143
    %s145 = sphi 0, %s143
    %s146 = sphi 0, %s145
    %s160 = sphi 0, %s146
    %s164 = sphi 0, %s164
    %s166 = sphi 0, %s164
    %s167 = sphi 0, %s166
    %s181 = sphi 0, %s167
    %s189 = sphi 0, %s191
    %s192 = sphi 0, %s189
    %s193 = sphi 0, %s192
    %s209 = sphi 0, %s193
  $region4: #{decoder_forward.9} parent=0 // loop_header_branch
    %16 = sbr.rel (%p14) target = $region8
  $region5: #{decoder_forward.9} parent=0 // loop_body
    %s18 = ssub.s32 %s13, 1
    %s19 = ssub.s32 %s13, 2
    %s26 = sadd.s32 1, %s21
    %p27 = scmp.ge.s32.totalorder %s26, 2
    %s28 = scalar_select %p27, 0, %s26
    %s29 = sadd.s32 1, %s20
    %s30 = scalar_select %p27, %s29, %s20
    %p31 = scmp.ge.s32.totalorder %s30, 2
    %s32 = scalar_select %p31, 0, %s30
    %s33 = ssub.s32 %s20, %s32
    %p34 = scmp.eq.s32.totalorder %s33, 0
    %s36 = sadd.s32 %s35, 1
    %s37 = scalar_select %p34, %s35, %s36
    %p40 = pneg %p34
    %p41 = scmp.eq.s32.totalorder %s13, 3
    %p42 = por %p40, %p41
    %p43 = scmp.ne.s32.totalorder %s35, %s38
    %p44 = scmp.eq.s32.totalorder %s13, 0
    %p45 = por %p43, %p44
    %p46 = scmp.ne.s32.totalorder %s35, %s38
    %p47 = scmp.eq.s32.totalorder %s18, 3
    %p48 = por %p46, %p47
    %p49 = scmp.ne.s32.totalorder %s38, %s39
    %p50 = scmp.eq.s32.totalorder %s18, 0
    %p51 = por %p49, %p50
    %p52 = scmp.ne.s32.totalorder %s38, %s39
    %p53 = scmp.eq.s32.totalorder %s19, 3
    %p54 = por %p52, %p53
    %p56 = scmp.ne.s32.totalorder %s39, %s55
    %p57 = scmp.eq.s32.totalorder %s19, 0
    %p58 = por %p56, %p57
    %s60 = sadd.s32 %s59, 1
    %p63 = scmp.eq.s32.totalorder %s13, 3
    %p64 = scmp.ne.s32.totalorder %s59, %s61
    %p65 = scmp.eq.s32.totalorder %s13, 0
    %p66 = por %p64, %p65
    %p67 = scmp.ne.s32.totalorder %s59, %s61
    %p68 = scmp.eq.s32.totalorder %s18, 3
    %p69 = por %p67, %p68
    %p70 = scmp.ne.s32.totalorder %s61, %s62
    %p71 = scmp.eq.s32.totalorder %s18, 0
    %p72 = por %p70, %p71
    %p73 = scmp.ne.s32.totalorder %s61, %s62
    %p74 = scmp.eq.s32.totalorder %s19, 3
    %p75 = por %p73, %p74
    %p77 = scmp.ne.s32.totalorder %s62, %s76
    %p78 = scmp.eq.s32.totalorder %s19, 0
    %p79 = por %p77, %p78
    %s81 = sadd.s32 %s80, 1
    %p84 = scmp.eq.s32.totalorder %s13, 3
    %p85 = scmp.ne.s32.totalorder %s80, %s82
    %p86 = scmp.eq.s32.totalorder %s13, 0
    %p87 = por %p85, %p86
    %p88 = scmp.ne.s32.totalorder %s80, %s82
    %p89 = scmp.eq.s32.totalorder %s18, 3
    %p90 = por %p88, %p89
    %p91 = scmp.ne.s32.totalorder %s82, %s83
    %p92 = scmp.eq.s32.totalorder %s18, 0
    %p93 = por %p91, %p92
    %p94 = scmp.ne.s32.totalorder %s82, %s83
    %p95 = scmp.eq.s32.totalorder %s19, 3
    %p96 = por %p94, %p95
    %p98 = scmp.ne.s32.totalorder %s83, %s97
    %p99 = scmp.eq.s32.totalorder %s19, 0
    %p100 = por %p98, %p99
    %s102 = sadd.s32 %s101, 1
    %p105 = scmp.eq.s32.totalorder %s13, 3
    %p106 = scmp.ne.s32.totalorder %s101, %s103
    %p107 = scmp.eq.s32.totalorder %s13, 0
    %p108 = por %p106, %p107
    %p109 = scmp.ne.s32.totalorder %s101, %s103
    %p110 = scmp.eq.s32.totalorder %s18, 3
    %p111 = por %p109, %p110
    %p112 = scmp.ne.s32.totalorder %s103, %s104
    %p113 = scmp.eq.s32.totalorder %s18, 0
    %p114 = por %p112, %p113
    %p115 = scmp.ne.s32.totalorder %s103, %s104
    %p116 = scmp.eq.s32.totalorder %s19, 3
    %p117 = por %p115, %p116
    %p119 = scmp.ne.s32.totalorder %s104, %s118
    %p120 = scmp.eq.s32.totalorder %s19, 0
    %p121 = por %p119, %p120
    %s123 = sadd.s32 %s122, 1
    %p126 = scmp.eq.s32.totalorder %s13, 3
    %p127 = scmp.ne.s32.totalorder %s122, %s124
    %p128 = scmp.eq.s32.totalorder %s13, 0
    %p129 = por %p127, %p128
    %p130 = scmp.ne.s32.totalorder %s122, %s124
    %p131 = scmp.eq.s32.totalorder %s18, 3
    %p132 = por %p130, %p131
    %p133 = scmp.ne.s32.totalorder %s124, %s125
    %p134 = scmp.eq.s32.totalorder %s18, 0
    %p135 = por %p133, %p134
    %p136 = scmp.ne.s32.totalorder %s124, %s125
    %p137 = scmp.eq.s32.totalorder %s19, 3
    %p138 = por %p136, %p137
    %p140 = scmp.ne.s32.totalorder %s125, %s139
    %p141 = scmp.eq.s32.totalorder %s19, 0
    %p142 = por %p140, %p141
    %s144 = sadd.s32 %s143, 1
    %p147 = scmp.eq.s32.totalorder %s13, 3
    %p148 = scmp.ne.s32.totalorder %s143, %s145
    %p149 = scmp.eq.s32.totalorder %s13, 0
    %p150 = por %p148, %p149
    %p151 = scmp.ne.s32.totalorder %s143, %s145
    %p152 = scmp.eq.s32.totalorder %s18, 3
    %p153 = por %p151, %p152
    %p154 = scmp.ne.s32.totalorder %s145, %s146
    %p155 = scmp.eq.s32.totalorder %s18, 0
    %p156 = por %p154, %p155
    %p157 = scmp.ne.s32.totalorder %s145, %s146
    %p158 = scmp.eq.s32.totalorder %s19, 3
    %p159 = por %p157, %p158
    %p161 = scmp.ne.s32.totalorder %s146, %s160
    %p162 = scmp.eq.s32.totalorder %s19, 0
    %p163 = por %p161, %p162
    %s165 = sadd.s32 %s164, 1
    %p168 = scmp.eq.s32.totalorder %s13, 3
    %p169 = scmp.ne.s32.totalorder %s164, %s166
    %p170 = scmp.eq.s32.totalorder %s13, 0
    %p171 = por %p169, %p170
    %p172 = scmp.ne.s32.totalorder %s164, %s166
    %p173 = scmp.eq.s32.totalorder %s18, 3
    %p174 = por %p172, %p173
    %p175 = scmp.ne.s32.totalorder %s166, %s167
    %p176 = scmp.eq.s32.totalorder %s18, 0
    %p177 = por %p175, %p176
    %p178 = scmp.ne.s32.totalorder %s166, %s167
    %p179 = scmp.eq.s32.totalorder %s19, 3
    %p180 = por %p178, %p179
    %p182 = scmp.ne.s32.totalorder %s167, %s181
    %p183 = scmp.eq.s32.totalorder %s19, 0
    %p184 = por %p182, %p183
    %s185 = ssub.s32 %s20, %s32
    %s186 = ssub.s32 %s21, %s28
    %s187 = sor.u32 %s185, %s186
    %p188 = scmp.eq.s32.totalorder %s187, 0
    %s190 = sadd.s32 %s189, 1
    %s191 = scalar_select %p188, %s189, %s190
    %p194 = pneg %p188
    %p195 = scmp.eq.s32.totalorder %s13, 3
    %p196 = por %p194, %p195
    %p197 = scmp.ne.s32.totalorder %s189, %s192
    %p198 = scmp.eq.s32.totalorder %s13, 0
    %p199 = por %p197, %p198
    %p200 = scmp.ne.s32.totalorder %s189, %s192
    %p201 = scmp.eq.s32.totalorder %s18, 3
    %p202 = por %p200, %p201
    %p203 = scmp.ne.s32.totalorder %s192, %s193
    %p204 = scmp.eq.s32.totalorder %s18, 0
    %p205 = por %p203, %p204
    %p206 = scmp.ne.s32.totalorder %s192, %s193
    %p207 = scmp.eq.s32.totalorder %s19, 3
    %p208 = por %p206, %p207
    %p210 = scmp.ne.s32.totalorder %s193, %s209
    %p211 = scmp.eq.s32.totalorder %s19, 0
    %p212 = por %p210, %p211
    %p213 = scmp.le.s32.totalorder 1, %s13
    %p214 = scmp.lt.s32.totalorder %s13, 5
    %p215 = pnand %p213, %p214
    %p216 = pneg %p215
    // Predicated region
    $region9: #{decoder_forward.9} parent=5 // pred_check
      _
    $region10: #{decoder_forward.9} parent=5 // pred_check_branch
      %218 = sbr.rel (%p215) target = $region12
    $region11: #{decoder_forward.9} parent=5 // pred_region
      %s219 = ssub.s32 %s13, 1
      // Predicated region
      $region13: #{decoder_forward.9} parent=11 // pred_check
        %p220 = pneg %p72
      $region14: #{decoder_forward.9} parent=11 // pred_check_branch
        %222 = sbr.rel (%p220) target = $region16
      $region15: #{decoder_forward.9} parent=11 // pred_region
        _
      $region16: #{decoder_forward.9} parent=11 // pred_fallthru
        _
      // Predicated region
      $region17: #{decoder_forward.9} parent=11 // pred_check
        %p223 = pneg %p93
      $region18: #{decoder_forward.9} parent=11 // pred_check_branch
        %225 = sbr.rel (%p223) target = $region20
      $region19: #{decoder_forward.9} parent=11 // pred_region
        _
      $region20: #{decoder_forward.9} parent=11 // pred_fallthru
        _
      // Predicated region
      $region21: #{decoder_forward.9} parent=11 // pred_check
        %p226 = pneg %p114
      $region22: #{decoder_forward.9} parent=11 // pred_check_branch
        %228 = sbr.rel (%p226) target = $region24
      $region23: #{decoder_forward.9} parent=11 // pred_region
        _
      $region24: #{decoder_forward.9} parent=11 // pred_fallthru
        _
      // Predicated region
      $region25: #{decoder_forward.9} parent=11 // pred_check
        %p229 = pneg %p135
      $region26: #{decoder_forward.9} parent=11 // pred_check_branch
        %231 = sbr.rel (%p229) target = $region28
      $region27: #{decoder_forward.9} parent=11 // pred_region
        _
      $region28: #{decoder_forward.9} parent=11 // pred_fallthru
        _
      // Predicated region
      $region29: #{decoder_forward.9} parent=11 // pred_check
        %p232 = pneg %p156
      $region30: #{decoder_forward.9} parent=11 // pred_check_branch
        %234 = sbr.rel (%p232) target = $region32
      $region31: #{decoder_forward.9} parent=11 // pred_region
        _
      $region32: #{decoder_forward.9} parent=11 // pred_fallthru
        _
      // Predicated region
      $region33: #{decoder_forward.9} parent=11 // pred_check
        %p235 = pneg %p177
      $region34: #{decoder_forward.9} parent=11 // pred_check_branch
        %237 = sbr.rel (%p235) target = $region36
      $region35: #{decoder_forward.9} parent=11 // pred_region
        _
      $region36: #{decoder_forward.9} parent=11 // pred_fallthru
        _
    $region12: #{decoder_forward.9} parent=5 // pred_fallthru
      _
    %p238 = scmp.lt.s32.totalorder %s13, 4
    // Predicated region
    $region37: #{decoder_forward.9} parent=5 // pred_check
      %p239 = pneg %p238
    $region38: #{decoder_forward.9} parent=5 // pred_check_branch
      %241 = sbr.rel (%p239) target = $region40
    $region39: #{decoder_forward.9} parent=5 // pred_region
      // Predicated region
      $region41: #{decoder_forward.9} parent=39 // pred_check
        %p242 = pneg %p45
      $region42: #{decoder_forward.9} parent=39 // pred_check_branch
        %244 = sbr.rel (%p242) target = $region44
      $region43: #{decoder_forward.9} parent=39 // pred_region
        %p245 = scmp.lt.s32.totalorder %s20, 1
        %s246 = scalar_select %p245, %s20, 1
        %s247 = smul.addr %s246, 2
        %s248 = smul.addr %s247, 8
        %s249 = scalar_lea.vmem %s0, %s248
      $region44: #{decoder_forward.9} parent=39 // pred_fallthru
        _
    $region40: #{decoder_forward.9} parent=5 // pred_fallthru
      _
    %p250 = scmp.le.s32.totalorder 1, %s13
    %p251 = scmp.lt.s32.totalorder %s13, 5
    %p252 = pnand %p250, %p251
    %p253 = pneg %p252
    // Predicated region
    $region45: #{decoder_forward.9} parent=5 // pred_check
      _
    $region46: #{decoder_forward.9} parent=5 // pred_check_branch
      %255 = sbr.rel (%p252) target = $region48
    $region47: #{decoder_forward.9} parent=5 // pred_region
      %s256 = ssub.s32 %s13, 1
      %p257 = scmp.lt.s32.totalorder %s22, 1
      %s258 = scalar_select %p257, %s22, 1
      %s259 = smul.addr %s258, 2
      %s260 = smul.addr %s259, 8
      %s261 = scalar_lea.vmem %s0, %s260
      %p262 = pneg %p51
      %p263 = pneg %p48
      %p264 = pneg %p72
      %p265 = pneg %p69
      %p266 = pneg %p93
      %p267 = pneg %p90
      %p268 = pneg %p114
      %p269 = pneg %p111
      %p270 = pneg %p135
      %p271 = pneg %p132
      %p272 = pneg %p156
      %p273 = pneg %p153
      %p274 = pneg %p177
      %p275 = pneg %p174
      %p276 = pneg %p205
      %p277 = pneg %p202
      %p278 = scmp.lt.s32.totalorder %s22, 1
      %s279 = scalar_select %p278, %s22, 1
      %p280 = scmp.lt.s32.totalorder %s23, 1
      %s281 = scalar_select %p280, %s23, 1
      %s282 = smul.addr %s279, 2
      %s283 = sadd.s32 %s281, %s282
      %s284 = smul.addr %s283, 8
      %s285 = scalar_lea.vmem %s7, %s284
      %p286 = scmp.lt.s32.totalorder %s22, 1
      %s287 = scalar_select %p286, %s22, 1
      %s288 = smul.addr %s287, 2
      %s289 = smul.addr %s288, 8
      %s290 = scalar_lea.vmem %s0, %s289
      %p291 = scmp.lt.s32.totalorder %s22, 1
      %s292 = scalar_select %p291, %s22, 1
      %p293 = scmp.lt.s32.totalorder %s23, 1
      %s294 = scalar_select %p293, %s23, 1
      %s295 = smul.addr %s292, 2
      %s296 = sadd.s32 %s294, %s295
      %s297 = smul.addr %s296, 8
      %s298 = scalar_lea.vmem %s7, %s297
      %p300 = scmp.eq.s32.totalorder %s23, 0
      // Predicated region
      $region49: #{decoder_forward.9} parent=47 // pred_check
        %p301 = pneg %p300
      $region50: #{decoder_forward.9} parent=47 // pred_check_branch
        %303 = sbr.rel (%p301) target = $region52
      $region51: #{decoder_forward.9} parent=47 // pred_region
        %v304 = vld [vmem:[%s290] sm:$0xff]
        %v305 = vld [vmem:[%s290 + $0x8] sm:$0xff]
        %v306 = vld [vmem:[%s1] sm:$0x1]
        %v307 = vld [vmem:[%s2] sm:$0x1]
        %308 = vadd.xlane.f32.xlu0 %v304
        %v309 = vpop.xlane.xlu0 %308
        %310 = vadd.xlane.f32.xlu0 %v305
        %v311 = vpop.xlane.xlu0 %310
        %v312 = vrcp.pop 128.0
        %v313 = vmul.f32 %v309, %v312
        %v314 = vmul.f32 %v311, %v312
        %v315 = vsub.f32 %v304, %v313
        %v316 = vsub.f32 %v305, %v314
        %v317 = vmul.f32 %v315, %v315
        %v318 = vmul.f32 %v316, %v316
        %319 = vadd.xlane.f32.xlu0 %v317
        %v320 = vpop.xlane.xlu0 %319
        %321 = vadd.xlane.f32.xlu0 %v318
        %v322 = vpop.xlane.xlu0 %321
        %v323 = vmul.f32 %v320, 0.007874016
        %v324 = vmul.f32 %v322, 0.007874016
        %v325 = vrsqrt.pop %v323
        %v326 = vmul.f32 %v323, %v325
        %vm327 = vcmp.eq.f32.partialorder %v323, inf
        %v328 = vsel %vm327, %v323, %v326
        %vm329 = vcmp.eq.f32.partialorder %v323, 0.0
        %v330 = vand.u32 %v323, 2147483648
        %v331 = vsel %vm329, %v330, %v328
        %v332 = vrsqrt.pop %v324
        %v333 = vmul.f32 %v324, %v332
        %vm334 = vcmp.eq.f32.partialorder %v324, inf
        %v335 = vsel %vm334, %v324, %v333
        %vm336 = vcmp.eq.f32.partialorder %v324, 0.0
        %v337 = vand.u32 %v324, 2147483648
        %v338 = vsel %vm336, %v337, %v335
        %v340 = vlaneseq
        %v341 = vshrl.u32 %v340, 7
        %v342 = vsub.s32 0, %v341
        %v343 = vrot.slane %v306, %v342
        %v345 = vmul.f32 %v343, %v315
        %v346 = vmul.f32 %v343, %v316
        %v347 = vadd.f32 %v331, 1e-06
        %v348 = vadd.f32 %v338, 1e-06
        %v349 = vrcp.pop %v347
        %v350 = vrcp.pop %v348
        %v351 = vmul.f32 %v345, %v349
        %v352 = vmul.f32 %v346, %v350
        %v354 = vlaneseq
        %v355 = vshrl.u32 %v354, 7
        %v356 = vsub.s32 0, %v355
        %v357 = vrot.slane %v307, %v356
        %v359 = vadd.f32 %v351, %v357
        %v360 = vadd.f32 %v352, %v357
        %v361 = vpack.c.bf16 %v360, %v359
        %v362 = vld [vmem:[%s3] sm:$0xff]
        %v363 = vld [vmem:[%s3 + $0x8] sm:$0xf]
        %v364 = vld [vmem:[%s3 + $0xc] sm:$0xff]
        %v365 = vld [vmem:[%s3 + $0x14] sm:$0xf]
        %v366 = vld [vmem:[%s3 + $0x18] sm:$0xff]
        %v367 = vld [vmem:[%s3 + $0x20] sm:$0xf]
        %v368 = vld [vmem:[%s3 + $0x24] sm:$0xff]
        %v369 = vld [vmem:[%s3 + $0x2c] sm:$0xf]
        %v370 = vld [vmem:[%s3 + $0x30] sm:$0xff]
        %v371 = vld [vmem:[%s3 + $0x38] sm:$0xf]
        %v372 = vld [vmem:[%s3 + $0x3c] sm:$0xff]
        %v373 = vld [vmem:[%s3 + $0x44] sm:$0xf]
        %v374 = vld [vmem:[%s3 + $0x48] sm:$0xff]
        %v375 = vld [vmem:[%s3 + $0x50] sm:$0xf]
        %v376 = vld [vmem:[%s3 + $0x54] sm:$0xff]
        %v377 = vld [vmem:[%s3 + $0x5c] sm:$0xf]
        %v378 = vld [vmem:[%s3 + $0x60] sm:$0xff]
        %v379 = vld [vmem:[%s3 + $0x68] sm:$0xf]
        %v380 = vld [vmem:[%s3 + $0x6c] sm:$0xff]
        %v381 = vld [vmem:[%s3 + $0x74] sm:$0xf]
        %v382 = vld [vmem:[%s3 + $0x78] sm:$0xff]
        %v383 = vld [vmem:[%s3 + $0x80] sm:$0xf]
        %v384 = vld [vmem:[%s3 + $0x84] sm:$0xff]
        %v385 = vld [vmem:[%s3 + $0x8c] sm:$0xf]
        %v386 = vld [vmem:[%s3 + $0x90] sm:$0xff]
        %v387 = vld [vmem:[%s3 + $0x98] sm:$0xf]
        %v388 = vld [vmem:[%s3 + $0x9c] sm:$0xff]
        %v389 = vld [vmem:[%s3 + $0xa4] sm:$0xf]
        %v390 = vld [vmem:[%s3 + $0xa8] sm:$0xff]
        %v391 = vld [vmem:[%s3 + $0xb0] sm:$0xf]
        %v392 = vld [vmem:[%s3 + $0xb4] sm:$0xff]
        %v393 = vld [vmem:[%s3 + $0xbc] sm:$0xf]
        %v394 = vld [vmem:[%s4] sm:$0x7]
        %v396 = vlaneseq
        %v397 = vshrl.u32 %v396, 7
        %v398 = vsub.s32 0, %v397
        %v399 = vrot.slane %v394, %v398
        %v400 = vlaneseq
        %v401 = vshrl.u32 %v400, 7
        %v402 = vsub.s32 1, %v401
        %v403 = vrot.slane %v394, %v402
        %v404 = vlaneseq
        %v405 = vshrl.u32 %v404, 7
        %v406 = vsub.s32 2, %v405
        %v407 = vrot.slane %v394, %v406
        %v443 = vunpack.c.l.b16 %v362
        %v444 = vunpack.c.h.b16 %v362
        %v445 = vunpack.c.l.b16 %v363
        %v446 = vunpack.c.l.b16 %v364
        %v447 = vunpack.c.h.b16 %v364
        %v448 = vunpack.c.l.b16 %v365
        %v449 = vunpack.c.l.b16 %v366
        %v450 = vunpack.c.h.b16 %v366
        %v451 = vunpack.c.l.b16 %v367
        %v452 = vunpack.c.l.b16 %v368
        %v453 = vunpack.c.h.b16 %v368
        %v454 = vunpack.c.l.b16 %v369
        %v455 = vunpack.c.l.b16 %v370
        %v456 = vunpack.c.h.b16 %v370
        %v457 = vunpack.c.l.b16 %v371
        %v458 = vunpack.c.l.b16 %v372
        %v459 = vunpack.c.h.b16 %v372
        %v460 = vunpack.c.l.b16 %v373
        %v461 = vunpack.c.l.b16 %v374
        %v462 = vunpack.c.h.b16 %v374
        %v463 = vunpack.c.l.b16 %v375
        %v464 = vunpack.c.l.b16 %v376
        %v465 = vunpack.c.h.b16 %v376
        %v466 = vunpack.c.l.b16 %v377
        %v467 = vunpack.c.l.b16 %v378
        %v468 = vunpack.c.h.b16 %v378
        %v469 = vunpack.c.l.b16 %v379
        %v470 = vunpack.c.l.b16 %v380
        %v471 = vunpack.c.h.b16 %v380
        %v472 = vunpack.c.l.b16 %v381
        %v473 = vunpack.c.l.b16 %v382
        %v474 = vunpack.c.h.b16 %v382
        %v475 = vunpack.c.l.b16 %v383
        %v476 = vunpack.c.l.b16 %v384
        %v477 = vunpack.c.h.b16 %v384
        %v478 = vunpack.c.l.b16 %v385
        %v479 = vunpack.c.l.b16 %v386
        %v480 = vunpack.c.h.b16 %v386
        %v481 = vunpack.c.l.b16 %v387
        %v482 = vunpack.c.l.b16 %v388
        %v483 = vunpack.c.h.b16 %v388
        %v484 = vunpack.c.l.b16 %v389
        %v485 = vunpack.c.l.b16 %v390
        %v486 = vunpack.c.h.b16 %v390
        %v487 = vunpack.c.l.b16 %v391
        %v488 = vunpack.c.l.b16 %v392
        %v489 = vunpack.c.h.b16 %v392
        %v490 = vunpack.c.l.b16 %v393
        %v491 = vpack.c.b16 %v446, %v443
        %v492 = vpack.c.b16 %v447, %v444
        %v493 = vpack.c.b16 %v448, %v445
        %v494 = vpack.c.b16 %v452, %v449
        %v495 = vpack.c.b16 %v453, %v450
        %v496 = vpack.c.b16 %v454, %v451
        %v497 = vpack.c.b16 %v458, %v455
        %v498 = vpack.c.b16 %v459, %v456
        %v499 = vpack.c.b16 %v460, %v457
        %v500 = vpack.c.b16 %v464, %v461
        %v501 = vpack.c.b16 %v465, %v462
        %v502 = vpack.c.b16 %v466, %v463
        %v503 = vpack.c.b16 %v470, %v467
        %v504 = vpack.c.b16 %v471, %v468
        %v505 = vpack.c.b16 %v472, %v469
        %v506 = vpack.c.b16 %v476, %v473
        %v507 = vpack.c.b16 %v477, %v474
        %v508 = vpack.c.b16 %v478, %v475
        %v509 = vpack.c.b16 %v482, %v479
        %v510 = vpack.c.b16 %v483, %v480
        %v511 = vpack.c.b16 %v484, %v481
        %v512 = vpack.c.b16 %v488, %v485
        %v513 = vpack.c.b16 %v489, %v486
        %v514 = vpack.c.b16 %v490, %v487
        %539 = vmatprep.subr.bf16.mxu0 %v492
        %540 = vmatpush1.bf16.msra.mxu0 %v491
        %541 = vmatprep.subr.bf16.mxu0 %v495
        %542 = vmatpush1.bf16.msra.mxu0 %v494
        %543 = vmatprep.subr.bf16.mxu0 %v498
        %544 = vmatpush1.bf16.msra.mxu0 %v497
        %545 = vmatprep.subr.bf16.mxu0 %v501
        %546 = vmatpush1.bf16.msra.mxu0 %v500
        %547 = vmatprep.subr.bf16.mxu0 %v504
        %548 = vmatpush1.bf16.msra.mxu0 %v503
        %549 = vmatprep.subr.bf16.mxu0 %v507
        %550 = vmatpush1.bf16.msra.mxu0 %v506
        %551 = vmatprep.subr.bf16.mxu0 %v510
        %552 = vmatpush1.bf16.msra.mxu0 %v509
        %553 = vmatprep.subr.bf16.mxu0 %v513
        %554 = vmatpush1.bf16.msra.mxu0 %v512
        %555 = vmatprep.subr.bf16.mxu0 0
        %556 = vmatpush1.bf16.msra.mxu0 0
        %557 = vmatprep.subr.bf16.mxu0 0
        %558 = vmatpush1.bf16.msra.mxu0 0
        %559 = vmatprep.subr.bf16.mxu0 0
        %560 = vmatpush1.bf16.msra.mxu0 0
        %561 = vmatprep.subr.bf16.mxu0 0
        %562 = vmatpush1.bf16.msra.mxu0 0
        %563 = vmatprep.subr.bf16.mxu0 0
        %564 = vmatpush1.bf16.msra.mxu0 0
        %565 = vmatprep.subr.bf16.mxu0 0
        %566 = vmatpush1.bf16.msra.mxu0 0
        %567 = vmatprep.subr.bf16.mxu0 0
        %568 = vmatpush1.bf16.msra.mxu0 0
        %569 = vmatprep.subr.bf16.mxu0 0
        %570 = vmatpush1.bf16.msra.mxu0 0
        %571 = vmatprep.mubr.bf16.mxu0 0
        %572 = vmatmul.mubr.bf16.gmra.mrb[0].mxu0 %v361
        %v573 = vpop.f32.mrb[0].mxu0
        %v574 = vadd.f32 %v399, %v573
        %v575 = vpop.f32.mrb[0].mxu0
        %v576 = vadd.f32 %v403, %v575
        %v577 = vpop.f32.mrb[0].mxu0
        %v578 = vadd.f32 %v399, %v577
        %v579 = vpop.f32.mrb[0].mxu0
        %v580 = vadd.f32 %v403, %v579
        %581 = vdwg.mxu0
        %582 = vmatprep.subr.bf16.mxu0 0
        %583 = vmatpush1.bf16.msra.mxu0 %v493
        %584 = vmatprep.subr.bf16.mxu0 0
        %585 = vmatpush1.bf16.msra.mxu0 %v496
        %586 = vmatprep.subr.bf16.mxu0 0
        %587 = vmatpush1.bf16.msra.mxu0 %v499
        %588 = vmatprep.subr.bf16.mxu0 0
        %589 = vmatpush1.bf16.msra.mxu0 %v502
        %590 = vmatprep.subr.bf16.mxu0 0
        %591 = vmatpush1.bf16.msra.mxu0 %v505
        %592 = vmatprep.subr.bf16.mxu0 0
        %593 = vmatpush1.bf16.msra.mxu0 %v508
        %594 = vmatprep.subr.bf16.mxu0 0
        %595 = vmatpush1.bf16.msra.mxu0 %v511
        %596 = vmatprep.subr.bf16.mxu0 0
        %597 = vmatpush1.bf16.msra.mxu0 %v514
        %598 = vmatprep.subr.bf16.mxu0 0
        %599 = vmatpush1.bf16.msra.mxu0 0
        %600 = vmatprep.subr.bf16.mxu0 0
        %601 = vmatpush1.bf16.msra.mxu0 0
        %602 = vmatprep.subr.bf16.mxu0 0
        %603 = vmatpush1.bf16.msra.mxu0 0
        %604 = vmatprep.subr.bf16.mxu0 0
        %605 = vmatpush1.bf16.msra.mxu0 0
        %606 = vmatprep.subr.bf16.mxu0 0
        %607 = vmatpush1.bf16.msra.mxu0 0
        %608 = vmatprep.subr.bf16.mxu0 0
        %609 = vmatpush1.bf16.msra.mxu0 0
        %610 = vmatprep.subr.bf16.mxu0 0
        %611 = vmatpush1.bf16.msra.mxu0 0
        %612 = vmatprep.subr.bf16.mxu0 0
        %613 = vmatpush1.bf16.msra.mxu0 0
        %614 = vmatprep.mubr.bf16.mxu0 0
        %615 = vmatmul.mubr.bf16.gmra.mrb[0].mxu0 %v361
        %v616 = vpop.f32.mrb[0].mxu0
        %v617 = vadd.f32 %v407, %v616
        %v618 = vpop.f32.mrb[0].mxu0
        %v619 = vpop.f32.mrb[0].mxu0
        %v620 = vadd.f32 %v407, %v619
        %v621 = vpop.f32.mrb[0].mxu0
        %622 = vdwg.mxu0
        %623 = vst [vmem:[#allocation2] sm:$0xff] %v574
        %624 = vst [vmem:[#allocation2 + $0x8] sm:$0xff] %v576
        %625 = vst [vmem:[#allocation2 + $0x10] sm:$0xff] %v617
        %626 = vst [vmem:[#allocation2 + $0x18] sm:$0xff] %v578
        %627 = vst [vmem:[#allocation2 + $0x20] sm:$0xff] %v580
        %628 = vst [vmem:[#allocation2 + $0x28] sm:$0xff] %v620
      $region52: #{decoder_forward.9} parent=47 // pred_fallthru
        _
      %s629 = smul.u32 %s23, 8
      %s630 = sshra.s32 %s629, 3
      %s631 = sand.u32 %s629, 7
      %s632 = smul.u32 %s630, 3
      %s633 = smul.addr %s632, 8
      %s634 = scalar_lea.vmem [#allocation2], %s633
      %v635 = vld [vmem:[%s634] sm:$0xff]
      %v636 = vld [vmem:[#allocation2 + $0x8] sm:$0xff]
      %v637 = vld [vmem:[#allocation2 + $0x20] sm:$0xff]
      %v638 = vld [vmem:[#allocation2 + $0x10] sm:$0xff]
      %v639 = vld [vmem:[#allocation2 + $0x28] sm:$0xff]
      %v640 = vlaneseq
      %v641 = vshrl.u32 %v640, 7
      %v642 = vstv %s629
      %v643 = vadd.s32 %v642, %v641
      %v644 = vlaneseq
      %v645 = vand.u32 %v644, 127
      %vm646 = vcmp.le.s32.totalorder %v645, %v643
      %v647 = vsel %vm646, 0.0, -1e+09
      %v648 = vld [vmem:[%s5] sm:$0xf]
      %v649 = vld [vmem:[%s5 + $0x4] sm:$0xf]
      %v650 = vld [vmem:[%s5 + $0x8] sm:$0xf]
      %v651 = vld [vmem:[%s5 + $0xc] sm:$0xf]
      %v652 = vld [vmem:[%s5 + $0x10] sm:$0xf]
      %v653 = vld [vmem:[%s5 + $0x14] sm:$0xf]
      %v654 = vld [vmem:[%s5 + $0x18] sm:$0xf]
      %v655 = vld [vmem:[%s5 + $0x1c] sm:$0xf]
      %v656 = vld [vmem:[%s5 + $0x20] sm:$0xf]
      %v657 = vld [vmem:[%s5 + $0x24] sm:$0xf]
      %v658 = vld [vmem:[%s5 + $0x28] sm:$0xf]
      %v659 = vld [vmem:[%s5 + $0x2c] sm:$0xf]
      %v660 = vld [vmem:[%s5 + $0x30] sm:$0xf]
      %v661 = vld [vmem:[%s5 + $0x34] sm:$0xf]
      %v662 = vld [vmem:[%s5 + $0x38] sm:$0xf]
      %v663 = vld [vmem:[%s5 + $0x3c] sm:$0xf]
      %v664 = vld [vmem:[%s6] sm:$0x1]
      %v665 = vpack.c.bf16 %v635, %v635
      %667 = vrot.lane.b32.xlu0 %v665, 96
      %v668 = vpop.permute.xlu0 %667
      %669 = vrot.lane.b32.xlu0 %v665, 64
      %v670 = vpop.permute.xlu0 %669
      %671 = vrot.lane.b32.xlu0 %v665, 32
      %v672 = vpop.permute.xlu0 %671
      %v673 = vpack.c.bf16 %v637, %v636
      %675 = vrot.lane.b32.xlu0 %v673, 96
      %v676 = vpop.permute.xlu0 %675
      %677 = vrot.lane.b32.xlu0 %v673, 64
      %v678 = vpop.permute.xlu0 %677
      %679 = vrot.lane.b32.xlu0 %v673, 32
      %v680 = vpop.permute.xlu0 %679
      %v681 = vpack.c.bf16 %v639, %v638
      %683 = vrot.lane.b32.xlu0 %v681, 96
      %v684 = vpop.permute.xlu0 %683
      %686 = vrot.lane.b32.xlu0 %v681, 64
      %v687 = vpop.permute.xlu0 %686
      %689 = vrot.lane.b32.xlu0 %v681, 32
      %v690 = vpop.permute.xlu0 %689
      %vm692 = vcmask 261120
      %v694 = vsel %vm692, %v665, 0
      %v697 = vsel %vm692, %v673, 0
      %699 = vmatprep.subr.bf16.mxu0 0
      %700 = vmatpush1.bf16.xpose.msra.mxu0 %v697
      %701 = vmatprep.subr.bf16.mxu0 0
      %702 = vmatpush1.bf16.xpose.msra.mxu0 0
      %703 = vmatprep.subr.bf16.mxu0 0
      %704 = vmatpush1.bf16.xpose.msra.mxu0 0
      %705 = vmatprep.subr.bf16.mxu0 0
      %706 = vmatpush1.bf16.xpose.msra.mxu0 0
      %707 = vmatprep.subr.bf16.mxu0 0
      %708 = vmatpush1.bf16.xpose.msra.mxu0 0
      %709 = vmatprep.subr.bf16.mxu0 0
      %710 = vmatpush1.bf16.xpose.msra.mxu0 0
      %711 = vmatprep.subr.bf16.mxu0 0
      %712 = vmatpush1.bf16.xpose.msra.mxu0 0
      %713 = vmatprep.subr.bf16.mxu0 0
      %714 = vmatpush1.bf16.xpose.msra.mxu0 0
      %715 = vmatprep.subr.bf16.mxu0 0
      %716 = vmatpush1.bf16.xpose.msra.mxu0 0
      %717 = vmatprep.subr.bf16.mxu0 0
      %718 = vmatpush1.bf16.xpose.msra.mxu0 0
      %719 = vmatprep.subr.bf16.mxu0 0
      %720 = vmatpush1.bf16.xpose.msra.mxu0 0
      %721 = vmatprep.subr.bf16.mxu0 0
      %722 = vmatpush1.bf16.xpose.msra.mxu0 0
      %723 = vmatprep.subr.bf16.mxu0 0
      %724 = vmatpush1.bf16.xpose.msra.mxu0 0
      %725 = vmatprep.subr.bf16.mxu0 0
      %726 = vmatpush1.bf16.xpose.msra.mxu0 0
      %727 = vmatprep.subr.bf16.mxu0 0
      %728 = vmatpush1.bf16.xpose.msra.mxu0 0
      %729 = vmatprep.subr.bf16.mxu0 0
      %730 = vmatpush1.bf16.xpose.msra.mxu0 0
      %731 = vmatprep.mubr.bf16.mxu0 0
      %732 = vmatmul.mubr.bf16.gmra.mrb[0].mxu0 %v694
      %v733 = vpop.f32.mrb[0].mxu0
      %v734 = vadd.f32 0.0, %v733
      %v735 = vpop.f32.mrb[0].mxu0
      %v736 = vpop.f32.mrb[0].mxu0
      %v737 = vpop.f32.mrb[0].mxu0
      %738 = vdwg.mxu0
      %v740 = vsel %vm692, %v668, 0
      %v743 = vsel %vm692, %v676, 0
      %745 = vmatprep.subr.bf16.mxu0 0
      %746 = vmatpush1.bf16.xpose.msra.mxu0 %v743
      %747 = vmatprep.subr.bf16.mxu0 0
      %748 = vmatpush1.bf16.xpose.msra.mxu0 0
      %749 = vmatprep.subr.bf16.mxu0 0
      %750 = vmatpush1.bf16.xpose.msra.mxu0 0
      %751 = vmatprep.subr.bf16.mxu0 0
      %752 = vmatpush1.bf16.xpose.msra.mxu0 0
      %753 = vmatprep.subr.bf16.mxu0 0
      %754 = vmatpush1.bf16.xpose.msra.mxu0 0
      %755 = vmatprep.subr.bf16.mxu0 0
      %756 = vmatpush1.bf16.xpose.msra.mxu0 0
      %757 = vmatprep.subr.bf16.mxu0 0
      %758 = vmatpush1.bf16.xpose.msra.mxu0 0
      %759 = vmatprep.subr.bf16.mxu0 0
      %760 = vmatpush1.bf16.xpose.msra.mxu0 0
      %761 = vmatprep.subr.bf16.mxu0 0
      %762 = vmatpush1.bf16.xpose.msra.mxu0 0
      %763 = vmatprep.subr.bf16.mxu0 0
      %764 = vmatpush1.bf16.xpose.msra.mxu0 0
      %765 = vmatprep.subr.bf16.mxu0 0
      %766 = vmatpush1.bf16.xpose.msra.mxu0 0
      %767 = vmatprep.subr.bf16.mxu0 0
      %768 = vmatpush1.bf16.xpose.msra.mxu0 0
      %769 = vmatprep.subr.bf16.mxu0 0
      %770 = vmatpush1.bf16.xpose.msra.mxu0 0
      %771 = vmatprep.subr.bf16.mxu0 0
      %772 = vmatpush1.bf16.xpose.msra.mxu0 0
      %773 = vmatprep.subr.bf16.mxu0 0
      %774 = vmatpush1.bf16.xpose.msra.mxu0 0
      %775 = vmatprep.subr.bf16.mxu0 0
      %776 = vmatpush1.bf16.xpose.msra.mxu0 0
      %777 = vmatprep.mubr.bf16.mxu0 0
      %778 = vmatmul.mubr.bf16.gmra.mrb[0].mxu0 %v740
      %v779 = vpop.f32.mrb[0].mxu0
      %v780 = vadd.f32 0.0, %v779
      %v781 = vpop.f32.mrb[0].mxu0
      %v782 = vpop.f32.mrb[0].mxu0
      %v783 = vpop.f32.mrb[0].mxu0
      %784 = vdwg.mxu0
      %v786 = vsel %vm692, %v670, 0
      %v789 = vsel %vm692, %v678, 0
      %791 = vmatprep.subr.bf16.mxu0 0
      %792 = vmatpush1.bf16.xpose.msra.mxu0 %v789
      %793 = vmatprep.subr.bf16.mxu0 0
      %794 = vmatpush1.bf16.xpose.msra.mxu0 0
      %795 = vmatprep.subr.bf16.mxu0 0
      %796 = vmatpush1.bf16.xpose.msra.mxu0 0
      %797 = vmatprep.subr.bf16.mxu0 0
      %798 = vmatpush1.bf16.xpose.msra.mxu0 0
      %799 = vmatprep.subr.bf16.mxu0 0
      %800 = vmatpush1.bf16.xpose.msra.mxu0 0
      %801 = vmatprep.subr.bf16.mxu0 0
      %802 = vmatpush1.bf16.xpose.msra.mxu0 0
      %803 = vmatprep.subr.bf16.mxu0 0
      %804 = vmatpush1.bf16.xpose.msra.mxu0 0
      %805 = vmatprep.subr.bf16.mxu0 0
      %806 = vmatpush1.bf16.xpose.msra.mxu0 0
      %807 = vmatprep.subr.bf16.mxu0 0
      %808 = vmatpush1.bf16.xpose.msra.mxu0 0
      %809 = vmatprep.subr.bf16.mxu0 0
      %810 = vmatpush1.bf16.xpose.msra.mxu0 0
      %811 = vmatprep.subr.bf16.mxu0 0
      %812 = vmatpush1.bf16.xpose.msra.mxu0 0
      %813 = vmatprep.subr.bf16.mxu0 0
      %814 = vmatpush1.bf16.xpose.msra.mxu0 0
      %815 = vmatprep.subr.bf16.mxu0 0
      %816 = vmatpush1.bf16.xpose.msra.mxu0 0
      %817 = vmatprep.subr.bf16.mxu0 0
      %818 = vmatpush1.bf16.xpose.msra.mxu0 0
      %819 = vmatprep.subr.bf16.mxu0 0
      %820 = vmatpush1.bf16.xpose.msra.mxu0 0
      %821 = vmatprep.subr.bf16.mxu0 0
      %822 = vmatpush1.bf16.xpose.msra.mxu0 0
      %823 = vmatprep.mubr.bf16.mxu0 0
      %824 = vmatmul.mubr.bf16.gmra.mrb[0].mxu0 %v786
      %v825 = vpop.f32.mrb[0].mxu0
      %v826 = vadd.f32 0.0, %v825
      %v827 = vpop.f32.mrb[0].mxu0
      %v828 = vpop.f32.mrb[0].mxu0
      %v829 = vpop.f32.mrb[0].mxu0
      %830 = vdwg.mxu0
      %v832 = vsel %vm692, %v672, 0
      %v835 = vsel %vm692, %v680, 0
      %837 = vmatprep.subr.bf16.mxu0 0
      %838 = vmatpush1.bf16.xpose.msra.mxu0 %v835
      %839 = vmatprep.subr.bf16.mxu0 0
      %840 = vmatpush1.bf16.xpose.msra.mxu0 0
      %841 = vmatprep.subr.bf16.mxu0 0
      %842 = vmatpush1.bf16.xpose.msra.mxu0 0
      %843 = vmatprep.subr.bf16.mxu0 0
      %844 = vmatpush1.bf16.xpose.msra.mxu0 0
      %845 = vmatprep.subr.bf16.mxu0 0
      %846 = vmatpush1.bf16.xpose.msra.mxu0 0
      %847 = vmatprep.subr.bf16.mxu0 0
      %848 = vmatpush1.bf16.xpose.msra.mxu0 0
      %849 = vmatprep.subr.bf16.mxu0 0
      %850 = vmatpush1.bf16.xpose.msra.mxu0 0
      %851 = vmatprep.subr.bf16.mxu0 0
      %852 = vmatpush1.bf16.xpose.msra.mxu0 0
      %853 = vmatprep.subr.bf16.mxu0 0
      %854 = vmatpush1.bf16.xpose.msra.mxu0 0
      %855 = vmatprep.subr.bf16.mxu0 0
      %856 = vmatpush1.bf16.xpose.msra.mxu0 0
      %857 = vmatprep.subr.bf16.mxu0 0
      %858 = vmatpush1.bf16.xpose.msra.mxu0 0
      %859 = vmatprep.subr.bf16.mxu0 0
      %860 = vmatpush1.bf16.xpose.msra.mxu0 0
      %861 = vmatprep.subr.bf16.mxu0 0
      %862 = vmatpush1.bf16.xpose.msra.mxu0 0
      %863 = vmatprep.subr.bf16.mxu0 0
      %864 = vmatpush1.bf16.xpose.msra.mxu0 0
      %865 = vmatprep.subr.bf16.mxu0 0
      %866 = vmatpush1.bf16.xpose.msra.mxu0 0
      %867 = vmatprep.subr.bf16.mxu0 0
      %868 = vmatpush1.bf16.xpose.msra.mxu0 0
      %869 = vmatprep.mubr.bf16.mxu0 0
      %870 = vmatmul.mubr.bf16.gmra.mrb[0].mxu0 %v832
      %v871 = vpop.f32.mrb[0].mxu0
      %v872 = vadd.f32 0.0, %v871
      %v873 = vpop.f32.mrb[0].mxu0
      %v874 = vpop.f32.mrb[0].mxu0
      %v875 = vpop.f32.mrb[0].mxu0
      %876 = vdwg.mxu0
      %v877 = vmul.f32 %v734, 0.17677669
      %v878 = vmul.f32 %v780, 0.17677669
      %v879 = vmul.f32 %v826, 0.17677669
      %v880 = vmul.f32 %v872, 0.17677669
      %v881 = vadd.f32 %v877, %v647
      %v882 = vadd.f32 %v878, %v647
      %v883 = vadd.f32 %v879, %v647
      %v884 = vadd.f32 %v880, %v647
      %vm885 = vcmask 130048
      %v886 = vsel %vm885, %v881, -inf
      %887 = vmax.xlane.f32.xlu0 %v886
      %v888 = vpop.xlane.xlu0 %887
      %v889 = vsel %vm885, %v882, -inf
      %890 = vmax.xlane.f32.xlu0 %v889
      %v891 = vpop.xlane.xlu0 %890
      %v892 = vsel %vm885, %v883, -inf
      %893 = vmax.xlane.f32.xlu0 %v892
      %v894 = vpop.xlane.xlu0 %893
      %v895 = vsel %vm885, %v884, -inf
      %896 = vmax.xlane.f32.xlu0 %v895
      %v897 = vpop.xlane.xlu0 %896
      %v898 = vsub.f32 %v881, %v888
      %v899 = vsub.f32 %v882, %v891
      %v900 = vsub.f32 %v883, %v894
      %v901 = vsub.f32 %v884, %v897
      %v902 = vmul.f32 %v898, 1.442695
      %v903 = vpow.pop %v902
      %v904 = vmul.f32 %v899, 1.442695
      %v905 = vpow.pop %v904
      %v906 = vmul.f32 %v900, 1.442695
      %v907 = vpow.pop %v906
      %v908 = vmul.f32 %v901, 1.442695
      %v909 = vpow.pop %v908
      %v910 = vsel %vm885, %v903, 0.0
      %911 = vadd.xlane.f32.xlu0 %v910
      %v912 = vpop.xlane.xlu0 %911
      %v913 = vsel %vm885, %v905, 0.0
      %914 = vadd.xlane.f32.xlu0 %v913
      %v915 = vpop.xlane.xlu0 %914
      %v916 = vsel %vm885, %v907, 0.0
      %917 = vadd.xlane.f32.xlu0 %v916
      %v918 = vpop.xlane.xlu0 %917
      %v919 = vsel %vm885, %v909, 0.0
      %920 = vadd.xlane.f32.xlu0 %v919
      %v921 = vpop.xlane.xlu0 %920
      %v922 = vrcp.pop %v912
      %v923 = vrcp.pop %v915
      %v924 = vrcp.pop %v918
      %v925 = vrcp.pop %v921
      %v926 = vmul.f32 %v903, %v922
      %v927 = vmul.f32 %v905, %v923
      %v928 = vmul.f32 %v907, %v924
      %v929 = vmul.f32 %v909, %v925
      %v930 = vpack.c.bf16 %v926, %v926
      %v931 = vpack.c.bf16 %v927, %v927
      %v932 = vpack.c.bf16 %v928, %v928
      %v933 = vpack.c.bf16 %v929, %v929
      %v935 = vsel %vm885, %v930, 0
      %937 = vmatprep.subr.bf16.mxu0 0
      %938 = vmatpush1.bf16.msra.mxu0 %v681
      %939 = vmatprep.subr.bf16.mxu0 0
      %940 = vmatpush1.bf16.msra.mxu0 0
      %941 = vmatprep.subr.bf16.mxu0 0
      %942 = vmatpush1.bf16.msra.mxu0 0
      %943 = vmatprep.subr.bf16.mxu0 0
      %944 = vmatpush1.bf16.msra.mxu0 0
      %945 = vmatprep.subr.bf16.mxu0 0
      %946 = vmatpush1.bf16.msra.mxu0 0
      %947 = vmatprep.subr.bf16.mxu0 0
      %948 = vmatpush1.bf16.msra.mxu0 0
      %949 = vmatprep.subr.bf16.mxu0 0
      %950 = vmatpush1.bf16.msra.mxu0 0
      %951 = vmatprep.subr.bf16.mxu0 0
      %952 = vmatpush1.bf16.msra.mxu0 0
      %953 = vmatprep.subr.bf16.mxu0 0
      %954 = vmatpush1.bf16.msra.mxu0 0
      %955 = vmatprep.subr.bf16.mxu0 0
      %956 = vmatpush1.bf16.msra.mxu0 0
      %957 = vmatprep.subr.bf16.mxu0 0
      %958 = vmatpush1.bf16.msra.mxu0 0
      %959 = vmatprep.subr.bf16.mxu0 0
      %960 = vmatpush1.bf16.msra.mxu0 0
      %961 = vmatprep.subr.bf16.mxu0 0
      %962 = vmatpush1.bf16.msra.mxu0 0
      %963 = vmatprep.subr.bf16.mxu0 0
      %964 = vmatpush1.bf16.msra.mxu0 0
      %965 = vmatprep.subr.bf16.mxu0 0
      %966 = vmatpush1.bf16.msra.mxu0 0
      %967 = vmatprep.subr.bf16.mxu0 0
      %968 = vmatpush1.bf16.msra.mxu0 0
      %969 = vmatprep.mubr.bf16.mxu0 0
      %970 = vmatmul.mubr.bf16.gmra.mrb[0].mxu0 %v935
      %v971 = vpop.f32.mrb[0].mxu0
      %v972 = vadd.f32 0.0, %v971
      %v973 = vpop.f32.mrb[0].mxu0
      %v974 = vpop.f32.mrb[0].mxu0
      %v975 = vpop.f32.mrb[0].mxu0
      %976 = vdwg.mxu0
      %v978 = vsel %vm885, %v931, 0
      %980 = vmatprep.subr.bf16.mxu0 0
      %981 = vmatpush1.bf16.msra.mxu0 %v684
      %982 = vmatprep.subr.bf16.mxu0 0
      %983 = vmatpush1.bf16.msra.mxu0 0
      %984 = vmatprep.subr.bf16.mxu0 0
      %985 = vmatpush1.bf16.msra.mxu0 0
      %986 = vmatprep.subr.bf16.mxu0 0
      %987 = vmatpush1.bf16.msra.mxu0 0
      %988 = vmatprep.subr.bf16.mxu0 0
      %989 = vmatpush1.bf16.msra.mxu0 0
      %990 = vmatprep.subr.bf16.mxu0 0
      %991 = vmatpush1.bf16.msra.mxu0 0
      %992 = vmatprep.subr.bf16.mxu0 0
      %993 = vmatpush1.bf16.msra.mxu0 0
      %994 = vmatprep.subr.bf16.mxu0 0
      %995 = vmatpush1.bf16.msra.mxu0 0
      %996 = vmatprep.subr.bf16.mxu0 0
      %997 = vmatpush1.bf16.msra.mxu0 0
      %998 = vmatprep.subr.bf16.mxu0 0
      %999 = vmatpush1.bf16.msra.mxu0 0
      %1000 = vmatprep.subr.bf16.mxu0 0
      %1001 = vmatpush1.bf16.msra.mxu0 0
      %1002 = vmatprep.subr.bf16.mxu0 0
      %1003 = vmatpush1.bf16.msra.mxu0 0
      %1004 = vmatprep.subr.bf16.mxu0 0
      %1005 = vmatpush1.bf16.msra.mxu0 0
      %1006 = vmatprep.subr.bf16.mxu0 0
      %1007 = vmatpush1.bf16.msra.mxu0 0
      %1008 = vmatprep.subr.bf16.mxu0 0
      %1009 = vmatpush1.bf16.msra.mxu0 0
      %1010 = vmatprep.subr.bf16.mxu0 0
      %1011 = vmatpush1.bf16.msra.mxu0 0
      %1012 = vmatprep.mubr.bf16.mxu0 0
      %1013 = vmatmul.mubr.bf16.gmra.mrb[0].mxu0 %v978
      %v1014 = vpop.f32.mrb[0].mxu0
      %v1015 = vadd.f32 0.0, %v1014
      %v1016 = vpop.f32.mrb[0].mxu0
      %v1017 = vpop.f32.mrb[0].mxu0
      %v1018 = vpop.f32.mrb[0].mxu0
      %1019 = vdwg.mxu0
      %v1021 = vsel %vm885, %v932, 0
      %1023 = vmatprep.subr.bf16.mxu0 0
      %1024 = vmatpush1.bf16.msra.mxu0 %v687
      %1025 = vmatprep.subr.bf16.mxu0 0
      %1026 = vmatpush1.bf16.msra.mxu0 0
      %1027 = vmatprep.subr.bf16.mxu0 0
      %1028 = vmatpush1.bf16.msra.mxu0 0
      %1029 = vmatprep.subr.bf16.mxu0 0
      %1030 = vmatpush1.bf16.msra.mxu0 0
      %1031 = vmatprep.subr.bf16.mxu0 0
      %1032 = vmatpush1.bf16.msra.mxu0 0
      %1033 = vmatprep.subr.bf16.mxu0 0
      %1034 = vmatpush1.bf16.msra.mxu0 0
      %1035 = vmatprep.subr.bf16.mxu0 0
      %1036 = vmatpush1.bf16.msra.mxu0 0
      %1037 = vmatprep.subr.bf16.mxu0 0
      %1038 = vmatpush1.bf16.msra.mxu0 0
      %1039 = vmatprep.subr.bf16.mxu0 0
      %1040 = vmatpush1.bf16.msra.mxu0 0
      %1041 = vmatprep.subr.bf16.mxu0 0
      %1042 = vmatpush1.bf16.msra.mxu0 0
      %1043 = vmatprep.subr.bf16.mxu0 0
      %1044 = vmatpush1.bf16.msra.mxu0 0
      %1045 = vmatprep.subr.bf16.mxu0 0
      %1046 = vmatpush1.bf16.msra.mxu0 0
      %1047 = vmatprep.subr.bf16.mxu0 0
      %1048 = vmatpush1.bf16.msra.mxu0 0
      %1049 = vmatprep.subr.bf16.mxu0 0
      %1050 = vmatpush1.bf16.msra.mxu0 0
      %1051 = vmatprep.subr.bf16.mxu0 0
      %1052 = vmatpush1.bf16.msra.mxu0 0
      %1053 = vmatprep.subr.bf16.mxu0 0
      %1054 = vmatpush1.bf16.msra.mxu0 0
      %1055 = vmatprep.mubr.bf16.mxu0 0
      %1056 = vmatmul.mubr.bf16.gmra.mrb[0].mxu0 %v1021
      %v1057 = vpop.f32.mrb[0].mxu0
      %v1058 = vadd.f32 0.0, %v1057
      %v1059 = vpop.f32.mrb[0].mxu0
      %v1060 = vpop.f32.mrb[0].mxu0
      %v1061 = vpop.f32.mrb[0].mxu0
      %1062 = vdwg.mxu0
      %v1064 = vsel %vm885, %v933, 0
      %1066 = vmatprep.subr.bf16.mxu0 0
      %1067 = vmatpush1.bf16.msra.mxu0 %v690
      %1068 = vmatprep.subr.bf16.mxu0 0
      %1069 = vmatpush1.bf16.msra.mxu0 0
      %1070 = vmatprep.subr.bf16.mxu0 0
      %1071 = vmatpush1.bf16.msra.mxu0 0
      %1072 = vmatprep.subr.bf16.mxu0 0
      %1073 = vmatpush1.bf16.msra.mxu0 0
      %1074 = vmatprep.subr.bf16.mxu0 0
      %1075 = vmatpush1.bf16.msra.mxu0 0
      %1076 = vmatprep.subr.bf16.mxu0 0
      %1077 = vmatpush1.bf16.msra.mxu0 0
      %1078 = vmatprep.subr.bf16.mxu0 0
      %1079 = vmatpush1.bf16.msra.mxu0 0
      %1080 = vmatprep.subr.bf16.mxu0 0
      %1081 = vmatpush1.bf16.msra.mxu0 0
      %1082 = vmatprep.subr.bf16.mxu0 0
      %1083 = vmatpush1.bf16.msra.mxu0 0
      %1084 = vmatprep.subr.bf16.mxu0 0
      %1085 = vmatpush1.bf16.msra.mxu0 0
      %1086 = vmatprep.subr.bf16.mxu0 0
      %1087 = vmatpush1.bf16.msra.mxu0 0
      %1088 = vmatprep.subr.bf16.mxu0 0
      %1089 = vmatpush1.bf16.msra.mxu0 0
      %1090 = vmatprep.subr.bf16.mxu0 0
      %1091 = vmatpush1.bf16.msra.mxu0 0
      %1092 = vmatprep.subr.bf16.mxu0 0
      %1093 = vmatpush1.bf16.msra.mxu0 0
      %1094 = vmatprep.subr.bf16.mxu0 0
      %1095 = vmatpush1.bf16.msra.mxu0 0
      %1096 = vmatprep.subr.bf16.mxu0 0
      %1097 = vmatpush1.bf16.msra.mxu0 0
      %1098 = vmatprep.mubr.bf16.mxu0 0
      %1099 = vmatmul.mubr.bf16.gmra.mrb[0].mxu0 %v1064
      %v1100 = vpop.f32.mrb[0].mxu0
      %v1101 = vadd.f32 0.0, %v1100
      %v1102 = vpop.f32.mrb[0].mxu0
      %v1103 = vpop.f32.mrb[0].mxu0
      %v1104 = vpop.f32.mrb[0].mxu0
      %1105 = vdwg.mxu0
      %1107 = vrot.lane.b32.xlu0 %v1015, 32
      %v1108 = vpop.permute.xlu0 %1107
      %1111 = vrot.lane.b32.xlu0 %v1058, 64
      %v1112 = vpop.permute.xlu0 %1111
      %1115 = vrot.lane.b32.xlu0 %v1101, 96
      %v1116 = vpop.permute.xlu0 %1115
      %v1118 = vsel %vm692, %v972, %v1108
      %vm1119 = vcmask 523264
      %v1120 = vsel %vm1119, %v1118, %v1112
      %vm1121 = vcmask 785408
      %v1122 = vsel %vm1121, %v1120, %v1116
      %v1123 = vpack.c.bf16 %v1122, %v1122
      %v1125 = vlaneseq
      %v1126 = vshrl.u32 %v1125, 7
      %v1127 = vsub.s32 0, %v1126
      %v1128 = vrot.slane %v664, %v1127
      %v1146 = vunpack.c.l.b16 %v648
      %v1147 = vunpack.c.l.b16 %v649
      %v1148 = vunpack.c.l.b16 %v650
      %v1149 = vunpack.c.l.b16 %v651
      %v1150 = vunpack.c.l.b16 %v652
      %v1151 = vunpack.c.l.b16 %v653
      %v1152 = vunpack.c.l.b16 %v654
      %v1153 = vunpack.c.l.b16 %v655
      %v1154 = vunpack.c.l.b16 %v656
      %v1155 = vunpack.c.l.b16 %v657
      %v1156 = vunpack.c.l.b16 %v658
      %v1157 = vunpack.c.l.b16 %v659
      %v1158 = vunpack.c.l.b16 %v660
      %v1159 = vunpack.c.l.b16 %v661
      %v1160 = vunpack.c.l.b16 %v662
      %v1161 = vunpack.c.l.b16 %v663
      %v1162 = vpack.c.b16 %v1147, %v1146
      %v1163 = vpack.c.b16 %v1149, %v1148
      %v1164 = vpack.c.b16 %v1151, %v1150
      %v1165 = vpack.c.b16 %v1153, %v1152
      %v1166 = vpack.c.b16 %v1155, %v1154
      %v1167 = vpack.c.b16 %v1157, %v1156
      %v1168 = vpack.c.b16 %v1159, %v1158
      %v1169 = vpack.c.b16 %v1161, %v1160
      %1178 = vmatprep.subr.bf16.mxu0 0
      %1179 = vmatpush1.bf16.msra.mxu0 %v1162
      %1180 = vmatprep.subr.bf16.mxu0 0
      %1181 = vmatpush1.bf16.msra.mxu0 %v1163
      %1182 = vmatprep.subr.bf16.mxu0 0
      %1183 = vmatpush1.bf16.msra.mxu0 %v1164
      %1184 = vmatprep.subr.bf16.mxu0 0
      %1185 = vmatpush1.bf16.msra.mxu0 %v1165
      %1186 = vmatprep.subr.bf16.mxu0 0
      %1187 = vmatpush1.bf16.msra.mxu0 %v1166
      %1188 = vmatprep.subr.bf16.mxu0 0
      %1189 = vmatpush1.bf16.msra.mxu0 %v1167
      %1190 = vmatprep.subr.bf16.mxu0 0
      %1191 = vmatpush1.bf16.msra.mxu0 %v1168
      %1192 = vmatprep.subr.bf16.mxu0 0
      %1193 = vmatpush1.bf16.msra.mxu0 %v1169
      %1194 = vmatprep.subr.bf16.mxu0 0
      %1195 = vmatpush1.bf16.msra.mxu0 0
      %1196 = vmatprep.subr.bf16.mxu0 0
      %1197 = vmatpush1.bf16.msra.mxu0 0
      %1198 = vmatprep.subr.bf16.mxu0 0
      %1199 = vmatpush1.bf16.msra.mxu0 0
      %1200 = vmatprep.subr.bf16.mxu0 0
      %1201 = vmatpush1.bf16.msra.mxu0 0
      %1202 = vmatprep.subr.bf16.mxu0 0
      %1203 = vmatpush1.bf16.msra.mxu0 0
      %1204 = vmatprep.subr.bf16.mxu0 0
      %1205 = vmatpush1.bf16.msra.mxu0 0
      %1206 = vmatprep.subr.bf16.mxu0 0
      %1207 = vmatpush1.bf16.msra.mxu0 0
      %1208 = vmatprep.subr.bf16.mxu0 0
      %1209 = vmatpush1.bf16.msra.mxu0 0
      %1210 = vmatprep.mubr.bf16.mxu0 0
      %1211 = vmatmul.mubr.bf16.gmra.mrb[0].mxu0 %v1123
      %v1212 = vpop.f32.mrb[0].mxu0
      %v1213 = vadd.f32 %v1128, %v1212
      %v1214 = vpop.f32.mrb[0].mxu0
      %v1215 = vpop.f32.mrb[0].mxu0
      %v1216 = vpop.f32.mrb[0].mxu0
      %1217 = vdwg.mxu0
      %s1218 = scalar_lea.vmem %s290, %s629
      %v1219 = vld [vmem:[%s1218] sm:$0xff]
      %v1220 = vadd.f32 %v1219, %v1213
      %1221 = vst [vmem:[%s298] sm:$0xff] %v1220
      %p1222 = scmp.lt.s32.totalorder %s22, 1
      %s1223 = scalar_select %p1222, %s22, 1
      %p1224 = scmp.lt.s32.totalorder %s23, 1
      %s1225 = scalar_select %p1224, %s23, 1
      %s1226 = smul.addr %s1223, 2
      %s1227 = sadd.s32 %s1225, %s1226
      %s1228 = smul.addr %s1227, 8
      %s1229 = scalar_lea.vmem %s7, %s1228
      // Predicated region
      $region53: #{decoder_forward.9} parent=47 // pred_check
        %p1230 = pneg %p202
      $region54: #{decoder_forward.9} parent=47 // pred_check_branch
        %1232 = sbr.rel (%p1230) target = $region56
      $region55: #{decoder_forward.9} parent=47 // pred_region
        _
      $region56: #{decoder_forward.9} parent=47 // pred_fallthru
        _
    $region48: #{decoder_forward.9} parent=5 // pred_fallthru
      _
    %p1233 = scmp.le.s32.totalorder 2, %s13
    // Predicated region
    $region57: #{decoder_forward.9} parent=5 // pred_check
      %p1234 = pneg %p1233
    $region58: #{decoder_forward.9} parent=5 // pred_check_branch
      %1236 = sbr.rel (%p1234) target = $region60
    $region59: #{decoder_forward.9} parent=5 // pred_region
      %s1237 = ssub.s32 %s13, 2
      // Predicated region
      $region61: #{decoder_forward.9} parent=59 // pred_check
        %p1238 = pneg %p208
      $region62: #{decoder_forward.9} parent=59 // pred_check_branch
        %1240 = sbr.rel (%p1238) target = $region64
      $region63: #{decoder_forward.9} parent=59 // pred_region
        %p1241 = scmp.lt.s32.totalorder %s24, 1
        %s1242 = scalar_select %p1241, %s24, 1
        %p1243 = scmp.lt.s32.totalorder %s25, 1
        %s1244 = scalar_select %p1243, %s25, 1
        %s1245 = smul.addr %s1242, 2
        %s1246 = sadd.s32 %s1244, %s1245
        %s1247 = smul.addr %s1246, 8
        %s1248 = scalar_lea.vmem %s7, %s1247
      $region64: #{decoder_forward.9} parent=59 // pred_fallthru
        _
    $region60: #{decoder_forward.9} parent=5 // pred_fallthru
      _
  $region6: #{decoder_forward.9} parent=0 // loop_footer
    %s17 = sadd.s32 1, %s13
  $region7: #{decoder_forward.9} parent=0 // loop_footer_branch
    %12 = sbr.rel target = $region3
  $region8: #{decoder_forward.9} parent=0 // loop_exit
    _

// kernel: decoder_forward.11
$region0: #{decoder_forward.11}
  #allocation0 [shape = 'u32[]', space=smem, size = 0x4, offset = 0x4, fixed_abs, tag = 'smem constant byte address 0x4 - core index']
  #allocation1 [shape = 'u32[144,128]{1,0:T(1,128)}', space=vmem, size = 0x12000, scoped, tag = 'internal scratch']
  %s0 = inlined_call_operand.vmem [shape: f32[32,128], index: 0, kind: input, shape index: {}]
  %s1 = inlined_call_operand.vmem [shape: f32[1,128], index: 1, kind: input, shape index: {}]
  %s2 = inlined_call_operand.vmem [shape: f32[1,128], index: 2, kind: input, shape index: {}]
  %s3 = inlined_call_operand.vmem [shape: bf16[128,256], index: 3, kind: input, shape index: {}]
  %s4 = inlined_call_operand.vmem [shape: f32[1,256], index: 4, kind: input, shape index: {}]
  %s5 = inlined_call_operand.vmem [shape: bf16[256,128], index: 5, kind: input, shape index: {}]
  %s6 = inlined_call_operand.vmem [shape: f32[1,128], index: 6, kind: input, shape index: {}]
  %s7 = inlined_call_operand.vmem [shape: f32[1,128], index: 7, kind: input, shape index: {}]
  %s8 = inlined_call_operand.vmem [shape: f32[1,128], index: 8, kind: input, shape index: {}]
  %s9 = inlined_call_operand.hbm [shape: f32[32,128], index: 9, kind: output, shape index: {}]
  %s10 = sld [smem:[#allocation0]]
  $region69: #{decoder_forward.11} parent=0
    _
  %s12 = ssub.s32 1, %s10
  %s13 = scalar_select 0, %s12, %s10
  $region1: #{decoder_forward.11} parent=0
    #allocation2 [shape = 'u8[8192]{0}', space=vmem, size = 0x2000, scoped, tag = 'output window, operand 0']
    #allocation3 [shape = 's32[2]{0}', space=sflag, size = 0x8, scoped, tag = 'scoped memory for decoder_forward.11']
    %14 = vsyncpa [#allocation3], 0
    %s15 = scalar_lea.sflag [#allocation3], 1
    %16 = vsyncpa %s15, 0
    loop: start=0, step=1, limit=6
    $region2: #{decoder_forward.11} parent=1 // loop_pre_header
      _
    $region3: #{decoder_forward.11} parent=1 // loop_header
      %s18 = sphi 0, %s22
      %p19 = scmp.ge.s32.totalorder %s18, 6
      %s28 = sphi 0, %s30
      %s31 = sphi 0, %s28
      %s32 = sphi 0, %s31
      %s48 = sphi 0, %s32
      %s52 = sphi 0, %s52
      %s54 = sphi 0, %s52
      %s55 = sphi 0, %s54
      %s69 = sphi 0, %s55
      %s73 = sphi 0, %s73
      %s75 = sphi 0, %s73
      %s76 = sphi 0, %s75
      %s90 = sphi 0, %s76
      %s94 = sphi 0, %s94
      %s96 = sphi 0, %s94
      %s97 = sphi 0, %s96
      %s111 = sphi 0, %s97
      %s115 = sphi 0, %s115
      %s117 = sphi 0, %s115
      %s118 = sphi 0, %s117
      %s132 = sphi 0, %s118
      %s136 = sphi 0, %s136
      %s138 = sphi 0, %s136
      %s139 = sphi 0, %s138
      %s153 = sphi 0, %s139
      %s157 = sphi 0, %s157
      %s159 = sphi 0, %s157
      %s160 = sphi 0, %s159
      %s174 = sphi 0, %s160
      %s178 = sphi 0, %s178
      %s180 = sphi 0, %s178
      %s181 = sphi 0, %s180
      %s195 = sphi 0, %s181
      %s199 = sphi 0, %s199
      %s201 = sphi 0, %s199
      %s202 = sphi 0, %s201
      %s216 = sphi 0, %s202
      %s222 = sphi 0, %s224
      %s225 = sphi 0, %s222
      %s226 = sphi 0, %s225
      %s242 = sphi 0, %s226
    $region4: #{decoder_forward.11} parent=1 // loop_header_branch
      %21 = sbr.rel (%p19) target = $region8
    $region5: #{decoder_forward.11} parent=1 // loop_body
      %s23 = ssub.s32 %s18, 1
      %s24 = ssub.s32 %s18, 2
      %s25 = sadd.s32 %s18, 1
      %s26 = ssub.s32 %s18, %s25
      %p27 = scmp.eq.s32.totalorder %s26, 0
      %s29 = sadd.s32 %s28, 1
      %s30 = scalar_select %p27, %s28, %s29
      %p33 = pneg %p27
      %p34 = scmp.eq.s32.totalorder %s18, 3
      %p35 = por %p33, %p34
      %p36 = scmp.ne.s32.totalorder %s28, %s31
      %p37 = scmp.eq.s32.totalorder %s18, 0
      %p38 = por %p36, %p37
      %p39 = scmp.ne.s32.totalorder %s28, %s31
      %p40 = scmp.eq.s32.totalorder %s23, 3
      %p41 = por %p39, %p40
      %p42 = scmp.ne.s32.totalorder %s31, %s32
      %p43 = scmp.eq.s32.totalorder %s23, 0
      %p44 = por %p42, %p43
      %p45 = scmp.ne.s32.totalorder %s31, %s32
      %p46 = scmp.eq.s32.totalorder %s24, 3
      %p47 = por %p45, %p46
      %p49 = scmp.ne.s32.totalorder %s32, %s48
      %p50 = scmp.eq.s32.totalorder %s24, 0
      %p51 = por %p49, %p50
      %s53 = sadd.s32 %s52, 1
      %p56 = scmp.eq.s32.totalorder %s18, 3
      %p57 = scmp.ne.s32.totalorder %s52, %s54
      %p58 = scmp.eq.s32.totalorder %s18, 0
      %p59 = por %p57, %p58
      %p60 = scmp.ne.s32.totalorder %s52, %s54
      %p61 = scmp.eq.s32.totalorder %s23, 3
      %p62 = por %p60, %p61
      %p63 = scmp.ne.s32.totalorder %s54, %s55
      %p64 = scmp.eq.s32.totalorder %s23, 0
      %p65 = por %p63, %p64
      %p66 = scmp.ne.s32.totalorder %s54, %s55
      %p67 = scmp.eq.s32.totalorder %s24, 3
      %p68 = por %p66, %p67
      %p70 = scmp.ne.s32.totalorder %s55, %s69
      %p71 = scmp.eq.s32.totalorder %s24, 0
      %p72 = por %p70, %p71
      %s74 = sadd.s32 %s73, 1
      %p77 = scmp.eq.s32.totalorder %s18, 3
      %p78 = scmp.ne.s32.totalorder %s73, %s75
      %p79 = scmp.eq.s32.totalorder %s18, 0
      %p80 = por %p78, %p79
      %p81 = scmp.ne.s32.totalorder %s73, %s75
      %p82 = scmp.eq.s32.totalorder %s23, 3
      %p83 = por %p81, %p82
      %p84 = scmp.ne.s32.totalorder %s75, %s76
      %p85 = scmp.eq.s32.totalorder %s23, 0
      %p86 = por %p84, %p85
      %p87 = scmp.ne.s32.totalorder %s75, %s76
      %p88 = scmp.eq.s32.totalorder %s24, 3
      %p89 = por %p87, %p88
      %p91 = scmp.ne.s32.totalorder %s76, %s90
      %p92 = scmp.eq.s32.totalorder %s24, 0
      %p93 = por %p91, %p92
      %s95 = sadd.s32 %s94, 1
      %p98 = scmp.eq.s32.totalorder %s18, 3
      %p99 = scmp.ne.s32.totalorder %s94, %s96
      %p100 = scmp.eq.s32.totalorder %s18, 0
      %p101 = por %p99, %p100
      %p102 = scmp.ne.s32.totalorder %s94, %s96
      %p103 = scmp.eq.s32.totalorder %s23, 3
      %p104 = por %p102, %p103
      %p105 = scmp.ne.s32.totalorder %s96, %s97
      %p106 = scmp.eq.s32.totalorder %s23, 0
      %p107 = por %p105, %p106
      %p108 = scmp.ne.s32.totalorder %s96, %s97
      %p109 = scmp.eq.s32.totalorder %s24, 3
      %p110 = por %p108, %p109
      %p112 = scmp.ne.s32.totalorder %s97, %s111
      %p113 = scmp.eq.s32.totalorder %s24, 0
      %p114 = por %p112, %p113
      %s116 = sadd.s32 %s115, 1
      %p119 = scmp.eq.s32.totalorder %s18, 3
      %p120 = scmp.ne.s32.totalorder %s115, %s117
      %p121 = scmp.eq.s32.totalorder %s18, 0
      %p122 = por %p120, %p121
      %p123 = scmp.ne.s32.totalorder %s115, %s117
      %p124 = scmp.eq.s32.totalorder %s23, 3
      %p125 = por %p123, %p124
      %p126 = scmp.ne.s32.totalorder %s117, %s118
      %p127 = scmp.eq.s32.totalorder %s23, 0
      %p128 = por %p126, %p127
      %p129 = scmp.ne.s32.totalorder %s117, %s118
      %p130 = scmp.eq.s32.totalorder %s24, 3
      %p131 = por %p129, %p130
      %p133 = scmp.ne.s32.totalorder %s118, %s132
      %p134 = scmp.eq.s32.totalorder %s24, 0
      %p135 = por %p133, %p134
      %s137 = sadd.s32 %s136, 1
      %p140 = scmp.eq.s32.totalorder %s18, 3
      %p141 = scmp.ne.s32.totalorder %s136, %s138
      %p142 = scmp.eq.s32.totalorder %s18, 0
      %p143 = por %p141, %p142
      %p144 = scmp.ne.s32.totalorder %s136, %s138
      %p145 = scmp.eq.s32.totalorder %s23, 3
      %p146 = por %p144, %p145
      %p147 = scmp.ne.s32.totalorder %s138, %s139
      %p148 = scmp.eq.s32.totalorder %s23, 0
      %p149 = por %p147, %p148
      %p150 = scmp.ne.s32.totalorder %s138, %s139
      %p151 = scmp.eq.s32.totalorder %s24, 3
      %p152 = por %p150, %p151
      %p154 = scmp.ne.s32.totalorder %s139, %s153
      %p155 = scmp.eq.s32.totalorder %s24, 0
      %p156 = por %p154, %p155
      %s158 = sadd.s32 %s157, 1
      %p161 = scmp.eq.s32.totalorder %s18, 3
      %p162 = scmp.ne.s32.totalorder %s157, %s159
      %p163 = scmp.eq.s32.totalorder %s18, 0
      %p164 = por %p162, %p163
      %p165 = scmp.ne.s32.totalorder %s157, %s159
      %p166 = scmp.eq.s32.totalorder %s23, 3
      %p167 = por %p165, %p166
      %p168 = scmp.ne.s32.totalorder %s159, %s160
      %p169 = scmp.eq.s32.totalorder %s23, 0
      %p170 = por %p168, %p169
      %p171 = scmp.ne.s32.totalorder %s159, %s160
      %p172 = scmp.eq.s32.totalorder %s24, 3
      %p173 = por %p171, %p172
      %p175 = scmp.ne.s32.totalorder %s160, %s174
      %p176 = scmp.eq.s32.totalorder %s24, 0
      %p177 = por %p175, %p176
      %s179 = sadd.s32 %s178, 1
      %p182 = scmp.eq.s32.totalorder %s18, 3
      %p183 = scmp.ne.s32.totalorder %s178, %s180
      %p184 = scmp.eq.s32.totalorder %s18, 0
      %p185 = por %p183, %p184
      %p186 = scmp.ne.s32.totalorder %s178, %s180
      %p187 = scmp.eq.s32.totalorder %s23, 3
      %p188 = por %p186, %p187
      %p189 = scmp.ne.s32.totalorder %s180, %s181
      %p190 = scmp.eq.s32.totalorder %s23, 0
      %p191 = por %p189, %p190
      %p192 = scmp.ne.s32.totalorder %s180, %s181
      %p193 = scmp.eq.s32.totalorder %s24, 3
      %p194 = por %p192, %p193
      %p196 = scmp.ne.s32.totalorder %s181, %s195
      %p197 = scmp.eq.s32.totalorder %s24, 0
      %p198 = por %p196, %p197
      %s200 = sadd.s32 %s199, 1
      %p203 = scmp.eq.s32.totalorder %s18, 3
      %p204 = scmp.ne.s32.totalorder %s199, %s201
      %p205 = scmp.eq.s32.totalorder %s18, 0
      %p206 = por %p204, %p205
      %p207 = scmp.ne.s32.totalorder %s199, %s201
      %p208 = scmp.eq.s32.totalorder %s23, 3
      %p209 = por %p207, %p208
      %p210 = scmp.ne.s32.totalorder %s201, %s202
      %p211 = scmp.eq.s32.totalorder %s23, 0
      %p212 = por %p210, %p211
      %p213 = scmp.ne.s32.totalorder %s201, %s202
      %p214 = scmp.eq.s32.totalorder %s24, 3
      %p215 = por %p213, %p214
      %p217 = scmp.ne.s32.totalorder %s202, %s216
      %p218 = scmp.eq.s32.totalorder %s24, 0
      %p219 = por %p217, %p218
      %s220 = ssub.s32 %s18, %s25
      %p221 = scmp.eq.s32.totalorder %s220, 0
      %s223 = sadd.s32 %s222, 1
      %s224 = scalar_select %p221, %s222, %s223
      %p227 = pneg %p221
      %p228 = scmp.eq.s32.totalorder %s18, 3
      %p229 = por %p227, %p228
      %p230 = scmp.ne.s32.totalorder %s222, %s225
      %p231 = scmp.eq.s32.totalorder %s18, 0
      %p232 = por %p230, %p231
      %p233 = scmp.ne.s32.totalorder %s222, %s225
      %p234 = scmp.eq.s32.totalorder %s23, 3
      %p235 = por %p233, %p234
      %p236 = scmp.ne.s32.totalorder %s225, %s226
      %p237 = scmp.eq.s32.totalorder %s23, 0
      %p238 = por %p236, %p237
      %p239 = scmp.ne.s32.totalorder %s225, %s226
      %p240 = scmp.eq.s32.totalorder %s24, 3
      %p241 = por %p239, %p240
      %p243 = scmp.ne.s32.totalorder %s226, %s242
      %p244 = scmp.eq.s32.totalorder %s24, 0
      %p245 = por %p243, %p244
      %p246 = scmp.le.s32.totalorder 1, %s18
      %p247 = scmp.lt.s32.totalorder %s18, 5
      %p248 = pnand %p246, %p247
      %p249 = pneg %p248
      // Predicated region
      $region9: #{decoder_forward.11} parent=5 // pred_check
        _
      $region10: #{decoder_forward.11} parent=5 // pred_check_branch
        %251 = sbr.rel (%p248) target = $region12
      $region11: #{decoder_forward.11} parent=5 // pred_region
        %s252 = ssub.s32 %s18, 1
        // Predicated region
        $region13: #{decoder_forward.11} parent=11 // pred_check
          %p253 = pneg %p65
        $region14: #{decoder_forward.11} parent=11 // pred_check_branch
          %255 = sbr.rel (%p253) target = $region16
        $region15: #{decoder_forward.11} parent=11 // pred_region
          _
        $region16: #{decoder_forward.11} parent=11 // pred_fallthru
          _
        // Predicated region
        $region17: #{decoder_forward.11} parent=11 // pred_check
          %p256 = pneg %p86
        $region18: #{decoder_forward.11} parent=11 // pred_check_branch
          %258 = sbr.rel (%p256) target = $region20
        $region19: #{decoder_forward.11} parent=11 // pred_region
          _
        $region20: #{decoder_forward.11} parent=11 // pred_fallthru
          _
        // Predicated region
        $region21: #{decoder_forward.11} parent=11 // pred_check
          %p259 = pneg %p107
        $region22: #{decoder_forward.11} parent=11 // pred_check_branch
          %261 = sbr.rel (%p259) target = $region24
        $region23: #{decoder_forward.11} parent=11 // pred_region
          _
        $region24: #{decoder_forward.11} parent=11 // pred_fallthru
          _
        // Predicated region
        $region25: #{decoder_forward.11} parent=11 // pred_check
          %p262 = pneg %p128
        $region26: #{decoder_forward.11} parent=11 // pred_check_branch
          %264 = sbr.rel (%p262) target = $region28
        $region27: #{decoder_forward.11} parent=11 // pred_region
          _
        $region28: #{decoder_forward.11} parent=11 // pred_fallthru
          _
        // Predicated region
        $region29: #{decoder_forward.11} parent=11 // pred_check
          %p265 = pneg %p149
        $region30: #{decoder_forward.11} parent=11 // pred_check_branch
          %267 = sbr.rel (%p265) target = $region32
        $region31: #{decoder_forward.11} parent=11 // pred_region
          _
        $region32: #{decoder_forward.11} parent=11 // pred_fallthru
          _
        // Predicated region
        $region33: #{decoder_forward.11} parent=11 // pred_check
          %p268 = pneg %p170
        $region34: #{decoder_forward.11} parent=11 // pred_check_branch
          %270 = sbr.rel (%p268) target = $region36
        $region35: #{decoder_forward.11} parent=11 // pred_region
          _
        $region36: #{decoder_forward.11} parent=11 // pred_fallthru
          _
        // Predicated region
        $region37: #{decoder_forward.11} parent=11 // pred_check
          %p271 = pneg %p191
        $region38: #{decoder_forward.11} parent=11 // pred_check_branch
          %273 = sbr.rel (%p271) target = $region40
        $region39: #{decoder_forward.11} parent=11 // pred_region
          _
        $region40: #{decoder_forward.11} parent=11 // pred_fallthru
          _
        // Predicated region
        $region41: #{decoder_forward.11} parent=11 // pred_check
          %p274 = pneg %p212
        $region42: #{decoder_forward.11} parent=11 // pred_check_branch
          %276 = sbr.rel (%p274) target = $region44
        $region43: #{decoder_forward.11} parent=11 // pred_region
          _
        $region44: #{decoder_forward.11} parent=11 // pred_fallthru
          _
      $region12: #{decoder_forward.11} parent=5 // pred_fallthru
        _
      %p277 = scmp.lt.s32.totalorder %s18, 4
      // Predicated region
      $region45: #{decoder_forward.11} parent=5 // pred_check
        %p278 = pneg %p277
      $region46: #{decoder_forward.11} parent=5 // pred_check_branch
        %280 = sbr.rel (%p278) target = $region48
      $region47: #{decoder_forward.11} parent=5 // pred_region
        // Predicated region
        $region49: #{decoder_forward.11} parent=47 // pred_check
          %p281 = pneg %p38
        $region50: #{decoder_forward.11} parent=47 // pred_check_branch
          %283 = sbr.rel (%p281) target = $region52
        $region51: #{decoder_forward.11} parent=47 // pred_region
          %p284 = scmp.lt.s32.totalorder %s18, 3
          %s285 = scalar_select %p284, %s18, 3
          %s286 = smul.addr %s285, 8
          %s287 = scalar_lea.vmem %s0, %s286
        $region52: #{decoder_forward.11} parent=47 // pred_fallthru
          _
      $region48: #{decoder_forward.11} parent=5 // pred_fallthru
        _
      %p288 = scmp.le.s32.totalorder 1, %s18
      %p289 = scmp.lt.s32.totalorder %s18, 5
      %p290 = pnand %p288, %p289
      %p291 = pneg %p290
      // Predicated region
      $region53: #{decoder_forward.11} parent=5 // pred_check
        _
      $region54: #{decoder_forward.11} parent=5 // pred_check_branch
        %293 = sbr.rel (%p290) target = $region56
      $region55: #{decoder_forward.11} parent=5 // pred_region
        %s294 = ssub.s32 %s18, 1
        %p295 = scmp.lt.s32.totalorder %s23, 3
        %s296 = scalar_select %p295, %s23, 3
        %s297 = smul.addr %s296, 8
        %s298 = scalar_lea.vmem %s0, %s297
        %p299 = pneg %p44
        %p300 = pneg %p41
        %p301 = pneg %p65
        %p302 = pneg %p62
        %p303 = pneg %p86
        %p304 = pneg %p83
        %p305 = pneg %p107
        %p306 = pneg %p104
        %p307 = pneg %p128
        %p308 = pneg %p125
        %p309 = pneg %p149
        %p310 = pneg %p146
        %p311 = pneg %p170
        %p312 = pneg %p167
        %p313 = pneg %p191
        %p314 = pneg %p188
        %p315 = pneg %p212
        %p316 = pneg %p209
        %p317 = pneg %p238
        %p318 = pneg %p235
        %s319 = sand.u32 %s225, 1
        %s320 = scalar_lea.sflag [#allocation3], %s319
        %s321 = sand.u32 %s225, 1
        %s322 = smul.addr %s321, 8
        %s323 = scalar_lea.vmem [#allocation2], %s322
        %p324 = scmp.lt.s32.totalorder %s23, 3
        %s325 = scalar_select %p324, %s23, 3
        %s326 = smul.addr %s325, 8
        %s327 = scalar_lea.vmem %s0, %s326
        %v329 = vld [vmem:[%s327] sm:$0xff]
        %v330 = vld [vmem:[%s1] sm:$0x1]
        %v331 = vld [vmem:[%s2] sm:$0x1]
        %332 = vadd.xlane.f32.xlu0 %v329
        %v333 = vpop.xlane.xlu0 %332
        %v334 = vrcp.pop 128.0
        %v335 = vmul.f32 %v333, %v334
        %v336 = vsub.f32 %v329, %v335
        %v337 = vmul.f32 %v336, %v336
        %338 = vadd.xlane.f32.xlu0 %v337
        %v339 = vpop.xlane.xlu0 %338
        %v340 = vmul.f32 %v339, 0.007874016
        %v341 = vrsqrt.pop %v340
        %v342 = vmul.f32 %v340, %v341
        %vm343 = vcmp.eq.f32.partialorder %v340, inf
        %v344 = vsel %vm343, %v340, %v342
        %vm345 = vcmp.eq.f32.partialorder %v340, 0.0
        %v346 = vand.u32 %v340, 2147483648
        %v347 = vsel %vm345, %v346, %v344
        %v349 = vlaneseq
        %v350 = vshrl.u32 %v349, 7
        %v351 = vsub.s32 0, %v350
        %v352 = vrot.slane %v330, %v351
        %v354 = vmul.f32 %v352, %v336
        %v355 = vadd.f32 %v347, 1e-06
        %v356 = vrcp.pop %v355
        %v357 = vmul.f32 %v354, %v356
        %v359 = vlaneseq
        %v360 = vshrl.u32 %v359, 7
        %v361 = vsub.s32 0, %v360
        %v362 = vrot.slane %v331, %v361
        %v364 = vadd.f32 %v357, %v362
        %v365 = vpack.c.bf16 %v364, %v364
        %v366 = vld [vmem:[%s3] sm:$0xff]
        %v367 = vld [vmem:[%s3 + $0x8] sm:$0xff]
        %v368 = vld [vmem:[%s3 + $0x10] sm:$0xff]
        %v369 = vld [vmem:[%s3 + $0x18] sm:$0xff]
        %v370 = vld [vmem:[%s3 + $0x20] sm:$0xff]
        %v371 = vld [vmem:[%s3 + $0x28] sm:$0xff]
        %v372 = vld [vmem:[%s3 + $0x30] sm:$0xff]
        %v373 = vld [vmem:[%s3 + $0x38] sm:$0xff]
        %v374 = vld [vmem:[%s3 + $0x40] sm:$0xff]
        %v375 = vld [vmem:[%s3 + $0x48] sm:$0xff]
        %v376 = vld [vmem:[%s3 + $0x50] sm:$0xff]
        %v377 = vld [vmem:[%s3 + $0x58] sm:$0xff]
        %v378 = vld [vmem:[%s3 + $0x60] sm:$0xff]
        %v379 = vld [vmem:[%s3 + $0x68] sm:$0xff]
        %v380 = vld [vmem:[%s3 + $0x70] sm:$0xff]
        %v381 = vld [vmem:[%s3 + $0x78] sm:$0xff]
        %v382 = vld [vmem:[%s4] sm:$0x3]
        %v384 = vlaneseq
        %v385 = vshrl.u32 %v384, 7
        %v386 = vsub.s32 0, %v385
        %v387 = vrot.slane %v382, %v386
        %v388 = vlaneseq
        %v389 = vshrl.u32 %v388, 7
        %v390 = vsub.s32 1, %v389
        %v391 = vrot.slane %v382, %v390
        %v410 = vunpack.c.l.b16 %v366
        %v411 = vunpack.c.h.b16 %v366
        %v412 = vunpack.c.l.b16 %v367
        %v413 = vunpack.c.h.b16 %v367
        %v414 = vunpack.c.l.b16 %v368
        %v415 = vunpack.c.h.b16 %v368
        %v416 = vunpack.c.l.b16 %v369
        %v417 = vunpack.c.h.b16 %v369
        %v418 = vunpack.c.l.b16 %v370
        %v419 = vunpack.c.h.b16 %v370
        %v420 = vunpack.c.l.b16 %v371
        %v421 = vunpack.c.h.b16 %v371
        %v422 = vunpack.c.l.b16 %v372
        %v423 = vunpack.c.h.b16 %v372
        %v424 = vunpack.c.l.b16 %v373
        %v425 = vunpack.c.h.b16 %v373
        %v426 = vunpack.c.l.b16 %v374
        %v427 = vunpack.c.h.b16 %v374
        %v428 = vunpack.c.l.b16 %v375
        %v429 = vunpack.c.h.b16 %v375
        %v430 = vunpack.c.l.b16 %v376
        %v431 = vunpack.c.h.b16 %v376
        %v432 = vunpack.c.l.b16 %v377
        %v433 = vunpack.c.h.b16 %v377
        %v434 = vunpack.c.l.b16 %v378
        %v435 = vunpack.c.h.b16 %v378
        %v436 = vunpack.c.l.b16 %v379
        %v437 = vunpack.c.h.b16 %v379
        %v438 = vunpack.c.l.b16 %v380
        %v439 = vunpack.c.h.b16 %v380
        %v440 = vunpack.c.l.b16 %v381
        %v441 = vunpack.c.h.b16 %v381
        %v442 = vpack.c.b16 %v412, %v410
        %v443 = vpack.c.b16 %v413, %v411
        %v444 = vpack.c.b16 %v416, %v414
        %v445 = vpack.c.b16 %v417, %v415
        %v446 = vpack.c.b16 %v420, %v418
        %v447 = vpack.c.b16 %v421, %v419
        %v448 = vpack.c.b16 %v424, %v422
        %v449 = vpack.c.b16 %v425, %v423
        %v450 = vpack.c.b16 %v428, %v426
        %v451 = vpack.c.b16 %v429, %v427
        %v452 = vpack.c.b16 %v432, %v430
        %v453 = vpack.c.b16 %v433, %v431
        %v454 = vpack.c.b16 %v436, %v434
        %v455 = vpack.c.b16 %v437, %v435
        %v456 = vpack.c.b16 %v440, %v438
        %v457 = vpack.c.b16 %v441, %v439
        %474 = vmatprep.subr.bf16.mxu0 %v443
        %475 = vmatpush1.bf16.msra.mxu0 %v442
        %476 = vmatprep.subr.bf16.mxu0 %v445
        %477 = vmatpush1.bf16.msra.mxu0 %v444
        %478 = vmatprep.subr.bf16.mxu0 %v447
        %479 = vmatpush1.bf16.msra.mxu0 %v446
        %480 = vmatprep.subr.bf16.mxu0 %v449
        %481 = vmatpush1.bf16.msra.mxu0 %v448
        %482 = vmatprep.subr.bf16.mxu0 %v451
        %483 = vmatpush1.bf16.msra.mxu0 %v450
        %484 = vmatprep.subr.bf16.mxu0 %v453
        %485 = vmatpush1.bf16.msra.mxu0 %v452
        %486 = vmatprep.subr.bf16.mxu0 %v455
        %487 = vmatpush1.bf16.msra.mxu0 %v454
        %488 = vmatprep.subr.bf16.mxu0 %v457
        %489 = vmatpush1.bf16.msra.mxu0 %v456
        %490 = vmatprep.subr.bf16.mxu0 0
        %491 = vmatpush1.bf16.msra.mxu0 0
        %492 = vmatprep.subr.bf16.mxu0 0
        %493 = vmatpush1.bf16.msra.mxu0 0
        %494 = vmatprep.subr.bf16.mxu0 0
        %495 = vmatpush1.bf16.msra.mxu0 0
        %496 = vmatprep.subr.bf16.mxu0 0
        %497 = vmatpush1.bf16.msra.mxu0 0
        %498 = vmatprep.subr.bf16.mxu0 0
        %499 = vmatpush1.bf16.msra.mxu0 0
        %500 = vmatprep.subr.bf16.mxu0 0
        %501 = vmatpush1.bf16.msra.mxu0 0
        %502 = vmatprep.subr.bf16.mxu0 0
        %503 = vmatpush1.bf16.msra.mxu0 0
        %504 = vmatprep.subr.bf16.mxu0 0
        %505 = vmatpush1.bf16.msra.mxu0 0
        %506 = vmatprep.mubr.bf16.mxu0 0
        %507 = vmatmul.mubr.bf16.gmra.mrb[0].mxu0 %v365
        %v508 = vpop.f32.mrb[0].mxu0
        %v509 = vadd.f32 %v387, %v508
        %v510 = vpop.f32.mrb[0].mxu0
        %v511 = vadd.f32 %v391, %v510
        %v512 = vpop.f32.mrb[0].mxu0
        %v513 = vpop.f32.mrb[0].mxu0
        %514 = vdwg.mxu0
        %v515 = vmax.f32 %v509, 0.0
        %v516 = vmax.f32 %v511, 0.0
        %v517 = vpack.c.bf16 %v515, %v515
        %v518 = vpack.c.bf16 %v516, %v516
        %v519 = vld [vmem:[%s5] sm:$0xf]
        %v520 = vld [vmem:[%s5 + $0x4] sm:$0xf]
        %v521 = vld [vmem:[%s5 + $0x8] sm:$0xf]
        %v522 = vld [vmem:[%s5 + $0xc] sm:$0xf]
        %v523 = vld [vmem:[%s5 + $0x10] sm:$0xf]
        %v524 = vld [vmem:[%s5 + $0x14] sm:$0xf]
        %v525 = vld [vmem:[%s5 + $0x18] sm:$0xf]
        %v526 = vld [vmem:[%s5 + $0x1c] sm:$0xf]
        %v527 = vld [vmem:[%s5 + $0x20] sm:$0xf]
        %v528 = vld [vmem:[%s5 + $0x24] sm:$0xf]
        %v529 = vld [vmem:[%s5 + $0x28] sm:$0xf]
        %v530 = vld [vmem:[%s5 + $0x2c] sm:$0xf]
        %v531 = vld [vmem:[%s5 + $0x30] sm:$0xf]
        %v532 = vld [vmem:[%s5 + $0x34] sm:$0xf]
        %v533 = vld [vmem:[%s5 + $0x38] sm:$0xf]
        %v534 = vld [vmem:[%s5 + $0x3c] sm:$0xf]
        %v535 = vld [vmem:[%s5 + $0x40] sm:$0xf]
        %v536 = vld [vmem:[%s5 + $0x44] sm:$0xf]
        %v537 = vld [vmem:[%s5 + $0x48] sm:$0xf]
        %v538 = vld [vmem:[%s5 + $0x4c] sm:$0xf]
        %v539 = vld [vmem:[%s5 + $0x50] sm:$0xf]
        %v540 = vld [vmem:[%s5 + $0x54] sm:$0xf]
        %v541 = vld [vmem:[%s5 + $0x58] sm:$0xf]
        %v542 = vld [vmem:[%s5 + $0x5c] sm:$0xf]
        %v543 = vld [vmem:[%s5 + $0x60] sm:$0xf]
        %v544 = vld [vmem:[%s5 + $0x64] sm:$0xf]
        %v545 = vld [vmem:[%s5 + $0x68] sm:$0xf]
        %v546 = vld [vmem:[%s5 + $0x6c] sm:$0xf]
        %v547 = vld [vmem:[%s5 + $0x70] sm:$0xf]
        %v548 = vld [vmem:[%s5 + $0x74] sm:$0xf]
        %v549 = vld [vmem:[%s5 + $0x78] sm:$0xf]
        %v550 = vld [vmem:[%s5 + $0x7c] sm:$0xf]
        %v583 = vunpack.c.l.b16 %v519
        %v584 = vunpack.c.l.b16 %v520
        %v585 = vunpack.c.l.b16 %v521
        %v586 = vunpack.c.l.b16 %v522
        %v587 = vunpack.c.l.b16 %v523
        %v588 = vunpack.c.l.b16 %v524
        %v589 = vunpack.c.l.b16 %v525
        %v590 = vunpack.c.l.b16 %v526
        %v591 = vunpack.c.l.b16 %v527
        %v592 = vunpack.c.l.b16 %v528
        %v593 = vunpack.c.l.b16 %v529
        %v594 = vunpack.c.l.b16 %v530
        %v595 = vunpack.c.l.b16 %v531
        %v596 = vunpack.c.l.b16 %v532
        %v597 = vunpack.c.l.b16 %v533
        %v598 = vunpack.c.l.b16 %v534
        %v599 = vunpack.c.l.b16 %v535
        %v600 = vunpack.c.l.b16 %v536
        %v601 = vunpack.c.l.b16 %v537
        %v602 = vunpack.c.l.b16 %v538
        %v603 = vunpack.c.l.b16 %v539
        %v604 = vunpack.c.l.b16 %v540
        %v605 = vunpack.c.l.b16 %v541
        %v606 = vunpack.c.l.b16 %v542
        %v607 = vunpack.c.l.b16 %v543
        %v608 = vunpack.c.l.b16 %v544
        %v609 = vunpack.c.l.b16 %v545
        %v610 = vunpack.c.l.b16 %v546
        %v611 = vunpack.c.l.b16 %v547
        %v612 = vunpack.c.l.b16 %v548
        %v613 = vunpack.c.l.b16 %v549
        %v614 = vunpack.c.l.b16 %v550
        %v615 = vpack.c.b16 %v584, %v583
        %v616 = vpack.c.b16 %v586, %v585
        %v617 = vpack.c.b16 %v588, %v587
        %v618 = vpack.c.b16 %v590, %v589
        %v619 = vpack.c.b16 %v592, %v591
        %v620 = vpack.c.b16 %v594, %v593
        %v621 = vpack.c.b16 %v596, %v595
        %v622 = vpack.c.b16 %v598, %v597
        %v623 = vpack.c.b16 %v600, %v599
        %v624 = vpack.c.b16 %v602, %v601
        %v625 = vpack.c.b16 %v604, %v603
        %v626 = vpack.c.b16 %v606, %v605
        %v627 = vpack.c.b16 %v608, %v607
        %v628 = vpack.c.b16 %v610, %v609
        %v629 = vpack.c.b16 %v612, %v611
        %v630 = vpack.c.b16 %v614, %v613
        %647 = vmatprep.subr.bf16.mxu0 0
        %648 = vmatpush1.bf16.msra.mxu0 %v615
        %649 = vmatprep.subr.bf16.mxu0 0
        %650 = vmatpush1.bf16.msra.mxu0 %v616
        %651 = vmatprep.subr.bf16.mxu0 0
        %652 = vmatpush1.bf16.msra.mxu0 %v617
        %653 = vmatprep.subr.bf16.mxu0 0
        %654 = vmatpush1.bf16.msra.mxu0 %v618
        %655 = vmatprep.subr.bf16.mxu0 0
        %656 = vmatpush1.bf16.msra.mxu0 %v619
        %657 = vmatprep.subr.bf16.mxu0 0
        %658 = vmatpush1.bf16.msra.mxu0 %v620
        %659 = vmatprep.subr.bf16.mxu0 0
        %660 = vmatpush1.bf16.msra.mxu0 %v621
        %661 = vmatprep.subr.bf16.mxu0 0
        %662 = vmatpush1.bf16.msra.mxu0 %v622
        %663 = vmatprep.subr.bf16.mxu0 0
        %664 = vmatpush1.bf16.msra.mxu0 %v623
        %665 = vmatprep.subr.bf16.mxu0 0
        %666 = vmatpush1.bf16.msra.mxu0 %v624
        %667 = vmatprep.subr.bf16.mxu0 0
        %668 = vmatpush1.bf16.msra.mxu0 %v625
        %669 = vmatprep.subr.bf16.mxu0 0
        %670 = vmatpush1.bf16.msra.mxu0 %v626
        %671 = vmatprep.subr.bf16.mxu0 0
        %672 = vmatpush1.bf16.msra.mxu0 %v627
        %673 = vmatprep.subr.bf16.mxu0 0
        %674 = vmatpush1.bf16.msra.mxu0 %v628
        %675 = vmatprep.subr.bf16.mxu0 0
        %676 = vmatpush1.bf16.msra.mxu0 %v629
        %677 = vmatprep.subr.bf16.mxu0 0
        %678 = vmatpush1.bf16.msra.mxu0 %v630
        %679 = vmatprep.mubr.bf16.mxu0 %v518
        %680 = vmatmul.mubr.bf16.gmra.mrb[0].mxu0 %v517
        %v681 = vpop.f32.mrb[0].mxu0
        %v682 = vadd.f32 0.0, %v681
        %v683 = vpop.f32.mrb[0].mxu0
        %v684 = vpop.f32.mrb[0].mxu0
        %v685 = vpop.f32.mrb[0].mxu0
        %686 = vdwg.mxu0
        %v687 = vadd.f32 %v329, %v682
        %v688 = vld [vmem:[%s6] sm:$0x1]
        %v690 = vlaneseq
        %v691 = vshrl.u32 %v690, 7
        %v692 = vsub.s32 0, %v691
        %v693 = vrot.slane %v688, %v692
        %v695 = vadd.f32 %v687, %v693
        %v696 = vld [vmem:[%s7] sm:$0x1]
        %v697 = vld [vmem:[%s8] sm:$0x1]
        %698 = vadd.xlane.f32.xlu0 %v695
        %v699 = vpop.xlane.xlu0 %698
        %v700 = vmul.f32 %v699, %v334
        %v701 = vsub.f32 %v695, %v700
        %v702 = vmul.f32 %v701, %v701
        %703 = vadd.xlane.f32.xlu0 %v702
        %v704 = vpop.xlane.xlu0 %703
        %v705 = vmul.f32 %v704, 0.007874016
        %v706 = vrsqrt.pop %v705
        %v707 = vmul.f32 %v705, %v706
        %vm708 = vcmp.eq.f32.partialorder %v705, inf
        %v709 = vsel %vm708, %v705, %v707
        %vm710 = vcmp.eq.f32.partialorder %v705, 0.0
        %v711 = vand.u32 %v705, 2147483648
        %v712 = vsel %vm710, %v711, %v709
        %v714 = vlaneseq
        %v715 = vshrl.u32 %v714, 7
        %v716 = vsub.s32 0, %v715
        %v717 = vrot.slane %v696, %v716
        %v719 = vmul.f32 %v717, %v701
        %v720 = vadd.f32 %v712, 1e-06
        %v721 = vrcp.pop %v720
        %v722 = vmul.f32 %v719, %v721
        %v724 = vlaneseq
        %v725 = vshrl.u32 %v724, 7
        %v726 = vsub.s32 0, %v725
        %v727 = vrot.slane %v697, %v726
        %v729 = vadd.f32 %v722, %v727
        %730 = vst [vmem:[%s323] sm:$0xff] %v729
        %s731 = sand.u32 %s225, 1
        %s732 = scalar_lea.sflag [#allocation3], %s731
        %s733 = sand.u32 %s225, 1
        %s734 = smul.addr %s733, 8
        %s735 = scalar_lea.vmem [#allocation2], %s734
        // Predicated region
        $region57: #{decoder_forward.11} parent=55 // pred_check
          %p736 = pneg %p235
        $region58: #{decoder_forward.11} parent=55 // pred_check_branch
          %738 = sbr.rel (%p736) target = $region60
        $region59: #{decoder_forward.11} parent=55 // pred_region
          %s740 = ssub.s32 128, 128
          %741 = vsyncadd %s732, %s740
          %s742 = smul.addr %s23, 128
          %s743 = scalar_lea.hbm %s9, %s742
          %s745 = sshll.u32 %s735, 4
          %s746 = int_to_ptr.vmem [resolvable:$true] %s745
          %748 = dma.vmem_to_hbm [thread:$0]  %s746, 128, %s743, %s732
        $region60: #{decoder_forward.11} parent=55 // pred_fallthru
          _
      $region56: #{decoder_forward.11} parent=5 // pred_fallthru
        _
      %p749 = scmp.le.s32.totalorder 2, %s18
      // Predicated region
      $region61: #{decoder_forward.11} parent=5 // pred_check
        %p750 = pneg %p749
      $region62: #{decoder_forward.11} parent=5 // pred_check_branch
        %752 = sbr.rel (%p750) target = $region64
      $region63: #{decoder_forward.11} parent=5 // pred_region
        %s753 = ssub.s32 %s18, 2
        // Predicated region
        $region65: #{decoder_forward.11} parent=63 // pred_check
          %p754 = pneg %p241
        $region66: #{decoder_forward.11} parent=63 // pred_check_branch
          %756 = sbr.rel (%p754) target = $region68
        $region67: #{decoder_forward.11} parent=63 // pred_region
          %s757 = sand.u32 %s226, 1
          %s758 = scalar_lea.sflag [#allocation3], %s757
          %s759 = sand.u32 %s226, 1
          %s760 = smul.addr %s759, 8
          %s761 = scalar_lea.vmem [#allocation2], %s760
          %762 = dma.done %s758, 128
        $region68: #{decoder_forward.11} parent=63 // pred_fallthru
          _
      $region64: #{decoder_forward.11} parent=5 // pred_fallthru
        _
    $region6: #{decoder_forward.11} parent=1 // loop_footer
      %s22 = sadd.s32 1, %s18
    $region7: #{decoder_forward.11} parent=1 // loop_footer_branch
      %17 = sbr.rel target = $region3
    $region8: #{decoder_forward.11} parent=1 // loop_exit
      _
    %763 = vsyncpa [#allocation3], 1
    %s764 = scalar_lea.sflag [#allocation3], 1
    %765 = vsyncpa %s764, 1

</llo_original>
